<compile_context>
chip_gen: v5e
topology: v5e:2x2
jax: 0.10.0
libtpu: 0.0.40
codegen_flags: <defaults>
</compile_context>

<pallas_src>
import math

import jax
import jax.numpy as jnp
import numpy as np
from jax.experimental import pallas as pl
from jax.experimental.pallas import tpu as pltpu

# ----------------------------------------------------------------------------
# Configuration (small, consistent with the module: num_patches must be > 16)
# ----------------------------------------------------------------------------
IMAGE_SIZE = 32
PATCH_SIZE = 4
CHANNELS = 3
DIM = 32
DEPTH = 2
HEADS = 4
DIM_HEAD = 8
MLP_DIM = 64
NUM_NOISE = 2
BATCH = 2

GRID_HW = IMAGE_SIZE // PATCH_SIZE              # 8
NUM_PATCHES = GRID_HW * GRID_HW                 # 64  (> MIN_NUM_PATCHES = 16)
PATCH_DIM = CHANNELS * PATCH_SIZE * PATCH_SIZE  # 48
INNER = HEADS * DIM_HEAD                        # 32
N_TOT = NUM_PATCHES + NUM_NOISE                 # 66 real tokens per batch element
TOK_PAD = 72                                    # per-batch token block, 8-aligned
TOK_TOTAL = BATCH * TOK_PAD                     # 144 rows in the fused token matrix
OUT_LANES = 128                                 # lane-dense output width (>= PATCH_DIM)
SCALE = DIM ** (-0.5)                           # PyTorch scales by dim, not dim_head
LN_EPS = 1e-5
NEG_BIAS = -1e30                                # Python float (no captured jnp consts)
F32 = jnp.float32
BF16 = jnp.bfloat16

# per-layer weight slab layout (everything at lane offset 0, 8-aligned rows)
SLAB_L = 168
R_WQKV = 0       # (DIM, 3*INNER)      rows 0..31,  cols 0..95   (Q cols pre-scaled)
R_WOUT = 32      # (INNER, DIM)        rows 32..63, cols 0..31
R_WFF1 = 64      # (DIM, MLP_DIM)      rows 64..95, cols 0..63
R_WFF2 = 96      # (MLP_DIM, DIM)      rows 96..159, cols 0..31
R_LN1G = 160
R_LN1B = 161
R_BOUT = 162
R_LN2G = 163
R_LN2B = 164
R_BFF1 = 165
R_BFF2 = 166     # row 167 unused (padding)

# misc slab layout
MISC_ROWS = 88
R_WPE = 0                      # (PATCH_DIM, DIM)        rows 0..47,  cols 0..31
R_WEP = PATCH_DIM              # (DIM, OUT_LANES)        rows 48..79  (cols >=48 zero)
R_BEP = PATCH_DIM + DIM        # (1, OUT_LANES)          row 80
R_KBIAS = PATCH_DIM + DIM + 1  # (1, OUT_LANES) key bias row 81: 0 valid / -1e30 pad


# ----------------------------------------------------------------------------
# Elementwise helpers
# ----------------------------------------------------------------------------
def _layernorm(x, gamma, beta):
    # single-pass variance: E[x^2] - mean^2 (two independent lane reductions)
    mu = jnp.mean(x, axis=-1, keepdims=True)
    ms = jnp.mean(x * x, axis=-1, keepdims=True)
    var = ms - mu * mu
    return (x - mu) * jax.lax.rsqrt(var + LN_EPS) * gamma + beta


def _gelu_tanh(x):
    # tanh-GELU: runs on the EUP instead of a long VALU erf polynomial chain.
    c = math.sqrt(2.0 / math.pi)
    return 0.5 * x * (1.0 + jnp.tanh(c * (x + 0.044715 * x * x * x)))


def _gelu_exact(x):  # reference only (matches PyTorch nn.GELU default)
    return 0.5 * x * (1.0 + jax.lax.erf(x / math.sqrt(2.0)))


# ----------------------------------------------------------------------------
# Pallas kernel: full ExemplarTransformer forward, batch fused into tokens
# ----------------------------------------------------------------------------
def exemplar_transformer_kernel(patches_ref, add_ref, misc_ref, slab_ref, out_ref):
    # patch_to_embedding for all 144 rows (noise/pad rows hold zero patches),
    # then add (b_pe + pos) for patch rows / (noise + pos) for noise rows.
    w_pe = misc_ref[R_WPE:R_WPE + PATCH_DIM, 0:DIM]                       # bf16
    x = (jnp.dot(patches_ref[...], w_pe, preferred_element_type=F32)
         + add_ref[...].astype(F32))                                      # (144,32) f32

    # Additive key bias: 0 for valid key columns, -1e30 for pad columns 66..71.
    key_bias = misc_ref[R_KBIAS:R_KBIAS + 1, 0:TOK_PAD].astype(F32)       # (1, 72)

    # ones column used to fuse the softmax denominator into the AV matmul
    ones_col = jnp.ones((TOK_PAD, 1), BF16)

    for l in range(DEPTH):
        base = l * SLAB_L

        # ---- Residual(PreNorm(Attention)) ----
        ln1_g = slab_ref[base + R_LN1G:base + R_LN1G + 1, 0:DIM].astype(F32)
        ln1_b = slab_ref[base + R_LN1B:base + R_LN1B + 1, 0:DIM].astype(F32)
        w_qkv = slab_ref[base + R_WQKV:base + R_WQKV + DIM, 0:3 * INNER]   # bf16
        w_out = slab_ref[base + R_WOUT:base + R_WOUT + INNER, 0:DIM]       # bf16
        b_out = slab_ref[base + R_BOUT:base + R_BOUT + 1, 0:DIM].astype(F32)

        h = _layernorm(x, ln1_g, ln1_b).astype(BF16)
        qkv = jnp.dot(h, w_qkv, preferred_element_type=F32).astype(BF16)   # (144, 96)

        attn_blocks = []
        for b in range(BATCH):                                             # per-batch attn
            r0 = b * TOK_PAD
            qb = qkv[r0:r0 + TOK_PAD, 0 * INNER:1 * INNER]                 # already * SCALE
            kb = qkv[r0:r0 + TOK_PAD, 1 * INNER:2 * INNER]
            vb = qkv[r0:r0 + TOK_PAD, 2 * INNER:3 * INNER]
            o_acc = jnp.zeros((TOK_PAD, DIM), F32)
            for hd in range(HEADS):
                lo = hd * DIM_HEAD
                qh = qb[:, lo:lo + DIM_HEAD]
                kh = kb[:, lo:lo + DIM_HEAD]
                vh = vb[:, lo:lo + DIM_HEAD]
                dots = jax.lax.dot_general(qh, kh, (((1,), (1,)), ((), ())),
                                           preferred_element_type=F32)     # (72,72) f32
                dots = dots + key_bias                                      # mask pad keys
                dots = dots - jnp.max(dots, axis=-1, keepdims=True)
                e = jnp.exp(dots).astype(BF16)
                # fuse softmax denominator into the AV matmul: e @ [v | 1]
                v_aug = jnp.concatenate([vh, ones_col], axis=1)             # (72, 9)
                hv_aug = jnp.dot(e, v_aug, preferred_element_type=F32)      # (72, 9)
                inv = pl.reciprocal(hv_aug[:, DIM_HEAD:DIM_HEAD + 1], approx=True)
                hv = (hv_aug[:, 0:DIM_HEAD] * inv).astype(BF16)             # (72, 8)
                # accumulate the output projection per head (no lane concat)
                o_acc = o_acc + jnp.dot(hv, w_out[lo:lo + DIM_HEAD, :],
                                        preferred_element_type=F32)
            attn_blocks.append(o_acc)
        attn_out = jnp.concatenate(attn_blocks, axis=0)                     # (144,32) f32
        x = x + attn_out + b_out

        # ---- Residual(PreNorm(FeedForward)) ----
        ln2_g = slab_ref[base + R_LN2G:base + R_LN2G + 1, 0:DIM].astype(F32)
        ln2_b = slab_ref[base + R_LN2B:base + R_LN2B + 1, 0:DIM].astype(F32)
        w_ff1 = slab_ref[base + R_WFF1:base + R_WFF1 + DIM, 0:MLP_DIM]      # bf16
        b_ff1 = slab_ref[base + R_BFF1:base + R_BFF1 + 1, 0:MLP_DIM].astype(F32)
        w_ff2 = slab_ref[base + R_WFF2:base + R_WFF2 + MLP_DIM, 0:DIM]      # bf16
        b_ff2 = slab_ref[base + R_BFF2:base + R_BFF2 + 1, 0:DIM].astype(F32)

        h2 = _layernorm(x, ln2_g, ln2_b).astype(BF16)
        h2 = jnp.dot(h2, w_ff1, preferred_element_type=F32) + b_ff1
        h2 = _gelu_tanh(h2).astype(BF16)
        h2 = jnp.dot(h2, w_ff2, preferred_element_type=F32) + b_ff2
        x = x + h2

    # embedding_to_patch on all rows (pad/noise rows discarded by the wrapper).
    # w_ep/b_ep are zero-padded to 128 lanes -> unmasked, lane-dense store.
    w_ep = misc_ref[R_WEP:R_WEP + DIM, :]                                   # bf16
    b_ep = misc_ref[R_BEP:R_BEP + 1, :].astype(F32)
    out_ref[...] = jnp.dot(x.astype(BF16), w_ep, preferred_element_type=F32) + b_ep


# ----------------------------------------------------------------------------
# Wrapper: patchify / operand packing (glue), pallas_call, un-patchify (glue)
# ----------------------------------------------------------------------------
def _pack_operands(params, noise_token):
    # per-layer weight slab (DEPTH*168, 128), built in f32 then stored as bf16
    slab = jnp.zeros((DEPTH * SLAB_L, OUT_LANES), F32)
    for l in range(DEPTH):
        base = l * SLAB_L
        wq = params["w_qkv"][l]
        wq = wq.at[:, :INNER].multiply(SCALE)      # fold attention scale into Q columns
        slab = slab.at[base + R_WQKV:base + R_WQKV + DIM, 0:3 * INNER].set(wq)
        slab = slab.at[base + R_WOUT:base + R_WOUT + INNER, 0:DIM].set(params["w_out"][l])
        slab = slab.at[base + R_WFF1:base + R_WFF1 + DIM, 0:MLP_DIM].set(params["w_ff1"][l])
        slab = slab.at[base + R_WFF2:base + R_WFF2 + MLP_DIM, 0:DIM].set(params["w_ff2"][l])
        slab = slab.at[base + R_LN1G, 0:DIM].set(params["ln1_g"][l, 0])
        slab = slab.at[base + R_LN1B, 0:DIM].set(params["ln1_b"][l, 0])
        slab = slab.at[base + R_BOUT, 0:DIM].set(params["b_out"][l, 0])
        slab = slab.at[base + R_LN2G, 0:DIM].set(params["ln2_g"][l, 0])
        slab = slab.at[base + R_LN2B, 0:DIM].set(params["ln2_b"][l, 0])
        slab = slab.at[base + R_BFF1, 0:MLP_DIM].set(params["b_ff1"][l, 0])
        slab = slab.at[base + R_BFF2, 0:DIM].set(params["b_ff2"][l, 0])
    slab = slab.astype(BF16)

    # misc slab: w_pe + lane-padded (to 128) w_ep / b_ep + additive key-bias row
    misc = jnp.zeros((MISC_ROWS, OUT_LANES), F32)
    misc = misc.at[R_WPE:R_WPE + PATCH_DIM, 0:DIM].set(params["w_pe"])
    misc = misc.at[R_WEP:R_WEP + DIM, 0:PATCH_DIM].set(params["w_ep"])
    misc = misc.at[R_BEP, 0:PATCH_DIM].set(params["b_ep"][0])
    lane_idx = jnp.arange(OUT_LANES, dtype=jnp.int32)
    kbias = jnp.where(lane_idx < N_TOT, 0.0, NEG_BIAS).astype(F32)
    misc = misc.at[R_KBIAS, :].set(kbias)
    misc = misc.astype(BF16)

    # per-token additive term: b_pe+pos (patch rows), noise+pos (noise rows), 0 (pad rows)
    pos_noise = params["pos"][:NUM_NOISE]
    pos_patch = params["pos"][NUM_NOISE:]
    add_block = jnp.concatenate([
        jnp.broadcast_to((pos_patch + params["b_pe"])[None], (BATCH, NUM_PATCHES, DIM)),
        pos_noise[None] + noise_token,
        jnp.zeros((BATCH, TOK_PAD - N_TOT, DIM), F32),
    ], axis=1)
    add_arr = add_block.reshape(TOK_TOTAL, DIM).astype(BF16)
    return slab, misc, add_arr


@jax.jit
def exemplar_transformer_forward(img, noise_token, params):
    b = img.shape[0]
    p = PATCH_SIZE

    # rearrange 'b c (h p1) (w p2) -> b (h w) (p1 p2 c)'
    patches = img.reshape(b, CHANNELS, GRID_HW, p, GRID_HW, p)
    patches = patches.transpose(0, 2, 4, 3, 5, 1).reshape(b, NUM_PATCHES, PATCH_DIM)
    # pad each batch block to 72 rows (noise/pad rows carry zero patches)
    patches_pad = jnp.pad(patches, ((0, 0), (0, TOK_PAD - NUM_PATCHES), (0, 0)))
    patches_pad = patches_pad.reshape(TOK_TOTAL, PATCH_DIM).astype(BF16)

    slab, misc, add_arr = _pack_operands(params, noise_token)

    # TODO(synk): on v7x, grid over batch with dimension_semantics=("parallel",)
    # would use both TensorCores; single fused step is best for v5e/v6e.
    out = pl.pallas_call(
        exemplar_transformer_kernel,
        out_shape=jax.ShapeDtypeStruct((TOK_TOTAL, OUT_LANES), F32),
        grid=(1,),
        in_specs=[
            pl.BlockSpec((TOK_TOTAL, PATCH_DIM), lambda i: (0, 0)),
            pl.BlockSpec((TOK_TOTAL, DIM), lambda i: (0, 0)),
            pl.BlockSpec((MISC_ROWS, OUT_LANES), lambda i: (0, 0)),
            pl.BlockSpec((DEPTH * SLAB_L, OUT_LANES), lambda i: (0, 0)),
        ],
        out_specs=pl.BlockSpec((TOK_TOTAL, OUT_LANES), lambda i: (0, 0)),
        compiler_params=pltpu.CompilerParams(
            dimension_semantics=("arbitrary",),
        ),
    )(patches_pad, add_arr, misc, slab)

    # drop pad/noise rows and the zero lanes, then
    # rearrange 'b (h w) (p1 p2 c) -> b c (h p1) (w p2)'
    y = out.reshape(BATCH, TOK_PAD, OUT_LANES)[:, :NUM_PATCHES, :PATCH_DIM]
    y = y.reshape(b, GRID_HW, GRID_HW, p, p, CHANNELS)
    return y.transpose(0, 5, 1, 3, 2, 4).reshape(b, CHANNELS, IMAGE_SIZE, IMAGE_SIZE)


# ----------------------------------------------------------------------------
# Deterministic parameter init (shapes follow the module's __init__)
# ----------------------------------------------------------------------------
def init_params(key):
    ks = jax.random.split(key, 12)

    def w(k, shape, scale=0.02):
        return (scale * jax.random.normal(k, shape)).astype(F32)

    return dict(
        pos=w(ks[0], (N_TOT, DIM), 1.0),                 # nn.Parameter(torch.randn(...))
        w_pe=w(ks[1], (PATCH_DIM, DIM)),                 # patch_to_embedding
        b_pe=w(ks[2], (1, DIM)),
        ln1_g=jnp.ones((DEPTH, 1, DIM), F32),
        ln1_b=jnp.zeros((DEPTH, 1, DIM), F32),
        w_qkv=w(ks[3], (DEPTH, DIM, 3 * INNER)),         # Attention.to_qkv (no bias)
        w_out=w(ks[4], (DEPTH, INNER, DIM)),             # Attention.to_out[0]
        b_out=w(ks[5], (DEPTH, 1, DIM)),
        ln2_g=jnp.ones((DEPTH, 1, DIM), F32),
        ln2_b=jnp.zeros((DEPTH, 1, DIM), F32),
        w_ff1=w(ks[6], (DEPTH, DIM, MLP_DIM)),           # FeedForward linear 1
        b_ff1=w(ks[7], (DEPTH, 1, MLP_DIM)),
        w_ff2=w(ks[8], (DEPTH, MLP_DIM, DIM)),           # FeedForward linear 2
        b_ff2=w(ks[9], (DEPTH, 1, DIM)),
        w_ep=w(ks[10], (DIM, PATCH_DIM)),                # embedding_to_patch
        b_ep=w(ks[11], (1, PATCH_DIM)),
    )


# ----------------------------------------------------------------------------
# Pure-JAX reference (mirrors the PyTorch forward, PyTorch token order, f32)
# ----------------------------------------------------------------------------
def reference_forward(img, noise_token, params):
    b = img.shape[0]
    p = PATCH_SIZE
    patches = img.reshape(b, CHANNELS, GRID_HW, p, GRID_HW, p)
    patches = patches.transpose(0, 2, 4, 3, 5, 1).reshape(b, NUM_PATCHES, PATCH_DIM)
    x = patches @ params["w_pe"] + params["b_pe"]
    x = jnp.concatenate([noise_token, x], axis=1) + params["pos"][None]
    for l in range(DEPTH):
        h = _layernorm(x, params["ln1_g"][l], params["ln1_b"][l])
        qkv = h @ params["w_qkv"][l]
        q, k, v = jnp.split(qkv, 3, axis=-1)
        q = q.reshape(b, N_TOT, HEADS, DIM_HEAD).transpose(0, 2, 1, 3)
        k = k.reshape(b, N_TOT, HEADS, DIM_HEAD).transpose(0, 2, 1, 3)
        v = v.reshape(b, N_TOT, HEADS, DIM_HEAD).transpose(0, 2, 1, 3)
        dots = jnp.einsum("bhid,bhjd->bhij", q, k) * SCALE
        attn = jax.nn.softmax(dots, axis=-1)
        o = jnp.einsum("bhij,bhjd->bhid", attn, v)
        o = o.transpose(0, 2, 1, 3).reshape(b, N_TOT, INNER)
        x = x + (o @ params["w_out"][l] + params["b_out"][l])
        h2 = _layernorm(x, params["ln2_g"][l], params["ln2_b"][l])
        h2 = _gelu_exact(h2 @ params["w_ff1"][l] + params["b_ff1"][l])
        x = x + (h2 @ params["w_ff2"][l] + params["b_ff2"][l])
    y = x[:, NUM_NOISE:] @ params["w_ep"] + params["b_ep"]
    y = y.reshape(b, GRID_HW, GRID_HW, p, p, CHANNELS)
    return y.transpose(0, 5, 1, 3, 2, 4).reshape(b, CHANNELS, IMAGE_SIZE, IMAGE_SIZE)


if __name__ == "__main__":
    key = jax.random.PRNGKey(0)
    k_img, k_noise, k_par = jax.random.split(key, 3)
    img = jax.random.normal(k_img, (BATCH, CHANNELS, IMAGE_SIZE, IMAGE_SIZE), F32)
    noise_token = jax.random.normal(k_noise, (BATCH, NUM_NOISE, DIM), F32)
    params = init_params(k_par)

    out = jax.block_until_ready(exemplar_transformer_forward(img, noise_token, params))
    ref = jax.block_until_ready(reference_forward(img, noise_token, params))

    assert out.shape == (BATCH, CHANNELS, IMAGE_SIZE, IMAGE_SIZE)
    np.testing.assert_allclose(np.asarray(out), np.asarray(ref), rtol=2e-2, atol=2e-2)
    print("KERNEL_OK")
</pallas_src>

<mosaic_0001>
module attributes {stable_mosaic.version = 11 : i64} {
  func.func @exemplar_transformer_kernel(%arg0: i32, %arg1: memref<144x48xbf16, #tpu.memory_space<vmem>>, %arg2: memref<144x32xbf16, #tpu.memory_space<vmem>>, %arg3: memref<88x128xbf16, #tpu.memory_space<vmem>>, %arg4: memref<336x128xbf16, #tpu.memory_space<vmem>>, %arg5: memref<144x128xf32, #tpu.memory_space<vmem>>) attributes {dimension_semantics = [#tpu.dimension_semantics<arbitrary>], iteration_bounds = array<i64: 1>, scalar_prefetch = 0 : i64, scratch_operands = 0 : i64, tpu.core_type = #tpu.core_type<tc>, window_params = [{pipeline_mode = #tpu.pipeline_mode<synchronous>, transform_indices = @transform_0, window_bounds = array<i64: 144, 48>}, {pipeline_mode = #tpu.pipeline_mode<synchronous>, transform_indices = @transform_1, window_bounds = array<i64: 144, 32>}, {pipeline_mode = #tpu.pipeline_mode<synchronous>, transform_indices = @transform_2, window_bounds = array<i64: 88, 128>}, {pipeline_mode = #tpu.pipeline_mode<synchronous>, transform_indices = @transform_3, window_bounds = array<i64: 336, 128>}, {pipeline_mode = #tpu.pipeline_mode<synchronous>, transform_indices = @transform_4, window_bounds = array<i64: 144, 128>}]} {
    %c0 = arith.constant 0 : index
    %c0_0 = arith.constant 0 : index
    %0 = vector.load %arg3[%c0, %c0_0] : memref<88x128xbf16, #tpu.memory_space<vmem>>, vector<48x32xbf16>
    %c0_1 = arith.constant 0 : index
    %c0_2 = arith.constant 0 : index
    %1 = vector.load %arg1[%c0_1, %c0_2] : memref<144x48xbf16, #tpu.memory_space<vmem>>, vector<144x48xbf16>
    %cst = arith.constant dense<0.000000e+00> : vector<144x32xf32>
    %2 = tpu.matmul %1, %0, %cst {dimension_numbers = #tpu.dot_dimension_numbers<[1], [0], [0], [1], [0, 0, 1, 1], [], []>} : vector<144x48xbf16>, vector<48x32xbf16>, vector<144x32xf32> -> vector<144x32xf32>
    %c0_3 = arith.constant 0 : index
    %c0_4 = arith.constant 0 : index
    %3 = vector.load %arg2[%c0_3, %c0_4] : memref<144x32xbf16, #tpu.memory_space<vmem>>, vector<144x32xbf16>
    %4 = arith.extf %3 : vector<144x32xbf16> to vector<144x32xf32>
    %5 = arith.addf %2, %4 : vector<144x32xf32>
    %c81 = arith.constant 81 : index
    %c0_5 = arith.constant 0 : index
    %6 = vector.load %arg3[%c81, %c0_5] : memref<88x128xbf16, #tpu.memory_space<vmem>>, vector<1x72xbf16>
    %7 = arith.extf %6 : vector<1x72xbf16> to vector<1x72xf32>
    %cst_6 = arith.constant 1.000000e+00 : bf16
    %8 = vector.broadcast %cst_6 : bf16 to vector<72x1xbf16>
    %c160 = arith.constant 160 : index
    %c0_7 = arith.constant 0 : index
    %9 = vector.load %arg4[%c160, %c0_7] : memref<336x128xbf16, #tpu.memory_space<vmem>>, vector<1x32xbf16>
    %10 = arith.extf %9 : vector<1x32xbf16> to vector<1x32xf32>
    %c161 = arith.constant 161 : index
    %c0_8 = arith.constant 0 : index
    %11 = vector.load %arg4[%c161, %c0_8] : memref<336x128xbf16, #tpu.memory_space<vmem>>, vector<1x32xbf16>
    %12 = arith.extf %11 : vector<1x32xbf16> to vector<1x32xf32>
    %c0_9 = arith.constant 0 : index
    %c0_10 = arith.constant 0 : index
    %13 = vector.load %arg4[%c0_9, %c0_10] : memref<336x128xbf16, #tpu.memory_space<vmem>>, vector<32x96xbf16>
    %c32 = arith.constant 32 : index
    %c0_11 = arith.constant 0 : index
    %14 = vector.load %arg4[%c32, %c0_11] : memref<336x128xbf16, #tpu.memory_space<vmem>>, vector<32x32xbf16>
    %c162 = arith.constant 162 : index
    %c0_12 = arith.constant 0 : index
    %15 = vector.load %arg4[%c162, %c0_12] : memref<336x128xbf16, #tpu.memory_space<vmem>>, vector<1x32xbf16>
    %16 = arith.extf %15 : vector<1x32xbf16> to vector<1x32xf32>
    %cst_13 = arith.constant dense<0.000000e+00> : vector<144xf32>
    %17 = vector.multi_reduction <add>, %5, %cst_13 [1] : vector<144x32xf32> to vector<144xf32>
    %18 = vector.shape_cast %17 : vector<144xf32> to vector<144x1xf32>
    %cst_14 = arith.constant 3.200000e+01 : f32
    %19 = vector.broadcast %cst_14 : f32 to vector<144x1xf32>
    %20 = arith.divf %18, %19 : vector<144x1xf32>
    %21 = arith.mulf %5, %5 : vector<144x32xf32>
    %cst_15 = arith.constant dense<0.000000e+00> : vector<144xf32>
    %22 = vector.multi_reduction <add>, %21, %cst_15 [1] : vector<144x32xf32> to vector<144xf32>
    %23 = vector.shape_cast %22 : vector<144xf32> to vector<144x1xf32>
    %cst_16 = arith.constant 3.200000e+01 : f32
    %24 = vector.broadcast %cst_16 : f32 to vector<144x1xf32>
    %25 = arith.divf %23, %24 : vector<144x1xf32>
    %26 = arith.mulf %20, %20 : vector<144x1xf32>
    %27 = arith.subf %25, %26 : vector<144x1xf32>
    %28 = vector.broadcast %20 : vector<144x1xf32> to vector<144x32xf32>
    %29 = arith.subf %5, %28 : vector<144x32xf32>
    %cst_17 = arith.constant 9.99999974E-6 : f32
    %30 = vector.broadcast %cst_17 : f32 to vector<144x1xf32>
    %31 = arith.addf %27, %30 : vector<144x1xf32>
    %32 = math.rsqrt %31 : vector<144x1xf32>
    %33 = vector.broadcast %32 : vector<144x1xf32> to vector<144x32xf32>
    %34 = arith.mulf %29, %33 : vector<144x32xf32>
    %35 = vector.broadcast %10 : vector<1x32xf32> to vector<144x32xf32>
    %36 = arith.mulf %34, %35 : vector<144x32xf32>
    %37 = vector.broadcast %12 : vector<1x32xf32> to vector<144x32xf32>
    %38 = arith.addf %36, %37 : vector<144x32xf32>
    %39 = arith.truncf %38 : vector<144x32xf32> to vector<144x32xbf16>
    %cst_18 = arith.constant dense<0.000000e+00> : vector<144x96xf32>
    %40 = tpu.matmul %39, %13, %cst_18 {dimension_numbers = #tpu.dot_dimension_numbers<[1], [0], [0], [1], [0, 0, 1, 1], [], []>} : vector<144x32xbf16>, vector<32x96xbf16>, vector<144x96xf32> -> vector<144x96xf32>
    %41 = arith.truncf %40 : vector<144x96xf32> to vector<144x96xbf16>
    %42 = vector.extract_strided_slice %41 {offsets = [0, 0], sizes = [72, 32], strides = [1, 1]} : vector<144x96xbf16> to vector<72x32xbf16>
    %43 = vector.extract_strided_slice %41 {offsets = [0, 32], sizes = [72, 32], strides = [1, 1]} : vector<144x96xbf16> to vector<72x32xbf16>
    %44 = vector.extract_strided_slice %41 {offsets = [0, 64], sizes = [72, 32], strides = [1, 1]} : vector<144x96xbf16> to vector<72x32xbf16>
    %cst_19 = arith.constant 0.000000e+00 : f32
    %45 = vector.broadcast %cst_19 : f32 to vector<72x32xf32>
    %46 = vector.extract_strided_slice %42 {offsets = [0, 0], sizes = [72, 8], strides = [1, 1]} : vector<72x32xbf16> to vector<72x8xbf16>
    %47 = vector.extract_strided_slice %43 {offsets = [0, 0], sizes = [72, 8], strides = [1, 1]} : vector<72x32xbf16> to vector<72x8xbf16>
    %48 = vector.extract_strided_slice %44 {offsets = [0, 0], sizes = [72, 8], strides = [1, 1]} : vector<72x32xbf16> to vector<72x8xbf16>
    %cst_20 = arith.constant dense<0.000000e+00> : vector<72x72xf32>
    %49 = tpu.matmul %46, %47, %cst_20 {dimension_numbers = #tpu.dot_dimension_numbers<[1], [1], [0], [0], [0, 0, 1, 0], [], []>} : vector<72x8xbf16>, vector<72x8xbf16>, vector<72x72xf32> -> vector<72x72xf32>
    %50 = vector.broadcast %7 : vector<1x72xf32> to vector<72x72xf32>
    %51 = arith.addf %49, %50 : vector<72x72xf32>
    %cst_21 = arith.constant dense<0xFF800000> : vector<72xf32>
    %52 = vector.multi_reduction <maximumf>, %51, %cst_21 [1] : vector<72x72xf32> to vector<72xf32>
    %53 = vector.shape_cast %52 : vector<72xf32> to vector<72x1xf32>
    %54 = vector.broadcast %53 : vector<72x1xf32> to vector<72x72xf32>
    %55 = arith.subf %51, %54 : vector<72x72xf32>
    %56 = math.exp %55 : vector<72x72xf32>
    %57 = arith.truncf %56 : vector<72x72xf32> to vector<72x72xbf16>
    %58 = tpu.concatenate %48, %8 in 1 : vector<72x8xbf16>, vector<72x1xbf16> -> vector<72x9xbf16>
    %cst_22 = arith.constant dense<0.000000e+00> : vector<72x9xf32>
    %59 = tpu.matmul %57, %58, %cst_22 {dimension_numbers = #tpu.dot_dimension_numbers<[1], [0], [0], [1], [0, 0, 1, 1], [], []>} : vector<72x72xbf16>, vector<72x9xbf16>, vector<72x9xf32> -> vector<72x9xf32>
    %60 = vector.extract_strided_slice %59 {offsets = [0, 8], sizes = [72, 1], strides = [1, 1]} : vector<72x9xf32> to vector<72x1xf32>
    %61 = tpu.reciprocal %60 {approx = true} : vector<72x1xf32> -> vector<72x1xf32>
    %62 = vector.extract_strided_slice %59 {offsets = [0, 0], sizes = [72, 8], strides = [1, 1]} : vector<72x9xf32> to vector<72x8xf32>
    %63 = vector.broadcast %61 : vector<72x1xf32> to vector<72x8xf32>
    %64 = arith.mulf %62, %63 : vector<72x8xf32>
    %65 = arith.truncf %64 : vector<72x8xf32> to vector<72x8xbf16>
    %66 = vector.extract_strided_slice %14 {offsets = [0, 0], sizes = [8, 32], strides = [1, 1]} : vector<32x32xbf16> to vector<8x32xbf16>
    %cst_23 = arith.constant dense<0.000000e+00> : vector<72x32xf32>
    %67 = tpu.matmul %65, %66, %cst_23 {dimension_numbers = #tpu.dot_dimension_numbers<[1], [0], [0], [1], [0, 0, 1, 1], [], []>} : vector<72x8xbf16>, vector<8x32xbf16>, vector<72x32xf32> -> vector<72x32xf32>
    %68 = arith.addf %45, %67 : vector<72x32xf32>
    %69 = vector.extract_strided_slice %42 {offsets = [0, 8], sizes = [72, 8], strides = [1, 1]} : vector<72x32xbf16> to vector<72x8xbf16>
    %70 = vector.extract_strided_slice %43 {offsets = [0, 8], sizes = [72, 8], strides = [1, 1]} : vector<72x32xbf16> to vector<72x8xbf16>
    %71 = vector.extract_strided_slice %44 {offsets = [0, 8], sizes = [72, 8], strides = [1, 1]} : vector<72x32xbf16> to vector<72x8xbf16>
    %cst_24 = arith.constant dense<0.000000e+00> : vector<72x72xf32>
    %72 = tpu.matmul %69, %70, %cst_24 {dimension_numbers = #tpu.dot_dimension_numbers<[1], [1], [0], [0], [0, 0, 1, 0], [], []>} : vector<72x8xbf16>, vector<72x8xbf16>, vector<72x72xf32> -> vector<72x72xf32>
    %73 = vector.broadcast %7 : vector<1x72xf32> to vector<72x72xf32>
    %74 = arith.addf %72, %73 : vector<72x72xf32>
    %cst_25 = arith.constant dense<0xFF800000> : vector<72xf32>
    %75 = vector.multi_reduction <maximumf>, %74, %cst_25 [1] : vector<72x72xf32> to vector<72xf32>
    %76 = vector.shape_cast %75 : vector<72xf32> to vector<72x1xf32>
    %77 = vector.broadcast %76 : vector<72x1xf32> to vector<72x72xf32>
    %78 = arith.subf %74, %77 : vector<72x72xf32>
    %79 = math.exp %78 : vector<72x72xf32>
    %80 = arith.truncf %79 : vector<72x72xf32> to vector<72x72xbf16>
    %81 = tpu.concatenate %71, %8 in 1 : vector<72x8xbf16>, vector<72x1xbf16> -> vector<72x9xbf16>
    %cst_26 = arith.constant dense<0.000000e+00> : vector<72x9xf32>
    %82 = tpu.matmul %80, %81, %cst_26 {dimension_numbers = #tpu.dot_dimension_numbers<[1], [0], [0], [1], [0, 0, 1, 1], [], []>} : vector<72x72xbf16>, vector<72x9xbf16>, vector<72x9xf32> -> vector<72x9xf32>
    %83 = vector.extract_strided_slice %82 {offsets = [0, 8], sizes = [72, 1], strides = [1, 1]} : vector<72x9xf32> to vector<72x1xf32>
    %84 = tpu.reciprocal %83 {approx = true} : vector<72x1xf32> -> vector<72x1xf32>
    %85 = vector.extract_strided_slice %82 {offsets = [0, 0], sizes = [72, 8], strides = [1, 1]} : vector<72x9xf32> to vector<72x8xf32>
    %86 = vector.broadcast %84 : vector<72x1xf32> to vector<72x8xf32>
    %87 = arith.mulf %85, %86 : vector<72x8xf32>
    %88 = arith.truncf %87 : vector<72x8xf32> to vector<72x8xbf16>
    %89 = vector.extract_strided_slice %14 {offsets = [8, 0], sizes = [8, 32], strides = [1, 1]} : vector<32x32xbf16> to vector<8x32xbf16>
    %cst_27 = arith.constant dense<0.000000e+00> : vector<72x32xf32>
    %90 = tpu.matmul %88, %89, %cst_27 {dimension_numbers = #tpu.dot_dimension_numbers<[1], [0], [0], [1], [0, 0, 1, 1], [], []>} : vector<72x8xbf16>, vector<8x32xbf16>, vector<72x32xf32> -> vector<72x32xf32>
    %91 = arith.addf %68, %90 : vector<72x32xf32>
    %92 = vector.extract_strided_slice %42 {offsets = [0, 16], sizes = [72, 8], strides = [1, 1]} : vector<72x32xbf16> to vector<72x8xbf16>
    %93 = vector.extract_strided_slice %43 {offsets = [0, 16], sizes = [72, 8], strides = [1, 1]} : vector<72x32xbf16> to vector<72x8xbf16>
    %94 = vector.extract_strided_slice %44 {offsets = [0, 16], sizes = [72, 8], strides = [1, 1]} : vector<72x32xbf16> to vector<72x8xbf16>
    %cst_28 = arith.constant dense<0.000000e+00> : vector<72x72xf32>
    %95 = tpu.matmul %92, %93, %cst_28 {dimension_numbers = #tpu.dot_dimension_numbers<[1], [1], [0], [0], [0, 0, 1, 0], [], []>} : vector<72x8xbf16>, vector<72x8xbf16>, vector<72x72xf32> -> vector<72x72xf32>
    %96 = vector.broadcast %7 : vector<1x72xf32> to vector<72x72xf32>
    %97 = arith.addf %95, %96 : vector<72x72xf32>
    %cst_29 = arith.constant dense<0xFF800000> : vector<72xf32>
    %98 = vector.multi_reduction <maximumf>, %97, %cst_29 [1] : vector<72x72xf32> to vector<72xf32>
    %99 = vector.shape_cast %98 : vector<72xf32> to vector<72x1xf32>
    %100 = vector.broadcast %99 : vector<72x1xf32> to vector<72x72xf32>
    %101 = arith.subf %97, %100 : vector<72x72xf32>
    %102 = math.exp %101 : vector<72x72xf32>
    %103 = arith.truncf %102 : vector<72x72xf32> to vector<72x72xbf16>
    %104 = tpu.concatenate %94, %8 in 1 : vector<72x8xbf16>, vector<72x1xbf16> -> vector<72x9xbf16>
    %cst_30 = arith.constant dense<0.000000e+00> : vector<72x9xf32>
    %105 = tpu.matmul %103, %104, %cst_30 {dimension_numbers = #tpu.dot_dimension_numbers<[1], [0], [0], [1], [0, 0, 1, 1], [], []>} : vector<72x72xbf16>, vector<72x9xbf16>, vector<72x9xf32> -> vector<72x9xf32>
    %106 = vector.extract_strided_slice %105 {offsets = [0, 8], sizes = [72, 1], strides = [1, 1]} : vector<72x9xf32> to vector<72x1xf32>
    %107 = tpu.reciprocal %106 {approx = true} : vector<72x1xf32> -> vector<72x1xf32>
    %108 = vector.extract_strided_slice %105 {offsets = [0, 0], sizes = [72, 8], strides = [1, 1]} : vector<72x9xf32> to vector<72x8xf32>
    %109 = vector.broadcast %107 : vector<72x1xf32> to vector<72x8xf32>
    %110 = arith.mulf %108, %109 : vector<72x8xf32>
    %111 = arith.truncf %110 : vector<72x8xf32> to vector<72x8xbf16>
    %112 = vector.extract_strided_slice %14 {offsets = [16, 0], sizes = [8, 32], strides = [1, 1]} : vector<32x32xbf16> to vector<8x32xbf16>
    %cst_31 = arith.constant dense<0.000000e+00> : vector<72x32xf32>
    %113 = tpu.matmul %111, %112, %cst_31 {dimension_numbers = #tpu.dot_dimension_numbers<[1], [0], [0], [1], [0, 0, 1, 1], [], []>} : vector<72x8xbf16>, vector<8x32xbf16>, vector<72x32xf32> -> vector<72x32xf32>
    %114 = arith.addf %91, %113 : vector<72x32xf32>
    %115 = vector.extract_strided_slice %42 {offsets = [0, 24], sizes = [72, 8], strides = [1, 1]} : vector<72x32xbf16> to vector<72x8xbf16>
    %116 = vector.extract_strided_slice %43 {offsets = [0, 24], sizes = [72, 8], strides = [1, 1]} : vector<72x32xbf16> to vector<72x8xbf16>
    %117 = vector.extract_strided_slice %44 {offsets = [0, 24], sizes = [72, 8], strides = [1, 1]} : vector<72x32xbf16> to vector<72x8xbf16>
    %cst_32 = arith.constant dense<0.000000e+00> : vector<72x72xf32>
    %118 = tpu.matmul %115, %116, %cst_32 {dimension_numbers = #tpu.dot_dimension_numbers<[1], [1], [0], [0], [0, 0, 1, 0], [], []>} : vector<72x8xbf16>, vector<72x8xbf16>, vector<72x72xf32> -> vector<72x72xf32>
    %119 = vector.broadcast %7 : vector<1x72xf32> to vector<72x72xf32>
    %120 = arith.addf %118, %119 : vector<72x72xf32>
    %cst_33 = arith.constant dense<0xFF800000> : vector<72xf32>
    %121 = vector.multi_reduction <maximumf>, %120, %cst_33 [1] : vector<72x72xf32> to vector<72xf32>
    %122 = vector.shape_cast %121 : vector<72xf32> to vector<72x1xf32>
    %123 = vector.broadcast %122 : vector<72x1xf32> to vector<72x72xf32>
    %124 = arith.subf %120, %123 : vector<72x72xf32>
    %125 = math.exp %124 : vector<72x72xf32>
    %126 = arith.truncf %125 : vector<72x72xf32> to vector<72x72xbf16>
    %127 = tpu.concatenate %117, %8 in 1 : vector<72x8xbf16>, vector<72x1xbf16> -> vector<72x9xbf16>
    %cst_34 = arith.constant dense<0.000000e+00> : vector<72x9xf32>
    %128 = tpu.matmul %126, %127, %cst_34 {dimension_numbers = #tpu.dot_dimension_numbers<[1], [0], [0], [1], [0, 0, 1, 1], [], []>} : vector<72x72xbf16>, vector<72x9xbf16>, vector<72x9xf32> -> vector<72x9xf32>
    %129 = vector.extract_strided_slice %128 {offsets = [0, 8], sizes = [72, 1], strides = [1, 1]} : vector<72x9xf32> to vector<72x1xf32>
    %130 = tpu.reciprocal %129 {approx = true} : vector<72x1xf32> -> vector<72x1xf32>
    %131 = vector.extract_strided_slice %128 {offsets = [0, 0], sizes = [72, 8], strides = [1, 1]} : vector<72x9xf32> to vector<72x8xf32>
    %132 = vector.broadcast %130 : vector<72x1xf32> to vector<72x8xf32>
    %133 = arith.mulf %131, %132 : vector<72x8xf32>
    %134 = arith.truncf %133 : vector<72x8xf32> to vector<72x8xbf16>
    %135 = vector.extract_strided_slice %14 {offsets = [24, 0], sizes = [8, 32], strides = [1, 1]} : vector<32x32xbf16> to vector<8x32xbf16>
    %cst_35 = arith.constant dense<0.000000e+00> : vector<72x32xf32>
    %136 = tpu.matmul %134, %135, %cst_35 {dimension_numbers = #tpu.dot_dimension_numbers<[1], [0], [0], [1], [0, 0, 1, 1], [], []>} : vector<72x8xbf16>, vector<8x32xbf16>, vector<72x32xf32> -> vector<72x32xf32>
    %137 = arith.addf %114, %136 : vector<72x32xf32>
    %138 = vector.extract_strided_slice %41 {offsets = [72, 0], sizes = [72, 32], strides = [1, 1]} : vector<144x96xbf16> to vector<72x32xbf16>
    %139 = vector.extract_strided_slice %41 {offsets = [72, 32], sizes = [72, 32], strides = [1, 1]} : vector<144x96xbf16> to vector<72x32xbf16>
    %140 = vector.extract_strided_slice %41 {offsets = [72, 64], sizes = [72, 32], strides = [1, 1]} : vector<144x96xbf16> to vector<72x32xbf16>
    %cst_36 = arith.constant 0.000000e+00 : f32
    %141 = vector.broadcast %cst_36 : f32 to vector<72x32xf32>
    %142 = vector.extract_strided_slice %138 {offsets = [0, 0], sizes = [72, 8], strides = [1, 1]} : vector<72x32xbf16> to vector<72x8xbf16>
    %143 = vector.extract_strided_slice %139 {offsets = [0, 0], sizes = [72, 8], strides = [1, 1]} : vector<72x32xbf16> to vector<72x8xbf16>
    %144 = vector.extract_strided_slice %140 {offsets = [0, 0], sizes = [72, 8], strides = [1, 1]} : vector<72x32xbf16> to vector<72x8xbf16>
    %cst_37 = arith.constant dense<0.000000e+00> : vector<72x72xf32>
    %145 = tpu.matmul %142, %143, %cst_37 {dimension_numbers = #tpu.dot_dimension_numbers<[1], [1], [0], [0], [0, 0, 1, 0], [], []>} : vector<72x8xbf16>, vector<72x8xbf16>, vector<72x72xf32> -> vector<72x72xf32>
    %146 = vector.broadcast %7 : vector<1x72xf32> to vector<72x72xf32>
    %147 = arith.addf %145, %146 : vector<72x72xf32>
    %cst_38 = arith.constant dense<0xFF800000> : vector<72xf32>
    %148 = vector.multi_reduction <maximumf>, %147, %cst_38 [1] : vector<72x72xf32> to vector<72xf32>
    %149 = vector.shape_cast %148 : vector<72xf32> to vector<72x1xf32>
    %150 = vector.broadcast %149 : vector<72x1xf32> to vector<72x72xf32>
    %151 = arith.subf %147, %150 : vector<72x72xf32>
    %152 = math.exp %151 : vector<72x72xf32>
    %153 = arith.truncf %152 : vector<72x72xf32> to vector<72x72xbf16>
    %154 = tpu.concatenate %144, %8 in 1 : vector<72x8xbf16>, vector<72x1xbf16> -> vector<72x9xbf16>
    %cst_39 = arith.constant dense<0.000000e+00> : vector<72x9xf32>
    %155 = tpu.matmul %153, %154, %cst_39 {dimension_numbers = #tpu.dot_dimension_numbers<[1], [0], [0], [1], [0, 0, 1, 1], [], []>} : vector<72x72xbf16>, vector<72x9xbf16>, vector<72x9xf32> -> vector<72x9xf32>
    %156 = vector.extract_strided_slice %155 {offsets = [0, 8], sizes = [72, 1], strides = [1, 1]} : vector<72x9xf32> to vector<72x1xf32>
    %157 = tpu.reciprocal %156 {approx = true} : vector<72x1xf32> -> vector<72x1xf32>
    %158 = vector.extract_strided_slice %155 {offsets = [0, 0], sizes = [72, 8], strides = [1, 1]} : vector<72x9xf32> to vector<72x8xf32>
    %159 = vector.broadcast %157 : vector<72x1xf32> to vector<72x8xf32>
    %160 = arith.mulf %158, %159 : vector<72x8xf32>
    %161 = arith.truncf %160 : vector<72x8xf32> to vector<72x8xbf16>
    %162 = vector.extract_strided_slice %14 {offsets = [0, 0], sizes = [8, 32], strides = [1, 1]} : vector<32x32xbf16> to vector<8x32xbf16>
    %cst_40 = arith.constant dense<0.000000e+00> : vector<72x32xf32>
    %163 = tpu.matmul %161, %162, %cst_40 {dimension_numbers = #tpu.dot_dimension_numbers<[1], [0], [0], [1], [0, 0, 1, 1], [], []>} : vector<72x8xbf16>, vector<8x32xbf16>, vector<72x32xf32> -> vector<72x32xf32>
    %164 = arith.addf %141, %163 : vector<72x32xf32>
    %165 = vector.extract_strided_slice %138 {offsets = [0, 8], sizes = [72, 8], strides = [1, 1]} : vector<72x32xbf16> to vector<72x8xbf16>
    %166 = vector.extract_strided_slice %139 {offsets = [0, 8], sizes = [72, 8], strides = [1, 1]} : vector<72x32xbf16> to vector<72x8xbf16>
    %167 = vector.extract_strided_slice %140 {offsets = [0, 8], sizes = [72, 8], strides = [1, 1]} : vector<72x32xbf16> to vector<72x8xbf16>
    %cst_41 = arith.constant dense<0.000000e+00> : vector<72x72xf32>
    %168 = tpu.matmul %165, %166, %cst_41 {dimension_numbers = #tpu.dot_dimension_numbers<[1], [1], [0], [0], [0, 0, 1, 0], [], []>} : vector<72x8xbf16>, vector<72x8xbf16>, vector<72x72xf32> -> vector<72x72xf32>
    %169 = vector.broadcast %7 : vector<1x72xf32> to vector<72x72xf32>
    %170 = arith.addf %168, %169 : vector<72x72xf32>
    %cst_42 = arith.constant dense<0xFF800000> : vector<72xf32>
    %171 = vector.multi_reduction <maximumf>, %170, %cst_42 [1] : vector<72x72xf32> to vector<72xf32>
    %172 = vector.shape_cast %171 : vector<72xf32> to vector<72x1xf32>
    %173 = vector.broadcast %172 : vector<72x1xf32> to vector<72x72xf32>
    %174 = arith.subf %170, %173 : vector<72x72xf32>
    %175 = math.exp %174 : vector<72x72xf32>
    %176 = arith.truncf %175 : vector<72x72xf32> to vector<72x72xbf16>
    %177 = tpu.concatenate %167, %8 in 1 : vector<72x8xbf16>, vector<72x1xbf16> -> vector<72x9xbf16>
    %cst_43 = arith.constant dense<0.000000e+00> : vector<72x9xf32>
    %178 = tpu.matmul %176, %177, %cst_43 {dimension_numbers = #tpu.dot_dimension_numbers<[1], [0], [0], [1], [0, 0, 1, 1], [], []>} : vector<72x72xbf16>, vector<72x9xbf16>, vector<72x9xf32> -> vector<72x9xf32>
    %179 = vector.extract_strided_slice %178 {offsets = [0, 8], sizes = [72, 1], strides = [1, 1]} : vector<72x9xf32> to vector<72x1xf32>
    %180 = tpu.reciprocal %179 {approx = true} : vector<72x1xf32> -> vector<72x1xf32>
    %181 = vector.extract_strided_slice %178 {offsets = [0, 0], sizes = [72, 8], strides = [1, 1]} : vector<72x9xf32> to vector<72x8xf32>
    %182 = vector.broadcast %180 : vector<72x1xf32> to vector<72x8xf32>
    %183 = arith.mulf %181, %182 : vector<72x8xf32>
    %184 = arith.truncf %183 : vector<72x8xf32> to vector<72x8xbf16>
    %185 = vector.extract_strided_slice %14 {offsets = [8, 0], sizes = [8, 32], strides = [1, 1]} : vector<32x32xbf16> to vector<8x32xbf16>
    %cst_44 = arith.constant dense<0.000000e+00> : vector<72x32xf32>
    %186 = tpu.matmul %184, %185, %cst_44 {dimension_numbers = #tpu.dot_dimension_numbers<[1], [0], [0], [1], [0, 0, 1, 1], [], []>} : vector<72x8xbf16>, vector<8x32xbf16>, vector<72x32xf32> -> vector<72x32xf32>
    %187 = arith.addf %164, %186 : vector<72x32xf32>
    %188 = vector.extract_strided_slice %138 {offsets = [0, 16], sizes = [72, 8], strides = [1, 1]} : vector<72x32xbf16> to vector<72x8xbf16>
    %189 = vector.extract_strided_slice %139 {offsets = [0, 16], sizes = [72, 8], strides = [1, 1]} : vector<72x32xbf16> to vector<72x8xbf16>
    %190 = vector.extract_strided_slice %140 {offsets = [0, 16], sizes = [72, 8], strides = [1, 1]} : vector<72x32xbf16> to vector<72x8xbf16>
    %cst_45 = arith.constant dense<0.000000e+00> : vector<72x72xf32>
    %191 = tpu.matmul %188, %189, %cst_45 {dimension_numbers = #tpu.dot_dimension_numbers<[1], [1], [0], [0], [0, 0, 1, 0], [], []>} : vector<72x8xbf16>, vector<72x8xbf16>, vector<72x72xf32> -> vector<72x72xf32>
    %192 = vector.broadcast %7 : vector<1x72xf32> to vector<72x72xf32>
    %193 = arith.addf %191, %192 : vector<72x72xf32>
    %cst_46 = arith.constant dense<0xFF800000> : vector<72xf32>
    %194 = vector.multi_reduction <maximumf>, %193, %cst_46 [1] : vector<72x72xf32> to vector<72xf32>
    %195 = vector.shape_cast %194 : vector<72xf32> to vector<72x1xf32>
    %196 = vector.broadcast %195 : vector<72x1xf32> to vector<72x72xf32>
    %197 = arith.subf %193, %196 : vector<72x72xf32>
    %198 = math.exp %197 : vector<72x72xf32>
    %199 = arith.truncf %198 : vector<72x72xf32> to vector<72x72xbf16>
    %200 = tpu.concatenate %190, %8 in 1 : vector<72x8xbf16>, vector<72x1xbf16> -> vector<72x9xbf16>
    %cst_47 = arith.constant dense<0.000000e+00> : vector<72x9xf32>
    %201 = tpu.matmul %199, %200, %cst_47 {dimension_numbers = #tpu.dot_dimension_numbers<[1], [0], [0], [1], [0, 0, 1, 1], [], []>} : vector<72x72xbf16>, vector<72x9xbf16>, vector<72x9xf32> -> vector<72x9xf32>
    %202 = vector.extract_strided_slice %201 {offsets = [0, 8], sizes = [72, 1], strides = [1, 1]} : vector<72x9xf32> to vector<72x1xf32>
    %203 = tpu.reciprocal %202 {approx = true} : vector<72x1xf32> -> vector<72x1xf32>
    %204 = vector.extract_strided_slice %201 {offsets = [0, 0], sizes = [72, 8], strides = [1, 1]} : vector<72x9xf32> to vector<72x8xf32>
    %205 = vector.broadcast %203 : vector<72x1xf32> to vector<72x8xf32>
    %206 = arith.mulf %204, %205 : vector<72x8xf32>
    %207 = arith.truncf %206 : vector<72x8xf32> to vector<72x8xbf16>
    %208 = vector.extract_strided_slice %14 {offsets = [16, 0], sizes = [8, 32], strides = [1, 1]} : vector<32x32xbf16> to vector<8x32xbf16>
    %cst_48 = arith.constant dense<0.000000e+00> : vector<72x32xf32>
    %209 = tpu.matmul %207, %208, %cst_48 {dimension_numbers = #tpu.dot_dimension_numbers<[1], [0], [0], [1], [0, 0, 1, 1], [], []>} : vector<72x8xbf16>, vector<8x32xbf16>, vector<72x32xf32> -> vector<72x32xf32>
    %210 = arith.addf %187, %209 : vector<72x32xf32>
    %211 = vector.extract_strided_slice %138 {offsets = [0, 24], sizes = [72, 8], strides = [1, 1]} : vector<72x32xbf16> to vector<72x8xbf16>
    %212 = vector.extract_strided_slice %139 {offsets = [0, 24], sizes = [72, 8], strides = [1, 1]} : vector<72x32xbf16> to vector<72x8xbf16>
    %213 = vector.extract_strided_slice %140 {offsets = [0, 24], sizes = [72, 8], strides = [1, 1]} : vector<72x32xbf16> to vector<72x8xbf16>
    %cst_49 = arith.constant dense<0.000000e+00> : vector<72x72xf32>
    %214 = tpu.matmul %211, %212, %cst_49 {dimension_numbers = #tpu.dot_dimension_numbers<[1], [1], [0], [0], [0, 0, 1, 0], [], []>} : vector<72x8xbf16>, vector<72x8xbf16>, vector<72x72xf32> -> vector<72x72xf32>
    %215 = vector.broadcast %7 : vector<1x72xf32> to vector<72x72xf32>
    %216 = arith.addf %214, %215 : vector<72x72xf32>
    %cst_50 = arith.constant dense<0xFF800000> : vector<72xf32>
    %217 = vector.multi_reduction <maximumf>, %216, %cst_50 [1] : vector<72x72xf32> to vector<72xf32>
    %218 = vector.shape_cast %217 : vector<72xf32> to vector<72x1xf32>
    %219 = vector.broadcast %218 : vector<72x1xf32> to vector<72x72xf32>
    %220 = arith.subf %216, %219 : vector<72x72xf32>
    %221 = math.exp %220 : vector<72x72xf32>
    %222 = arith.truncf %221 : vector<72x72xf32> to vector<72x72xbf16>
    %223 = tpu.concatenate %213, %8 in 1 : vector<72x8xbf16>, vector<72x1xbf16> -> vector<72x9xbf16>
    %cst_51 = arith.constant dense<0.000000e+00> : vector<72x9xf32>
    %224 = tpu.matmul %222, %223, %cst_51 {dimension_numbers = #tpu.dot_dimension_numbers<[1], [0], [0], [1], [0, 0, 1, 1], [], []>} : vector<72x72xbf16>, vector<72x9xbf16>, vector<72x9xf32> -> vector<72x9xf32>
    %225 = vector.extract_strided_slice %224 {offsets = [0, 8], sizes = [72, 1], strides = [1, 1]} : vector<72x9xf32> to vector<72x1xf32>
    %226 = tpu.reciprocal %225 {approx = true} : vector<72x1xf32> -> vector<72x1xf32>
    %227 = vector.extract_strided_slice %224 {offsets = [0, 0], sizes = [72, 8], strides = [1, 1]} : vector<72x9xf32> to vector<72x8xf32>
    %228 = vector.broadcast %226 : vector<72x1xf32> to vector<72x8xf32>
    %229 = arith.mulf %227, %228 : vector<72x8xf32>
    %230 = arith.truncf %229 : vector<72x8xf32> to vector<72x8xbf16>
    %231 = vector.extract_strided_slice %14 {offsets = [24, 0], sizes = [8, 32], strides = [1, 1]} : vector<32x32xbf16> to vector<8x32xbf16>
    %cst_52 = arith.constant dense<0.000000e+00> : vector<72x32xf32>
    %232 = tpu.matmul %230, %231, %cst_52 {dimension_numbers = #tpu.dot_dimension_numbers<[1], [0], [0], [1], [0, 0, 1, 1], [], []>} : vector<72x8xbf16>, vector<8x32xbf16>, vector<72x32xf32> -> vector<72x32xf32>
    %233 = arith.addf %210, %232 : vector<72x32xf32>
    %234 = tpu.concatenate %137, %233 in 0 : vector<72x32xf32>, vector<72x32xf32> -> vector<144x32xf32>
    %235 = arith.addf %5, %234 : vector<144x32xf32>
    %236 = vector.broadcast %16 : vector<1x32xf32> to vector<144x32xf32>
    %237 = arith.addf %235, %236 : vector<144x32xf32>
    %c163 = arith.constant 163 : index
    %c0_53 = arith.constant 0 : index
    %238 = vector.load %arg4[%c163, %c0_53] : memref<336x128xbf16, #tpu.memory_space<vmem>>, vector<1x32xbf16>
    %239 = arith.extf %238 : vector<1x32xbf16> to vector<1x32xf32>
    %c164 = arith.constant 164 : index
    %c0_54 = arith.constant 0 : index
    %240 = vector.load %arg4[%c164, %c0_54] : memref<336x128xbf16, #tpu.memory_space<vmem>>, vector<1x32xbf16>
    %241 = arith.extf %240 : vector<1x32xbf16> to vector<1x32xf32>
    %c64 = arith.constant 64 : index
    %c0_55 = arith.constant 0 : index
    %242 = vector.load %arg4[%c64, %c0_55] : memref<336x128xbf16, #tpu.memory_space<vmem>>, vector<32x64xbf16>
    %c165 = arith.constant 165 : index
    %c0_56 = arith.constant 0 : index
    %243 = vector.load %arg4[%c165, %c0_56] : memref<336x128xbf16, #tpu.memory_space<vmem>>, vector<1x64xbf16>
    %244 = arith.extf %243 : vector<1x64xbf16> to vector<1x64xf32>
    %c96 = arith.constant 96 : index
    %c0_57 = arith.constant 0 : index
    %245 = vector.load %arg4[%c96, %c0_57] : memref<336x128xbf16, #tpu.memory_space<vmem>>, vector<64x32xbf16>
    %c166 = arith.constant 166 : index
    %c0_58 = arith.constant 0 : index
    %246 = vector.load %arg4[%c166, %c0_58] : memref<336x128xbf16, #tpu.memory_space<vmem>>, vector<1x32xbf16>
    %247 = arith.extf %246 : vector<1x32xbf16> to vector<1x32xf32>
    %cst_59 = arith.constant dense<0.000000e+00> : vector<144xf32>
    %248 = vector.multi_reduction <add>, %237, %cst_59 [1] : vector<144x32xf32> to vector<144xf32>
    %249 = vector.shape_cast %248 : vector<144xf32> to vector<144x1xf32>
    %cst_60 = arith.constant 3.200000e+01 : f32
    %250 = vector.broadcast %cst_60 : f32 to vector<144x1xf32>
    %251 = arith.divf %249, %250 : vector<144x1xf32>
    %252 = arith.mulf %237, %237 : vector<144x32xf32>
    %cst_61 = arith.constant dense<0.000000e+00> : vector<144xf32>
    %253 = vector.multi_reduction <add>, %252, %cst_61 [1] : vector<144x32xf32> to vector<144xf32>
    %254 = vector.shape_cast %253 : vector<144xf32> to vector<144x1xf32>
    %cst_62 = arith.constant 3.200000e+01 : f32
    %255 = vector.broadcast %cst_62 : f32 to vector<144x1xf32>
    %256 = arith.divf %254, %255 : vector<144x1xf32>
    %257 = arith.mulf %251, %251 : vector<144x1xf32>
    %258 = arith.subf %256, %257 : vector<144x1xf32>
    %259 = vector.broadcast %251 : vector<144x1xf32> to vector<144x32xf32>
    %260 = arith.subf %237, %259 : vector<144x32xf32>
    %cst_63 = arith.constant 9.99999974E-6 : f32
    %261 = vector.broadcast %cst_63 : f32 to vector<144x1xf32>
    %262 = arith.addf %258, %261 : vector<144x1xf32>
    %263 = math.rsqrt %262 : vector<144x1xf32>
    %264 = vector.broadcast %263 : vector<144x1xf32> to vector<144x32xf32>
    %265 = arith.mulf %260, %264 : vector<144x32xf32>
    %266 = vector.broadcast %239 : vector<1x32xf32> to vector<144x32xf32>
    %267 = arith.mulf %265, %266 : vector<144x32xf32>
    %268 = vector.broadcast %241 : vector<1x32xf32> to vector<144x32xf32>
    %269 = arith.addf %267, %268 : vector<144x32xf32>
    %270 = arith.truncf %269 : vector<144x32xf32> to vector<144x32xbf16>
    %cst_64 = arith.constant dense<0.000000e+00> : vector<144x64xf32>
    %271 = tpu.matmul %270, %242, %cst_64 {dimension_numbers = #tpu.dot_dimension_numbers<[1], [0], [0], [1], [0, 0, 1, 1], [], []>} : vector<144x32xbf16>, vector<32x64xbf16>, vector<144x64xf32> -> vector<144x64xf32>
    %272 = vector.broadcast %244 : vector<1x64xf32> to vector<144x64xf32>
    %273 = arith.addf %271, %272 : vector<144x64xf32>
    %cst_65 = arith.constant 5.000000e-01 : f32
    %274 = vector.broadcast %cst_65 : f32 to vector<144x64xf32>
    %275 = arith.mulf %274, %273 : vector<144x64xf32>
    %cst_66 = arith.constant 4.471500e-02 : f32
    %276 = vector.broadcast %cst_66 : f32 to vector<144x64xf32>
    %277 = arith.mulf %276, %273 : vector<144x64xf32>
    %278 = arith.mulf %277, %273 : vector<144x64xf32>
    %279 = arith.mulf %278, %273 : vector<144x64xf32>
    %280 = arith.addf %273, %279 : vector<144x64xf32>
    %cst_67 = arith.constant 0.797884583 : f32
    %281 = vector.broadcast %cst_67 : f32 to vector<144x64xf32>
    %282 = arith.mulf %281, %280 : vector<144x64xf32>
    %283 = math.tanh %282 : vector<144x64xf32>
    %cst_68 = arith.constant 1.000000e+00 : f32
    %284 = vector.broadcast %cst_68 : f32 to vector<144x64xf32>
    %285 = arith.addf %284, %283 : vector<144x64xf32>
    %286 = arith.mulf %275, %285 : vector<144x64xf32>
    %287 = arith.truncf %286 : vector<144x64xf32> to vector<144x64xbf16>
    %cst_69 = arith.constant dense<0.000000e+00> : vector<144x32xf32>
    %288 = tpu.matmul %287, %245, %cst_69 {dimension_numbers = #tpu.dot_dimension_numbers<[1], [0], [0], [1], [0, 0, 1, 1], [], []>} : vector<144x64xbf16>, vector<64x32xbf16>, vector<144x32xf32> -> vector<144x32xf32>
    %289 = vector.broadcast %247 : vector<1x32xf32> to vector<144x32xf32>
    %290 = arith.addf %288, %289 : vector<144x32xf32>
    %291 = arith.addf %237, %290 : vector<144x32xf32>
    %c328 = arith.constant 328 : index
    %c0_70 = arith.constant 0 : index
    %292 = vector.load %arg4[%c328, %c0_70] : memref<336x128xbf16, #tpu.memory_space<vmem>>, vector<1x32xbf16>
    %293 = arith.extf %292 : vector<1x32xbf16> to vector<1x32xf32>
    %c329 = arith.constant 329 : index
    %c0_71 = arith.constant 0 : index
    %294 = vector.load %arg4[%c329, %c0_71] : memref<336x128xbf16, #tpu.memory_space<vmem>>, vector<1x32xbf16>
    %295 = arith.extf %294 : vector<1x32xbf16> to vector<1x32xf32>
    %c168 = arith.constant 168 : index
    %c0_72 = arith.constant 0 : index
    %296 = vector.load %arg4[%c168, %c0_72] : memref<336x128xbf16, #tpu.memory_space<vmem>>, vector<32x96xbf16>
    %c200 = arith.constant 200 : index
    %c0_73 = arith.constant 0 : index
    %297 = vector.load %arg4[%c200, %c0_73] : memref<336x128xbf16, #tpu.memory_space<vmem>>, vector<32x32xbf16>
    %c330 = arith.constant 330 : index
    %c0_74 = arith.constant 0 : index
    %298 = vector.load %arg4[%c330, %c0_74] : memref<336x128xbf16, #tpu.memory_space<vmem>>, vector<1x32xbf16>
    %299 = arith.extf %298 : vector<1x32xbf16> to vector<1x32xf32>
    %cst_75 = arith.constant dense<0.000000e+00> : vector<144xf32>
    %300 = vector.multi_reduction <add>, %291, %cst_75 [1] : vector<144x32xf32> to vector<144xf32>
    %301 = vector.shape_cast %300 : vector<144xf32> to vector<144x1xf32>
    %cst_76 = arith.constant 3.200000e+01 : f32
    %302 = vector.broadcast %cst_76 : f32 to vector<144x1xf32>
    %303 = arith.divf %301, %302 : vector<144x1xf32>
    %304 = arith.mulf %291, %291 : vector<144x32xf32>
    %cst_77 = arith.constant dense<0.000000e+00> : vector<144xf32>
    %305 = vector.multi_reduction <add>, %304, %cst_77 [1] : vector<144x32xf32> to vector<144xf32>
    %306 = vector.shape_cast %305 : vector<144xf32> to vector<144x1xf32>
    %cst_78 = arith.constant 3.200000e+01 : f32
    %307 = vector.broadcast %cst_78 : f32 to vector<144x1xf32>
    %308 = arith.divf %306, %307 : vector<144x1xf32>
    %309 = arith.mulf %303, %303 : vector<144x1xf32>
    %310 = arith.subf %308, %309 : vector<144x1xf32>
    %311 = vector.broadcast %303 : vector<144x1xf32> to vector<144x32xf32>
    %312 = arith.subf %291, %311 : vector<144x32xf32>
    %cst_79 = arith.constant 9.99999974E-6 : f32
    %313 = vector.broadcast %cst_79 : f32 to vector<144x1xf32>
    %314 = arith.addf %310, %313 : vector<144x1xf32>
    %315 = math.rsqrt %314 : vector<144x1xf32>
    %316 = vector.broadcast %315 : vector<144x1xf32> to vector<144x32xf32>
    %317 = arith.mulf %312, %316 : vector<144x32xf32>
    %318 = vector.broadcast %293 : vector<1x32xf32> to vector<144x32xf32>
    %319 = arith.mulf %317, %318 : vector<144x32xf32>
    %320 = vector.broadcast %295 : vector<1x32xf32> to vector<144x32xf32>
    %321 = arith.addf %319, %320 : vector<144x32xf32>
    %322 = arith.truncf %321 : vector<144x32xf32> to vector<144x32xbf16>
    %cst_80 = arith.constant dense<0.000000e+00> : vector<144x96xf32>
    %323 = tpu.matmul %322, %296, %cst_80 {dimension_numbers = #tpu.dot_dimension_numbers<[1], [0], [0], [1], [0, 0, 1, 1], [], []>} : vector<144x32xbf16>, vector<32x96xbf16>, vector<144x96xf32> -> vector<144x96xf32>
    %324 = arith.truncf %323 : vector<144x96xf32> to vector<144x96xbf16>
    %325 = vector.extract_strided_slice %324 {offsets = [0, 0], sizes = [72, 32], strides = [1, 1]} : vector<144x96xbf16> to vector<72x32xbf16>
    %326 = vector.extract_strided_slice %324 {offsets = [0, 32], sizes = [72, 32], strides = [1, 1]} : vector<144x96xbf16> to vector<72x32xbf16>
    %327 = vector.extract_strided_slice %324 {offsets = [0, 64], sizes = [72, 32], strides = [1, 1]} : vector<144x96xbf16> to vector<72x32xbf16>
    %cst_81 = arith.constant 0.000000e+00 : f32
    %328 = vector.broadcast %cst_81 : f32 to vector<72x32xf32>
    %329 = vector.extract_strided_slice %325 {offsets = [0, 0], sizes = [72, 8], strides = [1, 1]} : vector<72x32xbf16> to vector<72x8xbf16>
    %330 = vector.extract_strided_slice %326 {offsets = [0, 0], sizes = [72, 8], strides = [1, 1]} : vector<72x32xbf16> to vector<72x8xbf16>
    %331 = vector.extract_strided_slice %327 {offsets = [0, 0], sizes = [72, 8], strides = [1, 1]} : vector<72x32xbf16> to vector<72x8xbf16>
    %cst_82 = arith.constant dense<0.000000e+00> : vector<72x72xf32>
    %332 = tpu.matmul %329, %330, %cst_82 {dimension_numbers = #tpu.dot_dimension_numbers<[1], [1], [0], [0], [0, 0, 1, 0], [], []>} : vector<72x8xbf16>, vector<72x8xbf16>, vector<72x72xf32> -> vector<72x72xf32>
    %333 = vector.broadcast %7 : vector<1x72xf32> to vector<72x72xf32>
    %334 = arith.addf %332, %333 : vector<72x72xf32>
    %cst_83 = arith.constant dense<0xFF800000> : vector<72xf32>
    %335 = vector.multi_reduction <maximumf>, %334, %cst_83 [1] : vector<72x72xf32> to vector<72xf32>
    %336 = vector.shape_cast %335 : vector<72xf32> to vector<72x1xf32>
    %337 = vector.broadcast %336 : vector<72x1xf32> to vector<72x72xf32>
    %338 = arith.subf %334, %337 : vector<72x72xf32>
    %339 = math.exp %338 : vector<72x72xf32>
    %340 = arith.truncf %339 : vector<72x72xf32> to vector<72x72xbf16>
    %341 = tpu.concatenate %331, %8 in 1 : vector<72x8xbf16>, vector<72x1xbf16> -> vector<72x9xbf16>
    %cst_84 = arith.constant dense<0.000000e+00> : vector<72x9xf32>
    %342 = tpu.matmul %340, %341, %cst_84 {dimension_numbers = #tpu.dot_dimension_numbers<[1], [0], [0], [1], [0, 0, 1, 1], [], []>} : vector<72x72xbf16>, vector<72x9xbf16>, vector<72x9xf32> -> vector<72x9xf32>
    %343 = vector.extract_strided_slice %342 {offsets = [0, 8], sizes = [72, 1], strides = [1, 1]} : vector<72x9xf32> to vector<72x1xf32>
    %344 = tpu.reciprocal %343 {approx = true} : vector<72x1xf32> -> vector<72x1xf32>
    %345 = vector.extract_strided_slice %342 {offsets = [0, 0], sizes = [72, 8], strides = [1, 1]} : vector<72x9xf32> to vector<72x8xf32>
    %346 = vector.broadcast %344 : vector<72x1xf32> to vector<72x8xf32>
    %347 = arith.mulf %345, %346 : vector<72x8xf32>
    %348 = arith.truncf %347 : vector<72x8xf32> to vector<72x8xbf16>
    %349 = vector.extract_strided_slice %297 {offsets = [0, 0], sizes = [8, 32], strides = [1, 1]} : vector<32x32xbf16> to vector<8x32xbf16>
    %cst_85 = arith.constant dense<0.000000e+00> : vector<72x32xf32>
    %350 = tpu.matmul %348, %349, %cst_85 {dimension_numbers = #tpu.dot_dimension_numbers<[1], [0], [0], [1], [0, 0, 1, 1], [], []>} : vector<72x8xbf16>, vector<8x32xbf16>, vector<72x32xf32> -> vector<72x32xf32>
    %351 = arith.addf %328, %350 : vector<72x32xf32>
    %352 = vector.extract_strided_slice %325 {offsets = [0, 8], sizes = [72, 8], strides = [1, 1]} : vector<72x32xbf16> to vector<72x8xbf16>
    %353 = vector.extract_strided_slice %326 {offsets = [0, 8], sizes = [72, 8], strides = [1, 1]} : vector<72x32xbf16> to vector<72x8xbf16>
    %354 = vector.extract_strided_slice %327 {offsets = [0, 8], sizes = [72, 8], strides = [1, 1]} : vector<72x32xbf16> to vector<72x8xbf16>
    %cst_86 = arith.constant dense<0.000000e+00> : vector<72x72xf32>
    %355 = tpu.matmul %352, %353, %cst_86 {dimension_numbers = #tpu.dot_dimension_numbers<[1], [1], [0], [0], [0, 0, 1, 0], [], []>} : vector<72x8xbf16>, vector<72x8xbf16>, vector<72x72xf32> -> vector<72x72xf32>
    %356 = vector.broadcast %7 : vector<1x72xf32> to vector<72x72xf32>
    %357 = arith.addf %355, %356 : vector<72x72xf32>
    %cst_87 = arith.constant dense<0xFF800000> : vector<72xf32>
    %358 = vector.multi_reduction <maximumf>, %357, %cst_87 [1] : vector<72x72xf32> to vector<72xf32>
    %359 = vector.shape_cast %358 : vector<72xf32> to vector<72x1xf32>
    %360 = vector.broadcast %359 : vector<72x1xf32> to vector<72x72xf32>
    %361 = arith.subf %357, %360 : vector<72x72xf32>
    %362 = math.exp %361 : vector<72x72xf32>
    %363 = arith.truncf %362 : vector<72x72xf32> to vector<72x72xbf16>
    %364 = tpu.concatenate %354, %8 in 1 : vector<72x8xbf16>, vector<72x1xbf16> -> vector<72x9xbf16>
    %cst_88 = arith.constant dense<0.000000e+00> : vector<72x9xf32>
    %365 = tpu.matmul %363, %364, %cst_88 {dimension_numbers = #tpu.dot_dimension_numbers<[1], [0], [0], [1], [0, 0, 1, 1], [], []>} : vector<72x72xbf16>, vector<72x9xbf16>, vector<72x9xf32> -> vector<72x9xf32>
    %366 = vector.extract_strided_slice %365 {offsets = [0, 8], sizes = [72, 1], strides = [1, 1]} : vector<72x9xf32> to vector<72x1xf32>
    %367 = tpu.reciprocal %366 {approx = true} : vector<72x1xf32> -> vector<72x1xf32>
    %368 = vector.extract_strided_slice %365 {offsets = [0, 0], sizes = [72, 8], strides = [1, 1]} : vector<72x9xf32> to vector<72x8xf32>
    %369 = vector.broadcast %367 : vector<72x1xf32> to vector<72x8xf32>
    %370 = arith.mulf %368, %369 : vector<72x8xf32>
    %371 = arith.truncf %370 : vector<72x8xf32> to vector<72x8xbf16>
    %372 = vector.extract_strided_slice %297 {offsets = [8, 0], sizes = [8, 32], strides = [1, 1]} : vector<32x32xbf16> to vector<8x32xbf16>
    %cst_89 = arith.constant dense<0.000000e+00> : vector<72x32xf32>
    %373 = tpu.matmul %371, %372, %cst_89 {dimension_numbers = #tpu.dot_dimension_numbers<[1], [0], [0], [1], [0, 0, 1, 1], [], []>} : vector<72x8xbf16>, vector<8x32xbf16>, vector<72x32xf32> -> vector<72x32xf32>
    %374 = arith.addf %351, %373 : vector<72x32xf32>
    %375 = vector.extract_strided_slice %325 {offsets = [0, 16], sizes = [72, 8], strides = [1, 1]} : vector<72x32xbf16> to vector<72x8xbf16>
    %376 = vector.extract_strided_slice %326 {offsets = [0, 16], sizes = [72, 8], strides = [1, 1]} : vector<72x32xbf16> to vector<72x8xbf16>
    %377 = vector.extract_strided_slice %327 {offsets = [0, 16], sizes = [72, 8], strides = [1, 1]} : vector<72x32xbf16> to vector<72x8xbf16>
    %cst_90 = arith.constant dense<0.000000e+00> : vector<72x72xf32>
    %378 = tpu.matmul %375, %376, %cst_90 {dimension_numbers = #tpu.dot_dimension_numbers<[1], [1], [0], [0], [0, 0, 1, 0], [], []>} : vector<72x8xbf16>, vector<72x8xbf16>, vector<72x72xf32> -> vector<72x72xf32>
    %379 = vector.broadcast %7 : vector<1x72xf32> to vector<72x72xf32>
    %380 = arith.addf %378, %379 : vector<72x72xf32>
    %cst_91 = arith.constant dense<0xFF800000> : vector<72xf32>
    %381 = vector.multi_reduction <maximumf>, %380, %cst_91 [1] : vector<72x72xf32> to vector<72xf32>
    %382 = vector.shape_cast %381 : vector<72xf32> to vector<72x1xf32>
    %383 = vector.broadcast %382 : vector<72x1xf32> to vector<72x72xf32>
    %384 = arith.subf %380, %383 : vector<72x72xf32>
    %385 = math.exp %384 : vector<72x72xf32>
    %386 = arith.truncf %385 : vector<72x72xf32> to vector<72x72xbf16>
    %387 = tpu.concatenate %377, %8 in 1 : vector<72x8xbf16>, vector<72x1xbf16> -> vector<72x9xbf16>
    %cst_92 = arith.constant dense<0.000000e+00> : vector<72x9xf32>
    %388 = tpu.matmul %386, %387, %cst_92 {dimension_numbers = #tpu.dot_dimension_numbers<[1], [0], [0], [1], [0, 0, 1, 1], [], []>} : vector<72x72xbf16>, vector<72x9xbf16>, vector<72x9xf32> -> vector<72x9xf32>
    %389 = vector.extract_strided_slice %388 {offsets = [0, 8], sizes = [72, 1], strides = [1, 1]} : vector<72x9xf32> to vector<72x1xf32>
    %390 = tpu.reciprocal %389 {approx = true} : vector<72x1xf32> -> vector<72x1xf32>
    %391 = vector.extract_strided_slice %388 {offsets = [0, 0], sizes = [72, 8], strides = [1, 1]} : vector<72x9xf32> to vector<72x8xf32>
    %392 = vector.broadcast %390 : vector<72x1xf32> to vector<72x8xf32>
    %393 = arith.mulf %391, %392 : vector<72x8xf32>
    %394 = arith.truncf %393 : vector<72x8xf32> to vector<72x8xbf16>
    %395 = vector.extract_strided_slice %297 {offsets = [16, 0], sizes = [8, 32], strides = [1, 1]} : vector<32x32xbf16> to vector<8x32xbf16>
    %cst_93 = arith.constant dense<0.000000e+00> : vector<72x32xf32>
    %396 = tpu.matmul %394, %395, %cst_93 {dimension_numbers = #tpu.dot_dimension_numbers<[1], [0], [0], [1], [0, 0, 1, 1], [], []>} : vector<72x8xbf16>, vector<8x32xbf16>, vector<72x32xf32> -> vector<72x32xf32>
    %397 = arith.addf %374, %396 : vector<72x32xf32>
    %398 = vector.extract_strided_slice %325 {offsets = [0, 24], sizes = [72, 8], strides = [1, 1]} : vector<72x32xbf16> to vector<72x8xbf16>
    %399 = vector.extract_strided_slice %326 {offsets = [0, 24], sizes = [72, 8], strides = [1, 1]} : vector<72x32xbf16> to vector<72x8xbf16>
    %400 = vector.extract_strided_slice %327 {offsets = [0, 24], sizes = [72, 8], strides = [1, 1]} : vector<72x32xbf16> to vector<72x8xbf16>
    %cst_94 = arith.constant dense<0.000000e+00> : vector<72x72xf32>
    %401 = tpu.matmul %398, %399, %cst_94 {dimension_numbers = #tpu.dot_dimension_numbers<[1], [1], [0], [0], [0, 0, 1, 0], [], []>} : vector<72x8xbf16>, vector<72x8xbf16>, vector<72x72xf32> -> vector<72x72xf32>
    %402 = vector.broadcast %7 : vector<1x72xf32> to vector<72x72xf32>
    %403 = arith.addf %401, %402 : vector<72x72xf32>
    %cst_95 = arith.constant dense<0xFF800000> : vector<72xf32>
    %404 = vector.multi_reduction <maximumf>, %403, %cst_95 [1] : vector<72x72xf32> to vector<72xf32>
    %405 = vector.shape_cast %404 : vector<72xf32> to vector<72x1xf32>
    %406 = vector.broadcast %405 : vector<72x1xf32> to vector<72x72xf32>
    %407 = arith.subf %403, %406 : vector<72x72xf32>
    %408 = math.exp %407 : vector<72x72xf32>
    %409 = arith.truncf %408 : vector<72x72xf32> to vector<72x72xbf16>
    %410 = tpu.concatenate %400, %8 in 1 : vector<72x8xbf16>, vector<72x1xbf16> -> vector<72x9xbf16>
    %cst_96 = arith.constant dense<0.000000e+00> : vector<72x9xf32>
    %411 = tpu.matmul %409, %410, %cst_96 {dimension_numbers = #tpu.dot_dimension_numbers<[1], [0], [0], [1], [0, 0, 1, 1], [], []>} : vector<72x72xbf16>, vector<72x9xbf16>, vector<72x9xf32> -> vector<72x9xf32>
    %412 = vector.extract_strided_slice %411 {offsets = [0, 8], sizes = [72, 1], strides = [1, 1]} : vector<72x9xf32> to vector<72x1xf32>
    %413 = tpu.reciprocal %412 {approx = true} : vector<72x1xf32> -> vector<72x1xf32>
    %414 = vector.extract_strided_slice %411 {offsets = [0, 0], sizes = [72, 8], strides = [1, 1]} : vector<72x9xf32> to vector<72x8xf32>
    %415 = vector.broadcast %413 : vector<72x1xf32> to vector<72x8xf32>
    %416 = arith.mulf %414, %415 : vector<72x8xf32>
    %417 = arith.truncf %416 : vector<72x8xf32> to vector<72x8xbf16>
    %418 = vector.extract_strided_slice %297 {offsets = [24, 0], sizes = [8, 32], strides = [1, 1]} : vector<32x32xbf16> to vector<8x32xbf16>
    %cst_97 = arith.constant dense<0.000000e+00> : vector<72x32xf32>
    %419 = tpu.matmul %417, %418, %cst_97 {dimension_numbers = #tpu.dot_dimension_numbers<[1], [0], [0], [1], [0, 0, 1, 1], [], []>} : vector<72x8xbf16>, vector<8x32xbf16>, vector<72x32xf32> -> vector<72x32xf32>
    %420 = arith.addf %397, %419 : vector<72x32xf32>
    %421 = vector.extract_strided_slice %324 {offsets = [72, 0], sizes = [72, 32], strides = [1, 1]} : vector<144x96xbf16> to vector<72x32xbf16>
    %422 = vector.extract_strided_slice %324 {offsets = [72, 32], sizes = [72, 32], strides = [1, 1]} : vector<144x96xbf16> to vector<72x32xbf16>
    %423 = vector.extract_strided_slice %324 {offsets = [72, 64], sizes = [72, 32], strides = [1, 1]} : vector<144x96xbf16> to vector<72x32xbf16>
    %cst_98 = arith.constant 0.000000e+00 : f32
    %424 = vector.broadcast %cst_98 : f32 to vector<72x32xf32>
    %425 = vector.extract_strided_slice %421 {offsets = [0, 0], sizes = [72, 8], strides = [1, 1]} : vector<72x32xbf16> to vector<72x8xbf16>
    %426 = vector.extract_strided_slice %422 {offsets = [0, 0], sizes = [72, 8], strides = [1, 1]} : vector<72x32xbf16> to vector<72x8xbf16>
    %427 = vector.extract_strided_slice %423 {offsets = [0, 0], sizes = [72, 8], strides = [1, 1]} : vector<72x32xbf16> to vector<72x8xbf16>
    %cst_99 = arith.constant dense<0.000000e+00> : vector<72x72xf32>
    %428 = tpu.matmul %425, %426, %cst_99 {dimension_numbers = #tpu.dot_dimension_numbers<[1], [1], [0], [0], [0, 0, 1, 0], [], []>} : vector<72x8xbf16>, vector<72x8xbf16>, vector<72x72xf32> -> vector<72x72xf32>
    %429 = vector.broadcast %7 : vector<1x72xf32> to vector<72x72xf32>
    %430 = arith.addf %428, %429 : vector<72x72xf32>
    %cst_100 = arith.constant dense<0xFF800000> : vector<72xf32>
    %431 = vector.multi_reduction <maximumf>, %430, %cst_100 [1] : vector<72x72xf32> to vector<72xf32>
    %432 = vector.shape_cast %431 : vector<72xf32> to vector<72x1xf32>
    %433 = vector.broadcast %432 : vector<72x1xf32> to vector<72x72xf32>
    %434 = arith.subf %430, %433 : vector<72x72xf32>
    %435 = math.exp %434 : vector<72x72xf32>
    %436 = arith.truncf %435 : vector<72x72xf32> to vector<72x72xbf16>
    %437 = tpu.concatenate %427, %8 in 1 : vector<72x8xbf16>, vector<72x1xbf16> -> vector<72x9xbf16>
    %cst_101 = arith.constant dense<0.000000e+00> : vector<72x9xf32>
    %438 = tpu.matmul %436, %437, %cst_101 {dimension_numbers = #tpu.dot_dimension_numbers<[1], [0], [0], [1], [0, 0, 1, 1], [], []>} : vector<72x72xbf16>, vector<72x9xbf16>, vector<72x9xf32> -> vector<72x9xf32>
    %439 = vector.extract_strided_slice %438 {offsets = [0, 8], sizes = [72, 1], strides = [1, 1]} : vector<72x9xf32> to vector<72x1xf32>
    %440 = tpu.reciprocal %439 {approx = true} : vector<72x1xf32> -> vector<72x1xf32>
    %441 = vector.extract_strided_slice %438 {offsets = [0, 0], sizes = [72, 8], strides = [1, 1]} : vector<72x9xf32> to vector<72x8xf32>
    %442 = vector.broadcast %440 : vector<72x1xf32> to vector<72x8xf32>
    %443 = arith.mulf %441, %442 : vector<72x8xf32>
    %444 = arith.truncf %443 : vector<72x8xf32> to vector<72x8xbf16>
    %445 = vector.extract_strided_slice %297 {offsets = [0, 0], sizes = [8, 32], strides = [1, 1]} : vector<32x32xbf16> to vector<8x32xbf16>
    %cst_102 = arith.constant dense<0.000000e+00> : vector<72x32xf32>
    %446 = tpu.matmul %444, %445, %cst_102 {dimension_numbers = #tpu.dot_dimension_numbers<[1], [0], [0], [1], [0, 0, 1, 1], [], []>} : vector<72x8xbf16>, vector<8x32xbf16>, vector<72x32xf32> -> vector<72x32xf32>
    %447 = arith.addf %424, %446 : vector<72x32xf32>
    %448 = vector.extract_strided_slice %421 {offsets = [0, 8], sizes = [72, 8], strides = [1, 1]} : vector<72x32xbf16> to vector<72x8xbf16>
    %449 = vector.extract_strided_slice %422 {offsets = [0, 8], sizes = [72, 8], strides = [1, 1]} : vector<72x32xbf16> to vector<72x8xbf16>
    %450 = vector.extract_strided_slice %423 {offsets = [0, 8], sizes = [72, 8], strides = [1, 1]} : vector<72x32xbf16> to vector<72x8xbf16>
    %cst_103 = arith.constant dense<0.000000e+00> : vector<72x72xf32>
    %451 = tpu.matmul %448, %449, %cst_103 {dimension_numbers = #tpu.dot_dimension_numbers<[1], [1], [0], [0], [0, 0, 1, 0], [], []>} : vector<72x8xbf16>, vector<72x8xbf16>, vector<72x72xf32> -> vector<72x72xf32>
    %452 = vector.broadcast %7 : vector<1x72xf32> to vector<72x72xf32>
    %453 = arith.addf %451, %452 : vector<72x72xf32>
    %cst_104 = arith.constant dense<0xFF800000> : vector<72xf32>
    %454 = vector.multi_reduction <maximumf>, %453, %cst_104 [1] : vector<72x72xf32> to vector<72xf32>
    %455 = vector.shape_cast %454 : vector<72xf32> to vector<72x1xf32>
    %456 = vector.broadcast %455 : vector<72x1xf32> to vector<72x72xf32>
    %457 = arith.subf %453, %456 : vector<72x72xf32>
    %458 = math.exp %457 : vector<72x72xf32>
    %459 = arith.truncf %458 : vector<72x72xf32> to vector<72x72xbf16>
    %460 = tpu.concatenate %450, %8 in 1 : vector<72x8xbf16>, vector<72x1xbf16> -> vector<72x9xbf16>
    %cst_105 = arith.constant dense<0.000000e+00> : vector<72x9xf32>
    %461 = tpu.matmul %459, %460, %cst_105 {dimension_numbers = #tpu.dot_dimension_numbers<[1], [0], [0], [1], [0, 0, 1, 1], [], []>} : vector<72x72xbf16>, vector<72x9xbf16>, vector<72x9xf32> -> vector<72x9xf32>
    %462 = vector.extract_strided_slice %461 {offsets = [0, 8], sizes = [72, 1], strides = [1, 1]} : vector<72x9xf32> to vector<72x1xf32>
    %463 = tpu.reciprocal %462 {approx = true} : vector<72x1xf32> -> vector<72x1xf32>
    %464 = vector.extract_strided_slice %461 {offsets = [0, 0], sizes = [72, 8], strides = [1, 1]} : vector<72x9xf32> to vector<72x8xf32>
    %465 = vector.broadcast %463 : vector<72x1xf32> to vector<72x8xf32>
    %466 = arith.mulf %464, %465 : vector<72x8xf32>
    %467 = arith.truncf %466 : vector<72x8xf32> to vector<72x8xbf16>
    %468 = vector.extract_strided_slice %297 {offsets = [8, 0], sizes = [8, 32], strides = [1, 1]} : vector<32x32xbf16> to vector<8x32xbf16>
    %cst_106 = arith.constant dense<0.000000e+00> : vector<72x32xf32>
    %469 = tpu.matmul %467, %468, %cst_106 {dimension_numbers = #tpu.dot_dimension_numbers<[1], [0], [0], [1], [0, 0, 1, 1], [], []>} : vector<72x8xbf16>, vector<8x32xbf16>, vector<72x32xf32> -> vector<72x32xf32>
    %470 = arith.addf %447, %469 : vector<72x32xf32>
    %471 = vector.extract_strided_slice %421 {offsets = [0, 16], sizes = [72, 8], strides = [1, 1]} : vector<72x32xbf16> to vector<72x8xbf16>
    %472 = vector.extract_strided_slice %422 {offsets = [0, 16], sizes = [72, 8], strides = [1, 1]} : vector<72x32xbf16> to vector<72x8xbf16>
    %473 = vector.extract_strided_slice %423 {offsets = [0, 16], sizes = [72, 8], strides = [1, 1]} : vector<72x32xbf16> to vector<72x8xbf16>
    %cst_107 = arith.constant dense<0.000000e+00> : vector<72x72xf32>
    %474 = tpu.matmul %471, %472, %cst_107 {dimension_numbers = #tpu.dot_dimension_numbers<[1], [1], [0], [0], [0, 0, 1, 0], [], []>} : vector<72x8xbf16>, vector<72x8xbf16>, vector<72x72xf32> -> vector<72x72xf32>
    %475 = vector.broadcast %7 : vector<1x72xf32> to vector<72x72xf32>
    %476 = arith.addf %474, %475 : vector<72x72xf32>
    %cst_108 = arith.constant dense<0xFF800000> : vector<72xf32>
    %477 = vector.multi_reduction <maximumf>, %476, %cst_108 [1] : vector<72x72xf32> to vector<72xf32>
    %478 = vector.shape_cast %477 : vector<72xf32> to vector<72x1xf32>
    %479 = vector.broadcast %478 : vector<72x1xf32> to vector<72x72xf32>
    %480 = arith.subf %476, %479 : vector<72x72xf32>
    %481 = math.exp %480 : vector<72x72xf32>
    %482 = arith.truncf %481 : vector<72x72xf32> to vector<72x72xbf16>
    %483 = tpu.concatenate %473, %8 in 1 : vector<72x8xbf16>, vector<72x1xbf16> -> vector<72x9xbf16>
    %cst_109 = arith.constant dense<0.000000e+00> : vector<72x9xf32>
    %484 = tpu.matmul %482, %483, %cst_109 {dimension_numbers = #tpu.dot_dimension_numbers<[1], [0], [0], [1], [0, 0, 1, 1], [], []>} : vector<72x72xbf16>, vector<72x9xbf16>, vector<72x9xf32> -> vector<72x9xf32>
    %485 = vector.extract_strided_slice %484 {offsets = [0, 8], sizes = [72, 1], strides = [1, 1]} : vector<72x9xf32> to vector<72x1xf32>
    %486 = tpu.reciprocal %485 {approx = true} : vector<72x1xf32> -> vector<72x1xf32>
    %487 = vector.extract_strided_slice %484 {offsets = [0, 0], sizes = [72, 8], strides = [1, 1]} : vector<72x9xf32> to vector<72x8xf32>
    %488 = vector.broadcast %486 : vector<72x1xf32> to vector<72x8xf32>
    %489 = arith.mulf %487, %488 : vector<72x8xf32>
    %490 = arith.truncf %489 : vector<72x8xf32> to vector<72x8xbf16>
    %491 = vector.extract_strided_slice %297 {offsets = [16, 0], sizes = [8, 32], strides = [1, 1]} : vector<32x32xbf16> to vector<8x32xbf16>
    %cst_110 = arith.constant dense<0.000000e+00> : vector<72x32xf32>
    %492 = tpu.matmul %490, %491, %cst_110 {dimension_numbers = #tpu.dot_dimension_numbers<[1], [0], [0], [1], [0, 0, 1, 1], [], []>} : vector<72x8xbf16>, vector<8x32xbf16>, vector<72x32xf32> -> vector<72x32xf32>
    %493 = arith.addf %470, %492 : vector<72x32xf32>
    %494 = vector.extract_strided_slice %421 {offsets = [0, 24], sizes = [72, 8], strides = [1, 1]} : vector<72x32xbf16> to vector<72x8xbf16>
    %495 = vector.extract_strided_slice %422 {offsets = [0, 24], sizes = [72, 8], strides = [1, 1]} : vector<72x32xbf16> to vector<72x8xbf16>
    %496 = vector.extract_strided_slice %423 {offsets = [0, 24], sizes = [72, 8], strides = [1, 1]} : vector<72x32xbf16> to vector<72x8xbf16>
    %cst_111 = arith.constant dense<0.000000e+00> : vector<72x72xf32>
    %497 = tpu.matmul %494, %495, %cst_111 {dimension_numbers = #tpu.dot_dimension_numbers<[1], [1], [0], [0], [0, 0, 1, 0], [], []>} : vector<72x8xbf16>, vector<72x8xbf16>, vector<72x72xf32> -> vector<72x72xf32>
    %498 = vector.broadcast %7 : vector<1x72xf32> to vector<72x72xf32>
    %499 = arith.addf %497, %498 : vector<72x72xf32>
    %cst_112 = arith.constant dense<0xFF800000> : vector<72xf32>
    %500 = vector.multi_reduction <maximumf>, %499, %cst_112 [1] : vector<72x72xf32> to vector<72xf32>
    %501 = vector.shape_cast %500 : vector<72xf32> to vector<72x1xf32>
    %502 = vector.broadcast %501 : vector<72x1xf32> to vector<72x72xf32>
    %503 = arith.subf %499, %502 : vector<72x72xf32>
    %504 = math.exp %503 : vector<72x72xf32>
    %505 = arith.truncf %504 : vector<72x72xf32> to vector<72x72xbf16>
    %506 = tpu.concatenate %496, %8 in 1 : vector<72x8xbf16>, vector<72x1xbf16> -> vector<72x9xbf16>
    %cst_113 = arith.constant dense<0.000000e+00> : vector<72x9xf32>
    %507 = tpu.matmul %505, %506, %cst_113 {dimension_numbers = #tpu.dot_dimension_numbers<[1], [0], [0], [1], [0, 0, 1, 1], [], []>} : vector<72x72xbf16>, vector<72x9xbf16>, vector<72x9xf32> -> vector<72x9xf32>
    %508 = vector.extract_strided_slice %507 {offsets = [0, 8], sizes = [72, 1], strides = [1, 1]} : vector<72x9xf32> to vector<72x1xf32>
    %509 = tpu.reciprocal %508 {approx = true} : vector<72x1xf32> -> vector<72x1xf32>
    %510 = vector.extract_strided_slice %507 {offsets = [0, 0], sizes = [72, 8], strides = [1, 1]} : vector<72x9xf32> to vector<72x8xf32>
    %511 = vector.broadcast %509 : vector<72x1xf32> to vector<72x8xf32>
    %512 = arith.mulf %510, %511 : vector<72x8xf32>
    %513 = arith.truncf %512 : vector<72x8xf32> to vector<72x8xbf16>
    %514 = vector.extract_strided_slice %297 {offsets = [24, 0], sizes = [8, 32], strides = [1, 1]} : vector<32x32xbf16> to vector<8x32xbf16>
    %cst_114 = arith.constant dense<0.000000e+00> : vector<72x32xf32>
    %515 = tpu.matmul %513, %514, %cst_114 {dimension_numbers = #tpu.dot_dimension_numbers<[1], [0], [0], [1], [0, 0, 1, 1], [], []>} : vector<72x8xbf16>, vector<8x32xbf16>, vector<72x32xf32> -> vector<72x32xf32>
    %516 = arith.addf %493, %515 : vector<72x32xf32>
    %517 = tpu.concatenate %420, %516 in 0 : vector<72x32xf32>, vector<72x32xf32> -> vector<144x32xf32>
    %518 = arith.addf %291, %517 : vector<144x32xf32>
    %519 = vector.broadcast %299 : vector<1x32xf32> to vector<144x32xf32>
    %520 = arith.addf %518, %519 : vector<144x32xf32>
    %c331 = arith.constant 331 : index
    %c0_115 = arith.constant 0 : index
    %521 = vector.load %arg4[%c331, %c0_115] : memref<336x128xbf16, #tpu.memory_space<vmem>>, vector<1x32xbf16>
    %522 = arith.extf %521 : vector<1x32xbf16> to vector<1x32xf32>
    %c332 = arith.constant 332 : index
    %c0_116 = arith.constant 0 : index
    %523 = vector.load %arg4[%c332, %c0_116] : memref<336x128xbf16, #tpu.memory_space<vmem>>, vector<1x32xbf16>
    %524 = arith.extf %523 : vector<1x32xbf16> to vector<1x32xf32>
    %c232 = arith.constant 232 : index
    %c0_117 = arith.constant 0 : index
    %525 = vector.load %arg4[%c232, %c0_117] : memref<336x128xbf16, #tpu.memory_space<vmem>>, vector<32x64xbf16>
    %c333 = arith.constant 333 : index
    %c0_118 = arith.constant 0 : index
    %526 = vector.load %arg4[%c333, %c0_118] : memref<336x128xbf16, #tpu.memory_space<vmem>>, vector<1x64xbf16>
    %527 = arith.extf %526 : vector<1x64xbf16> to vector<1x64xf32>
    %c264 = arith.constant 264 : index
    %c0_119 = arith.constant 0 : index
    %528 = vector.load %arg4[%c264, %c0_119] : memref<336x128xbf16, #tpu.memory_space<vmem>>, vector<64x32xbf16>
    %c334 = arith.constant 334 : index
    %c0_120 = arith.constant 0 : index
    %529 = vector.load %arg4[%c334, %c0_120] : memref<336x128xbf16, #tpu.memory_space<vmem>>, vector<1x32xbf16>
    %530 = arith.extf %529 : vector<1x32xbf16> to vector<1x32xf32>
    %cst_121 = arith.constant dense<0.000000e+00> : vector<144xf32>
    %531 = vector.multi_reduction <add>, %520, %cst_121 [1] : vector<144x32xf32> to vector<144xf32>
    %532 = vector.shape_cast %531 : vector<144xf32> to vector<144x1xf32>
    %cst_122 = arith.constant 3.200000e+01 : f32
    %533 = vector.broadcast %cst_122 : f32 to vector<144x1xf32>
    %534 = arith.divf %532, %533 : vector<144x1xf32>
    %535 = arith.mulf %520, %520 : vector<144x32xf32>
    %cst_123 = arith.constant dense<0.000000e+00> : vector<144xf32>
    %536 = vector.multi_reduction <add>, %535, %cst_123 [1] : vector<144x32xf32> to vector<144xf32>
    %537 = vector.shape_cast %536 : vector<144xf32> to vector<144x1xf32>
    %cst_124 = arith.constant 3.200000e+01 : f32
    %538 = vector.broadcast %cst_124 : f32 to vector<144x1xf32>
    %539 = arith.divf %537, %538 : vector<144x1xf32>
    %540 = arith.mulf %534, %534 : vector<144x1xf32>
    %541 = arith.subf %539, %540 : vector<144x1xf32>
    %542 = vector.broadcast %534 : vector<144x1xf32> to vector<144x32xf32>
    %543 = arith.subf %520, %542 : vector<144x32xf32>
    %cst_125 = arith.constant 9.99999974E-6 : f32
    %544 = vector.broadcast %cst_125 : f32 to vector<144x1xf32>
    %545 = arith.addf %541, %544 : vector<144x1xf32>
    %546 = math.rsqrt %545 : vector<144x1xf32>
    %547 = vector.broadcast %546 : vector<144x1xf32> to vector<144x32xf32>
    %548 = arith.mulf %543, %547 : vector<144x32xf32>
    %549 = vector.broadcast %522 : vector<1x32xf32> to vector<144x32xf32>
    %550 = arith.mulf %548, %549 : vector<144x32xf32>
    %551 = vector.broadcast %524 : vector<1x32xf32> to vector<144x32xf32>
    %552 = arith.addf %550, %551 : vector<144x32xf32>
    %553 = arith.truncf %552 : vector<144x32xf32> to vector<144x32xbf16>
    %cst_126 = arith.constant dense<0.000000e+00> : vector<144x64xf32>
    %554 = tpu.matmul %553, %525, %cst_126 {dimension_numbers = #tpu.dot_dimension_numbers<[1], [0], [0], [1], [0, 0, 1, 1], [], []>} : vector<144x32xbf16>, vector<32x64xbf16>, vector<144x64xf32> -> vector<144x64xf32>
    %555 = vector.broadcast %527 : vector<1x64xf32> to vector<144x64xf32>
    %556 = arith.addf %554, %555 : vector<144x64xf32>
    %cst_127 = arith.constant 5.000000e-01 : f32
    %557 = vector.broadcast %cst_127 : f32 to vector<144x64xf32>
    %558 = arith.mulf %557, %556 : vector<144x64xf32>
    %cst_128 = arith.constant 4.471500e-02 : f32
    %559 = vector.broadcast %cst_128 : f32 to vector<144x64xf32>
    %560 = arith.mulf %559, %556 : vector<144x64xf32>
    %561 = arith.mulf %560, %556 : vector<144x64xf32>
    %562 = arith.mulf %561, %556 : vector<144x64xf32>
    %563 = arith.addf %556, %562 : vector<144x64xf32>
    %cst_129 = arith.constant 0.797884583 : f32
    %564 = vector.broadcast %cst_129 : f32 to vector<144x64xf32>
    %565 = arith.mulf %564, %563 : vector<144x64xf32>
    %566 = math.tanh %565 : vector<144x64xf32>
    %cst_130 = arith.constant 1.000000e+00 : f32
    %567 = vector.broadcast %cst_130 : f32 to vector<144x64xf32>
    %568 = arith.addf %567, %566 : vector<144x64xf32>
    %569 = arith.mulf %558, %568 : vector<144x64xf32>
    %570 = arith.truncf %569 : vector<144x64xf32> to vector<144x64xbf16>
    %cst_131 = arith.constant dense<0.000000e+00> : vector<144x32xf32>
    %571 = tpu.matmul %570, %528, %cst_131 {dimension_numbers = #tpu.dot_dimension_numbers<[1], [0], [0], [1], [0, 0, 1, 1], [], []>} : vector<144x64xbf16>, vector<64x32xbf16>, vector<144x32xf32> -> vector<144x32xf32>
    %572 = vector.broadcast %530 : vector<1x32xf32> to vector<144x32xf32>
    %573 = arith.addf %571, %572 : vector<144x32xf32>
    %574 = arith.addf %520, %573 : vector<144x32xf32>
    %c48 = arith.constant 48 : index
    %c0_132 = arith.constant 0 : index
    %575 = vector.load %arg3[%c48, %c0_132] : memref<88x128xbf16, #tpu.memory_space<vmem>>, vector<32x128xbf16>
    %c80 = arith.constant 80 : index
    %c0_133 = arith.constant 0 : index
    %576 = vector.load %arg3[%c80, %c0_133] : memref<88x128xbf16, #tpu.memory_space<vmem>>, vector<1x128xbf16>
    %577 = arith.extf %576 : vector<1x128xbf16> to vector<1x128xf32>
    %578 = arith.truncf %574 : vector<144x32xf32> to vector<144x32xbf16>
    %cst_134 = arith.constant dense<0.000000e+00> : vector<144x128xf32>
    %579 = tpu.matmul %578, %575, %cst_134 {dimension_numbers = #tpu.dot_dimension_numbers<[1], [0], [0], [1], [0, 0, 1, 1], [], []>} : vector<144x32xbf16>, vector<32x128xbf16>, vector<144x128xf32> -> vector<144x128xf32>
    %580 = vector.broadcast %577 : vector<1x128xf32> to vector<144x128xf32>
    %581 = arith.addf %579, %580 : vector<144x128xf32>
    %c0_135 = arith.constant 0 : index
    %c0_136 = arith.constant 0 : index
    %582 = vector.load %arg5[%c0_135, %c0_136] : memref<144x128xf32, #tpu.memory_space<vmem>>, vector<144x128xf32>
    tpu.vector_store %arg5[%c0_135, %c0_136], %581 {strides = array<i32>} : memref<144x128xf32, #tpu.memory_space<vmem>>, vector<144x128xf32>,
    return
  }
  func.func @transform_0(%arg0: i32) -> (i32, i32) {
    %c0_i32 = arith.constant 0 : i32
    %c0_i32_0 = arith.constant 0 : i32
    %c0_i32_1 = arith.constant 0 : i32
    return %c0_i32, %c0_i32_0 : i32, i32
  }
  func.func @transform_1(%arg0: i32) -> (i32, i32) {
    %c0_i32 = arith.constant 0 : i32
    %c0_i32_0 = arith.constant 0 : i32
    %c0_i32_1 = arith.constant 0 : i32
    return %c0_i32, %c0_i32_0 : i32, i32
  }
  func.func @transform_2(%arg0: i32) -> (i32, i32) {
    %c0_i32 = arith.constant 0 : i32
    %c0_i32_0 = arith.constant 0 : i32
    %c0_i32_1 = arith.constant 0 : i32
    return %c0_i32, %c0_i32_0 : i32, i32
  }
  func.func @transform_3(%arg0: i32) -> (i32, i32) {
    %c0_i32 = arith.constant 0 : i32
    %c0_i32_0 = arith.constant 0 : i32
    %c0_i32_1 = arith.constant 0 : i32
    return %c0_i32, %c0_i32_0 : i32, i32
  }
  func.func @transform_4(%arg0: i32) -> (i32, i32) {
    %c0_i32 = arith.constant 0 : i32
    %c0_i32_0 = arith.constant 0 : i32
    %c0_i32_1 = arith.constant 0 : i32
    return %c0_i32, %c0_i32_0 : i32, i32
  }
}

</mosaic_0001>

<llo_original>
// kernel: exemplar_transformer_forward.1
$region0: #{exemplar_transformer_forward.1}
  #allocation0 [shape = 'u32[]', space=smem, size = 0x4, offset = 0x4, fixed_abs, tag = 'smem constant byte address 0x4 - core index']
  #allocation1 [shape = 'u32[72,128]{1,0:T(1,128)}', space=vmem, size = 0x9000, scoped, tag = 'internal scratch']
  %s0 = inlined_call_operand.vmem [shape: bf16[144,48], index: 0, kind: input, shape index: {}]
  %s1 = inlined_call_operand.vmem [shape: bf16[144,32], index: 1, kind: input, shape index: {}]
  %s2 = inlined_call_operand.vmem [shape: bf16[88,128], index: 2, kind: input, shape index: {}]
  %s3 = inlined_call_operand.vmem [shape: bf16[336,128], index: 3, kind: input, shape index: {}]
  %s4 = inlined_call_operand.vmem [shape: f32[144,128], index: 4, kind: output, shape index: {}]
  %s5 = sld [smem:[#allocation0]]
  $region26: #{exemplar_transformer_forward.1} parent=0
    _
  %s7 = ssub.s32 1, %s5
  %s8 = scalar_select 0, %s7, %s5
  // Predicated region
  $region2: #{exemplar_transformer_forward.1} parent=0 // pred_check
    _
  $region3: #{exemplar_transformer_forward.1} parent=0 // pred_check_branch
    %10 = sbr.rel (0) target = $region5
  $region4: #{exemplar_transformer_forward.1} parent=0 // pred_region
    _
  $region5: #{exemplar_transformer_forward.1} parent=0 // pred_fallthru
    _
  // Predicated region
  $region6: #{exemplar_transformer_forward.1} parent=0 // pred_check
    _
  $region7: #{exemplar_transformer_forward.1} parent=0 // pred_check_branch
    %12 = sbr.rel (0) target = $region9
  $region8: #{exemplar_transformer_forward.1} parent=0 // pred_region
    _
  $region9: #{exemplar_transformer_forward.1} parent=0 // pred_fallthru
    _
  // Predicated region
  $region10: #{exemplar_transformer_forward.1} parent=0 // pred_check
    _
  $region11: #{exemplar_transformer_forward.1} parent=0 // pred_check_branch
    %14 = sbr.rel (0) target = $region13
  $region12: #{exemplar_transformer_forward.1} parent=0 // pred_region
    _
  $region13: #{exemplar_transformer_forward.1} parent=0 // pred_fallthru
    _
  // Predicated region
  $region14: #{exemplar_transformer_forward.1} parent=0 // pred_check
    _
  $region15: #{exemplar_transformer_forward.1} parent=0 // pred_check_branch
    %16 = sbr.rel (0) target = $region17
  $region16: #{exemplar_transformer_forward.1} parent=0 // pred_region
    _
  $region17: #{exemplar_transformer_forward.1} parent=0 // pred_fallthru
    _
  %v19 = vld [vmem:[%s2] sm:$0xf]
  %v20 = vld [vmem:[%s2 + $0x4] sm:$0xf]
  %v21 = vld [vmem:[%s2 + $0x8] sm:$0xf]
  %v22 = vld [vmem:[%s2 + $0xc] sm:$0xf]
  %v23 = vld [vmem:[%s2 + $0x10] sm:$0xf]
  %v24 = vld [vmem:[%s2 + $0x14] sm:$0xf]
  %v25 = vld [vmem:[%s0] sm:$0xf]
  %v26 = vld [vmem:[%s0 + $0x4] sm:$0xf]
  %v27 = vld [vmem:[%s0 + $0x8] sm:$0xf]
  %v28 = vld [vmem:[%s0 + $0xc] sm:$0xf]
  %v29 = vld [vmem:[%s0 + $0x10] sm:$0xf]
  %v30 = vld [vmem:[%s0 + $0x14] sm:$0xf]
  %v31 = vld [vmem:[%s0 + $0x18] sm:$0xf]
  %v32 = vld [vmem:[%s0 + $0x1c] sm:$0xf]
  %v33 = vld [vmem:[%s0 + $0x20] sm:$0xf]
  %v34 = vld [vmem:[%s0 + $0x24] sm:$0xf]
  %v35 = vld [vmem:[%s0 + $0x28] sm:$0xf]
  %v36 = vld [vmem:[%s0 + $0x2c] sm:$0xf]
  %v37 = vld [vmem:[%s0 + $0x30] sm:$0xf]
  %v38 = vld [vmem:[%s0 + $0x34] sm:$0xf]
  %v39 = vld [vmem:[%s0 + $0x38] sm:$0xf]
  %v40 = vld [vmem:[%s0 + $0x3c] sm:$0xf]
  %v41 = vld [vmem:[%s0 + $0x40] sm:$0xf]
  %v42 = vld [vmem:[%s0 + $0x44] sm:$0xf]
  %v43 = vld [vmem:[%s1] sm:$0xf]
  %v44 = vld [vmem:[%s1 + $0x4] sm:$0xf]
  %v45 = vld [vmem:[%s1 + $0x8] sm:$0xf]
  %v46 = vld [vmem:[%s1 + $0xc] sm:$0xf]
  %v47 = vld [vmem:[%s1 + $0x10] sm:$0xf]
  %v48 = vld [vmem:[%s1 + $0x14] sm:$0xf]
  %v49 = vld [vmem:[%s1 + $0x18] sm:$0xf]
  %v50 = vld [vmem:[%s1 + $0x1c] sm:$0xf]
  %v51 = vld [vmem:[%s1 + $0x20] sm:$0xf]
  %v52 = vld [vmem:[%s1 + $0x24] sm:$0xf]
  %v53 = vld [vmem:[%s1 + $0x28] sm:$0xf]
  %v54 = vld [vmem:[%s1 + $0x2c] sm:$0xf]
  %v55 = vld [vmem:[%s1 + $0x30] sm:$0xf]
  %v56 = vld [vmem:[%s1 + $0x34] sm:$0xf]
  %v57 = vld [vmem:[%s1 + $0x38] sm:$0xf]
  %v58 = vld [vmem:[%s1 + $0x3c] sm:$0xf]
  %v59 = vld [vmem:[%s1 + $0x40] sm:$0xf]
  %v60 = vld [vmem:[%s1 + $0x44] sm:$0xf]
  %v61 = vunpack.c.l.bf16 %v43
  %v62 = vunpack.c.l.bf16 %v44
  %v63 = vunpack.c.l.bf16 %v45
  %v64 = vunpack.c.l.bf16 %v46
  %v65 = vunpack.c.l.bf16 %v47
  %v66 = vunpack.c.l.bf16 %v48
  %v67 = vunpack.c.l.bf16 %v49
  %v68 = vunpack.c.l.bf16 %v50
  %v69 = vunpack.c.l.bf16 %v51
  %v70 = vunpack.c.l.bf16 %v52
  %v71 = vunpack.c.l.bf16 %v53
  %v72 = vunpack.c.l.bf16 %v54
  %v73 = vunpack.c.l.bf16 %v55
  %v74 = vunpack.c.l.bf16 %v56
  %v75 = vunpack.c.l.bf16 %v57
  %v76 = vunpack.c.l.bf16 %v58
  %v77 = vunpack.c.l.bf16 %v59
  %v78 = vunpack.c.l.bf16 %v60
  %v97 = vunpack.c.l.b16 %v25
  %v98 = vunpack.c.l.b16 %v26
  %v99 = vunpack.c.l.b16 %v27
  %v100 = vunpack.c.l.b16 %v28
  %v101 = vunpack.c.l.b16 %v29
  %v102 = vunpack.c.l.b16 %v30
  %v103 = vunpack.c.l.b16 %v31
  %v104 = vunpack.c.l.b16 %v32
  %v105 = vunpack.c.l.b16 %v33
  %v106 = vunpack.c.l.b16 %v34
  %v107 = vunpack.c.l.b16 %v35
  %v108 = vunpack.c.l.b16 %v36
  %v109 = vunpack.c.l.b16 %v37
  %v110 = vunpack.c.l.b16 %v38
  %v111 = vunpack.c.l.b16 %v39
  %v112 = vunpack.c.l.b16 %v40
  %v113 = vunpack.c.l.b16 %v41
  %v114 = vunpack.c.l.b16 %v42
  %v115 = vpack.c.b16 %v98, %v97
  %v116 = vpack.c.b16 %v100, %v99
  %v117 = vpack.c.b16 %v102, %v101
  %v118 = vpack.c.b16 %v104, %v103
  %v119 = vpack.c.b16 %v106, %v105
  %v120 = vpack.c.b16 %v108, %v107
  %v121 = vpack.c.b16 %v110, %v109
  %v122 = vpack.c.b16 %v112, %v111
  %v123 = vpack.c.b16 %v114, %v113
  %v130 = vunpack.c.l.b16 %v19
  %v131 = vunpack.c.l.b16 %v20
  %v132 = vunpack.c.l.b16 %v21
  %v133 = vunpack.c.l.b16 %v22
  %v134 = vunpack.c.l.b16 %v23
  %v135 = vunpack.c.l.b16 %v24
  %v136 = vpack.c.b16 %v131, %v130
  %v137 = vpack.c.b16 %v133, %v132
  %v138 = vpack.c.b16 %v135, %v134
  %vm142 = vcmask 392192
  %v144 = vsel %vm142, %v115, 0
  %v147 = vsel %vm142, %v116, 0
  %v150 = vsel %vm142, %v117, 0
  %v153 = vsel %vm142, %v118, 0
  %v156 = vsel %vm142, %v119, 0
  %v159 = vsel %vm142, %v120, 0
  %v162 = vsel %vm142, %v121, 0
  %v165 = vsel %vm142, %v122, 0
  %v168 = vsel %vm142, %v123, 0
  %170 = vmatpush.bf16.msra.mxu0 0
  %171 = vmatpush.bf16.msra.mxu0 0
  %172 = vmatpush.bf16.msra.mxu0 0
  %173 = vmatpush.bf16.msra.mxu0 0
  %174 = vmatpush.bf16.msra.mxu0 0
  %175 = vmatpush.bf16.msra.mxu0 %v138
  %176 = vmatpush.bf16.msra.mxu0 %v137
  %177 = vmatpush.bf16.msra.mxu0 %v136
  %178 = vmatmul.bf16.gmra.mxu0 %v144
  %v179 = vpop.f32.mrf.mxu0
  %v180 = vadd.f32 %v61, %v179
  %v181 = vpop.f32.mrf.mxu0
  %v182 = vadd.f32 %v62, %v181
  %183 = vmatmul.bf16.gmra.mxu0 %v147
  %v184 = vpop.f32.mrf.mxu0
  %v185 = vadd.f32 %v63, %v184
  %v186 = vpop.f32.mrf.mxu0
  %v187 = vadd.f32 %v64, %v186
  %188 = vmatmul.bf16.gmra.mxu0 %v150
  %v189 = vpop.f32.mrf.mxu0
  %v190 = vadd.f32 %v65, %v189
  %v191 = vpop.f32.mrf.mxu0
  %v192 = vadd.f32 %v66, %v191
  %193 = vmatmul.bf16.gmra.mxu0 %v153
  %v194 = vpop.f32.mrf.mxu0
  %v195 = vadd.f32 %v67, %v194
  %v196 = vpop.f32.mrf.mxu0
  %v197 = vadd.f32 %v68, %v196
  %198 = vmatmul.bf16.gmra.mxu0 %v156
  %v199 = vpop.f32.mrf.mxu0
  %v200 = vadd.f32 %v69, %v199
  %v201 = vpop.f32.mrf.mxu0
  %v202 = vadd.f32 %v70, %v201
  %203 = vmatmul.bf16.gmra.mxu0 %v159
  %v204 = vpop.f32.mrf.mxu0
  %v205 = vadd.f32 %v71, %v204
  %v206 = vpop.f32.mrf.mxu0
  %v207 = vadd.f32 %v72, %v206
  %208 = vmatmul.bf16.gmra.mxu0 %v162
  %v209 = vpop.f32.mrf.mxu0
  %v210 = vadd.f32 %v73, %v209
  %v211 = vpop.f32.mrf.mxu0
  %v212 = vadd.f32 %v74, %v211
  %213 = vmatmul.bf16.gmra.mxu0 %v165
  %v214 = vpop.f32.mrf.mxu0
  %v215 = vadd.f32 %v75, %v214
  %v216 = vpop.f32.mrf.mxu0
  %v217 = vadd.f32 %v76, %v216
  %218 = vmatmul.bf16.gmra.mxu0 %v168
  %v219 = vpop.f32.mrf.mxu0
  %v220 = vadd.f32 %v77, %v219
  %v221 = vpop.f32.mrf.mxu0
  %v222 = vadd.f32 %v78, %v221
  %223 = vdwg.mxu0
  %v224 = vld [vmem:[%s2 + $0x28] sm:$0x1]
  %v225 = vunpack.c.l.bf16 %v224
  %v226 = vld [vmem:[%s3 + $0x50] sm:$0x1]
  %v227 = vunpack.c.l.bf16 %v226
  %v228 = vld [vmem:[%s3] sm:$0xf]
  %v229 = vld [vmem:[%s3 + $0x4] sm:$0xf]
  %v230 = vld [vmem:[%s3 + $0x8] sm:$0xf]
  %v231 = vld [vmem:[%s3 + $0xc] sm:$0xf]
  %v232 = vld [vmem:[%s3 + $0x10] sm:$0xf]
  %v233 = vld [vmem:[%s3 + $0x14] sm:$0xf]
  %v234 = vld [vmem:[%s3 + $0x18] sm:$0xf]
  %v235 = vld [vmem:[%s3 + $0x1c] sm:$0xf]
  %v236 = vld [vmem:[%s3 + $0x50] sm:$0x2]
  %v237 = vunpack.c.l.bf16 %v236
  %vm238 = vcmask 261120
  %v239 = vsel %vm238, %v180, 0.0
  %240 = vadd.xlane.f32.xlu0 %v239
  %v241 = vpop.xlane.xlu0 %240
  %v242 = vsel %vm238, %v182, 0.0
  %243 = vadd.xlane.f32.xlu0 %v242
  %v244 = vpop.xlane.xlu0 %243
  %v245 = vsel %vm238, %v185, 0.0
  %246 = vadd.xlane.f32.xlu0 %v245
  %v247 = vpop.xlane.xlu0 %246
  %v248 = vsel %vm238, %v187, 0.0
  %249 = vadd.xlane.f32.xlu0 %v248
  %v250 = vpop.xlane.xlu0 %249
  %v251 = vsel %vm238, %v190, 0.0
  %252 = vadd.xlane.f32.xlu0 %v251
  %v253 = vpop.xlane.xlu0 %252
  %v254 = vsel %vm238, %v192, 0.0
  %255 = vadd.xlane.f32.xlu0 %v254
  %v256 = vpop.xlane.xlu0 %255
  %v257 = vsel %vm238, %v195, 0.0
  %258 = vadd.xlane.f32.xlu0 %v257
  %v259 = vpop.xlane.xlu0 %258
  %v260 = vsel %vm238, %v197, 0.0
  %261 = vadd.xlane.f32.xlu0 %v260
  %v262 = vpop.xlane.xlu0 %261
  %v263 = vsel %vm238, %v200, 0.0
  %264 = vadd.xlane.f32.xlu0 %v263
  %v265 = vpop.xlane.xlu0 %264
  %v266 = vsel %vm238, %v202, 0.0
  %267 = vadd.xlane.f32.xlu0 %v266
  %v268 = vpop.xlane.xlu0 %267
  %v269 = vsel %vm238, %v205, 0.0
  %270 = vadd.xlane.f32.xlu0 %v269
  %v271 = vpop.xlane.xlu0 %270
  %v272 = vsel %vm238, %v207, 0.0
  %273 = vadd.xlane.f32.xlu0 %v272
  %v274 = vpop.xlane.xlu0 %273
  %v275 = vsel %vm238, %v210, 0.0
  %276 = vadd.xlane.f32.xlu0 %v275
  %v277 = vpop.xlane.xlu0 %276
  %v278 = vsel %vm238, %v212, 0.0
  %279 = vadd.xlane.f32.xlu0 %v278
  %v280 = vpop.xlane.xlu0 %279
  %v281 = vsel %vm238, %v215, 0.0
  %282 = vadd.xlane.f32.xlu0 %v281
  %v283 = vpop.xlane.xlu0 %282
  %v284 = vsel %vm238, %v217, 0.0
  %285 = vadd.xlane.f32.xlu0 %v284
  %v286 = vpop.xlane.xlu0 %285
  %v287 = vsel %vm238, %v220, 0.0
  %288 = vadd.xlane.f32.xlu0 %v287
  %v289 = vpop.xlane.xlu0 %288
  %v290 = vsel %vm238, %v222, 0.0
  %291 = vadd.xlane.f32.xlu0 %v290
  %v292 = vpop.xlane.xlu0 %291
  %v293 = vrcp.pop 32.0
  %v294 = vmul.f32 32.0, %v293
  %v295 = vsub.f32 1.0, %v294
  %v296 = vmul.f32 %v293, %v295
  %v297 = vadd.f32 %v293, %v296
  %vm298 = vweird.f32 %v293
  %v299 = vsel %vm298, %v293, %v297
  %v300 = vmul.f32 %v241, %v299
  %v301 = vmul.f32 %v244, %v299
  %v302 = vmul.f32 %v247, %v299
  %v303 = vmul.f32 %v250, %v299
  %v304 = vmul.f32 %v253, %v299
  %v305 = vmul.f32 %v256, %v299
  %v306 = vmul.f32 %v259, %v299
  %v307 = vmul.f32 %v262, %v299
  %v308 = vmul.f32 %v265, %v299
  %v309 = vmul.f32 %v268, %v299
  %v310 = vmul.f32 %v271, %v299
  %v311 = vmul.f32 %v274, %v299
  %v312 = vmul.f32 %v277, %v299
  %v313 = vmul.f32 %v280, %v299
  %v314 = vmul.f32 %v283, %v299
  %v315 = vmul.f32 %v286, %v299
  %v316 = vmul.f32 %v289, %v299
  %v317 = vmul.f32 %v292, %v299
  %v318 = vmul.f32 %v180, %v180
  %v319 = vmul.f32 %v182, %v182
  %v320 = vmul.f32 %v185, %v185
  %v321 = vmul.f32 %v187, %v187
  %v322 = vmul.f32 %v190, %v190
  %v323 = vmul.f32 %v192, %v192
  %v324 = vmul.f32 %v195, %v195
  %v325 = vmul.f32 %v197, %v197
  %v326 = vmul.f32 %v200, %v200
  %v327 = vmul.f32 %v202, %v202
  %v328 = vmul.f32 %v205, %v205
  %v329 = vmul.f32 %v207, %v207
  %v330 = vmul.f32 %v210, %v210
  %v331 = vmul.f32 %v212, %v212
  %v332 = vmul.f32 %v215, %v215
  %v333 = vmul.f32 %v217, %v217
  %v334 = vmul.f32 %v220, %v220
  %v335 = vmul.f32 %v222, %v222
  %v336 = vsel %vm238, %v318, 0.0
  %337 = vadd.xlane.f32.xlu0 %v336
  %v338 = vpop.xlane.xlu0 %337
  %v339 = vsel %vm238, %v319, 0.0
  %340 = vadd.xlane.f32.xlu0 %v339
  %v341 = vpop.xlane.xlu0 %340
  %v342 = vsel %vm238, %v320, 0.0
  %343 = vadd.xlane.f32.xlu0 %v342
  %v344 = vpop.xlane.xlu0 %343
  %v345 = vsel %vm238, %v321, 0.0
  %346 = vadd.xlane.f32.xlu0 %v345
  %v347 = vpop.xlane.xlu0 %346
  %v348 = vsel %vm238, %v322, 0.0
  %349 = vadd.xlane.f32.xlu0 %v348
  %v350 = vpop.xlane.xlu0 %349
  %v351 = vsel %vm238, %v323, 0.0
  %352 = vadd.xlane.f32.xlu0 %v351
  %v353 = vpop.xlane.xlu0 %352
  %v354 = vsel %vm238, %v324, 0.0
  %355 = vadd.xlane.f32.xlu0 %v354
  %v356 = vpop.xlane.xlu0 %355
  %v357 = vsel %vm238, %v325, 0.0
  %358 = vadd.xlane.f32.xlu0 %v357
  %v359 = vpop.xlane.xlu0 %358
  %v360 = vsel %vm238, %v326, 0.0
  %361 = vadd.xlane.f32.xlu0 %v360
  %v362 = vpop.xlane.xlu0 %361
  %v363 = vsel %vm238, %v327, 0.0
  %364 = vadd.xlane.f32.xlu0 %v363
  %v365 = vpop.xlane.xlu0 %364
  %v366 = vsel %vm238, %v328, 0.0
  %367 = vadd.xlane.f32.xlu0 %v366
  %v368 = vpop.xlane.xlu0 %367
  %v369 = vsel %vm238, %v329, 0.0
  %370 = vadd.xlane.f32.xlu0 %v369
  %v371 = vpop.xlane.xlu0 %370
  %v372 = vsel %vm238, %v330, 0.0
  %373 = vadd.xlane.f32.xlu0 %v372
  %v374 = vpop.xlane.xlu0 %373
  %v375 = vsel %vm238, %v331, 0.0
  %376 = vadd.xlane.f32.xlu0 %v375
  %v377 = vpop.xlane.xlu0 %376
  %v378 = vsel %vm238, %v332, 0.0
  %379 = vadd.xlane.f32.xlu0 %v378
  %v380 = vpop.xlane.xlu0 %379
  %v381 = vsel %vm238, %v333, 0.0
  %382 = vadd.xlane.f32.xlu0 %v381
  %v383 = vpop.xlane.xlu0 %382
  %v384 = vsel %vm238, %v334, 0.0
  %385 = vadd.xlane.f32.xlu0 %v384
  %v386 = vpop.xlane.xlu0 %385
  %v387 = vsel %vm238, %v335, 0.0
  %388 = vadd.xlane.f32.xlu0 %v387
  %v389 = vpop.xlane.xlu0 %388
  %v390 = vmul.f32 %v338, %v299
  %v391 = vmul.f32 %v341, %v299
  %v392 = vmul.f32 %v344, %v299
  %v393 = vmul.f32 %v347, %v299
  %v394 = vmul.f32 %v350, %v299
  %v395 = vmul.f32 %v353, %v299
  %v396 = vmul.f32 %v356, %v299
  %v397 = vmul.f32 %v359, %v299
  %v398 = vmul.f32 %v362, %v299
  %v399 = vmul.f32 %v365, %v299
  %v400 = vmul.f32 %v368, %v299
  %v401 = vmul.f32 %v371, %v299
  %v402 = vmul.f32 %v374, %v299
  %v403 = vmul.f32 %v377, %v299
  %v404 = vmul.f32 %v380, %v299
  %v405 = vmul.f32 %v383, %v299
  %v406 = vmul.f32 %v386, %v299
  %v407 = vmul.f32 %v389, %v299
  %v408 = vmul.f32 %v300, %v300
  %v409 = vmul.f32 %v301, %v301
  %v410 = vmul.f32 %v302, %v302
  %v411 = vmul.f32 %v303, %v303
  %v412 = vmul.f32 %v304, %v304
  %v413 = vmul.f32 %v305, %v305
  %v414 = vmul.f32 %v306, %v306
  %v415 = vmul.f32 %v307, %v307
  %v416 = vmul.f32 %v308, %v308
  %v417 = vmul.f32 %v309, %v309
  %v418 = vmul.f32 %v310, %v310
  %v419 = vmul.f32 %v311, %v311
  %v420 = vmul.f32 %v312, %v312
  %v421 = vmul.f32 %v313, %v313
  %v422 = vmul.f32 %v314, %v314
  %v423 = vmul.f32 %v315, %v315
  %v424 = vmul.f32 %v316, %v316
  %v425 = vmul.f32 %v317, %v317
  %v426 = vsub.f32 %v390, %v408
  %v427 = vsub.f32 %v391, %v409
  %v428 = vsub.f32 %v392, %v410
  %v429 = vsub.f32 %v393, %v411
  %v430 = vsub.f32 %v394, %v412
  %v431 = vsub.f32 %v395, %v413
  %v432 = vsub.f32 %v396, %v414
  %v433 = vsub.f32 %v397, %v415
  %v434 = vsub.f32 %v398, %v416
  %v435 = vsub.f32 %v399, %v417
  %v436 = vsub.f32 %v400, %v418
  %v437 = vsub.f32 %v401, %v419
  %v438 = vsub.f32 %v402, %v420
  %v439 = vsub.f32 %v403, %v421
  %v440 = vsub.f32 %v404, %v422
  %v441 = vsub.f32 %v405, %v423
  %v442 = vsub.f32 %v406, %v424
  %v443 = vsub.f32 %v407, %v425
  %v444 = vsub.f32 %v180, %v300
  %v445 = vsub.f32 %v182, %v301
  %v446 = vsub.f32 %v185, %v302
  %v447 = vsub.f32 %v187, %v303
  %v448 = vsub.f32 %v190, %v304
  %v449 = vsub.f32 %v192, %v305
  %v450 = vsub.f32 %v195, %v306
  %v451 = vsub.f32 %v197, %v307
  %v452 = vsub.f32 %v200, %v308
  %v453 = vsub.f32 %v202, %v309
  %v454 = vsub.f32 %v205, %v310
  %v455 = vsub.f32 %v207, %v311
  %v456 = vsub.f32 %v210, %v312
  %v457 = vsub.f32 %v212, %v313
  %v458 = vsub.f32 %v215, %v314
  %v459 = vsub.f32 %v217, %v315
  %v460 = vsub.f32 %v220, %v316
  %v461 = vsub.f32 %v222, %v317
  %v462 = vadd.f32 %v426, 1e-05
  %v463 = vadd.f32 %v427, 1e-05
  %v464 = vadd.f32 %v428, 1e-05
  %v465 = vadd.f32 %v429, 1e-05
  %v466 = vadd.f32 %v430, 1e-05
  %v467 = vadd.f32 %v431, 1e-05
  %v468 = vadd.f32 %v432, 1e-05
  %v469 = vadd.f32 %v433, 1e-05
  %v470 = vadd.f32 %v434, 1e-05
  %v471 = vadd.f32 %v435, 1e-05
  %v472 = vadd.f32 %v436, 1e-05
  %v473 = vadd.f32 %v437, 1e-05
  %v474 = vadd.f32 %v438, 1e-05
  %v475 = vadd.f32 %v439, 1e-05
  %v476 = vadd.f32 %v440, 1e-05
  %v477 = vadd.f32 %v441, 1e-05
  %v478 = vadd.f32 %v442, 1e-05
  %v479 = vadd.f32 %v443, 1e-05
  %v480 = vrsqrt.pop %v462
  %v481 = vmul.f32 %v480, %v462
  %v482 = vmul.f32 %v481, %v480
  %v483 = vmul.f32 0.5, %v482
  %v484 = vsub.f32 1.5, %v483
  %v485 = vmul.f32 %v480, %v484
  %vm486 = vweird.f32 %v462
  %vm487 = vweird.f32 %v480
  %vm488 = vmor %vm486, %vm487
  %v489 = vsel %vm488, %v480, %v485
  %v490 = vrsqrt.pop %v463
  %v491 = vmul.f32 %v490, %v463
  %v492 = vmul.f32 %v491, %v490
  %v493 = vmul.f32 0.5, %v492
  %v494 = vsub.f32 1.5, %v493
  %v495 = vmul.f32 %v490, %v494
  %vm496 = vweird.f32 %v463
  %vm497 = vweird.f32 %v490
  %vm498 = vmor %vm496, %vm497
  %v499 = vsel %vm498, %v490, %v495
  %v500 = vrsqrt.pop %v464
  %v501 = vmul.f32 %v500, %v464
  %v502 = vmul.f32 %v501, %v500
  %v503 = vmul.f32 0.5, %v502
  %v504 = vsub.f32 1.5, %v503
  %v505 = vmul.f32 %v500, %v504
  %vm506 = vweird.f32 %v464
  %vm507 = vweird.f32 %v500
  %vm508 = vmor %vm506, %vm507
  %v509 = vsel %vm508, %v500, %v505
  %v510 = vrsqrt.pop %v465
  %v511 = vmul.f32 %v510, %v465
  %v512 = vmul.f32 %v511, %v510
  %v513 = vmul.f32 0.5, %v512
  %v514 = vsub.f32 1.5, %v513
  %v515 = vmul.f32 %v510, %v514
  %vm516 = vweird.f32 %v465
  %vm517 = vweird.f32 %v510
  %vm518 = vmor %vm516, %vm517
  %v519 = vsel %vm518, %v510, %v515
  %v520 = vrsqrt.pop %v466
  %v521 = vmul.f32 %v520, %v466
  %v522 = vmul.f32 %v521, %v520
  %v523 = vmul.f32 0.5, %v522
  %v524 = vsub.f32 1.5, %v523
  %v525 = vmul.f32 %v520, %v524
  %vm526 = vweird.f32 %v466
  %vm527 = vweird.f32 %v520
  %vm528 = vmor %vm526, %vm527
  %v529 = vsel %vm528, %v520, %v525
  %v530 = vrsqrt.pop %v467
  %v531 = vmul.f32 %v530, %v467
  %v532 = vmul.f32 %v531, %v530
  %v533 = vmul.f32 0.5, %v532
  %v534 = vsub.f32 1.5, %v533
  %v535 = vmul.f32 %v530, %v534
  %vm536 = vweird.f32 %v467
  %vm537 = vweird.f32 %v530
  %vm538 = vmor %vm536, %vm537
  %v539 = vsel %vm538, %v530, %v535
  %v540 = vrsqrt.pop %v468
  %v541 = vmul.f32 %v540, %v468
  %v542 = vmul.f32 %v541, %v540
  %v543 = vmul.f32 0.5, %v542
  %v544 = vsub.f32 1.5, %v543
  %v545 = vmul.f32 %v540, %v544
  %vm546 = vweird.f32 %v468
  %vm547 = vweird.f32 %v540
  %vm548 = vmor %vm546, %vm547
  %v549 = vsel %vm548, %v540, %v545
  %v550 = vrsqrt.pop %v469
  %v551 = vmul.f32 %v550, %v469
  %v552 = vmul.f32 %v551, %v550
  %v553 = vmul.f32 0.5, %v552
  %v554 = vsub.f32 1.5, %v553
  %v555 = vmul.f32 %v550, %v554
  %vm556 = vweird.f32 %v469
  %vm557 = vweird.f32 %v550
  %vm558 = vmor %vm556, %vm557
  %v559 = vsel %vm558, %v550, %v555
  %v560 = vrsqrt.pop %v470
  %v561 = vmul.f32 %v560, %v470
  %v562 = vmul.f32 %v561, %v560
  %v563 = vmul.f32 0.5, %v562
  %v564 = vsub.f32 1.5, %v563
  %v565 = vmul.f32 %v560, %v564
  %vm566 = vweird.f32 %v470
  %vm567 = vweird.f32 %v560
  %vm568 = vmor %vm566, %vm567
  %v569 = vsel %vm568, %v560, %v565
  %v570 = vrsqrt.pop %v471
  %v571 = vmul.f32 %v570, %v471
  %v572 = vmul.f32 %v571, %v570
  %v573 = vmul.f32 0.5, %v572
  %v574 = vsub.f32 1.5, %v573
  %v575 = vmul.f32 %v570, %v574
  %vm576 = vweird.f32 %v471
  %vm577 = vweird.f32 %v570
  %vm578 = vmor %vm576, %vm577
  %v579 = vsel %vm578, %v570, %v575
  %v580 = vrsqrt.pop %v472
  %v581 = vmul.f32 %v580, %v472
  %v582 = vmul.f32 %v581, %v580
  %v583 = vmul.f32 0.5, %v582
  %v584 = vsub.f32 1.5, %v583
  %v585 = vmul.f32 %v580, %v584
  %vm586 = vweird.f32 %v472
  %vm587 = vweird.f32 %v580
  %vm588 = vmor %vm586, %vm587
  %v589 = vsel %vm588, %v580, %v585
  %v590 = vrsqrt.pop %v473
  %v591 = vmul.f32 %v590, %v473
  %v592 = vmul.f32 %v591, %v590
  %v593 = vmul.f32 0.5, %v592
  %v594 = vsub.f32 1.5, %v593
  %v595 = vmul.f32 %v590, %v594
  %vm596 = vweird.f32 %v473
  %vm597 = vweird.f32 %v590
  %vm598 = vmor %vm596, %vm597
  %v599 = vsel %vm598, %v590, %v595
  %v600 = vrsqrt.pop %v474
  %v601 = vmul.f32 %v600, %v474
  %v602 = vmul.f32 %v601, %v600
  %v603 = vmul.f32 0.5, %v602
  %v604 = vsub.f32 1.5, %v603
  %v605 = vmul.f32 %v600, %v604
  %vm606 = vweird.f32 %v474
  %vm607 = vweird.f32 %v600
  %vm608 = vmor %vm606, %vm607
  %v609 = vsel %vm608, %v600, %v605
  %v610 = vrsqrt.pop %v475
  %v611 = vmul.f32 %v610, %v475
  %v612 = vmul.f32 %v611, %v610
  %v613 = vmul.f32 0.5, %v612
  %v614 = vsub.f32 1.5, %v613
  %v615 = vmul.f32 %v610, %v614
  %vm616 = vweird.f32 %v475
  %vm617 = vweird.f32 %v610
  %vm618 = vmor %vm616, %vm617
  %v619 = vsel %vm618, %v610, %v615
  %v620 = vrsqrt.pop %v476
  %v621 = vmul.f32 %v620, %v476
  %v622 = vmul.f32 %v621, %v620
  %v623 = vmul.f32 0.5, %v622
  %v624 = vsub.f32 1.5, %v623
  %v625 = vmul.f32 %v620, %v624
  %vm626 = vweird.f32 %v476
  %vm627 = vweird.f32 %v620
  %vm628 = vmor %vm626, %vm627
  %v629 = vsel %vm628, %v620, %v625
  %v630 = vrsqrt.pop %v477
  %v631 = vmul.f32 %v630, %v477
  %v632 = vmul.f32 %v631, %v630
  %v633 = vmul.f32 0.5, %v632
  %v634 = vsub.f32 1.5, %v633
  %v635 = vmul.f32 %v630, %v634
  %vm636 = vweird.f32 %v477
  %vm637 = vweird.f32 %v630
  %vm638 = vmor %vm636, %vm637
  %v639 = vsel %vm638, %v630, %v635
  %v640 = vrsqrt.pop %v478
  %v641 = vmul.f32 %v640, %v478
  %v642 = vmul.f32 %v641, %v640
  %v643 = vmul.f32 0.5, %v642
  %v644 = vsub.f32 1.5, %v643
  %v645 = vmul.f32 %v640, %v644
  %vm646 = vweird.f32 %v478
  %vm647 = vweird.f32 %v640
  %vm648 = vmor %vm646, %vm647
  %v649 = vsel %vm648, %v640, %v645
  %v650 = vrsqrt.pop %v479
  %v651 = vmul.f32 %v650, %v479
  %v652 = vmul.f32 %v651, %v650
  %v653 = vmul.f32 0.5, %v652
  %v654 = vsub.f32 1.5, %v653
  %v655 = vmul.f32 %v650, %v654
  %vm656 = vweird.f32 %v479
  %vm657 = vweird.f32 %v650
  %vm658 = vmor %vm656, %vm657
  %v659 = vsel %vm658, %v650, %v655
  %v660 = vmul.f32 %v444, %v489
  %v661 = vmul.f32 %v445, %v499
  %v662 = vmul.f32 %v446, %v509
  %v663 = vmul.f32 %v447, %v519
  %v664 = vmul.f32 %v448, %v529
  %v665 = vmul.f32 %v449, %v539
  %v666 = vmul.f32 %v450, %v549
  %v667 = vmul.f32 %v451, %v559
  %v668 = vmul.f32 %v452, %v569
  %v669 = vmul.f32 %v453, %v579
  %v670 = vmul.f32 %v454, %v589
  %v671 = vmul.f32 %v455, %v599
  %v672 = vmul.f32 %v456, %v609
  %v673 = vmul.f32 %v457, %v619
  %v674 = vmul.f32 %v458, %v629
  %v675 = vmul.f32 %v459, %v639
  %v676 = vmul.f32 %v460, %v649
  %v677 = vmul.f32 %v461, %v659
  %v678 = vperm.slane %v227, 0
  %v679 = vmul.f32 %v660, %v678
  %v680 = vmul.f32 %v661, %v678
  %v681 = vmul.f32 %v662, %v678
  %v682 = vmul.f32 %v663, %v678
  %v683 = vmul.f32 %v664, %v678
  %v684 = vmul.f32 %v665, %v678
  %v685 = vmul.f32 %v666, %v678
  %v686 = vmul.f32 %v667, %v678
  %v687 = vmul.f32 %v668, %v678
  %v688 = vmul.f32 %v669, %v678
  %v689 = vmul.f32 %v670, %v678
  %v690 = vmul.f32 %v671, %v678
  %v691 = vmul.f32 %v672, %v678
  %v692 = vmul.f32 %v673, %v678
  %v693 = vmul.f32 %v674, %v678
  %v694 = vmul.f32 %v675, %v678
  %v695 = vmul.f32 %v676, %v678
  %v696 = vmul.f32 %v677, %v678
  %v697 = vperm.slane %v227, 1
  %v698 = vadd.f32 %v679, %v697
  %v699 = vadd.f32 %v680, %v697
  %v700 = vadd.f32 %v681, %v697
  %v701 = vadd.f32 %v682, %v697
  %v702 = vadd.f32 %v683, %v697
  %v703 = vadd.f32 %v684, %v697
  %v704 = vadd.f32 %v685, %v697
  %v705 = vadd.f32 %v686, %v697
  %v706 = vadd.f32 %v687, %v697
  %v707 = vadd.f32 %v688, %v697
  %v708 = vadd.f32 %v689, %v697
  %v709 = vadd.f32 %v690, %v697
  %v710 = vadd.f32 %v691, %v697
  %v711 = vadd.f32 %v692, %v697
  %v712 = vadd.f32 %v693, %v697
  %v713 = vadd.f32 %v694, %v697
  %v714 = vadd.f32 %v695, %v697
  %v715 = vadd.f32 %v696, %v697
  %v716 = vpack.c.bf16 %v699, %v698
  %v717 = vpack.c.bf16 %v701, %v700
  %v718 = vpack.c.bf16 %v703, %v702
  %v719 = vpack.c.bf16 %v705, %v704
  %v720 = vpack.c.bf16 %v707, %v706
  %v721 = vpack.c.bf16 %v709, %v708
  %v722 = vpack.c.bf16 %v711, %v710
  %v723 = vpack.c.bf16 %v713, %v712
  %v724 = vpack.c.bf16 %v715, %v714
  %v729 = vunpack.c.l.b16 %v228
  %v730 = vunpack.c.l.b16 %v229
  %v731 = vunpack.c.l.b16 %v230
  %v732 = vunpack.c.l.b16 %v231
  %v733 = vpack.c.b16 %v730, %v729
  %v734 = vpack.c.b16 %v732, %v731
  %v738 = vsel %vm238, %v716, 0
  %v741 = vsel %vm238, %v717, 0
  %v744 = vsel %vm238, %v718, 0
  %v747 = vsel %vm238, %v719, 0
  %v750 = vsel %vm238, %v720, 0
  %v753 = vsel %vm238, %v721, 0
  %v756 = vsel %vm238, %v722, 0
  %v759 = vsel %vm238, %v723, 0
  %v762 = vsel %vm238, %v724, 0
  %764 = vmatpush.bf16.msra.mxu0 0
  %765 = vmatpush.bf16.msra.mxu0 0
  %766 = vmatpush.bf16.msra.mxu0 0
  %767 = vmatpush.bf16.msra.mxu0 0
  %768 = vmatpush.bf16.msra.mxu0 0
  %769 = vmatpush.bf16.msra.mxu0 0
  %770 = vmatpush.bf16.msra.mxu0 %v734
  %771 = vmatpush.bf16.msra.mxu0 %v733
  %772 = vmatmul.bf16.gmra.mxu0 %v738
  %v773 = vpop.f32.mrf.mxu0
  %v774 = vadd.f32 0.0, %v773
  %v775 = vpop.f32.mrf.mxu0
  %v776 = vadd.f32 0.0, %v775
  %777 = vmatmul.bf16.gmra.mxu0 %v741
  %v778 = vpop.f32.mrf.mxu0
  %v779 = vadd.f32 0.0, %v778
  %v780 = vpop.f32.mrf.mxu0
  %v781 = vadd.f32 0.0, %v780
  %782 = vmatmul.bf16.gmra.mxu0 %v744
  %v783 = vpop.f32.mrf.mxu0
  %v784 = vadd.f32 0.0, %v783
  %v785 = vpop.f32.mrf.mxu0
  %v786 = vadd.f32 0.0, %v785
  %787 = vmatmul.bf16.gmra.mxu0 %v747
  %v788 = vpop.f32.mrf.mxu0
  %v789 = vadd.f32 0.0, %v788
  %v790 = vpop.f32.mrf.mxu0
  %v791 = vadd.f32 0.0, %v790
  %792 = vmatmul.bf16.gmra.mxu0 %v750
  %v793 = vpop.f32.mrf.mxu0
  %v794 = vadd.f32 0.0, %v793
  %v795 = vpop.f32.mrf.mxu0
  %v796 = vadd.f32 0.0, %v795
  %797 = vmatmul.bf16.gmra.mxu0 %v753
  %v798 = vpop.f32.mrf.mxu0
  %v799 = vadd.f32 0.0, %v798
  %v800 = vpop.f32.mrf.mxu0
  %v801 = vadd.f32 0.0, %v800
  %802 = vmatmul.bf16.gmra.mxu0 %v756
  %v803 = vpop.f32.mrf.mxu0
  %v804 = vadd.f32 0.0, %v803
  %v805 = vpop.f32.mrf.mxu0
  %v806 = vadd.f32 0.0, %v805
  %807 = vmatmul.bf16.gmra.mxu0 %v759
  %v808 = vpop.f32.mrf.mxu0
  %v809 = vadd.f32 0.0, %v808
  %v810 = vpop.f32.mrf.mxu0
  %v811 = vadd.f32 0.0, %v810
  %812 = vmatmul.bf16.gmra.mxu0 %v762
  %v813 = vpop.f32.mrf.mxu0
  %v814 = vadd.f32 0.0, %v813
  %v815 = vpop.f32.mrf.mxu0
  %v816 = vadd.f32 0.0, %v815
  %817 = vdwg.mxu0
  %v818 = vpack.c.bf16 %v774, %v774
  %v819 = vpack.c.bf16 %v776, %v776
  %v820 = vpack.c.bf16 %v779, %v779
  %v821 = vpack.c.bf16 %v781, %v781
  %v822 = vpack.c.bf16 %v784, %v784
  %v823 = vpack.c.bf16 %v786, %v786
  %v824 = vpack.c.bf16 %v789, %v789
  %v825 = vpack.c.bf16 %v791, %v791
  %v826 = vpack.c.bf16 %v794, %v794
  %v827 = vpack.c.bf16 %v796, %v796
  %v828 = vpack.c.bf16 %v799, %v799
  %v829 = vpack.c.bf16 %v801, %v801
  %v830 = vpack.c.bf16 %v804, %v804
  %v831 = vpack.c.bf16 %v806, %v806
  %v832 = vpack.c.bf16 %v809, %v809
  %v833 = vpack.c.bf16 %v811, %v811
  %v834 = vpack.c.bf16 %v814, %v814
  %v835 = vpack.c.bf16 %v816, %v816
  %v836 = vperm.slane %v225, 1
  %v846 = vunpack.c.l.b16 %v818
  %v847 = vunpack.c.l.b16 %v819
  %v848 = vunpack.c.l.b16 %v820
  %v849 = vunpack.c.l.b16 %v821
  %v850 = vunpack.c.l.b16 %v822
  %v851 = vunpack.c.l.b16 %v823
  %v852 = vunpack.c.l.b16 %v824
  %v853 = vunpack.c.l.b16 %v825
  %v854 = vunpack.c.l.b16 %v826
  %v855 = vpack.c.b16 %v847, %v846
  %v856 = vpack.c.b16 %v849, %v848
  %v857 = vpack.c.b16 %v851, %v850
  %v858 = vpack.c.b16 %v853, %v852
  %v859 = vpack.c.b16 %v854, %v854
  %860 = vrot.lane.b32.xlu0 %v855, 96
  %v861 = vpop.permute.xlu0 %860
  %862 = vrot.lane.b32.xlu0 %v856, 96
  %v863 = vpop.permute.xlu0 %862
  %864 = vrot.lane.b32.xlu0 %v857, 96
  %v865 = vpop.permute.xlu0 %864
  %866 = vrot.lane.b32.xlu0 %v858, 96
  %v867 = vpop.permute.xlu0 %866
  %868 = vrot.lane.b32.xlu0 %v859, 96
  %v869 = vpop.permute.xlu0 %868
  %vm870 = vcmask 64512
  %v872 = vsel %vm870, %v855, 0
  %v875 = vsel %vm870, %v856, 0
  %v878 = vsel %vm870, %v857, 0
  %v881 = vsel %vm870, %v858, 0
  %v884 = vsel %vm870, %v859, 0
  %v887 = vsel %vm870, %v861, 0
  %v890 = vsel %vm870, %v863, 0
  %v893 = vsel %vm870, %v865, 0
  %v896 = vsel %vm870, %v867, 0
  %v899 = vsel %vm870, %v869, 0
  %901 = vmatpush.bf16.xpose.msra.mxu0 0
  %902 = vmatpush.bf16.xpose.msra.mxu0 0
  %903 = vmatpush.bf16.xpose.msra.mxu0 0
  %904 = vmatpush.bf16.xpose.msra.mxu0 %v899
  %905 = vmatpush.bf16.xpose.msra.mxu0 %v896
  %906 = vmatpush.bf16.xpose.msra.mxu0 %v893
  %907 = vmatpush.bf16.xpose.msra.mxu0 %v890
  %908 = vmatpush.bf16.xpose.msra.mxu0 %v887
  %909 = vmatmul.bf16.gmra.mxu0 %v872
  %v910 = vpop.f32.mrf.mxu0
  %v911 = vadd.f32 %v836, %v910
  %v912 = vpop.f32.mrf.mxu0
  %v913 = vadd.f32 %v836, %v912
  %914 = vmatmul.bf16.gmra.mxu0 %v875
  %v915 = vpop.f32.mrf.mxu0
  %v916 = vadd.f32 %v836, %v915
  %v917 = vpop.f32.mrf.mxu0
  %v918 = vadd.f32 %v836, %v917
  %919 = vmatmul.bf16.gmra.mxu0 %v878
  %v920 = vpop.f32.mrf.mxu0
  %v921 = vadd.f32 %v836, %v920
  %v922 = vpop.f32.mrf.mxu0
  %v923 = vadd.f32 %v836, %v922
  %924 = vmatmul.bf16.gmra.mxu0 %v881
  %v925 = vpop.f32.mrf.mxu0
  %v926 = vadd.f32 %v836, %v925
  %v927 = vpop.f32.mrf.mxu0
  %v928 = vadd.f32 %v836, %v927
  %929 = vmatmul.bf16.gmra.mxu0 %v884
  %v930 = vpop.f32.mrf.mxu0
  %v931 = vadd.f32 %v836, %v930
  %v932 = vpop.f32.mrf.mxu0
  %933 = vdwg.mxu0
  %vm934 = vcmask 588800
  %v935 = vsel %vm934, %v911, -inf
  %936 = vmax.xlane.f32.xlu0 %v935
  %v937 = vpop.xlane.xlu0 %936
  %v938 = vsel %vm934, %v913, -inf
  %939 = vmax.xlane.f32.xlu0 %v938
  %v940 = vpop.xlane.xlu0 %939
  %v941 = vsel %vm934, %v916, -inf
  %942 = vmax.xlane.f32.xlu0 %v941
  %v943 = vpop.xlane.xlu0 %942
  %v944 = vsel %vm934, %v918, -inf
  %945 = vmax.xlane.f32.xlu0 %v944
  %v946 = vpop.xlane.xlu0 %945
  %v947 = vsel %vm934, %v921, -inf
  %948 = vmax.xlane.f32.xlu0 %v947
  %v949 = vpop.xlane.xlu0 %948
  %v950 = vsel %vm934, %v923, -inf
  %951 = vmax.xlane.f32.xlu0 %v950
  %v952 = vpop.xlane.xlu0 %951
  %v953 = vsel %vm934, %v926, -inf
  %954 = vmax.xlane.f32.xlu0 %v953
  %v955 = vpop.xlane.xlu0 %954
  %v956 = vsel %vm934, %v928, -inf
  %957 = vmax.xlane.f32.xlu0 %v956
  %v958 = vpop.xlane.xlu0 %957
  %v959 = vsel %vm934, %v931, -inf
  %960 = vmax.xlane.f32.xlu0 %v959
  %v961 = vpop.xlane.xlu0 %960
  %v962 = vsub.f32 %v911, %v937
  %v963 = vsub.f32 %v913, %v940
  %v964 = vsub.f32 %v916, %v943
  %v965 = vsub.f32 %v918, %v946
  %v966 = vsub.f32 %v921, %v949
  %v967 = vsub.f32 %v923, %v952
  %v968 = vsub.f32 %v926, %v955
  %v969 = vsub.f32 %v928, %v958
  %v970 = vsub.f32 %v931, %v961
  %v971 = vmul.f32 %v962, 1.442695
  %v972 = vpow.pop %v971
  %v973 = vmul.f32 %v963, 1.442695
  %v974 = vpow.pop %v973
  %v975 = vmul.f32 %v964, 1.442695
  %v976 = vpow.pop %v975
  %v977 = vmul.f32 %v965, 1.442695
  %v978 = vpow.pop %v977
  %v979 = vmul.f32 %v966, 1.442695
  %v980 = vpow.pop %v979
  %v981 = vmul.f32 %v967, 1.442695
  %v982 = vpow.pop %v981
  %v983 = vmul.f32 %v968, 1.442695
  %v984 = vpow.pop %v983
  %v985 = vmul.f32 %v969, 1.442695
  %v986 = vpow.pop %v985
  %v987 = vmul.f32 %v970, 1.442695
  %v988 = vpow.pop %v987
  %v989 = vpack.c.bf16 %v974, %v972
  %v990 = vpack.c.bf16 %v978, %v976
  %v991 = vpack.c.bf16 %v982, %v980
  %v992 = vpack.c.bf16 %v986, %v984
  %v993 = vpack.c.bf16 %v988, %v988
  %994 = vrot.lane.b32.xlu0 %v855, 64
  %v995 = vpop.permute.xlu0 %994
  %996 = vrot.lane.b32.xlu0 %v856, 64
  %v997 = vpop.permute.xlu0 %996
  %998 = vrot.lane.b32.xlu0 %v857, 64
  %v999 = vpop.permute.xlu0 %998
  %1000 = vrot.lane.b32.xlu0 %v858, 64
  %v1001 = vpop.permute.xlu0 %1000
  %1002 = vrot.lane.b32.xlu0 %v859, 64
  %v1003 = vpop.permute.xlu0 %1002
  %v1006 = vsel %vm870, %v995, 1065369472
  %v1009 = vsel %vm870, %v997, 1065369472
  %v1012 = vsel %vm870, %v999, 1065369472
  %v1015 = vsel %vm870, %v1001, 1065369472
  %v1018 = vsel %vm870, %v1003, 1065369472
  %v1020 = vsel %vm934, %v989, 0
  %v1023 = vsel %vm934, %v990, 0
  %v1026 = vsel %vm934, %v991, 0
  %v1029 = vsel %vm934, %v992, 0
  %v1032 = vsel %vm934, %v993, 0
  %vm1034 = vcmask 1043456
  %v1035 = vsel %vm1034, %v1018, 0
  %1037 = vmatpush.bf16.msra.mxu0 0
  %1038 = vmatpush.bf16.msra.mxu0 0
  %1039 = vmatpush.bf16.msra.mxu0 0
  %1040 = vmatpush.bf16.msra.mxu0 %v1035
  %1041 = vmatpush.bf16.msra.mxu0 %v1015
  %1042 = vmatpush.bf16.msra.mxu0 %v1012
  %1043 = vmatpush.bf16.msra.mxu0 %v1009
  %1044 = vmatpush.bf16.msra.mxu0 %v1006
  %1045 = vmatmul.bf16.gmra.mxu0 %v1020
  %v1046 = vpop.f32.mrf.mxu0
  %v1047 = vadd.f32 0.0, %v1046
  %v1048 = vpop.f32.mrf.mxu0
  %v1049 = vadd.f32 0.0, %v1048
  %1050 = vmatmul.bf16.gmra.mxu0 %v1023
  %v1051 = vpop.f32.mrf.mxu0
  %v1052 = vadd.f32 0.0, %v1051
  %v1053 = vpop.f32.mrf.mxu0
  %v1054 = vadd.f32 0.0, %v1053
  %1055 = vmatmul.bf16.gmra.mxu0 %v1026
  %v1056 = vpop.f32.mrf.mxu0
  %v1057 = vadd.f32 0.0, %v1056
  %v1058 = vpop.f32.mrf.mxu0
  %v1059 = vadd.f32 0.0, %v1058
  %1060 = vmatmul.bf16.gmra.mxu0 %v1029
  %v1061 = vpop.f32.mrf.mxu0
  %v1062 = vadd.f32 0.0, %v1061
  %v1063 = vpop.f32.mrf.mxu0
  %v1064 = vadd.f32 0.0, %v1063
  %1065 = vmatmul.bf16.gmra.mxu0 %v1032
  %v1066 = vpop.f32.mrf.mxu0
  %v1067 = vadd.f32 0.0, %v1066
  %v1068 = vpop.f32.mrf.mxu0
  %1069 = vdwg.mxu0
  %v1070 = vrcp.pop %v1047
  %v1071 = vrcp.pop %v1049
  %v1072 = vrcp.pop %v1052
  %v1073 = vrcp.pop %v1054
  %v1074 = vrcp.pop %v1057
  %v1075 = vrcp.pop %v1059
  %v1076 = vrcp.pop %v1062
  %v1077 = vrcp.pop %v1064
  %v1078 = vrcp.pop %v1067
  %1080 = vset.pattern.permute.xlu0 8
  %1081 = vperm.xlu0 %1080, %v1070
  %v1082 = vpop.permute.xlu0 %1081
  %1085 = vset.pattern.permute.xlu0 8
  %1086 = vperm.xlu0 %1085, %v1071
  %v1087 = vpop.permute.xlu0 %1086
  %1090 = vset.pattern.permute.xlu0 8
  %1091 = vperm.xlu0 %1090, %v1072
  %v1092 = vpop.permute.xlu0 %1091
  %1095 = vset.pattern.permute.xlu0 8
  %1096 = vperm.xlu0 %1095, %v1073
  %v1097 = vpop.permute.xlu0 %1096
  %1100 = vset.pattern.permute.xlu0 8
  %1101 = vperm.xlu0 %1100, %v1074
  %v1102 = vpop.permute.xlu0 %1101
  %1105 = vset.pattern.permute.xlu0 8
  %1106 = vperm.xlu0 %1105, %v1075
  %v1107 = vpop.permute.xlu0 %1106
  %1110 = vset.pattern.permute.xlu0 8
  %1111 = vperm.xlu0 %1110, %v1076
  %v1112 = vpop.permute.xlu0 %1111
  %1115 = vset.pattern.permute.xlu0 8
  %1116 = vperm.xlu0 %1115, %v1077
  %v1117 = vpop.permute.xlu0 %1116
  %1120 = vset.pattern.permute.xlu0 8
  %1121 = vperm.xlu0 %1120, %v1078
  %v1122 = vpop.permute.xlu0 %1121
  %v1124 = vmul.f32 %v1047, %v1082
  %v1125 = vmul.f32 %v1049, %v1087
  %v1126 = vmul.f32 %v1052, %v1092
  %v1127 = vmul.f32 %v1054, %v1097
  %v1128 = vmul.f32 %v1057, %v1102
  %v1129 = vmul.f32 %v1059, %v1107
  %v1130 = vmul.f32 %v1062, %v1112
  %v1131 = vmul.f32 %v1064, %v1117
  %v1132 = vmul.f32 %v1067, %v1122
  %v1133 = vpack.c.bf16 %v1125, %v1124
  %v1134 = vpack.c.bf16 %v1127, %v1126
  %v1135 = vpack.c.bf16 %v1129, %v1128
  %v1136 = vpack.c.bf16 %v1131, %v1130
  %v1137 = vpack.c.bf16 %v1132, %v1132
  %1138 = vrot.lane.b32.xlu0 %v855, 120
  %v1139 = vpop.permute.xlu0 %1138
  %1140 = vrot.lane.b32.xlu0 %v856, 120
  %v1141 = vpop.permute.xlu0 %1140
  %1142 = vrot.lane.b32.xlu0 %v857, 120
  %v1143 = vpop.permute.xlu0 %1142
  %1144 = vrot.lane.b32.xlu0 %v858, 120
  %v1145 = vpop.permute.xlu0 %1144
  %1146 = vrot.lane.b32.xlu0 %v859, 120
  %v1147 = vpop.permute.xlu0 %1146
  %1148 = vrot.lane.b32.xlu0 %v855, 88
  %v1149 = vpop.permute.xlu0 %1148
  %1150 = vrot.lane.b32.xlu0 %v856, 88
  %v1151 = vpop.permute.xlu0 %1150
  %1152 = vrot.lane.b32.xlu0 %v857, 88
  %v1153 = vpop.permute.xlu0 %1152
  %1154 = vrot.lane.b32.xlu0 %v858, 88
  %v1155 = vpop.permute.xlu0 %1154
  %1156 = vrot.lane.b32.xlu0 %v859, 88
  %v1157 = vpop.permute.xlu0 %1156
  %v1159 = vsel %vm870, %v1139, 0
  %v1162 = vsel %vm870, %v1141, 0
  %v1165 = vsel %vm870, %v1143, 0
  %v1168 = vsel %vm870, %v1145, 0
  %v1171 = vsel %vm870, %v1147, 0
  %v1174 = vsel %vm870, %v1149, 0
  %v1177 = vsel %vm870, %v1151, 0
  %v1180 = vsel %vm870, %v1153, 0
  %v1183 = vsel %vm870, %v1155, 0
  %v1186 = vsel %vm870, %v1157, 0
  %1188 = vmatpush.bf16.xpose.msra.mxu0 0
  %1189 = vmatpush.bf16.xpose.msra.mxu0 0
  %1190 = vmatpush.bf16.xpose.msra.mxu0 0
  %1191 = vmatpush.bf16.xpose.msra.mxu0 %v1186
  %1192 = vmatpush.bf16.xpose.msra.mxu0 %v1183
  %1193 = vmatpush.bf16.xpose.msra.mxu0 %v1180
  %1194 = vmatpush.bf16.xpose.msra.mxu0 %v1177
  %1195 = vmatpush.bf16.xpose.msra.mxu0 %v1174
  %1196 = vmatmul.bf16.gmra.mxu0 %v1159
  %v1197 = vpop.f32.mrf.mxu0
  %v1198 = vadd.f32 %v836, %v1197
  %v1199 = vpop.f32.mrf.mxu0
  %v1200 = vadd.f32 %v836, %v1199
  %1201 = vmatmul.bf16.gmra.mxu0 %v1162
  %v1202 = vpop.f32.mrf.mxu0
  %v1203 = vadd.f32 %v836, %v1202
  %v1204 = vpop.f32.mrf.mxu0
  %v1205 = vadd.f32 %v836, %v1204
  %1206 = vmatmul.bf16.gmra.mxu0 %v1165
  %v1207 = vpop.f32.mrf.mxu0
  %v1208 = vadd.f32 %v836, %v1207
  %v1209 = vpop.f32.mrf.mxu0
  %v1210 = vadd.f32 %v836, %v1209
  %1211 = vmatmul.bf16.gmra.mxu0 %v1168
  %v1212 = vpop.f32.mrf.mxu0
  %v1213 = vadd.f32 %v836, %v1212
  %v1214 = vpop.f32.mrf.mxu0
  %v1215 = vadd.f32 %v836, %v1214
  %1216 = vmatmul.bf16.gmra.mxu0 %v1171
  %v1217 = vpop.f32.mrf.mxu0
  %v1218 = vadd.f32 %v836, %v1217
  %v1219 = vpop.f32.mrf.mxu0
  %1220 = vdwg.mxu0
  %v1221 = vsel %vm934, %v1198, -inf
  %1222 = vmax.xlane.f32.xlu0 %v1221
  %v1223 = vpop.xlane.xlu0 %1222
  %v1224 = vsel %vm934, %v1200, -inf
  %1225 = vmax.xlane.f32.xlu0 %v1224
  %v1226 = vpop.xlane.xlu0 %1225
  %v1227 = vsel %vm934, %v1203, -inf
  %1228 = vmax.xlane.f32.xlu0 %v1227
  %v1229 = vpop.xlane.xlu0 %1228
  %v1230 = vsel %vm934, %v1205, -inf
  %1231 = vmax.xlane.f32.xlu0 %v1230
  %v1232 = vpop.xlane.xlu0 %1231
  %v1233 = vsel %vm934, %v1208, -inf
  %1234 = vmax.xlane.f32.xlu0 %v1233
  %v1235 = vpop.xlane.xlu0 %1234
  %v1236 = vsel %vm934, %v1210, -inf
  %1237 = vmax.xlane.f32.xlu0 %v1236
  %v1238 = vpop.xlane.xlu0 %1237
  %v1239 = vsel %vm934, %v1213, -inf
  %1240 = vmax.xlane.f32.xlu0 %v1239
  %v1241 = vpop.xlane.xlu0 %1240
  %v1242 = vsel %vm934, %v1215, -inf
  %1243 = vmax.xlane.f32.xlu0 %v1242
  %v1244 = vpop.xlane.xlu0 %1243
  %v1245 = vsel %vm934, %v1218, -inf
  %1246 = vmax.xlane.f32.xlu0 %v1245
  %v1247 = vpop.xlane.xlu0 %1246
  %v1248 = vsub.f32 %v1198, %v1223
  %v1249 = vsub.f32 %v1200, %v1226
  %v1250 = vsub.f32 %v1203, %v1229
  %v1251 = vsub.f32 %v1205, %v1232
  %v1252 = vsub.f32 %v1208, %v1235
  %v1253 = vsub.f32 %v1210, %v1238
  %v1254 = vsub.f32 %v1213, %v1241
  %v1255 = vsub.f32 %v1215, %v1244
  %v1256 = vsub.f32 %v1218, %v1247
  %v1257 = vmul.f32 %v1248, 1.442695
  %v1258 = vpow.pop %v1257
  %v1259 = vmul.f32 %v1249, 1.442695
  %v1260 = vpow.pop %v1259
  %v1261 = vmul.f32 %v1250, 1.442695
  %v1262 = vpow.pop %v1261
  %v1263 = vmul.f32 %v1251, 1.442695
  %v1264 = vpow.pop %v1263
  %v1265 = vmul.f32 %v1252, 1.442695
  %v1266 = vpow.pop %v1265
  %v1267 = vmul.f32 %v1253, 1.442695
  %v1268 = vpow.pop %v1267
  %v1269 = vmul.f32 %v1254, 1.442695
  %v1270 = vpow.pop %v1269
  %v1271 = vmul.f32 %v1255, 1.442695
  %v1272 = vpow.pop %v1271
  %v1273 = vmul.f32 %v1256, 1.442695
  %v1274 = vpow.pop %v1273
  %v1275 = vpack.c.bf16 %v1260, %v1258
  %v1276 = vpack.c.bf16 %v1264, %v1262
  %v1277 = vpack.c.bf16 %v1268, %v1266
  %v1278 = vpack.c.bf16 %v1272, %v1270
  %v1279 = vpack.c.bf16 %v1274, %v1274
  %1280 = vrot.lane.b32.xlu0 %v855, 56
  %v1281 = vpop.permute.xlu0 %1280
  %1282 = vrot.lane.b32.xlu0 %v856, 56
  %v1283 = vpop.permute.xlu0 %1282
  %1284 = vrot.lane.b32.xlu0 %v857, 56
  %v1285 = vpop.permute.xlu0 %1284
  %1286 = vrot.lane.b32.xlu0 %v858, 56
  %v1287 = vpop.permute.xlu0 %1286
  %1288 = vrot.lane.b32.xlu0 %v859, 56
  %v1289 = vpop.permute.xlu0 %1288
  %v1291 = vsel %vm870, %v1281, 1065369472
  %v1294 = vsel %vm870, %v1283, 1065369472
  %v1297 = vsel %vm870, %v1285, 1065369472
  %v1300 = vsel %vm870, %v1287, 1065369472
  %v1303 = vsel %vm870, %v1289, 1065369472
  %v1305 = vsel %vm934, %v1275, 0
  %v1308 = vsel %vm934, %v1276, 0
  %v1311 = vsel %vm934, %v1277, 0
  %v1314 = vsel %vm934, %v1278, 0
  %v1317 = vsel %vm934, %v1279, 0
  %v1319 = vsel %vm1034, %v1303, 0
  %1321 = vmatpush.bf16.msra.mxu0 0
  %1322 = vmatpush.bf16.msra.mxu0 0
  %1323 = vmatpush.bf16.msra.mxu0 0
  %1324 = vmatpush.bf16.msra.mxu0 %v1319
  %1325 = vmatpush.bf16.msra.mxu0 %v1300
  %1326 = vmatpush.bf16.msra.mxu0 %v1297
  %1327 = vmatpush.bf16.msra.mxu0 %v1294
  %1328 = vmatpush.bf16.msra.mxu0 %v1291
  %1329 = vmatmul.bf16.gmra.mxu0 %v1305
  %v1330 = vpop.f32.mrf.mxu0
  %v1331 = vadd.f32 0.0, %v1330
  %v1332 = vpop.f32.mrf.mxu0
  %v1333 = vadd.f32 0.0, %v1332
  %1334 = vmatmul.bf16.gmra.mxu0 %v1308
  %v1335 = vpop.f32.mrf.mxu0
  %v1336 = vadd.f32 0.0, %v1335
  %v1337 = vpop.f32.mrf.mxu0
  %v1338 = vadd.f32 0.0, %v1337
  %1339 = vmatmul.bf16.gmra.mxu0 %v1311
  %v1340 = vpop.f32.mrf.mxu0
  %v1341 = vadd.f32 0.0, %v1340
  %v1342 = vpop.f32.mrf.mxu0
  %v1343 = vadd.f32 0.0, %v1342
  %1344 = vmatmul.bf16.gmra.mxu0 %v1314
  %v1345 = vpop.f32.mrf.mxu0
  %v1346 = vadd.f32 0.0, %v1345
  %v1347 = vpop.f32.mrf.mxu0
  %v1348 = vadd.f32 0.0, %v1347
  %1349 = vmatmul.bf16.gmra.mxu0 %v1317
  %v1350 = vpop.f32.mrf.mxu0
  %v1351 = vadd.f32 0.0, %v1350
  %v1352 = vpop.f32.mrf.mxu0
  %1353 = vdwg.mxu0
  %v1354 = vrcp.pop %v1331
  %v1355 = vrcp.pop %v1333
  %v1356 = vrcp.pop %v1336
  %v1357 = vrcp.pop %v1338
  %v1358 = vrcp.pop %v1341
  %v1359 = vrcp.pop %v1343
  %v1360 = vrcp.pop %v1346
  %v1361 = vrcp.pop %v1348
  %v1362 = vrcp.pop %v1351
  %1364 = vset.pattern.permute.xlu0 8
  %1365 = vperm.xlu0 %1364, %v1354
  %v1366 = vpop.permute.xlu0 %1365
  %1369 = vset.pattern.permute.xlu0 8
  %1370 = vperm.xlu0 %1369, %v1355
  %v1371 = vpop.permute.xlu0 %1370
  %1374 = vset.pattern.permute.xlu0 8
  %1375 = vperm.xlu0 %1374, %v1356
  %v1376 = vpop.permute.xlu0 %1375
  %1379 = vset.pattern.permute.xlu0 8
  %1380 = vperm.xlu0 %1379, %v1357
  %v1381 = vpop.permute.xlu0 %1380
  %1384 = vset.pattern.permute.xlu0 8
  %1385 = vperm.xlu0 %1384, %v1358
  %v1386 = vpop.permute.xlu0 %1385
  %1389 = vset.pattern.permute.xlu0 8
  %1390 = vperm.xlu0 %1389, %v1359
  %v1391 = vpop.permute.xlu0 %1390
  %1394 = vset.pattern.permute.xlu0 8
  %1395 = vperm.xlu0 %1394, %v1360
  %v1396 = vpop.permute.xlu0 %1395
  %1399 = vset.pattern.permute.xlu0 8
  %1400 = vperm.xlu0 %1399, %v1361
  %v1401 = vpop.permute.xlu0 %1400
  %1404 = vset.pattern.permute.xlu0 8
  %1405 = vperm.xlu0 %1404, %v1362
  %v1406 = vpop.permute.xlu0 %1405
  %v1408 = vmul.f32 %v1331, %v1366
  %v1409 = vmul.f32 %v1333, %v1371
  %v1410 = vmul.f32 %v1336, %v1376
  %v1411 = vmul.f32 %v1338, %v1381
  %v1412 = vmul.f32 %v1341, %v1386
  %v1413 = vmul.f32 %v1343, %v1391
  %v1414 = vmul.f32 %v1346, %v1396
  %v1415 = vmul.f32 %v1348, %v1401
  %v1416 = vmul.f32 %v1351, %v1406
  %v1417 = vpack.c.bf16 %v1409, %v1408
  %v1418 = vpack.c.bf16 %v1411, %v1410
  %v1419 = vpack.c.bf16 %v1413, %v1412
  %v1420 = vpack.c.bf16 %v1415, %v1414
  %v1421 = vpack.c.bf16 %v1416, %v1416
  %v1423 = vsel %vm870, %v1417, 0
  %v1426 = vsel %vm870, %v1418, 0
  %v1429 = vsel %vm870, %v1419, 0
  %v1432 = vsel %vm870, %v1420, 0
  %v1435 = vsel %vm870, %v1421, 0
  %v1438 = vsel %vm1034, %v233, 0
  %1440 = vmatpush.bf16.msra.mxu0 0
  %1441 = vmatpush.bf16.msra.mxu0 0
  %1442 = vmatpush.bf16.msra.mxu0 0
  %1443 = vmatpush.bf16.msra.mxu0 0
  %1444 = vmatpush.bf16.msra.mxu0 0
  %1445 = vmatpush.bf16.msra.mxu0 0
  %1446 = vmatpush.bf16.msra.mxu0 0
  %1447 = vmatpush.bf16.msra.mxu0 %v1438
  %1448 = vmatmul.bf16.gmra.mxu0 %v1423
  %v1449 = vpop.f32.mrf.mxu0
  %v1450 = vadd.f32 0.0, %v1449
  %v1451 = vpop.f32.mrf.mxu0
  %v1452 = vadd.f32 0.0, %v1451
  %1453 = vmatmul.bf16.gmra.mxu0 %v1426
  %v1454 = vpop.f32.mrf.mxu0
  %v1455 = vadd.f32 0.0, %v1454
  %v1456 = vpop.f32.mrf.mxu0
  %v1457 = vadd.f32 0.0, %v1456
  %1458 = vmatmul.bf16.gmra.mxu0 %v1429
  %v1459 = vpop.f32.mrf.mxu0
  %v1460 = vadd.f32 0.0, %v1459
  %v1461 = vpop.f32.mrf.mxu0
  %v1462 = vadd.f32 0.0, %v1461
  %1463 = vmatmul.bf16.gmra.mxu0 %v1432
  %v1464 = vpop.f32.mrf.mxu0
  %v1465 = vadd.f32 0.0, %v1464
  %v1466 = vpop.f32.mrf.mxu0
  %v1467 = vadd.f32 0.0, %v1466
  %1468 = vmatmul.bf16.gmra.mxu0 %v1435
  %v1469 = vpop.f32.mrf.mxu0
  %v1470 = vadd.f32 0.0, %v1469
  %v1471 = vpop.f32.mrf.mxu0
  %1472 = vdwg.mxu0
  %v1474 = vsel %vm870, %v1133, 0
  %v1477 = vsel %vm870, %v1134, 0
  %v1480 = vsel %vm870, %v1135, 0
  %v1483 = vsel %vm870, %v1136, 0
  %v1486 = vsel %vm870, %v1137, 0
  %v1489 = vsel %vm1034, %v232, 0
  %1491 = vmatpush.bf16.msra.mxu0 0
  %1492 = vmatpush.bf16.msra.mxu0 0
  %1493 = vmatpush.bf16.msra.mxu0 0
  %1494 = vmatpush.bf16.msra.mxu0 0
  %1495 = vmatpush.bf16.msra.mxu0 0
  %1496 = vmatpush.bf16.msra.mxu0 0
  %1497 = vmatpush.bf16.msra.mxu0 0
  %1498 = vmatpush.bf16.msra.mxu0 %v1489
  %1499 = vmatmul.bf16.gmra.mxu0 %v1474
  %v1500 = vpop.f32.mrf.mxu0
  %v1501 = vadd.f32 %v1450, %v1500
  %v1502 = vpop.f32.mrf.mxu0
  %v1503 = vadd.f32 %v1452, %v1502
  %1504 = vmatmul.bf16.gmra.mxu0 %v1477
  %v1505 = vpop.f32.mrf.mxu0
  %v1506 = vadd.f32 %v1455, %v1505
  %v1507 = vpop.f32.mrf.mxu0
  %v1508 = vadd.f32 %v1457, %v1507
  %1509 = vmatmul.bf16.gmra.mxu0 %v1480
  %v1510 = vpop.f32.mrf.mxu0
  %v1511 = vadd.f32 %v1460, %v1510
  %v1512 = vpop.f32.mrf.mxu0
  %v1513 = vadd.f32 %v1462, %v1512
  %1514 = vmatmul.bf16.gmra.mxu0 %v1483
  %v1515 = vpop.f32.mrf.mxu0
  %v1516 = vadd.f32 %v1465, %v1515
  %v1517 = vpop.f32.mrf.mxu0
  %v1518 = vadd.f32 %v1467, %v1517
  %1519 = vmatmul.bf16.gmra.mxu0 %v1486
  %v1520 = vpop.f32.mrf.mxu0
  %v1521 = vadd.f32 %v1470, %v1520
  %v1522 = vpop.f32.mrf.mxu0
  %1523 = vdwg.mxu0
  %1524 = vrot.lane.b32.xlu0 %v855, 112
  %v1525 = vpop.permute.xlu0 %1524
  %1526 = vrot.lane.b32.xlu0 %v856, 112
  %v1527 = vpop.permute.xlu0 %1526
  %1528 = vrot.lane.b32.xlu0 %v857, 112
  %v1529 = vpop.permute.xlu0 %1528
  %1530 = vrot.lane.b32.xlu0 %v858, 112
  %v1531 = vpop.permute.xlu0 %1530
  %1532 = vrot.lane.b32.xlu0 %v859, 112
  %v1533 = vpop.permute.xlu0 %1532
  %1534 = vrot.lane.b32.xlu0 %v855, 80
  %v1535 = vpop.permute.xlu0 %1534
  %1536 = vrot.lane.b32.xlu0 %v856, 80
  %v1537 = vpop.permute.xlu0 %1536
  %1538 = vrot.lane.b32.xlu0 %v857, 80
  %v1539 = vpop.permute.xlu0 %1538
  %1540 = vrot.lane.b32.xlu0 %v858, 80
  %v1541 = vpop.permute.xlu0 %1540
  %1542 = vrot.lane.b32.xlu0 %v859, 80
  %v1543 = vpop.permute.xlu0 %1542
  %v1545 = vsel %vm870, %v1525, 0
  %v1548 = vsel %vm870, %v1527, 0
  %v1551 = vsel %vm870, %v1529, 0
  %v1554 = vsel %vm870, %v1531, 0
  %v1557 = vsel %vm870, %v1533, 0
  %v1560 = vsel %vm870, %v1535, 0
  %v1563 = vsel %vm870, %v1537, 0
  %v1566 = vsel %vm870, %v1539, 0
  %v1569 = vsel %vm870, %v1541, 0
  %v1572 = vsel %vm870, %v1543, 0
  %1574 = vmatpush.bf16.xpose.msra.mxu0 0
  %1575 = vmatpush.bf16.xpose.msra.mxu0 0
  %1576 = vmatpush.bf16.xpose.msra.mxu0 0
  %1577 = vmatpush.bf16.xpose.msra.mxu0 %v1572
  %1578 = vmatpush.bf16.xpose.msra.mxu0 %v1569
  %1579 = vmatpush.bf16.xpose.msra.mxu0 %v1566
  %1580 = vmatpush.bf16.xpose.msra.mxu0 %v1563
  %1581 = vmatpush.bf16.xpose.msra.mxu0 %v1560
  %1582 = vmatmul.bf16.gmra.mxu0 %v1545
  %v1583 = vpop.f32.mrf.mxu0
  %v1584 = vadd.f32 %v836, %v1583
  %v1585 = vpop.f32.mrf.mxu0
  %v1586 = vadd.f32 %v836, %v1585
  %1587 = vmatmul.bf16.gmra.mxu0 %v1548
  %v1588 = vpop.f32.mrf.mxu0
  %v1589 = vadd.f32 %v836, %v1588
  %v1590 = vpop.f32.mrf.mxu0
  %v1591 = vadd.f32 %v836, %v1590
  %1592 = vmatmul.bf16.gmra.mxu0 %v1551
  %v1593 = vpop.f32.mrf.mxu0
  %v1594 = vadd.f32 %v836, %v1593
  %v1595 = vpop.f32.mrf.mxu0
  %v1596 = vadd.f32 %v836, %v1595
  %1597 = vmatmul.bf16.gmra.mxu0 %v1554
  %v1598 = vpop.f32.mrf.mxu0
  %v1599 = vadd.f32 %v836, %v1598
  %v1600 = vpop.f32.mrf.mxu0
  %v1601 = vadd.f32 %v836, %v1600
  %1602 = vmatmul.bf16.gmra.mxu0 %v1557
  %v1603 = vpop.f32.mrf.mxu0
  %v1604 = vadd.f32 %v836, %v1603
  %v1605 = vpop.f32.mrf.mxu0
  %1606 = vdwg.mxu0
  %v1607 = vsel %vm934, %v1584, -inf
  %1608 = vmax.xlane.f32.xlu0 %v1607
  %v1609 = vpop.xlane.xlu0 %1608
  %v1610 = vsel %vm934, %v1586, -inf
  %1611 = vmax.xlane.f32.xlu0 %v1610
  %v1612 = vpop.xlane.xlu0 %1611
  %v1613 = vsel %vm934, %v1589, -inf
  %1614 = vmax.xlane.f32.xlu0 %v1613
  %v1615 = vpop.xlane.xlu0 %1614
  %v1616 = vsel %vm934, %v1591, -inf
  %1617 = vmax.xlane.f32.xlu0 %v1616
  %v1618 = vpop.xlane.xlu0 %1617
  %v1619 = vsel %vm934, %v1594, -inf
  %1620 = vmax.xlane.f32.xlu0 %v1619
  %v1621 = vpop.xlane.xlu0 %1620
  %v1622 = vsel %vm934, %v1596, -inf
  %1623 = vmax.xlane.f32.xlu0 %v1622
  %v1624 = vpop.xlane.xlu0 %1623
  %v1625 = vsel %vm934, %v1599, -inf
  %1626 = vmax.xlane.f32.xlu0 %v1625
  %v1627 = vpop.xlane.xlu0 %1626
  %v1628 = vsel %vm934, %v1601, -inf
  %1629 = vmax.xlane.f32.xlu0 %v1628
  %v1630 = vpop.xlane.xlu0 %1629
  %v1631 = vsel %vm934, %v1604, -inf
  %1632 = vmax.xlane.f32.xlu0 %v1631
  %v1633 = vpop.xlane.xlu0 %1632
  %v1634 = vsub.f32 %v1584, %v1609
  %v1635 = vsub.f32 %v1586, %v1612
  %v1636 = vsub.f32 %v1589, %v1615
  %v1637 = vsub.f32 %v1591, %v1618
  %v1638 = vsub.f32 %v1594, %v1621
  %v1639 = vsub.f32 %v1596, %v1624
  %v1640 = vsub.f32 %v1599, %v1627
  %v1641 = vsub.f32 %v1601, %v1630
  %v1642 = vsub.f32 %v1604, %v1633
  %v1643 = vmul.f32 %v1634, 1.442695
  %v1644 = vpow.pop %v1643
  %v1645 = vmul.f32 %v1635, 1.442695
  %v1646 = vpow.pop %v1645
  %v1647 = vmul.f32 %v1636, 1.442695
  %v1648 = vpow.pop %v1647
  %v1649 = vmul.f32 %v1637, 1.442695
  %v1650 = vpow.pop %v1649
  %v1651 = vmul.f32 %v1638, 1.442695
  %v1652 = vpow.pop %v1651
  %v1653 = vmul.f32 %v1639, 1.442695
  %v1654 = vpow.pop %v1653
  %v1655 = vmul.f32 %v1640, 1.442695
  %v1656 = vpow.pop %v1655
  %v1657 = vmul.f32 %v1641, 1.442695
  %v1658 = vpow.pop %v1657
  %v1659 = vmul.f32 %v1642, 1.442695
  %v1660 = vpow.pop %v1659
  %v1661 = vpack.c.bf16 %v1646, %v1644
  %v1662 = vpack.c.bf16 %v1650, %v1648
  %v1663 = vpack.c.bf16 %v1654, %v1652
  %v1664 = vpack.c.bf16 %v1658, %v1656
  %v1665 = vpack.c.bf16 %v1660, %v1660
  %1666 = vrot.lane.b32.xlu0 %v855, 48
  %v1667 = vpop.permute.xlu0 %1666
  %1668 = vrot.lane.b32.xlu0 %v856, 48
  %v1669 = vpop.permute.xlu0 %1668
  %1670 = vrot.lane.b32.xlu0 %v857, 48
  %v1671 = vpop.permute.xlu0 %1670
  %1672 = vrot.lane.b32.xlu0 %v858, 48
  %v1673 = vpop.permute.xlu0 %1672
  %1674 = vrot.lane.b32.xlu0 %v859, 48
  %v1675 = vpop.permute.xlu0 %1674
  %v1677 = vsel %vm870, %v1667, 1065369472
  %v1680 = vsel %vm870, %v1669, 1065369472
  %v1683 = vsel %vm870, %v1671, 1065369472
  %v1686 = vsel %vm870, %v1673, 1065369472
  %v1689 = vsel %vm870, %v1675, 1065369472
  %v1691 = vsel %vm934, %v1661, 0
  %v1694 = vsel %vm934, %v1662, 0
  %v1697 = vsel %vm934, %v1663, 0
  %v1700 = vsel %vm934, %v1664, 0
  %v1703 = vsel %vm934, %v1665, 0
  %v1705 = vsel %vm1034, %v1689, 0
  %1707 = vmatpush.bf16.msra.mxu0 0
  %1708 = vmatpush.bf16.msra.mxu0 0
  %1709 = vmatpush.bf16.msra.mxu0 0
  %1710 = vmatpush.bf16.msra.mxu0 %v1705
  %1711 = vmatpush.bf16.msra.mxu0 %v1686
  %1712 = vmatpush.bf16.msra.mxu0 %v1683
  %1713 = vmatpush.bf16.msra.mxu0 %v1680
  %1714 = vmatpush.bf16.msra.mxu0 %v1677
  %1715 = vmatmul.bf16.gmra.mxu0 %v1691
  %v1716 = vpop.f32.mrf.mxu0
  %v1717 = vadd.f32 0.0, %v1716
  %v1718 = vpop.f32.mrf.mxu0
  %v1719 = vadd.f32 0.0, %v1718
  %1720 = vmatmul.bf16.gmra.mxu0 %v1694
  %v1721 = vpop.f32.mrf.mxu0
  %v1722 = vadd.f32 0.0, %v1721
  %v1723 = vpop.f32.mrf.mxu0
  %v1724 = vadd.f32 0.0, %v1723
  %1725 = vmatmul.bf16.gmra.mxu0 %v1697
  %v1726 = vpop.f32.mrf.mxu0
  %v1727 = vadd.f32 0.0, %v1726
  %v1728 = vpop.f32.mrf.mxu0
  %v1729 = vadd.f32 0.0, %v1728
  %1730 = vmatmul.bf16.gmra.mxu0 %v1700
  %v1731 = vpop.f32.mrf.mxu0
  %v1732 = vadd.f32 0.0, %v1731
  %v1733 = vpop.f32.mrf.mxu0
  %v1734 = vadd.f32 0.0, %v1733
  %1735 = vmatmul.bf16.gmra.mxu0 %v1703
  %v1736 = vpop.f32.mrf.mxu0
  %v1737 = vadd.f32 0.0, %v1736
  %v1738 = vpop.f32.mrf.mxu0
  %1739 = vdwg.mxu0
  %v1740 = vrcp.pop %v1717
  %v1741 = vrcp.pop %v1719
  %v1742 = vrcp.pop %v1722
  %v1743 = vrcp.pop %v1724
  %v1744 = vrcp.pop %v1727
  %v1745 = vrcp.pop %v1729
  %v1746 = vrcp.pop %v1732
  %v1747 = vrcp.pop %v1734
  %v1748 = vrcp.pop %v1737
  %1750 = vset.pattern.permute.xlu0 8
  %1751 = vperm.xlu0 %1750, %v1740
  %v1752 = vpop.permute.xlu0 %1751
  %1755 = vset.pattern.permute.xlu0 8
  %1756 = vperm.xlu0 %1755, %v1741
  %v1757 = vpop.permute.xlu0 %1756
  %1760 = vset.pattern.permute.xlu0 8
  %1761 = vperm.xlu0 %1760, %v1742
  %v1762 = vpop.permute.xlu0 %1761
  %1765 = vset.pattern.permute.xlu0 8
  %1766 = vperm.xlu0 %1765, %v1743
  %v1767 = vpop.permute.xlu0 %1766
  %1770 = vset.pattern.permute.xlu0 8
  %1771 = vperm.xlu0 %1770, %v1744
  %v1772 = vpop.permute.xlu0 %1771
  %1775 = vset.pattern.permute.xlu0 8
  %1776 = vperm.xlu0 %1775, %v1745
  %v1777 = vpop.permute.xlu0 %1776
  %1780 = vset.pattern.permute.xlu0 8
  %1781 = vperm.xlu0 %1780, %v1746
  %v1782 = vpop.permute.xlu0 %1781
  %1785 = vset.pattern.permute.xlu0 8
  %1786 = vperm.xlu0 %1785, %v1747
  %v1787 = vpop.permute.xlu0 %1786
  %1790 = vset.pattern.permute.xlu0 8
  %1791 = vperm.xlu0 %1790, %v1748
  %v1792 = vpop.permute.xlu0 %1791
  %v1794 = vmul.f32 %v1717, %v1752
  %v1795 = vmul.f32 %v1719, %v1757
  %v1796 = vmul.f32 %v1722, %v1762
  %v1797 = vmul.f32 %v1724, %v1767
  %v1798 = vmul.f32 %v1727, %v1772
  %v1799 = vmul.f32 %v1729, %v1777
  %v1800 = vmul.f32 %v1732, %v1782
  %v1801 = vmul.f32 %v1734, %v1787
  %v1802 = vmul.f32 %v1737, %v1792
  %v1803 = vpack.c.bf16 %v1795, %v1794
  %v1804 = vpack.c.bf16 %v1797, %v1796
  %v1805 = vpack.c.bf16 %v1799, %v1798
  %v1806 = vpack.c.bf16 %v1801, %v1800
  %v1807 = vpack.c.bf16 %v1802, %v1802
  %v1809 = vsel %vm870, %v1803, 0
  %v1812 = vsel %vm870, %v1804, 0
  %v1815 = vsel %vm870, %v1805, 0
  %v1818 = vsel %vm870, %v1806, 0
  %v1821 = vsel %vm870, %v1807, 0
  %v1824 = vsel %vm1034, %v234, 0
  %1826 = vmatpush.bf16.msra.mxu0 0
  %1827 = vmatpush.bf16.msra.mxu0 0
  %1828 = vmatpush.bf16.msra.mxu0 0
  %1829 = vmatpush.bf16.msra.mxu0 0
  %1830 = vmatpush.bf16.msra.mxu0 0
  %1831 = vmatpush.bf16.msra.mxu0 0
  %1832 = vmatpush.bf16.msra.mxu0 0
  %1833 = vmatpush.bf16.msra.mxu0 %v1824
  %1834 = vmatmul.bf16.gmra.mxu0 %v1809
  %v1835 = vpop.f32.mrf.mxu0
  %v1836 = vadd.f32 0.0, %v1835
  %v1837 = vpop.f32.mrf.mxu0
  %v1838 = vadd.f32 0.0, %v1837
  %1839 = vmatmul.bf16.gmra.mxu0 %v1812
  %v1840 = vpop.f32.mrf.mxu0
  %v1841 = vadd.f32 0.0, %v1840
  %v1842 = vpop.f32.mrf.mxu0
  %v1843 = vadd.f32 0.0, %v1842
  %1844 = vmatmul.bf16.gmra.mxu0 %v1815
  %v1845 = vpop.f32.mrf.mxu0
  %v1846 = vadd.f32 0.0, %v1845
  %v1847 = vpop.f32.mrf.mxu0
  %v1848 = vadd.f32 0.0, %v1847
  %1849 = vmatmul.bf16.gmra.mxu0 %v1818
  %v1850 = vpop.f32.mrf.mxu0
  %v1851 = vadd.f32 0.0, %v1850
  %v1852 = vpop.f32.mrf.mxu0
  %v1853 = vadd.f32 0.0, %v1852
  %1854 = vmatmul.bf16.gmra.mxu0 %v1821
  %v1855 = vpop.f32.mrf.mxu0
  %v1856 = vadd.f32 0.0, %v1855
  %v1857 = vpop.f32.mrf.mxu0
  %1858 = vdwg.mxu0
  %v1859 = vadd.f32 %v1501, %v1836
  %v1860 = vadd.f32 %v1503, %v1838
  %v1861 = vadd.f32 %v1506, %v1841
  %v1862 = vadd.f32 %v1508, %v1843
  %v1863 = vadd.f32 %v1511, %v1846
  %v1864 = vadd.f32 %v1513, %v1848
  %v1865 = vadd.f32 %v1516, %v1851
  %v1866 = vadd.f32 %v1518, %v1853
  %v1867 = vadd.f32 %v1521, %v1856
  %1868 = vrot.lane.b32.xlu0 %v855, 104
  %v1869 = vpop.permute.xlu0 %1868
  %1870 = vrot.lane.b32.xlu0 %v856, 104
  %v1871 = vpop.permute.xlu0 %1870
  %1872 = vrot.lane.b32.xlu0 %v857, 104
  %v1873 = vpop.permute.xlu0 %1872
  %1874 = vrot.lane.b32.xlu0 %v858, 104
  %v1875 = vpop.permute.xlu0 %1874
  %1876 = vrot.lane.b32.xlu0 %v859, 104
  %v1877 = vpop.permute.xlu0 %1876
  %1878 = vrot.lane.b32.xlu0 %v855, 72
  %v1879 = vpop.permute.xlu0 %1878
  %1880 = vrot.lane.b32.xlu0 %v856, 72
  %v1881 = vpop.permute.xlu0 %1880
  %1882 = vrot.lane.b32.xlu0 %v857, 72
  %v1883 = vpop.permute.xlu0 %1882
  %1884 = vrot.lane.b32.xlu0 %v858, 72
  %v1885 = vpop.permute.xlu0 %1884
  %1886 = vrot.lane.b32.xlu0 %v859, 72
  %v1887 = vpop.permute.xlu0 %1886
  %v1889 = vsel %vm870, %v1869, 0
  %v1892 = vsel %vm870, %v1871, 0
  %v1895 = vsel %vm870, %v1873, 0
  %v1898 = vsel %vm870, %v1875, 0
  %v1901 = vsel %vm870, %v1877, 0
  %v1904 = vsel %vm870, %v1879, 0
  %v1907 = vsel %vm870, %v1881, 0
  %v1910 = vsel %vm870, %v1883, 0
  %v1913 = vsel %vm870, %v1885, 0
  %v1916 = vsel %vm870, %v1887, 0
  %1918 = vmatpush.bf16.xpose.msra.mxu0 0
  %1919 = vmatpush.bf16.xpose.msra.mxu0 0
  %1920 = vmatpush.bf16.xpose.msra.mxu0 0
  %1921 = vmatpush.bf16.xpose.msra.mxu0 %v1916
  %1922 = vmatpush.bf16.xpose.msra.mxu0 %v1913
  %1923 = vmatpush.bf16.xpose.msra.mxu0 %v1910
  %1924 = vmatpush.bf16.xpose.msra.mxu0 %v1907
  %1925 = vmatpush.bf16.xpose.msra.mxu0 %v1904
  %1926 = vmatmul.bf16.gmra.mxu0 %v1889
  %v1927 = vpop.f32.mrf.mxu0
  %v1928 = vadd.f32 %v836, %v1927
  %v1929 = vpop.f32.mrf.mxu0
  %v1930 = vadd.f32 %v836, %v1929
  %1931 = vmatmul.bf16.gmra.mxu0 %v1892
  %v1932 = vpop.f32.mrf.mxu0
  %v1933 = vadd.f32 %v836, %v1932
  %v1934 = vpop.f32.mrf.mxu0
  %v1935 = vadd.f32 %v836, %v1934
  %1936 = vmatmul.bf16.gmra.mxu0 %v1895
  %v1937 = vpop.f32.mrf.mxu0
  %v1938 = vadd.f32 %v836, %v1937
  %v1939 = vpop.f32.mrf.mxu0
  %v1940 = vadd.f32 %v836, %v1939
  %1941 = vmatmul.bf16.gmra.mxu0 %v1898
  %v1942 = vpop.f32.mrf.mxu0
  %v1943 = vadd.f32 %v836, %v1942
  %v1944 = vpop.f32.mrf.mxu0
  %v1945 = vadd.f32 %v836, %v1944
  %1946 = vmatmul.bf16.gmra.mxu0 %v1901
  %v1947 = vpop.f32.mrf.mxu0
  %v1948 = vadd.f32 %v836, %v1947
  %v1949 = vpop.f32.mrf.mxu0
  %1950 = vdwg.mxu0
  %v1951 = vsel %vm934, %v1928, -inf
  %1952 = vmax.xlane.f32.xlu0 %v1951
  %v1953 = vpop.xlane.xlu0 %1952
  %v1954 = vsel %vm934, %v1930, -inf
  %1955 = vmax.xlane.f32.xlu0 %v1954
  %v1956 = vpop.xlane.xlu0 %1955
  %v1957 = vsel %vm934, %v1933, -inf
  %1958 = vmax.xlane.f32.xlu0 %v1957
  %v1959 = vpop.xlane.xlu0 %1958
  %v1960 = vsel %vm934, %v1935, -inf
  %1961 = vmax.xlane.f32.xlu0 %v1960
  %v1962 = vpop.xlane.xlu0 %1961
  %v1963 = vsel %vm934, %v1938, -inf
  %1964 = vmax.xlane.f32.xlu0 %v1963
  %v1965 = vpop.xlane.xlu0 %1964
  %v1966 = vsel %vm934, %v1940, -inf
  %1967 = vmax.xlane.f32.xlu0 %v1966
  %v1968 = vpop.xlane.xlu0 %1967
  %v1969 = vsel %vm934, %v1943, -inf
  %1970 = vmax.xlane.f32.xlu0 %v1969
  %v1971 = vpop.xlane.xlu0 %1970
  %v1972 = vsel %vm934, %v1945, -inf
  %1973 = vmax.xlane.f32.xlu0 %v1972
  %v1974 = vpop.xlane.xlu0 %1973
  %v1975 = vsel %vm934, %v1948, -inf
  %1976 = vmax.xlane.f32.xlu0 %v1975
  %v1977 = vpop.xlane.xlu0 %1976
  %v1978 = vsub.f32 %v1928, %v1953
  %v1979 = vsub.f32 %v1930, %v1956
  %v1980 = vsub.f32 %v1933, %v1959
  %v1981 = vsub.f32 %v1935, %v1962
  %v1982 = vsub.f32 %v1938, %v1965
  %v1983 = vsub.f32 %v1940, %v1968
  %v1984 = vsub.f32 %v1943, %v1971
  %v1985 = vsub.f32 %v1945, %v1974
  %v1986 = vsub.f32 %v1948, %v1977
  %v1987 = vmul.f32 %v1978, 1.442695
  %v1988 = vpow.pop %v1987
  %v1989 = vmul.f32 %v1979, 1.442695
  %v1990 = vpow.pop %v1989
  %v1991 = vmul.f32 %v1980, 1.442695
  %v1992 = vpow.pop %v1991
  %v1993 = vmul.f32 %v1981, 1.442695
  %v1994 = vpow.pop %v1993
  %v1995 = vmul.f32 %v1982, 1.442695
  %v1996 = vpow.pop %v1995
  %v1997 = vmul.f32 %v1983, 1.442695
  %v1998 = vpow.pop %v1997
  %v1999 = vmul.f32 %v1984, 1.442695
  %v2000 = vpow.pop %v1999
  %v2001 = vmul.f32 %v1985, 1.442695
  %v2002 = vpow.pop %v2001
  %v2003 = vmul.f32 %v1986, 1.442695
  %v2004 = vpow.pop %v2003
  %v2005 = vpack.c.bf16 %v1990, %v1988
  %v2006 = vpack.c.bf16 %v1994, %v1992
  %v2007 = vpack.c.bf16 %v1998, %v1996
  %v2008 = vpack.c.bf16 %v2002, %v2000
  %v2009 = vpack.c.bf16 %v2004, %v2004
  %2010 = vrot.lane.b32.xlu0 %v855, 40
  %v2011 = vpop.permute.xlu0 %2010
  %2012 = vrot.lane.b32.xlu0 %v856, 40
  %v2013 = vpop.permute.xlu0 %2012
  %2014 = vrot.lane.b32.xlu0 %v857, 40
  %v2015 = vpop.permute.xlu0 %2014
  %2016 = vrot.lane.b32.xlu0 %v858, 40
  %v2017 = vpop.permute.xlu0 %2016
  %2018 = vrot.lane.b32.xlu0 %v859, 40
  %v2019 = vpop.permute.xlu0 %2018
  %v2021 = vsel %vm870, %v2011, 1065369472
  %v2024 = vsel %vm870, %v2013, 1065369472
  %v2027 = vsel %vm870, %v2015, 1065369472
  %v2030 = vsel %vm870, %v2017, 1065369472
  %v2033 = vsel %vm870, %v2019, 1065369472
  %v2035 = vsel %vm934, %v2005, 0
  %v2038 = vsel %vm934, %v2006, 0
  %v2041 = vsel %vm934, %v2007, 0
  %v2044 = vsel %vm934, %v2008, 0
  %v2047 = vsel %vm934, %v2009, 0
  %v2049 = vsel %vm1034, %v2033, 0
  %2051 = vmatpush.bf16.msra.mxu0 0
  %2052 = vmatpush.bf16.msra.mxu0 0
  %2053 = vmatpush.bf16.msra.mxu0 0
  %2054 = vmatpush.bf16.msra.mxu0 %v2049
  %2055 = vmatpush.bf16.msra.mxu0 %v2030
  %2056 = vmatpush.bf16.msra.mxu0 %v2027
  %2057 = vmatpush.bf16.msra.mxu0 %v2024
  %2058 = vmatpush.bf16.msra.mxu0 %v2021
  %2059 = vmatmul.bf16.gmra.mxu0 %v2035
  %v2060 = vpop.f32.mrf.mxu0
  %v2061 = vadd.f32 0.0, %v2060
  %v2062 = vpop.f32.mrf.mxu0
  %v2063 = vadd.f32 0.0, %v2062
  %2064 = vmatmul.bf16.gmra.mxu0 %v2038
  %v2065 = vpop.f32.mrf.mxu0
  %v2066 = vadd.f32 0.0, %v2065
  %v2067 = vpop.f32.mrf.mxu0
  %v2068 = vadd.f32 0.0, %v2067
  %2069 = vmatmul.bf16.gmra.mxu0 %v2041
  %v2070 = vpop.f32.mrf.mxu0
  %v2071 = vadd.f32 0.0, %v2070
  %v2072 = vpop.f32.mrf.mxu0
  %v2073 = vadd.f32 0.0, %v2072
  %2074 = vmatmul.bf16.gmra.mxu0 %v2044
  %v2075 = vpop.f32.mrf.mxu0
  %v2076 = vadd.f32 0.0, %v2075
  %v2077 = vpop.f32.mrf.mxu0
  %v2078 = vadd.f32 0.0, %v2077
  %2079 = vmatmul.bf16.gmra.mxu0 %v2047
  %v2080 = vpop.f32.mrf.mxu0
  %v2081 = vadd.f32 0.0, %v2080
  %v2082 = vpop.f32.mrf.mxu0
  %2083 = vdwg.mxu0
  %v2084 = vrcp.pop %v2061
  %v2085 = vrcp.pop %v2063
  %v2086 = vrcp.pop %v2066
  %v2087 = vrcp.pop %v2068
  %v2088 = vrcp.pop %v2071
  %v2089 = vrcp.pop %v2073
  %v2090 = vrcp.pop %v2076
  %v2091 = vrcp.pop %v2078
  %v2092 = vrcp.pop %v2081
  %2094 = vset.pattern.permute.xlu0 8
  %2095 = vperm.xlu0 %2094, %v2084
  %v2096 = vpop.permute.xlu0 %2095
  %2099 = vset.pattern.permute.xlu0 8
  %2100 = vperm.xlu0 %2099, %v2085
  %v2101 = vpop.permute.xlu0 %2100
  %2104 = vset.pattern.permute.xlu0 8
  %2105 = vperm.xlu0 %2104, %v2086
  %v2106 = vpop.permute.xlu0 %2105
  %2109 = vset.pattern.permute.xlu0 8
  %2110 = vperm.xlu0 %2109, %v2087
  %v2111 = vpop.permute.xlu0 %2110
  %2114 = vset.pattern.permute.xlu0 8
  %2115 = vperm.xlu0 %2114, %v2088
  %v2116 = vpop.permute.xlu0 %2115
  %2119 = vset.pattern.permute.xlu0 8
  %2120 = vperm.xlu0 %2119, %v2089
  %v2121 = vpop.permute.xlu0 %2120
  %2124 = vset.pattern.permute.xlu0 8
  %2125 = vperm.xlu0 %2124, %v2090
  %v2126 = vpop.permute.xlu0 %2125
  %2129 = vset.pattern.permute.xlu0 8
  %2130 = vperm.xlu0 %2129, %v2091
  %v2131 = vpop.permute.xlu0 %2130
  %2134 = vset.pattern.permute.xlu0 8
  %2135 = vperm.xlu0 %2134, %v2092
  %v2136 = vpop.permute.xlu0 %2135
  %v2138 = vmul.f32 %v2061, %v2096
  %v2139 = vmul.f32 %v2063, %v2101
  %v2140 = vmul.f32 %v2066, %v2106
  %v2141 = vmul.f32 %v2068, %v2111
  %v2142 = vmul.f32 %v2071, %v2116
  %v2143 = vmul.f32 %v2073, %v2121
  %v2144 = vmul.f32 %v2076, %v2126
  %v2145 = vmul.f32 %v2078, %v2131
  %v2146 = vmul.f32 %v2081, %v2136
  %v2147 = vpack.c.bf16 %v2139, %v2138
  %v2148 = vpack.c.bf16 %v2141, %v2140
  %v2149 = vpack.c.bf16 %v2143, %v2142
  %v2150 = vpack.c.bf16 %v2145, %v2144
  %v2151 = vpack.c.bf16 %v2146, %v2146
  %v2153 = vsel %vm870, %v2147, 0
  %v2156 = vsel %vm870, %v2148, 0
  %v2159 = vsel %vm870, %v2149, 0
  %v2162 = vsel %vm870, %v2150, 0
  %v2165 = vsel %vm870, %v2151, 0
  %v2168 = vsel %vm1034, %v235, 0
  %2170 = vmatpush.bf16.msra.mxu0 0
  %2171 = vmatpush.bf16.msra.mxu0 0
  %2172 = vmatpush.bf16.msra.mxu0 0
  %2173 = vmatpush.bf16.msra.mxu0 0
  %2174 = vmatpush.bf16.msra.mxu0 0
  %2175 = vmatpush.bf16.msra.mxu0 0
  %2176 = vmatpush.bf16.msra.mxu0 0
  %2177 = vmatpush.bf16.msra.mxu0 %v2168
  %2178 = vmatmul.bf16.gmra.mxu0 %v2153
  %v2179 = vpop.f32.mrf.mxu0
  %v2180 = vadd.f32 0.0, %v2179
  %v2181 = vpop.f32.mrf.mxu0
  %v2182 = vadd.f32 0.0, %v2181
  %2183 = vmatmul.bf16.gmra.mxu0 %v2156
  %v2184 = vpop.f32.mrf.mxu0
  %v2185 = vadd.f32 0.0, %v2184
  %v2186 = vpop.f32.mrf.mxu0
  %v2187 = vadd.f32 0.0, %v2186
  %2188 = vmatmul.bf16.gmra.mxu0 %v2159
  %v2189 = vpop.f32.mrf.mxu0
  %v2190 = vadd.f32 0.0, %v2189
  %v2191 = vpop.f32.mrf.mxu0
  %v2192 = vadd.f32 0.0, %v2191
  %2193 = vmatmul.bf16.gmra.mxu0 %v2162
  %v2194 = vpop.f32.mrf.mxu0
  %v2195 = vadd.f32 0.0, %v2194
  %v2196 = vpop.f32.mrf.mxu0
  %v2197 = vadd.f32 0.0, %v2196
  %2198 = vmatmul.bf16.gmra.mxu0 %v2165
  %v2199 = vpop.f32.mrf.mxu0
  %v2200 = vadd.f32 0.0, %v2199
  %v2201 = vpop.f32.mrf.mxu0
  %2202 = vdwg.mxu0
  %v2203 = vadd.f32 %v1859, %v2180
  %v2204 = vadd.f32 %v1860, %v2182
  %v2205 = vadd.f32 %v1861, %v2185
  %v2206 = vadd.f32 %v1862, %v2187
  %v2207 = vadd.f32 %v1863, %v2190
  %v2208 = vadd.f32 %v1864, %v2192
  %v2209 = vadd.f32 %v1865, %v2195
  %v2210 = vadd.f32 %v1866, %v2197
  %v2211 = vadd.f32 %v1867, %v2200
  %v2221 = vunpack.c.l.b16 %v827
  %v2222 = vunpack.c.l.b16 %v828
  %v2223 = vunpack.c.l.b16 %v829
  %v2224 = vunpack.c.l.b16 %v830
  %v2225 = vunpack.c.l.b16 %v831
  %v2226 = vunpack.c.l.b16 %v832
  %v2227 = vunpack.c.l.b16 %v833
  %v2228 = vunpack.c.l.b16 %v834
  %v2229 = vunpack.c.l.b16 %v835
  %v2230 = vpack.c.b16 %v2222, %v2221
  %v2231 = vpack.c.b16 %v2224, %v2223
  %v2232 = vpack.c.b16 %v2226, %v2225
  %v2233 = vpack.c.b16 %v2228, %v2227
  %v2234 = vpack.c.b16 %v2229, %v2229
  %2235 = vrot.lane.b32.xlu0 %v2230, 96
  %v2236 = vpop.permute.xlu0 %2235
  %2237 = vrot.lane.b32.xlu0 %v2231, 96
  %v2238 = vpop.permute.xlu0 %2237
  %2239 = vrot.lane.b32.xlu0 %v2232, 96
  %v2240 = vpop.permute.xlu0 %2239
  %2241 = vrot.lane.b32.xlu0 %v2233, 96
  %v2242 = vpop.permute.xlu0 %2241
  %2243 = vrot.lane.b32.xlu0 %v2234, 96
  %v2244 = vpop.permute.xlu0 %2243
  %v2246 = vsel %vm870, %v2230, 0
  %v2249 = vsel %vm870, %v2231, 0
  %v2252 = vsel %vm870, %v2232, 0
  %v2255 = vsel %vm870, %v2233, 0
  %v2258 = vsel %vm870, %v2234, 0
  %v2261 = vsel %vm870, %v2236, 0
  %v2264 = vsel %vm870, %v2238, 0
  %v2267 = vsel %vm870, %v2240, 0
  %v2270 = vsel %vm870, %v2242, 0
  %v2273 = vsel %vm870, %v2244, 0
  %2275 = vmatpush.bf16.xpose.msra.mxu0 0
  %2276 = vmatpush.bf16.xpose.msra.mxu0 0
  %2277 = vmatpush.bf16.xpose.msra.mxu0 0
  %2278 = vmatpush.bf16.xpose.msra.mxu0 %v2273
  %2279 = vmatpush.bf16.xpose.msra.mxu0 %v2270
  %2280 = vmatpush.bf16.xpose.msra.mxu0 %v2267
  %2281 = vmatpush.bf16.xpose.msra.mxu0 %v2264
  %2282 = vmatpush.bf16.xpose.msra.mxu0 %v2261
  %2283 = vmatmul.bf16.gmra.mxu0 %v2246
  %v2284 = vpop.f32.mrf.mxu0
  %v2285 = vadd.f32 %v836, %v2284
  %v2286 = vpop.f32.mrf.mxu0
  %v2287 = vadd.f32 %v836, %v2286
  %2288 = vmatmul.bf16.gmra.mxu0 %v2249
  %v2289 = vpop.f32.mrf.mxu0
  %v2290 = vadd.f32 %v836, %v2289
  %v2291 = vpop.f32.mrf.mxu0
  %v2292 = vadd.f32 %v836, %v2291
  %2293 = vmatmul.bf16.gmra.mxu0 %v2252
  %v2294 = vpop.f32.mrf.mxu0
  %v2295 = vadd.f32 %v836, %v2294
  %v2296 = vpop.f32.mrf.mxu0
  %v2297 = vadd.f32 %v836, %v2296
  %2298 = vmatmul.bf16.gmra.mxu0 %v2255
  %v2299 = vpop.f32.mrf.mxu0
  %v2300 = vadd.f32 %v836, %v2299
  %v2301 = vpop.f32.mrf.mxu0
  %v2302 = vadd.f32 %v836, %v2301
  %2303 = vmatmul.bf16.gmra.mxu0 %v2258
  %v2304 = vpop.f32.mrf.mxu0
  %v2305 = vadd.f32 %v836, %v2304
  %v2306 = vpop.f32.mrf.mxu0
  %2307 = vdwg.mxu0
  %v2308 = vsel %vm934, %v2285, -inf
  %2309 = vmax.xlane.f32.xlu0 %v2308
  %v2310 = vpop.xlane.xlu0 %2309
  %v2311 = vsel %vm934, %v2287, -inf
  %2312 = vmax.xlane.f32.xlu0 %v2311
  %v2313 = vpop.xlane.xlu0 %2312
  %v2314 = vsel %vm934, %v2290, -inf
  %2315 = vmax.xlane.f32.xlu0 %v2314
  %v2316 = vpop.xlane.xlu0 %2315
  %v2317 = vsel %vm934, %v2292, -inf
  %2318 = vmax.xlane.f32.xlu0 %v2317
  %v2319 = vpop.xlane.xlu0 %2318
  %v2320 = vsel %vm934, %v2295, -inf
  %2321 = vmax.xlane.f32.xlu0 %v2320
  %v2322 = vpop.xlane.xlu0 %2321
  %v2323 = vsel %vm934, %v2297, -inf
  %2324 = vmax.xlane.f32.xlu0 %v2323
  %v2325 = vpop.xlane.xlu0 %2324
  %v2326 = vsel %vm934, %v2300, -inf
  %2327 = vmax.xlane.f32.xlu0 %v2326
  %v2328 = vpop.xlane.xlu0 %2327
  %v2329 = vsel %vm934, %v2302, -inf
  %2330 = vmax.xlane.f32.xlu0 %v2329
  %v2331 = vpop.xlane.xlu0 %2330
  %v2332 = vsel %vm934, %v2305, -inf
  %2333 = vmax.xlane.f32.xlu0 %v2332
  %v2334 = vpop.xlane.xlu0 %2333
  %v2335 = vsub.f32 %v2285, %v2310
  %v2336 = vsub.f32 %v2287, %v2313
  %v2337 = vsub.f32 %v2290, %v2316
  %v2338 = vsub.f32 %v2292, %v2319
  %v2339 = vsub.f32 %v2295, %v2322
  %v2340 = vsub.f32 %v2297, %v2325
  %v2341 = vsub.f32 %v2300, %v2328
  %v2342 = vsub.f32 %v2302, %v2331
  %v2343 = vsub.f32 %v2305, %v2334
  %v2344 = vmul.f32 %v2335, 1.442695
  %v2345 = vpow.pop %v2344
  %v2346 = vmul.f32 %v2336, 1.442695
  %v2347 = vpow.pop %v2346
  %v2348 = vmul.f32 %v2337, 1.442695
  %v2349 = vpow.pop %v2348
  %v2350 = vmul.f32 %v2338, 1.442695
  %v2351 = vpow.pop %v2350
  %v2352 = vmul.f32 %v2339, 1.442695
  %v2353 = vpow.pop %v2352
  %v2354 = vmul.f32 %v2340, 1.442695
  %v2355 = vpow.pop %v2354
  %v2356 = vmul.f32 %v2341, 1.442695
  %v2357 = vpow.pop %v2356
  %v2358 = vmul.f32 %v2342, 1.442695
  %v2359 = vpow.pop %v2358
  %v2360 = vmul.f32 %v2343, 1.442695
  %v2361 = vpow.pop %v2360
  %v2362 = vpack.c.bf16 %v2347, %v2345
  %v2363 = vpack.c.bf16 %v2351, %v2349
  %v2364 = vpack.c.bf16 %v2355, %v2353
  %v2365 = vpack.c.bf16 %v2359, %v2357
  %v2366 = vpack.c.bf16 %v2361, %v2361
  %2367 = vrot.lane.b32.xlu0 %v2230, 64
  %v2368 = vpop.permute.xlu0 %2367
  %2369 = vrot.lane.b32.xlu0 %v2231, 64
  %v2370 = vpop.permute.xlu0 %2369
  %2371 = vrot.lane.b32.xlu0 %v2232, 64
  %v2372 = vpop.permute.xlu0 %2371
  %2373 = vrot.lane.b32.xlu0 %v2233, 64
  %v2374 = vpop.permute.xlu0 %2373
  %2375 = vrot.lane.b32.xlu0 %v2234, 64
  %v2376 = vpop.permute.xlu0 %2375
  %v2378 = vsel %vm870, %v2368, 1065369472
  %v2381 = vsel %vm870, %v2370, 1065369472
  %v2384 = vsel %vm870, %v2372, 1065369472
  %v2387 = vsel %vm870, %v2374, 1065369472
  %v2390 = vsel %vm870, %v2376, 1065369472
  %v2392 = vsel %vm934, %v2362, 0
  %v2395 = vsel %vm934, %v2363, 0
  %v2398 = vsel %vm934, %v2364, 0
  %v2401 = vsel %vm934, %v2365, 0
  %v2404 = vsel %vm934, %v2366, 0
  %v2406 = vsel %vm1034, %v2390, 0
  %2408 = vmatpush.bf16.msra.mxu0 0
  %2409 = vmatpush.bf16.msra.mxu0 0
  %2410 = vmatpush.bf16.msra.mxu0 0
  %2411 = vmatpush.bf16.msra.mxu0 %v2406
  %2412 = vmatpush.bf16.msra.mxu0 %v2387
  %2413 = vmatpush.bf16.msra.mxu0 %v2384
  %2414 = vmatpush.bf16.msra.mxu0 %v2381
  %2415 = vmatpush.bf16.msra.mxu0 %v2378
  %2416 = vmatmul.bf16.gmra.mxu0 %v2392
  %v2417 = vpop.f32.mrf.mxu0
  %v2418 = vadd.f32 0.0, %v2417
  %v2419 = vpop.f32.mrf.mxu0
  %v2420 = vadd.f32 0.0, %v2419
  %2421 = vmatmul.bf16.gmra.mxu0 %v2395
  %v2422 = vpop.f32.mrf.mxu0
  %v2423 = vadd.f32 0.0, %v2422
  %v2424 = vpop.f32.mrf.mxu0
  %v2425 = vadd.f32 0.0, %v2424
  %2426 = vmatmul.bf16.gmra.mxu0 %v2398
  %v2427 = vpop.f32.mrf.mxu0
  %v2428 = vadd.f32 0.0, %v2427
  %v2429 = vpop.f32.mrf.mxu0
  %v2430 = vadd.f32 0.0, %v2429
  %2431 = vmatmul.bf16.gmra.mxu0 %v2401
  %v2432 = vpop.f32.mrf.mxu0
  %v2433 = vadd.f32 0.0, %v2432
  %v2434 = vpop.f32.mrf.mxu0
  %v2435 = vadd.f32 0.0, %v2434
  %2436 = vmatmul.bf16.gmra.mxu0 %v2404
  %v2437 = vpop.f32.mrf.mxu0
  %v2438 = vadd.f32 0.0, %v2437
  %v2439 = vpop.f32.mrf.mxu0
  %2440 = vdwg.mxu0
  %v2441 = vrcp.pop %v2418
  %v2442 = vrcp.pop %v2420
  %v2443 = vrcp.pop %v2423
  %v2444 = vrcp.pop %v2425
  %v2445 = vrcp.pop %v2428
  %v2446 = vrcp.pop %v2430
  %v2447 = vrcp.pop %v2433
  %v2448 = vrcp.pop %v2435
  %v2449 = vrcp.pop %v2438
  %2451 = vset.pattern.permute.xlu0 8
  %2452 = vperm.xlu0 %2451, %v2441
  %v2453 = vpop.permute.xlu0 %2452
  %2456 = vset.pattern.permute.xlu0 8
  %2457 = vperm.xlu0 %2456, %v2442
  %v2458 = vpop.permute.xlu0 %2457
  %2461 = vset.pattern.permute.xlu0 8
  %2462 = vperm.xlu0 %2461, %v2443
  %v2463 = vpop.permute.xlu0 %2462
  %2466 = vset.pattern.permute.xlu0 8
  %2467 = vperm.xlu0 %2466, %v2444
  %v2468 = vpop.permute.xlu0 %2467
  %2471 = vset.pattern.permute.xlu0 8
  %2472 = vperm.xlu0 %2471, %v2445
  %v2473 = vpop.permute.xlu0 %2472
  %2476 = vset.pattern.permute.xlu0 8
  %2477 = vperm.xlu0 %2476, %v2446
  %v2478 = vpop.permute.xlu0 %2477
  %2481 = vset.pattern.permute.xlu0 8
  %2482 = vperm.xlu0 %2481, %v2447
  %v2483 = vpop.permute.xlu0 %2482
  %2486 = vset.pattern.permute.xlu0 8
  %2487 = vperm.xlu0 %2486, %v2448
  %v2488 = vpop.permute.xlu0 %2487
  %2491 = vset.pattern.permute.xlu0 8
  %2492 = vperm.xlu0 %2491, %v2449
  %v2493 = vpop.permute.xlu0 %2492
  %v2495 = vmul.f32 %v2418, %v2453
  %v2496 = vmul.f32 %v2420, %v2458
  %v2497 = vmul.f32 %v2423, %v2463
  %v2498 = vmul.f32 %v2425, %v2468
  %v2499 = vmul.f32 %v2428, %v2473
  %v2500 = vmul.f32 %v2430, %v2478
  %v2501 = vmul.f32 %v2433, %v2483
  %v2502 = vmul.f32 %v2435, %v2488
  %v2503 = vmul.f32 %v2438, %v2493
  %v2504 = vpack.c.bf16 %v2496, %v2495
  %v2505 = vpack.c.bf16 %v2498, %v2497
  %v2506 = vpack.c.bf16 %v2500, %v2499
  %v2507 = vpack.c.bf16 %v2502, %v2501
  %v2508 = vpack.c.bf16 %v2503, %v2503
  %2509 = vrot.lane.b32.xlu0 %v2230, 120
  %v2510 = vpop.permute.xlu0 %2509
  %2511 = vrot.lane.b32.xlu0 %v2231, 120
  %v2512 = vpop.permute.xlu0 %2511
  %2513 = vrot.lane.b32.xlu0 %v2232, 120
  %v2514 = vpop.permute.xlu0 %2513
  %2515 = vrot.lane.b32.xlu0 %v2233, 120
  %v2516 = vpop.permute.xlu0 %2515
  %2517 = vrot.lane.b32.xlu0 %v2234, 120
  %v2518 = vpop.permute.xlu0 %2517
  %2519 = vrot.lane.b32.xlu0 %v2230, 88
  %v2520 = vpop.permute.xlu0 %2519
  %2521 = vrot.lane.b32.xlu0 %v2231, 88
  %v2522 = vpop.permute.xlu0 %2521
  %2523 = vrot.lane.b32.xlu0 %v2232, 88
  %v2524 = vpop.permute.xlu0 %2523
  %2525 = vrot.lane.b32.xlu0 %v2233, 88
  %v2526 = vpop.permute.xlu0 %2525
  %2527 = vrot.lane.b32.xlu0 %v2234, 88
  %v2528 = vpop.permute.xlu0 %2527
  %v2530 = vsel %vm870, %v2510, 0
  %v2533 = vsel %vm870, %v2512, 0
  %v2536 = vsel %vm870, %v2514, 0
  %v2539 = vsel %vm870, %v2516, 0
  %v2542 = vsel %vm870, %v2518, 0
  %v2545 = vsel %vm870, %v2520, 0
  %v2548 = vsel %vm870, %v2522, 0
  %v2551 = vsel %vm870, %v2524, 0
  %v2554 = vsel %vm870, %v2526, 0
  %v2557 = vsel %vm870, %v2528, 0
  %2559 = vmatpush.bf16.xpose.msra.mxu0 0
  %2560 = vmatpush.bf16.xpose.msra.mxu0 0
  %2561 = vmatpush.bf16.xpose.msra.mxu0 0
  %2562 = vmatpush.bf16.xpose.msra.mxu0 %v2557
  %2563 = vmatpush.bf16.xpose.msra.mxu0 %v2554
  %2564 = vmatpush.bf16.xpose.msra.mxu0 %v2551
  %2565 = vmatpush.bf16.xpose.msra.mxu0 %v2548
  %2566 = vmatpush.bf16.xpose.msra.mxu0 %v2545
  %2567 = vmatmul.bf16.gmra.mxu0 %v2530
  %v2568 = vpop.f32.mrf.mxu0
  %v2569 = vadd.f32 %v836, %v2568
  %v2570 = vpop.f32.mrf.mxu0
  %v2571 = vadd.f32 %v836, %v2570
  %2572 = vmatmul.bf16.gmra.mxu0 %v2533
  %v2573 = vpop.f32.mrf.mxu0
  %v2574 = vadd.f32 %v836, %v2573
  %v2575 = vpop.f32.mrf.mxu0
  %v2576 = vadd.f32 %v836, %v2575
  %2577 = vmatmul.bf16.gmra.mxu0 %v2536
  %v2578 = vpop.f32.mrf.mxu0
  %v2579 = vadd.f32 %v836, %v2578
  %v2580 = vpop.f32.mrf.mxu0
  %v2581 = vadd.f32 %v836, %v2580
  %2582 = vmatmul.bf16.gmra.mxu0 %v2539
  %v2583 = vpop.f32.mrf.mxu0
  %v2584 = vadd.f32 %v836, %v2583
  %v2585 = vpop.f32.mrf.mxu0
  %v2586 = vadd.f32 %v836, %v2585
  %2587 = vmatmul.bf16.gmra.mxu0 %v2542
  %v2588 = vpop.f32.mrf.mxu0
  %v2589 = vadd.f32 %v836, %v2588
  %v2590 = vpop.f32.mrf.mxu0
  %2591 = vdwg.mxu0
  %v2592 = vsel %vm934, %v2569, -inf
  %2593 = vmax.xlane.f32.xlu0 %v2592
  %v2594 = vpop.xlane.xlu0 %2593
  %v2595 = vsel %vm934, %v2571, -inf
  %2596 = vmax.xlane.f32.xlu0 %v2595
  %v2597 = vpop.xlane.xlu0 %2596
  %v2598 = vsel %vm934, %v2574, -inf
  %2599 = vmax.xlane.f32.xlu0 %v2598
  %v2600 = vpop.xlane.xlu0 %2599
  %v2601 = vsel %vm934, %v2576, -inf
  %2602 = vmax.xlane.f32.xlu0 %v2601
  %v2603 = vpop.xlane.xlu0 %2602
  %v2604 = vsel %vm934, %v2579, -inf
  %2605 = vmax.xlane.f32.xlu0 %v2604
  %v2606 = vpop.xlane.xlu0 %2605
  %v2607 = vsel %vm934, %v2581, -inf
  %2608 = vmax.xlane.f32.xlu0 %v2607
  %v2609 = vpop.xlane.xlu0 %2608
  %v2610 = vsel %vm934, %v2584, -inf
  %2611 = vmax.xlane.f32.xlu0 %v2610
  %v2612 = vpop.xlane.xlu0 %2611
  %v2613 = vsel %vm934, %v2586, -inf
  %2614 = vmax.xlane.f32.xlu0 %v2613
  %v2615 = vpop.xlane.xlu0 %2614
  %v2616 = vsel %vm934, %v2589, -inf
  %2617 = vmax.xlane.f32.xlu0 %v2616
  %v2618 = vpop.xlane.xlu0 %2617
  %v2619 = vsub.f32 %v2569, %v2594
  %v2620 = vsub.f32 %v2571, %v2597
  %v2621 = vsub.f32 %v2574, %v2600
  %v2622 = vsub.f32 %v2576, %v2603
  %v2623 = vsub.f32 %v2579, %v2606
  %v2624 = vsub.f32 %v2581, %v2609
  %v2625 = vsub.f32 %v2584, %v2612
  %v2626 = vsub.f32 %v2586, %v2615
  %v2627 = vsub.f32 %v2589, %v2618
  %v2628 = vmul.f32 %v2619, 1.442695
  %v2629 = vpow.pop %v2628
  %v2630 = vmul.f32 %v2620, 1.442695
  %v2631 = vpow.pop %v2630
  %v2632 = vmul.f32 %v2621, 1.442695
  %v2633 = vpow.pop %v2632
  %v2634 = vmul.f32 %v2622, 1.442695
  %v2635 = vpow.pop %v2634
  %v2636 = vmul.f32 %v2623, 1.442695
  %v2637 = vpow.pop %v2636
  %v2638 = vmul.f32 %v2624, 1.442695
  %v2639 = vpow.pop %v2638
  %v2640 = vmul.f32 %v2625, 1.442695
  %v2641 = vpow.pop %v2640
  %v2642 = vmul.f32 %v2626, 1.442695
  %v2643 = vpow.pop %v2642
  %v2644 = vmul.f32 %v2627, 1.442695
  %v2645 = vpow.pop %v2644
  %v2646 = vpack.c.bf16 %v2631, %v2629
  %v2647 = vpack.c.bf16 %v2635, %v2633
  %v2648 = vpack.c.bf16 %v2639, %v2637
  %v2649 = vpack.c.bf16 %v2643, %v2641
  %v2650 = vpack.c.bf16 %v2645, %v2645
  %2651 = vrot.lane.b32.xlu0 %v2230, 56
  %v2652 = vpop.permute.xlu0 %2651
  %2653 = vrot.lane.b32.xlu0 %v2231, 56
  %v2654 = vpop.permute.xlu0 %2653
  %2655 = vrot.lane.b32.xlu0 %v2232, 56
  %v2656 = vpop.permute.xlu0 %2655
  %2657 = vrot.lane.b32.xlu0 %v2233, 56
  %v2658 = vpop.permute.xlu0 %2657
  %2659 = vrot.lane.b32.xlu0 %v2234, 56
  %v2660 = vpop.permute.xlu0 %2659
  %v2662 = vsel %vm870, %v2652, 1065369472
  %v2665 = vsel %vm870, %v2654, 1065369472
  %v2668 = vsel %vm870, %v2656, 1065369472
  %v2671 = vsel %vm870, %v2658, 1065369472
  %v2674 = vsel %vm870, %v2660, 1065369472
  %v2676 = vsel %vm934, %v2646, 0
  %v2679 = vsel %vm934, %v2647, 0
  %v2682 = vsel %vm934, %v2648, 0
  %v2685 = vsel %vm934, %v2649, 0
  %v2688 = vsel %vm934, %v2650, 0
  %v2690 = vsel %vm1034, %v2674, 0
  %2692 = vmatpush.bf16.msra.mxu0 0
  %2693 = vmatpush.bf16.msra.mxu0 0
  %2694 = vmatpush.bf16.msra.mxu0 0
  %2695 = vmatpush.bf16.msra.mxu0 %v2690
  %2696 = vmatpush.bf16.msra.mxu0 %v2671
  %2697 = vmatpush.bf16.msra.mxu0 %v2668
  %2698 = vmatpush.bf16.msra.mxu0 %v2665
  %2699 = vmatpush.bf16.msra.mxu0 %v2662
  %2700 = vmatmul.bf16.gmra.mxu0 %v2676
  %v2701 = vpop.f32.mrf.mxu0
  %v2702 = vadd.f32 0.0, %v2701
  %v2703 = vpop.f32.mrf.mxu0
  %v2704 = vadd.f32 0.0, %v2703
  %2705 = vmatmul.bf16.gmra.mxu0 %v2679
  %v2706 = vpop.f32.mrf.mxu0
  %v2707 = vadd.f32 0.0, %v2706
  %v2708 = vpop.f32.mrf.mxu0
  %v2709 = vadd.f32 0.0, %v2708
  %2710 = vmatmul.bf16.gmra.mxu0 %v2682
  %v2711 = vpop.f32.mrf.mxu0
  %v2712 = vadd.f32 0.0, %v2711
  %v2713 = vpop.f32.mrf.mxu0
  %v2714 = vadd.f32 0.0, %v2713
  %2715 = vmatmul.bf16.gmra.mxu0 %v2685
  %v2716 = vpop.f32.mrf.mxu0
  %v2717 = vadd.f32 0.0, %v2716
  %v2718 = vpop.f32.mrf.mxu0
  %v2719 = vadd.f32 0.0, %v2718
  %2720 = vmatmul.bf16.gmra.mxu0 %v2688
  %v2721 = vpop.f32.mrf.mxu0
  %v2722 = vadd.f32 0.0, %v2721
  %v2723 = vpop.f32.mrf.mxu0
  %2724 = vdwg.mxu0
  %v2725 = vrcp.pop %v2702
  %v2726 = vrcp.pop %v2704
  %v2727 = vrcp.pop %v2707
  %v2728 = vrcp.pop %v2709
  %v2729 = vrcp.pop %v2712
  %v2730 = vrcp.pop %v2714
  %v2731 = vrcp.pop %v2717
  %v2732 = vrcp.pop %v2719
  %v2733 = vrcp.pop %v2722
  %2735 = vset.pattern.permute.xlu0 8
  %2736 = vperm.xlu0 %2735, %v2725
  %v2737 = vpop.permute.xlu0 %2736
  %2740 = vset.pattern.permute.xlu0 8
  %2741 = vperm.xlu0 %2740, %v2726
  %v2742 = vpop.permute.xlu0 %2741
  %2745 = vset.pattern.permute.xlu0 8
  %2746 = vperm.xlu0 %2745, %v2727
  %v2747 = vpop.permute.xlu0 %2746
  %2750 = vset.pattern.permute.xlu0 8
  %2751 = vperm.xlu0 %2750, %v2728
  %v2752 = vpop.permute.xlu0 %2751
  %2755 = vset.pattern.permute.xlu0 8
  %2756 = vperm.xlu0 %2755, %v2729
  %v2757 = vpop.permute.xlu0 %2756
  %2760 = vset.pattern.permute.xlu0 8
  %2761 = vperm.xlu0 %2760, %v2730
  %v2762 = vpop.permute.xlu0 %2761
  %2765 = vset.pattern.permute.xlu0 8
  %2766 = vperm.xlu0 %2765, %v2731
  %v2767 = vpop.permute.xlu0 %2766
  %2770 = vset.pattern.permute.xlu0 8
  %2771 = vperm.xlu0 %2770, %v2732
  %v2772 = vpop.permute.xlu0 %2771
  %2775 = vset.pattern.permute.xlu0 8
  %2776 = vperm.xlu0 %2775, %v2733
  %v2777 = vpop.permute.xlu0 %2776
  %v2779 = vmul.f32 %v2702, %v2737
  %v2780 = vmul.f32 %v2704, %v2742
  %v2781 = vmul.f32 %v2707, %v2747
  %v2782 = vmul.f32 %v2709, %v2752
  %v2783 = vmul.f32 %v2712, %v2757
  %v2784 = vmul.f32 %v2714, %v2762
  %v2785 = vmul.f32 %v2717, %v2767
  %v2786 = vmul.f32 %v2719, %v2772
  %v2787 = vmul.f32 %v2722, %v2777
  %v2788 = vpack.c.bf16 %v2780, %v2779
  %v2789 = vpack.c.bf16 %v2782, %v2781
  %v2790 = vpack.c.bf16 %v2784, %v2783
  %v2791 = vpack.c.bf16 %v2786, %v2785
  %v2792 = vpack.c.bf16 %v2787, %v2787
  %v2794 = vsel %vm870, %v2788, 0
  %v2797 = vsel %vm870, %v2789, 0
  %v2800 = vsel %vm870, %v2790, 0
  %v2803 = vsel %vm870, %v2791, 0
  %v2806 = vsel %vm870, %v2792, 0
  %2808 = vmatpush.bf16.msra.mxu0 0
  %2809 = vmatpush.bf16.msra.mxu0 0
  %2810 = vmatpush.bf16.msra.mxu0 0
  %2811 = vmatpush.bf16.msra.mxu0 0
  %2812 = vmatpush.bf16.msra.mxu0 0
  %2813 = vmatpush.bf16.msra.mxu0 0
  %2814 = vmatpush.bf16.msra.mxu0 0
  %2815 = vmatpush.bf16.msra.mxu0 %v1438
  %2816 = vmatmul.bf16.gmra.mxu0 %v2794
  %v2817 = vpop.f32.mrf.mxu0
  %v2818 = vadd.f32 0.0, %v2817
  %v2819 = vpop.f32.mrf.mxu0
  %v2820 = vadd.f32 0.0, %v2819
  %2821 = vmatmul.bf16.gmra.mxu0 %v2797
  %v2822 = vpop.f32.mrf.mxu0
  %v2823 = vadd.f32 0.0, %v2822
  %v2824 = vpop.f32.mrf.mxu0
  %v2825 = vadd.f32 0.0, %v2824
  %2826 = vmatmul.bf16.gmra.mxu0 %v2800
  %v2827 = vpop.f32.mrf.mxu0
  %v2828 = vadd.f32 0.0, %v2827
  %v2829 = vpop.f32.mrf.mxu0
  %v2830 = vadd.f32 0.0, %v2829
  %2831 = vmatmul.bf16.gmra.mxu0 %v2803
  %v2832 = vpop.f32.mrf.mxu0
  %v2833 = vadd.f32 0.0, %v2832
  %v2834 = vpop.f32.mrf.mxu0
  %v2835 = vadd.f32 0.0, %v2834
  %2836 = vmatmul.bf16.gmra.mxu0 %v2806
  %v2837 = vpop.f32.mrf.mxu0
  %v2838 = vadd.f32 0.0, %v2837
  %v2839 = vpop.f32.mrf.mxu0
  %2840 = vdwg.mxu0
  %v2842 = vsel %vm870, %v2504, 0
  %v2845 = vsel %vm870, %v2505, 0
  %v2848 = vsel %vm870, %v2506, 0
  %v2851 = vsel %vm870, %v2507, 0
  %v2854 = vsel %vm870, %v2508, 0
  %2856 = vmatpush.bf16.msra.mxu0 0
  %2857 = vmatpush.bf16.msra.mxu0 0
  %2858 = vmatpush.bf16.msra.mxu0 0
  %2859 = vmatpush.bf16.msra.mxu0 0
  %2860 = vmatpush.bf16.msra.mxu0 0
  %2861 = vmatpush.bf16.msra.mxu0 0
  %2862 = vmatpush.bf16.msra.mxu0 0
  %2863 = vmatpush.bf16.msra.mxu0 %v1489
  %2864 = vmatmul.bf16.gmra.mxu0 %v2842
  %v2865 = vpop.f32.mrf.mxu0
  %v2866 = vadd.f32 %v2818, %v2865
  %v2867 = vpop.f32.mrf.mxu0
  %v2868 = vadd.f32 %v2820, %v2867
  %2869 = vmatmul.bf16.gmra.mxu0 %v2845
  %v2870 = vpop.f32.mrf.mxu0
  %v2871 = vadd.f32 %v2823, %v2870
  %v2872 = vpop.f32.mrf.mxu0
  %v2873 = vadd.f32 %v2825, %v2872
  %2874 = vmatmul.bf16.gmra.mxu0 %v2848
  %v2875 = vpop.f32.mrf.mxu0
  %v2876 = vadd.f32 %v2828, %v2875
  %v2877 = vpop.f32.mrf.mxu0
  %v2878 = vadd.f32 %v2830, %v2877
  %2879 = vmatmul.bf16.gmra.mxu0 %v2851
  %v2880 = vpop.f32.mrf.mxu0
  %v2881 = vadd.f32 %v2833, %v2880
  %v2882 = vpop.f32.mrf.mxu0
  %v2883 = vadd.f32 %v2835, %v2882
  %2884 = vmatmul.bf16.gmra.mxu0 %v2854
  %v2885 = vpop.f32.mrf.mxu0
  %v2886 = vadd.f32 %v2838, %v2885
  %v2887 = vpop.f32.mrf.mxu0
  %2888 = vdwg.mxu0
  %2889 = vrot.lane.b32.xlu0 %v2230, 112
  %v2890 = vpop.permute.xlu0 %2889
  %2891 = vrot.lane.b32.xlu0 %v2231, 112
  %v2892 = vpop.permute.xlu0 %2891
  %2893 = vrot.lane.b32.xlu0 %v2232, 112
  %v2894 = vpop.permute.xlu0 %2893
  %2895 = vrot.lane.b32.xlu0 %v2233, 112
  %v2896 = vpop.permute.xlu0 %2895
  %2897 = vrot.lane.b32.xlu0 %v2234, 112
  %v2898 = vpop.permute.xlu0 %2897
  %2899 = vrot.lane.b32.xlu0 %v2230, 80
  %v2900 = vpop.permute.xlu0 %2899
  %2901 = vrot.lane.b32.xlu0 %v2231, 80
  %v2902 = vpop.permute.xlu0 %2901
  %2903 = vrot.lane.b32.xlu0 %v2232, 80
  %v2904 = vpop.permute.xlu0 %2903
  %2905 = vrot.lane.b32.xlu0 %v2233, 80
  %v2906 = vpop.permute.xlu0 %2905
  %2907 = vrot.lane.b32.xlu0 %v2234, 80
  %v2908 = vpop.permute.xlu0 %2907
  %v2910 = vsel %vm870, %v2890, 0
  %v2913 = vsel %vm870, %v2892, 0
  %v2916 = vsel %vm870, %v2894, 0
  %v2919 = vsel %vm870, %v2896, 0
  %v2922 = vsel %vm870, %v2898, 0
  %v2925 = vsel %vm870, %v2900, 0
  %v2928 = vsel %vm870, %v2902, 0
  %v2931 = vsel %vm870, %v2904, 0
  %v2934 = vsel %vm870, %v2906, 0
  %v2937 = vsel %vm870, %v2908, 0
  %2939 = vmatpush.bf16.xpose.msra.mxu0 0
  %2940 = vmatpush.bf16.xpose.msra.mxu0 0
  %2941 = vmatpush.bf16.xpose.msra.mxu0 0
  %2942 = vmatpush.bf16.xpose.msra.mxu0 %v2937
  %2943 = vmatpush.bf16.xpose.msra.mxu0 %v2934
  %2944 = vmatpush.bf16.xpose.msra.mxu0 %v2931
  %2945 = vmatpush.bf16.xpose.msra.mxu0 %v2928
  %2946 = vmatpush.bf16.xpose.msra.mxu0 %v2925
  %2947 = vmatmul.bf16.gmra.mxu0 %v2910
  %v2948 = vpop.f32.mrf.mxu0
  %v2949 = vadd.f32 %v836, %v2948
  %v2950 = vpop.f32.mrf.mxu0
  %v2951 = vadd.f32 %v836, %v2950
  %2952 = vmatmul.bf16.gmra.mxu0 %v2913
  %v2953 = vpop.f32.mrf.mxu0
  %v2954 = vadd.f32 %v836, %v2953
  %v2955 = vpop.f32.mrf.mxu0
  %v2956 = vadd.f32 %v836, %v2955
  %2957 = vmatmul.bf16.gmra.mxu0 %v2916
  %v2958 = vpop.f32.mrf.mxu0
  %v2959 = vadd.f32 %v836, %v2958
  %v2960 = vpop.f32.mrf.mxu0
  %v2961 = vadd.f32 %v836, %v2960
  %2962 = vmatmul.bf16.gmra.mxu0 %v2919
  %v2963 = vpop.f32.mrf.mxu0
  %v2964 = vadd.f32 %v836, %v2963
  %v2965 = vpop.f32.mrf.mxu0
  %v2966 = vadd.f32 %v836, %v2965
  %2967 = vmatmul.bf16.gmra.mxu0 %v2922
  %v2968 = vpop.f32.mrf.mxu0
  %v2969 = vadd.f32 %v836, %v2968
  %v2970 = vpop.f32.mrf.mxu0
  %2971 = vdwg.mxu0
  %v2972 = vsel %vm934, %v2949, -inf
  %2973 = vmax.xlane.f32.xlu0 %v2972
  %v2974 = vpop.xlane.xlu0 %2973
  %v2975 = vsel %vm934, %v2951, -inf
  %2976 = vmax.xlane.f32.xlu0 %v2975
  %v2977 = vpop.xlane.xlu0 %2976
  %v2978 = vsel %vm934, %v2954, -inf
  %2979 = vmax.xlane.f32.xlu0 %v2978
  %v2980 = vpop.xlane.xlu0 %2979
  %v2981 = vsel %vm934, %v2956, -inf
  %2982 = vmax.xlane.f32.xlu0 %v2981
  %v2983 = vpop.xlane.xlu0 %2982
  %v2984 = vsel %vm934, %v2959, -inf
  %2985 = vmax.xlane.f32.xlu0 %v2984
  %v2986 = vpop.xlane.xlu0 %2985
  %v2987 = vsel %vm934, %v2961, -inf
  %2988 = vmax.xlane.f32.xlu0 %v2987
  %v2989 = vpop.xlane.xlu0 %2988
  %v2990 = vsel %vm934, %v2964, -inf
  %2991 = vmax.xlane.f32.xlu0 %v2990
  %v2992 = vpop.xlane.xlu0 %2991
  %v2993 = vsel %vm934, %v2966, -inf
  %2994 = vmax.xlane.f32.xlu0 %v2993
  %v2995 = vpop.xlane.xlu0 %2994
  %v2996 = vsel %vm934, %v2969, -inf
  %2997 = vmax.xlane.f32.xlu0 %v2996
  %v2998 = vpop.xlane.xlu0 %2997
  %v2999 = vsub.f32 %v2949, %v2974
  %v3000 = vsub.f32 %v2951, %v2977
  %v3001 = vsub.f32 %v2954, %v2980
  %v3002 = vsub.f32 %v2956, %v2983
  %v3003 = vsub.f32 %v2959, %v2986
  %v3004 = vsub.f32 %v2961, %v2989
  %v3005 = vsub.f32 %v2964, %v2992
  %v3006 = vsub.f32 %v2966, %v2995
  %v3007 = vsub.f32 %v2969, %v2998
  %v3008 = vmul.f32 %v2999, 1.442695
  %v3009 = vpow.pop %v3008
  %v3010 = vmul.f32 %v3000, 1.442695
  %v3011 = vpow.pop %v3010
  %v3012 = vmul.f32 %v3001, 1.442695
  %v3013 = vpow.pop %v3012
  %v3014 = vmul.f32 %v3002, 1.442695
  %v3015 = vpow.pop %v3014
  %v3016 = vmul.f32 %v3003, 1.442695
  %v3017 = vpow.pop %v3016
  %v3018 = vmul.f32 %v3004, 1.442695
  %v3019 = vpow.pop %v3018
  %v3020 = vmul.f32 %v3005, 1.442695
  %v3021 = vpow.pop %v3020
  %v3022 = vmul.f32 %v3006, 1.442695
  %v3023 = vpow.pop %v3022
  %v3024 = vmul.f32 %v3007, 1.442695
  %v3025 = vpow.pop %v3024
  %v3026 = vpack.c.bf16 %v3011, %v3009
  %v3027 = vpack.c.bf16 %v3015, %v3013
  %v3028 = vpack.c.bf16 %v3019, %v3017
  %v3029 = vpack.c.bf16 %v3023, %v3021
  %v3030 = vpack.c.bf16 %v3025, %v3025
  %3031 = vrot.lane.b32.xlu0 %v2230, 48
  %v3032 = vpop.permute.xlu0 %3031
  %3033 = vrot.lane.b32.xlu0 %v2231, 48
  %v3034 = vpop.permute.xlu0 %3033
  %3035 = vrot.lane.b32.xlu0 %v2232, 48
  %v3036 = vpop.permute.xlu0 %3035
  %3037 = vrot.lane.b32.xlu0 %v2233, 48
  %v3038 = vpop.permute.xlu0 %3037
  %3039 = vrot.lane.b32.xlu0 %v2234, 48
  %v3040 = vpop.permute.xlu0 %3039
  %v3042 = vsel %vm870, %v3032, 1065369472
  %v3045 = vsel %vm870, %v3034, 1065369472
  %v3048 = vsel %vm870, %v3036, 1065369472
  %v3051 = vsel %vm870, %v3038, 1065369472
  %v3054 = vsel %vm870, %v3040, 1065369472
  %v3056 = vsel %vm934, %v3026, 0
  %v3059 = vsel %vm934, %v3027, 0
  %v3062 = vsel %vm934, %v3028, 0
  %v3065 = vsel %vm934, %v3029, 0
  %v3068 = vsel %vm934, %v3030, 0
  %v3070 = vsel %vm1034, %v3054, 0
  %3072 = vmatpush.bf16.msra.mxu0 0
  %3073 = vmatpush.bf16.msra.mxu0 0
  %3074 = vmatpush.bf16.msra.mxu0 0
  %3075 = vmatpush.bf16.msra.mxu0 %v3070
  %3076 = vmatpush.bf16.msra.mxu0 %v3051
  %3077 = vmatpush.bf16.msra.mxu0 %v3048
  %3078 = vmatpush.bf16.msra.mxu0 %v3045
  %3079 = vmatpush.bf16.msra.mxu0 %v3042
  %3080 = vmatmul.bf16.gmra.mxu0 %v3056
  %v3081 = vpop.f32.mrf.mxu0
  %v3082 = vadd.f32 0.0, %v3081
  %v3083 = vpop.f32.mrf.mxu0
  %v3084 = vadd.f32 0.0, %v3083
  %3085 = vmatmul.bf16.gmra.mxu0 %v3059
  %v3086 = vpop.f32.mrf.mxu0
  %v3087 = vadd.f32 0.0, %v3086
  %v3088 = vpop.f32.mrf.mxu0
  %v3089 = vadd.f32 0.0, %v3088
  %3090 = vmatmul.bf16.gmra.mxu0 %v3062
  %v3091 = vpop.f32.mrf.mxu0
  %v3092 = vadd.f32 0.0, %v3091
  %v3093 = vpop.f32.mrf.mxu0
  %v3094 = vadd.f32 0.0, %v3093
  %3095 = vmatmul.bf16.gmra.mxu0 %v3065
  %v3096 = vpop.f32.mrf.mxu0
  %v3097 = vadd.f32 0.0, %v3096
  %v3098 = vpop.f32.mrf.mxu0
  %v3099 = vadd.f32 0.0, %v3098
  %3100 = vmatmul.bf16.gmra.mxu0 %v3068
  %v3101 = vpop.f32.mrf.mxu0
  %v3102 = vadd.f32 0.0, %v3101
  %v3103 = vpop.f32.mrf.mxu0
  %3104 = vdwg.mxu0
  %v3105 = vrcp.pop %v3082
  %v3106 = vrcp.pop %v3084
  %v3107 = vrcp.pop %v3087
  %v3108 = vrcp.pop %v3089
  %v3109 = vrcp.pop %v3092
  %v3110 = vrcp.pop %v3094
  %v3111 = vrcp.pop %v3097
  %v3112 = vrcp.pop %v3099
  %v3113 = vrcp.pop %v3102
  %3115 = vset.pattern.permute.xlu0 8
  %3116 = vperm.xlu0 %3115, %v3105
  %v3117 = vpop.permute.xlu0 %3116
  %3120 = vset.pattern.permute.xlu0 8
  %3121 = vperm.xlu0 %3120, %v3106
  %v3122 = vpop.permute.xlu0 %3121
  %3125 = vset.pattern.permute.xlu0 8
  %3126 = vperm.xlu0 %3125, %v3107
  %v3127 = vpop.permute.xlu0 %3126
  %3130 = vset.pattern.permute.xlu0 8
  %3131 = vperm.xlu0 %3130, %v3108
  %v3132 = vpop.permute.xlu0 %3131
  %3135 = vset.pattern.permute.xlu0 8
  %3136 = vperm.xlu0 %3135, %v3109
  %v3137 = vpop.permute.xlu0 %3136
  %3140 = vset.pattern.permute.xlu0 8
  %3141 = vperm.xlu0 %3140, %v3110
  %v3142 = vpop.permute.xlu0 %3141
  %3145 = vset.pattern.permute.xlu0 8
  %3146 = vperm.xlu0 %3145, %v3111
  %v3147 = vpop.permute.xlu0 %3146
  %3150 = vset.pattern.permute.xlu0 8
  %3151 = vperm.xlu0 %3150, %v3112
  %v3152 = vpop.permute.xlu0 %3151
  %3155 = vset.pattern.permute.xlu0 8
  %3156 = vperm.xlu0 %3155, %v3113
  %v3157 = vpop.permute.xlu0 %3156
  %v3159 = vmul.f32 %v3082, %v3117
  %v3160 = vmul.f32 %v3084, %v3122
  %v3161 = vmul.f32 %v3087, %v3127
  %v3162 = vmul.f32 %v3089, %v3132
  %v3163 = vmul.f32 %v3092, %v3137
  %v3164 = vmul.f32 %v3094, %v3142
  %v3165 = vmul.f32 %v3097, %v3147
  %v3166 = vmul.f32 %v3099, %v3152
  %v3167 = vmul.f32 %v3102, %v3157
  %v3168 = vpack.c.bf16 %v3160, %v3159
  %v3169 = vpack.c.bf16 %v3162, %v3161
  %v3170 = vpack.c.bf16 %v3164, %v3163
  %v3171 = vpack.c.bf16 %v3166, %v3165
  %v3172 = vpack.c.bf16 %v3167, %v3167
  %v3174 = vsel %vm870, %v3168, 0
  %v3177 = vsel %vm870, %v3169, 0
  %v3180 = vsel %vm870, %v3170, 0
  %v3183 = vsel %vm870, %v3171, 0
  %v3186 = vsel %vm870, %v3172, 0
  %3188 = vmatpush.bf16.msra.mxu0 0
  %3189 = vmatpush.bf16.msra.mxu0 0
  %3190 = vmatpush.bf16.msra.mxu0 0
  %3191 = vmatpush.bf16.msra.mxu0 0
  %3192 = vmatpush.bf16.msra.mxu0 0
  %3193 = vmatpush.bf16.msra.mxu0 0
  %3194 = vmatpush.bf16.msra.mxu0 0
  %3195 = vmatpush.bf16.msra.mxu0 %v1824
  %3196 = vmatmul.bf16.gmra.mxu0 %v3174
  %v3197 = vpop.f32.mrf.mxu0
  %v3198 = vadd.f32 0.0, %v3197
  %v3199 = vpop.f32.mrf.mxu0
  %v3200 = vadd.f32 0.0, %v3199
  %3201 = vmatmul.bf16.gmra.mxu0 %v3177
  %v3202 = vpop.f32.mrf.mxu0
  %v3203 = vadd.f32 0.0, %v3202
  %v3204 = vpop.f32.mrf.mxu0
  %v3205 = vadd.f32 0.0, %v3204
  %3206 = vmatmul.bf16.gmra.mxu0 %v3180
  %v3207 = vpop.f32.mrf.mxu0
  %v3208 = vadd.f32 0.0, %v3207
  %v3209 = vpop.f32.mrf.mxu0
  %v3210 = vadd.f32 0.0, %v3209
  %3211 = vmatmul.bf16.gmra.mxu0 %v3183
  %v3212 = vpop.f32.mrf.mxu0
  %v3213 = vadd.f32 0.0, %v3212
  %v3214 = vpop.f32.mrf.mxu0
  %v3215 = vadd.f32 0.0, %v3214
  %3216 = vmatmul.bf16.gmra.mxu0 %v3186
  %v3217 = vpop.f32.mrf.mxu0
  %v3218 = vadd.f32 0.0, %v3217
  %v3219 = vpop.f32.mrf.mxu0
  %3220 = vdwg.mxu0
  %v3221 = vadd.f32 %v2866, %v3198
  %v3222 = vadd.f32 %v2868, %v3200
  %v3223 = vadd.f32 %v2871, %v3203
  %v3224 = vadd.f32 %v2873, %v3205
  %v3225 = vadd.f32 %v2876, %v3208
  %v3226 = vadd.f32 %v2878, %v3210
  %v3227 = vadd.f32 %v2881, %v3213
  %v3228 = vadd.f32 %v2883, %v3215
  %v3229 = vadd.f32 %v2886, %v3218
  %3230 = vrot.lane.b32.xlu0 %v2230, 104
  %v3231 = vpop.permute.xlu0 %3230
  %3232 = vrot.lane.b32.xlu0 %v2231, 104
  %v3233 = vpop.permute.xlu0 %3232
  %3234 = vrot.lane.b32.xlu0 %v2232, 104
  %v3235 = vpop.permute.xlu0 %3234
  %3236 = vrot.lane.b32.xlu0 %v2233, 104
  %v3237 = vpop.permute.xlu0 %3236
  %3238 = vrot.lane.b32.xlu0 %v2234, 104
  %v3239 = vpop.permute.xlu0 %3238
  %3240 = vrot.lane.b32.xlu0 %v2230, 72
  %v3241 = vpop.permute.xlu0 %3240
  %3242 = vrot.lane.b32.xlu0 %v2231, 72
  %v3243 = vpop.permute.xlu0 %3242
  %3244 = vrot.lane.b32.xlu0 %v2232, 72
  %v3245 = vpop.permute.xlu0 %3244
  %3246 = vrot.lane.b32.xlu0 %v2233, 72
  %v3247 = vpop.permute.xlu0 %3246
  %3248 = vrot.lane.b32.xlu0 %v2234, 72
  %v3249 = vpop.permute.xlu0 %3248
  %v3251 = vsel %vm870, %v3231, 0
  %v3254 = vsel %vm870, %v3233, 0
  %v3257 = vsel %vm870, %v3235, 0
  %v3260 = vsel %vm870, %v3237, 0
  %v3263 = vsel %vm870, %v3239, 0
  %v3266 = vsel %vm870, %v3241, 0
  %v3269 = vsel %vm870, %v3243, 0
  %v3272 = vsel %vm870, %v3245, 0
  %v3275 = vsel %vm870, %v3247, 0
  %v3278 = vsel %vm870, %v3249, 0
  %3280 = vmatpush.bf16.xpose.msra.mxu0 0
  %3281 = vmatpush.bf16.xpose.msra.mxu0 0
  %3282 = vmatpush.bf16.xpose.msra.mxu0 0
  %3283 = vmatpush.bf16.xpose.msra.mxu0 %v3278
  %3284 = vmatpush.bf16.xpose.msra.mxu0 %v3275
  %3285 = vmatpush.bf16.xpose.msra.mxu0 %v3272
  %3286 = vmatpush.bf16.xpose.msra.mxu0 %v3269
  %3287 = vmatpush.bf16.xpose.msra.mxu0 %v3266
  %3288 = vmatmul.bf16.gmra.mxu0 %v3251
  %v3289 = vpop.f32.mrf.mxu0
  %v3290 = vadd.f32 %v836, %v3289
  %v3291 = vpop.f32.mrf.mxu0
  %v3292 = vadd.f32 %v836, %v3291
  %3293 = vmatmul.bf16.gmra.mxu0 %v3254
  %v3294 = vpop.f32.mrf.mxu0
  %v3295 = vadd.f32 %v836, %v3294
  %v3296 = vpop.f32.mrf.mxu0
  %v3297 = vadd.f32 %v836, %v3296
  %3298 = vmatmul.bf16.gmra.mxu0 %v3257
  %v3299 = vpop.f32.mrf.mxu0
  %v3300 = vadd.f32 %v836, %v3299
  %v3301 = vpop.f32.mrf.mxu0
  %v3302 = vadd.f32 %v836, %v3301
  %3303 = vmatmul.bf16.gmra.mxu0 %v3260
  %v3304 = vpop.f32.mrf.mxu0
  %v3305 = vadd.f32 %v836, %v3304
  %v3306 = vpop.f32.mrf.mxu0
  %v3307 = vadd.f32 %v836, %v3306
  %3308 = vmatmul.bf16.gmra.mxu0 %v3263
  %v3309 = vpop.f32.mrf.mxu0
  %v3310 = vadd.f32 %v836, %v3309
  %v3311 = vpop.f32.mrf.mxu0
  %3312 = vdwg.mxu0
  %v3313 = vsel %vm934, %v3290, -inf
  %3314 = vmax.xlane.f32.xlu0 %v3313
  %v3315 = vpop.xlane.xlu0 %3314
  %v3316 = vsel %vm934, %v3292, -inf
  %3317 = vmax.xlane.f32.xlu0 %v3316
  %v3318 = vpop.xlane.xlu0 %3317
  %v3319 = vsel %vm934, %v3295, -inf
  %3320 = vmax.xlane.f32.xlu0 %v3319
  %v3321 = vpop.xlane.xlu0 %3320
  %v3322 = vsel %vm934, %v3297, -inf
  %3323 = vmax.xlane.f32.xlu0 %v3322
  %v3324 = vpop.xlane.xlu0 %3323
  %v3325 = vsel %vm934, %v3300, -inf
  %3326 = vmax.xlane.f32.xlu0 %v3325
  %v3327 = vpop.xlane.xlu0 %3326
  %v3328 = vsel %vm934, %v3302, -inf
  %3329 = vmax.xlane.f32.xlu0 %v3328
  %v3330 = vpop.xlane.xlu0 %3329
  %v3331 = vsel %vm934, %v3305, -inf
  %3332 = vmax.xlane.f32.xlu0 %v3331
  %v3333 = vpop.xlane.xlu0 %3332
  %v3334 = vsel %vm934, %v3307, -inf
  %3335 = vmax.xlane.f32.xlu0 %v3334
  %v3336 = vpop.xlane.xlu0 %3335
  %v3337 = vsel %vm934, %v3310, -inf
  %3338 = vmax.xlane.f32.xlu0 %v3337
  %v3339 = vpop.xlane.xlu0 %3338
  %v3340 = vsub.f32 %v3290, %v3315
  %v3341 = vsub.f32 %v3292, %v3318
  %v3342 = vsub.f32 %v3295, %v3321
  %v3343 = vsub.f32 %v3297, %v3324
  %v3344 = vsub.f32 %v3300, %v3327
  %v3345 = vsub.f32 %v3302, %v3330
  %v3346 = vsub.f32 %v3305, %v3333
  %v3347 = vsub.f32 %v3307, %v3336
  %v3348 = vsub.f32 %v3310, %v3339
  %v3349 = vmul.f32 %v3340, 1.442695
  %v3350 = vpow.pop %v3349
  %v3351 = vmul.f32 %v3341, 1.442695
  %v3352 = vpow.pop %v3351
  %v3353 = vmul.f32 %v3342, 1.442695
  %v3354 = vpow.pop %v3353
  %v3355 = vmul.f32 %v3343, 1.442695
  %v3356 = vpow.pop %v3355
  %v3357 = vmul.f32 %v3344, 1.442695
  %v3358 = vpow.pop %v3357
  %v3359 = vmul.f32 %v3345, 1.442695
  %v3360 = vpow.pop %v3359
  %v3361 = vmul.f32 %v3346, 1.442695
  %v3362 = vpow.pop %v3361
  %v3363 = vmul.f32 %v3347, 1.442695
  %v3364 = vpow.pop %v3363
  %v3365 = vmul.f32 %v3348, 1.442695
  %v3366 = vpow.pop %v3365
  %v3367 = vpack.c.bf16 %v3352, %v3350
  %v3368 = vpack.c.bf16 %v3356, %v3354
  %v3369 = vpack.c.bf16 %v3360, %v3358
  %v3370 = vpack.c.bf16 %v3364, %v3362
  %v3371 = vpack.c.bf16 %v3366, %v3366
  %3372 = vrot.lane.b32.xlu0 %v2230, 40
  %v3373 = vpop.permute.xlu0 %3372
  %3374 = vrot.lane.b32.xlu0 %v2231, 40
  %v3375 = vpop.permute.xlu0 %3374
  %3376 = vrot.lane.b32.xlu0 %v2232, 40
  %v3377 = vpop.permute.xlu0 %3376
  %3378 = vrot.lane.b32.xlu0 %v2233, 40
  %v3379 = vpop.permute.xlu0 %3378
  %3380 = vrot.lane.b32.xlu0 %v2234, 40
  %v3381 = vpop.permute.xlu0 %3380
  %v3383 = vsel %vm870, %v3373, 1065369472
  %v3386 = vsel %vm870, %v3375, 1065369472
  %v3389 = vsel %vm870, %v3377, 1065369472
  %v3392 = vsel %vm870, %v3379, 1065369472
  %v3395 = vsel %vm870, %v3381, 1065369472
  %v3397 = vsel %vm934, %v3367, 0
  %v3400 = vsel %vm934, %v3368, 0
  %v3403 = vsel %vm934, %v3369, 0
  %v3406 = vsel %vm934, %v3370, 0
  %v3409 = vsel %vm934, %v3371, 0
  %v3411 = vsel %vm1034, %v3395, 0
  %3413 = vmatpush.bf16.msra.mxu0 0
  %3414 = vmatpush.bf16.msra.mxu0 0
  %3415 = vmatpush.bf16.msra.mxu0 0
  %3416 = vmatpush.bf16.msra.mxu0 %v3411
  %3417 = vmatpush.bf16.msra.mxu0 %v3392
  %3418 = vmatpush.bf16.msra.mxu0 %v3389
  %3419 = vmatpush.bf16.msra.mxu0 %v3386
  %3420 = vmatpush.bf16.msra.mxu0 %v3383
  %3421 = vmatmul.bf16.gmra.mxu0 %v3397
  %v3422 = vpop.f32.mrf.mxu0
  %v3423 = vadd.f32 0.0, %v3422
  %v3424 = vpop.f32.mrf.mxu0
  %v3425 = vadd.f32 0.0, %v3424
  %3426 = vmatmul.bf16.gmra.mxu0 %v3400
  %v3427 = vpop.f32.mrf.mxu0
  %v3428 = vadd.f32 0.0, %v3427
  %v3429 = vpop.f32.mrf.mxu0
  %v3430 = vadd.f32 0.0, %v3429
  %3431 = vmatmul.bf16.gmra.mxu0 %v3403
  %v3432 = vpop.f32.mrf.mxu0
  %v3433 = vadd.f32 0.0, %v3432
  %v3434 = vpop.f32.mrf.mxu0
  %v3435 = vadd.f32 0.0, %v3434
  %3436 = vmatmul.bf16.gmra.mxu0 %v3406
  %v3437 = vpop.f32.mrf.mxu0
  %v3438 = vadd.f32 0.0, %v3437
  %v3439 = vpop.f32.mrf.mxu0
  %v3440 = vadd.f32 0.0, %v3439
  %3441 = vmatmul.bf16.gmra.mxu0 %v3409
  %v3442 = vpop.f32.mrf.mxu0
  %v3443 = vadd.f32 0.0, %v3442
  %v3444 = vpop.f32.mrf.mxu0
  %3445 = vdwg.mxu0
  %v3446 = vrcp.pop %v3423
  %v3447 = vrcp.pop %v3425
  %v3448 = vrcp.pop %v3428
  %v3449 = vrcp.pop %v3430
  %v3450 = vrcp.pop %v3433
  %v3451 = vrcp.pop %v3435
  %v3452 = vrcp.pop %v3438
  %v3453 = vrcp.pop %v3440
  %v3454 = vrcp.pop %v3443
  %3456 = vset.pattern.permute.xlu0 8
  %3457 = vperm.xlu0 %3456, %v3446
  %v3458 = vpop.permute.xlu0 %3457
  %3461 = vset.pattern.permute.xlu0 8
  %3462 = vperm.xlu0 %3461, %v3447
  %v3463 = vpop.permute.xlu0 %3462
  %3466 = vset.pattern.permute.xlu0 8
  %3467 = vperm.xlu0 %3466, %v3448
  %v3468 = vpop.permute.xlu0 %3467
  %3471 = vset.pattern.permute.xlu0 8
  %3472 = vperm.xlu0 %3471, %v3449
  %v3473 = vpop.permute.xlu0 %3472
  %3476 = vset.pattern.permute.xlu0 8
  %3477 = vperm.xlu0 %3476, %v3450
  %v3478 = vpop.permute.xlu0 %3477
  %3481 = vset.pattern.permute.xlu0 8
  %3482 = vperm.xlu0 %3481, %v3451
  %v3483 = vpop.permute.xlu0 %3482
  %3486 = vset.pattern.permute.xlu0 8
  %3487 = vperm.xlu0 %3486, %v3452
  %v3488 = vpop.permute.xlu0 %3487
  %3491 = vset.pattern.permute.xlu0 8
  %3492 = vperm.xlu0 %3491, %v3453
  %v3493 = vpop.permute.xlu0 %3492
  %3496 = vset.pattern.permute.xlu0 8
  %3497 = vperm.xlu0 %3496, %v3454
  %v3498 = vpop.permute.xlu0 %3497
  %v3500 = vmul.f32 %v3423, %v3458
  %v3501 = vmul.f32 %v3425, %v3463
  %v3502 = vmul.f32 %v3428, %v3468
  %v3503 = vmul.f32 %v3430, %v3473
  %v3504 = vmul.f32 %v3433, %v3478
  %v3505 = vmul.f32 %v3435, %v3483
  %v3506 = vmul.f32 %v3438, %v3488
  %v3507 = vmul.f32 %v3440, %v3493
  %v3508 = vmul.f32 %v3443, %v3498
  %v3509 = vpack.c.bf16 %v3501, %v3500
  %v3510 = vpack.c.bf16 %v3503, %v3502
  %v3511 = vpack.c.bf16 %v3505, %v3504
  %v3512 = vpack.c.bf16 %v3507, %v3506
  %v3513 = vpack.c.bf16 %v3508, %v3508
  %v3515 = vsel %vm870, %v3509, 0
  %v3518 = vsel %vm870, %v3510, 0
  %v3521 = vsel %vm870, %v3511, 0
  %v3524 = vsel %vm870, %v3512, 0
  %v3527 = vsel %vm870, %v3513, 0
  %3529 = vmatpush.bf16.msra.mxu0 0
  %3530 = vmatpush.bf16.msra.mxu0 0
  %3531 = vmatpush.bf16.msra.mxu0 0
  %3532 = vmatpush.bf16.msra.mxu0 0
  %3533 = vmatpush.bf16.msra.mxu0 0
  %3534 = vmatpush.bf16.msra.mxu0 0
  %3535 = vmatpush.bf16.msra.mxu0 0
  %3536 = vmatpush.bf16.msra.mxu0 %v2168
  %3537 = vmatmul.bf16.gmra.mxu0 %v3515
  %v3538 = vpop.f32.mrf.mxu0
  %v3539 = vadd.f32 0.0, %v3538
  %v3540 = vpop.f32.mrf.mxu0
  %v3541 = vadd.f32 0.0, %v3540
  %3542 = vmatmul.bf16.gmra.mxu0 %v3518
  %v3543 = vpop.f32.mrf.mxu0
  %v3544 = vadd.f32 0.0, %v3543
  %v3545 = vpop.f32.mrf.mxu0
  %v3546 = vadd.f32 0.0, %v3545
  %3547 = vmatmul.bf16.gmra.mxu0 %v3521
  %v3548 = vpop.f32.mrf.mxu0
  %v3549 = vadd.f32 0.0, %v3548
  %v3550 = vpop.f32.mrf.mxu0
  %v3551 = vadd.f32 0.0, %v3550
  %3552 = vmatmul.bf16.gmra.mxu0 %v3524
  %v3553 = vpop.f32.mrf.mxu0
  %v3554 = vadd.f32 0.0, %v3553
  %v3555 = vpop.f32.mrf.mxu0
  %v3556 = vadd.f32 0.0, %v3555
  %3557 = vmatmul.bf16.gmra.mxu0 %v3527
  %v3558 = vpop.f32.mrf.mxu0
  %v3559 = vadd.f32 0.0, %v3558
  %v3560 = vpop.f32.mrf.mxu0
  %3561 = vdwg.mxu0
  %v3562 = vadd.f32 %v3221, %v3539
  %v3563 = vadd.f32 %v3222, %v3541
  %v3564 = vadd.f32 %v3223, %v3544
  %v3565 = vadd.f32 %v3224, %v3546
  %v3566 = vadd.f32 %v3225, %v3549
  %v3567 = vadd.f32 %v3226, %v3551
  %v3568 = vadd.f32 %v3227, %v3554
  %v3569 = vadd.f32 %v3228, %v3556
  %v3570 = vadd.f32 %v3229, %v3559
  %v3571 = vadd.f32 %v180, %v2203
  %v3572 = vadd.f32 %v182, %v2204
  %v3573 = vadd.f32 %v185, %v2205
  %v3574 = vadd.f32 %v187, %v2206
  %v3575 = vadd.f32 %v190, %v2207
  %v3576 = vadd.f32 %v192, %v2208
  %v3577 = vadd.f32 %v195, %v2209
  %v3578 = vadd.f32 %v197, %v2210
  %v3579 = vadd.f32 %v200, %v2211
  %v3580 = vadd.f32 %v202, %v3562
  %v3581 = vadd.f32 %v205, %v3563
  %v3582 = vadd.f32 %v207, %v3564
  %v3583 = vadd.f32 %v210, %v3565
  %v3584 = vadd.f32 %v212, %v3566
  %v3585 = vadd.f32 %v215, %v3567
  %v3586 = vadd.f32 %v217, %v3568
  %v3587 = vadd.f32 %v220, %v3569
  %v3588 = vadd.f32 %v222, %v3570
  %v3589 = vperm.slane %v237, 2
  %v3590 = vadd.f32 %v3571, %v3589
  %v3591 = vadd.f32 %v3572, %v3589
  %v3592 = vadd.f32 %v3573, %v3589
  %v3593 = vadd.f32 %v3574, %v3589
  %v3594 = vadd.f32 %v3575, %v3589
  %v3595 = vadd.f32 %v3576, %v3589
  %v3596 = vadd.f32 %v3577, %v3589
  %v3597 = vadd.f32 %v3578, %v3589
  %v3598 = vadd.f32 %v3579, %v3589
  %v3599 = vadd.f32 %v3580, %v3589
  %v3600 = vadd.f32 %v3581, %v3589
  %v3601 = vadd.f32 %v3582, %v3589
  %v3602 = vadd.f32 %v3583, %v3589
  %v3603 = vadd.f32 %v3584, %v3589
  %v3604 = vadd.f32 %v3585, %v3589
  %v3605 = vadd.f32 %v3586, %v3589
  %v3606 = vadd.f32 %v3587, %v3589
  %v3607 = vadd.f32 %v3588, %v3589
  %v3608 = vld [vmem:[%s3 + $0x50] sm:$0x4]
  %v3609 = vunpack.c.l.bf16 %v3608
  %v3610 = vld [vmem:[%s3 + $0x20] sm:$0xf]
  %v3611 = vld [vmem:[%s3 + $0x24] sm:$0xf]
  %v3612 = vld [vmem:[%s3 + $0x28] sm:$0xf]
  %v3613 = vld [vmem:[%s3 + $0x2c] sm:$0xf]
  %v3614 = vld [vmem:[%s3 + $0x30] sm:$0xf]
  %v3615 = vld [vmem:[%s3 + $0x34] sm:$0xf]
  %v3616 = vld [vmem:[%s3 + $0x38] sm:$0xf]
  %v3617 = vld [vmem:[%s3 + $0x3c] sm:$0xf]
  %v3618 = vld [vmem:[%s3 + $0x40] sm:$0xf]
  %v3619 = vld [vmem:[%s3 + $0x44] sm:$0xf]
  %v3620 = vld [vmem:[%s3 + $0x48] sm:$0xf]
  %v3621 = vld [vmem:[%s3 + $0x4c] sm:$0xf]
  %v3622 = vld [vmem:[%s3 + $0x50] sm:$0x8]
  %v3623 = vunpack.c.l.bf16 %v3622
  %v3624 = vsel %vm238, %v3590, 0.0
  %3625 = vadd.xlane.f32.xlu0 %v3624
  %v3626 = vpop.xlane.xlu0 %3625
  %v3627 = vsel %vm238, %v3591, 0.0
  %3628 = vadd.xlane.f32.xlu0 %v3627
  %v3629 = vpop.xlane.xlu0 %3628
  %v3630 = vsel %vm238, %v3592, 0.0
  %3631 = vadd.xlane.f32.xlu0 %v3630
  %v3632 = vpop.xlane.xlu0 %3631
  %v3633 = vsel %vm238, %v3593, 0.0
  %3634 = vadd.xlane.f32.xlu0 %v3633
  %v3635 = vpop.xlane.xlu0 %3634
  %v3636 = vsel %vm238, %v3594, 0.0
  %3637 = vadd.xlane.f32.xlu0 %v3636
  %v3638 = vpop.xlane.xlu0 %3637
  %v3639 = vsel %vm238, %v3595, 0.0
  %3640 = vadd.xlane.f32.xlu0 %v3639
  %v3641 = vpop.xlane.xlu0 %3640
  %v3642 = vsel %vm238, %v3596, 0.0
  %3643 = vadd.xlane.f32.xlu0 %v3642
  %v3644 = vpop.xlane.xlu0 %3643
  %v3645 = vsel %vm238, %v3597, 0.0
  %3646 = vadd.xlane.f32.xlu0 %v3645
  %v3647 = vpop.xlane.xlu0 %3646
  %v3648 = vsel %vm238, %v3598, 0.0
  %3649 = vadd.xlane.f32.xlu0 %v3648
  %v3650 = vpop.xlane.xlu0 %3649
  %v3651 = vsel %vm238, %v3599, 0.0
  %3652 = vadd.xlane.f32.xlu0 %v3651
  %v3653 = vpop.xlane.xlu0 %3652
  %v3654 = vsel %vm238, %v3600, 0.0
  %3655 = vadd.xlane.f32.xlu0 %v3654
  %v3656 = vpop.xlane.xlu0 %3655
  %v3657 = vsel %vm238, %v3601, 0.0
  %3658 = vadd.xlane.f32.xlu0 %v3657
  %v3659 = vpop.xlane.xlu0 %3658
  %v3660 = vsel %vm238, %v3602, 0.0
  %3661 = vadd.xlane.f32.xlu0 %v3660
  %v3662 = vpop.xlane.xlu0 %3661
  %v3663 = vsel %vm238, %v3603, 0.0
  %3664 = vadd.xlane.f32.xlu0 %v3663
  %v3665 = vpop.xlane.xlu0 %3664
  %v3666 = vsel %vm238, %v3604, 0.0
  %3667 = vadd.xlane.f32.xlu0 %v3666
  %v3668 = vpop.xlane.xlu0 %3667
  %v3669 = vsel %vm238, %v3605, 0.0
  %3670 = vadd.xlane.f32.xlu0 %v3669
  %v3671 = vpop.xlane.xlu0 %3670
  %v3672 = vsel %vm238, %v3606, 0.0
  %3673 = vadd.xlane.f32.xlu0 %v3672
  %v3674 = vpop.xlane.xlu0 %3673
  %v3675 = vsel %vm238, %v3607, 0.0
  %3676 = vadd.xlane.f32.xlu0 %v3675
  %v3677 = vpop.xlane.xlu0 %3676
  %v3678 = vmul.f32 %v3626, %v299
  %v3679 = vmul.f32 %v3629, %v299
  %v3680 = vmul.f32 %v3632, %v299
  %v3681 = vmul.f32 %v3635, %v299
  %v3682 = vmul.f32 %v3638, %v299
  %v3683 = vmul.f32 %v3641, %v299
  %v3684 = vmul.f32 %v3644, %v299
  %v3685 = vmul.f32 %v3647, %v299
  %v3686 = vmul.f32 %v3650, %v299
  %v3687 = vmul.f32 %v3653, %v299
  %v3688 = vmul.f32 %v3656, %v299
  %v3689 = vmul.f32 %v3659, %v299
  %v3690 = vmul.f32 %v3662, %v299
  %v3691 = vmul.f32 %v3665, %v299
  %v3692 = vmul.f32 %v3668, %v299
  %v3693 = vmul.f32 %v3671, %v299
  %v3694 = vmul.f32 %v3674, %v299
  %v3695 = vmul.f32 %v3677, %v299
  %v3696 = vmul.f32 %v3590, %v3590
  %v3697 = vmul.f32 %v3591, %v3591
  %v3698 = vmul.f32 %v3592, %v3592
  %v3699 = vmul.f32 %v3593, %v3593
  %v3700 = vmul.f32 %v3594, %v3594
  %v3701 = vmul.f32 %v3595, %v3595
  %v3702 = vmul.f32 %v3596, %v3596
  %v3703 = vmul.f32 %v3597, %v3597
  %v3704 = vmul.f32 %v3598, %v3598
  %v3705 = vmul.f32 %v3599, %v3599
  %v3706 = vmul.f32 %v3600, %v3600
  %v3707 = vmul.f32 %v3601, %v3601
  %v3708 = vmul.f32 %v3602, %v3602
  %v3709 = vmul.f32 %v3603, %v3603
  %v3710 = vmul.f32 %v3604, %v3604
  %v3711 = vmul.f32 %v3605, %v3605
  %v3712 = vmul.f32 %v3606, %v3606
  %v3713 = vmul.f32 %v3607, %v3607
  %v3714 = vsel %vm238, %v3696, 0.0
  %3715 = vadd.xlane.f32.xlu0 %v3714
  %v3716 = vpop.xlane.xlu0 %3715
  %v3717 = vsel %vm238, %v3697, 0.0
  %3718 = vadd.xlane.f32.xlu0 %v3717
  %v3719 = vpop.xlane.xlu0 %3718
  %v3720 = vsel %vm238, %v3698, 0.0
  %3721 = vadd.xlane.f32.xlu0 %v3720
  %v3722 = vpop.xlane.xlu0 %3721
  %v3723 = vsel %vm238, %v3699, 0.0
  %3724 = vadd.xlane.f32.xlu0 %v3723
  %v3725 = vpop.xlane.xlu0 %3724
  %v3726 = vsel %vm238, %v3700, 0.0
  %3727 = vadd.xlane.f32.xlu0 %v3726
  %v3728 = vpop.xlane.xlu0 %3727
  %v3729 = vsel %vm238, %v3701, 0.0
  %3730 = vadd.xlane.f32.xlu0 %v3729
  %v3731 = vpop.xlane.xlu0 %3730
  %v3732 = vsel %vm238, %v3702, 0.0
  %3733 = vadd.xlane.f32.xlu0 %v3732
  %v3734 = vpop.xlane.xlu0 %3733
  %v3735 = vsel %vm238, %v3703, 0.0
  %3736 = vadd.xlane.f32.xlu0 %v3735
  %v3737 = vpop.xlane.xlu0 %3736
  %v3738 = vsel %vm238, %v3704, 0.0
  %3739 = vadd.xlane.f32.xlu0 %v3738
  %v3740 = vpop.xlane.xlu0 %3739
  %v3741 = vsel %vm238, %v3705, 0.0
  %3742 = vadd.xlane.f32.xlu0 %v3741
  %v3743 = vpop.xlane.xlu0 %3742
  %v3744 = vsel %vm238, %v3706, 0.0
  %3745 = vadd.xlane.f32.xlu0 %v3744
  %v3746 = vpop.xlane.xlu0 %3745
  %v3747 = vsel %vm238, %v3707, 0.0
  %3748 = vadd.xlane.f32.xlu0 %v3747
  %v3749 = vpop.xlane.xlu0 %3748
  %v3750 = vsel %vm238, %v3708, 0.0
  %3751 = vadd.xlane.f32.xlu0 %v3750
  %v3752 = vpop.xlane.xlu0 %3751
  %v3753 = vsel %vm238, %v3709, 0.0
  %3754 = vadd.xlane.f32.xlu0 %v3753
  %v3755 = vpop.xlane.xlu0 %3754
  %v3756 = vsel %vm238, %v3710, 0.0
  %3757 = vadd.xlane.f32.xlu0 %v3756
  %v3758 = vpop.xlane.xlu0 %3757
  %v3759 = vsel %vm238, %v3711, 0.0
  %3760 = vadd.xlane.f32.xlu0 %v3759
  %v3761 = vpop.xlane.xlu0 %3760
  %v3762 = vsel %vm238, %v3712, 0.0
  %3763 = vadd.xlane.f32.xlu0 %v3762
  %v3764 = vpop.xlane.xlu0 %3763
  %v3765 = vsel %vm238, %v3713, 0.0
  %3766 = vadd.xlane.f32.xlu0 %v3765
  %v3767 = vpop.xlane.xlu0 %3766
  %v3768 = vmul.f32 %v3716, %v299
  %v3769 = vmul.f32 %v3719, %v299
  %v3770 = vmul.f32 %v3722, %v299
  %v3771 = vmul.f32 %v3725, %v299
  %v3772 = vmul.f32 %v3728, %v299
  %v3773 = vmul.f32 %v3731, %v299
  %v3774 = vmul.f32 %v3734, %v299
  %v3775 = vmul.f32 %v3737, %v299
  %v3776 = vmul.f32 %v3740, %v299
  %v3777 = vmul.f32 %v3743, %v299
  %v3778 = vmul.f32 %v3746, %v299
  %v3779 = vmul.f32 %v3749, %v299
  %v3780 = vmul.f32 %v3752, %v299
  %v3781 = vmul.f32 %v3755, %v299
  %v3782 = vmul.f32 %v3758, %v299
  %v3783 = vmul.f32 %v3761, %v299
  %v3784 = vmul.f32 %v3764, %v299
  %v3785 = vmul.f32 %v3767, %v299
  %v3786 = vmul.f32 %v3678, %v3678
  %v3787 = vmul.f32 %v3679, %v3679
  %v3788 = vmul.f32 %v3680, %v3680
  %v3789 = vmul.f32 %v3681, %v3681
  %v3790 = vmul.f32 %v3682, %v3682
  %v3791 = vmul.f32 %v3683, %v3683
  %v3792 = vmul.f32 %v3684, %v3684
  %v3793 = vmul.f32 %v3685, %v3685
  %v3794 = vmul.f32 %v3686, %v3686
  %v3795 = vmul.f32 %v3687, %v3687
  %v3796 = vmul.f32 %v3688, %v3688
  %v3797 = vmul.f32 %v3689, %v3689
  %v3798 = vmul.f32 %v3690, %v3690
  %v3799 = vmul.f32 %v3691, %v3691
  %v3800 = vmul.f32 %v3692, %v3692
  %v3801 = vmul.f32 %v3693, %v3693
  %v3802 = vmul.f32 %v3694, %v3694
  %v3803 = vmul.f32 %v3695, %v3695
  %v3804 = vsub.f32 %v3768, %v3786
  %v3805 = vsub.f32 %v3769, %v3787
  %v3806 = vsub.f32 %v3770, %v3788
  %v3807 = vsub.f32 %v3771, %v3789
  %v3808 = vsub.f32 %v3772, %v3790
  %v3809 = vsub.f32 %v3773, %v3791
  %v3810 = vsub.f32 %v3774, %v3792
  %v3811 = vsub.f32 %v3775, %v3793
  %v3812 = vsub.f32 %v3776, %v3794
  %v3813 = vsub.f32 %v3777, %v3795
  %v3814 = vsub.f32 %v3778, %v3796
  %v3815 = vsub.f32 %v3779, %v3797
  %v3816 = vsub.f32 %v3780, %v3798
  %v3817 = vsub.f32 %v3781, %v3799
  %v3818 = vsub.f32 %v3782, %v3800
  %v3819 = vsub.f32 %v3783, %v3801
  %v3820 = vsub.f32 %v3784, %v3802
  %v3821 = vsub.f32 %v3785, %v3803
  %v3822 = vsub.f32 %v3590, %v3678
  %v3823 = vsub.f32 %v3591, %v3679
  %v3824 = vsub.f32 %v3592, %v3680
  %v3825 = vsub.f32 %v3593, %v3681
  %v3826 = vsub.f32 %v3594, %v3682
  %v3827 = vsub.f32 %v3595, %v3683
  %v3828 = vsub.f32 %v3596, %v3684
  %v3829 = vsub.f32 %v3597, %v3685
  %v3830 = vsub.f32 %v3598, %v3686
  %v3831 = vsub.f32 %v3599, %v3687
  %v3832 = vsub.f32 %v3600, %v3688
  %v3833 = vsub.f32 %v3601, %v3689
  %v3834 = vsub.f32 %v3602, %v3690
  %v3835 = vsub.f32 %v3603, %v3691
  %v3836 = vsub.f32 %v3604, %v3692
  %v3837 = vsub.f32 %v3605, %v3693
  %v3838 = vsub.f32 %v3606, %v3694
  %v3839 = vsub.f32 %v3607, %v3695
  %v3840 = vadd.f32 %v3804, 1e-05
  %v3841 = vadd.f32 %v3805, 1e-05
  %v3842 = vadd.f32 %v3806, 1e-05
  %v3843 = vadd.f32 %v3807, 1e-05
  %v3844 = vadd.f32 %v3808, 1e-05
  %v3845 = vadd.f32 %v3809, 1e-05
  %v3846 = vadd.f32 %v3810, 1e-05
  %v3847 = vadd.f32 %v3811, 1e-05
  %v3848 = vadd.f32 %v3812, 1e-05
  %v3849 = vadd.f32 %v3813, 1e-05
  %v3850 = vadd.f32 %v3814, 1e-05
  %v3851 = vadd.f32 %v3815, 1e-05
  %v3852 = vadd.f32 %v3816, 1e-05
  %v3853 = vadd.f32 %v3817, 1e-05
  %v3854 = vadd.f32 %v3818, 1e-05
  %v3855 = vadd.f32 %v3819, 1e-05
  %v3856 = vadd.f32 %v3820, 1e-05
  %v3857 = vadd.f32 %v3821, 1e-05
  %v3858 = vrsqrt.pop %v3840
  %v3859 = vmul.f32 %v3858, %v3840
  %v3860 = vmul.f32 %v3859, %v3858
  %v3861 = vmul.f32 0.5, %v3860
  %v3862 = vsub.f32 1.5, %v3861
  %v3863 = vmul.f32 %v3858, %v3862
  %vm3864 = vweird.f32 %v3840
  %vm3865 = vweird.f32 %v3858
  %vm3866 = vmor %vm3864, %vm3865
  %v3867 = vsel %vm3866, %v3858, %v3863
  %v3868 = vrsqrt.pop %v3841
  %v3869 = vmul.f32 %v3868, %v3841
  %v3870 = vmul.f32 %v3869, %v3868
  %v3871 = vmul.f32 0.5, %v3870
  %v3872 = vsub.f32 1.5, %v3871
  %v3873 = vmul.f32 %v3868, %v3872
  %vm3874 = vweird.f32 %v3841
  %vm3875 = vweird.f32 %v3868
  %vm3876 = vmor %vm3874, %vm3875
  %v3877 = vsel %vm3876, %v3868, %v3873
  %v3878 = vrsqrt.pop %v3842
  %v3879 = vmul.f32 %v3878, %v3842
  %v3880 = vmul.f32 %v3879, %v3878
  %v3881 = vmul.f32 0.5, %v3880
  %v3882 = vsub.f32 1.5, %v3881
  %v3883 = vmul.f32 %v3878, %v3882
  %vm3884 = vweird.f32 %v3842
  %vm3885 = vweird.f32 %v3878
  %vm3886 = vmor %vm3884, %vm3885
  %v3887 = vsel %vm3886, %v3878, %v3883
  %v3888 = vrsqrt.pop %v3843
  %v3889 = vmul.f32 %v3888, %v3843
  %v3890 = vmul.f32 %v3889, %v3888
  %v3891 = vmul.f32 0.5, %v3890
  %v3892 = vsub.f32 1.5, %v3891
  %v3893 = vmul.f32 %v3888, %v3892
  %vm3894 = vweird.f32 %v3843
  %vm3895 = vweird.f32 %v3888
  %vm3896 = vmor %vm3894, %vm3895
  %v3897 = vsel %vm3896, %v3888, %v3893
  %v3898 = vrsqrt.pop %v3844
  %v3899 = vmul.f32 %v3898, %v3844
  %v3900 = vmul.f32 %v3899, %v3898
  %v3901 = vmul.f32 0.5, %v3900
  %v3902 = vsub.f32 1.5, %v3901
  %v3903 = vmul.f32 %v3898, %v3902
  %vm3904 = vweird.f32 %v3844
  %vm3905 = vweird.f32 %v3898
  %vm3906 = vmor %vm3904, %vm3905
  %v3907 = vsel %vm3906, %v3898, %v3903
  %v3908 = vrsqrt.pop %v3845
  %v3909 = vmul.f32 %v3908, %v3845
  %v3910 = vmul.f32 %v3909, %v3908
  %v3911 = vmul.f32 0.5, %v3910
  %v3912 = vsub.f32 1.5, %v3911
  %v3913 = vmul.f32 %v3908, %v3912
  %vm3914 = vweird.f32 %v3845
  %vm3915 = vweird.f32 %v3908
  %vm3916 = vmor %vm3914, %vm3915
  %v3917 = vsel %vm3916, %v3908, %v3913
  %v3918 = vrsqrt.pop %v3846
  %v3919 = vmul.f32 %v3918, %v3846
  %v3920 = vmul.f32 %v3919, %v3918
  %v3921 = vmul.f32 0.5, %v3920
  %v3922 = vsub.f32 1.5, %v3921
  %v3923 = vmul.f32 %v3918, %v3922
  %vm3924 = vweird.f32 %v3846
  %vm3925 = vweird.f32 %v3918
  %vm3926 = vmor %vm3924, %vm3925
  %v3927 = vsel %vm3926, %v3918, %v3923
  %v3928 = vrsqrt.pop %v3847
  %v3929 = vmul.f32 %v3928, %v3847
  %v3930 = vmul.f32 %v3929, %v3928
  %v3931 = vmul.f32 0.5, %v3930
  %v3932 = vsub.f32 1.5, %v3931
  %v3933 = vmul.f32 %v3928, %v3932
  %vm3934 = vweird.f32 %v3847
  %vm3935 = vweird.f32 %v3928
  %vm3936 = vmor %vm3934, %vm3935
  %v3937 = vsel %vm3936, %v3928, %v3933
  %v3938 = vrsqrt.pop %v3848
  %v3939 = vmul.f32 %v3938, %v3848
  %v3940 = vmul.f32 %v3939, %v3938
  %v3941 = vmul.f32 0.5, %v3940
  %v3942 = vsub.f32 1.5, %v3941
  %v3943 = vmul.f32 %v3938, %v3942
  %vm3944 = vweird.f32 %v3848
  %vm3945 = vweird.f32 %v3938
  %vm3946 = vmor %vm3944, %vm3945
  %v3947 = vsel %vm3946, %v3938, %v3943
  %v3948 = vrsqrt.pop %v3849
  %v3949 = vmul.f32 %v3948, %v3849
  %v3950 = vmul.f32 %v3949, %v3948
  %v3951 = vmul.f32 0.5, %v3950
  %v3952 = vsub.f32 1.5, %v3951
  %v3953 = vmul.f32 %v3948, %v3952
  %vm3954 = vweird.f32 %v3849
  %vm3955 = vweird.f32 %v3948
  %vm3956 = vmor %vm3954, %vm3955
  %v3957 = vsel %vm3956, %v3948, %v3953
  %v3958 = vrsqrt.pop %v3850
  %v3959 = vmul.f32 %v3958, %v3850
  %v3960 = vmul.f32 %v3959, %v3958
  %v3961 = vmul.f32 0.5, %v3960
  %v3962 = vsub.f32 1.5, %v3961
  %v3963 = vmul.f32 %v3958, %v3962
  %vm3964 = vweird.f32 %v3850
  %vm3965 = vweird.f32 %v3958
  %vm3966 = vmor %vm3964, %vm3965
  %v3967 = vsel %vm3966, %v3958, %v3963
  %v3968 = vrsqrt.pop %v3851
  %v3969 = vmul.f32 %v3968, %v3851
  %v3970 = vmul.f32 %v3969, %v3968
  %v3971 = vmul.f32 0.5, %v3970
  %v3972 = vsub.f32 1.5, %v3971
  %v3973 = vmul.f32 %v3968, %v3972
  %vm3974 = vweird.f32 %v3851
  %vm3975 = vweird.f32 %v3968
  %vm3976 = vmor %vm3974, %vm3975
  %v3977 = vsel %vm3976, %v3968, %v3973
  %v3978 = vrsqrt.pop %v3852
  %v3979 = vmul.f32 %v3978, %v3852
  %v3980 = vmul.f32 %v3979, %v3978
  %v3981 = vmul.f32 0.5, %v3980
  %v3982 = vsub.f32 1.5, %v3981
  %v3983 = vmul.f32 %v3978, %v3982
  %vm3984 = vweird.f32 %v3852
  %vm3985 = vweird.f32 %v3978
  %vm3986 = vmor %vm3984, %vm3985
  %v3987 = vsel %vm3986, %v3978, %v3983
  %v3988 = vrsqrt.pop %v3853
  %v3989 = vmul.f32 %v3988, %v3853
  %v3990 = vmul.f32 %v3989, %v3988
  %v3991 = vmul.f32 0.5, %v3990
  %v3992 = vsub.f32 1.5, %v3991
  %v3993 = vmul.f32 %v3988, %v3992
  %vm3994 = vweird.f32 %v3853
  %vm3995 = vweird.f32 %v3988
  %vm3996 = vmor %vm3994, %vm3995
  %v3997 = vsel %vm3996, %v3988, %v3993
  %v3998 = vrsqrt.pop %v3854
  %v3999 = vmul.f32 %v3998, %v3854
  %v4000 = vmul.f32 %v3999, %v3998
  %v4001 = vmul.f32 0.5, %v4000
  %v4002 = vsub.f32 1.5, %v4001
  %v4003 = vmul.f32 %v3998, %v4002
  %vm4004 = vweird.f32 %v3854
  %vm4005 = vweird.f32 %v3998
  %vm4006 = vmor %vm4004, %vm4005
  %v4007 = vsel %vm4006, %v3998, %v4003
  %v4008 = vrsqrt.pop %v3855
  %v4009 = vmul.f32 %v4008, %v3855
  %v4010 = vmul.f32 %v4009, %v4008
  %v4011 = vmul.f32 0.5, %v4010
  %v4012 = vsub.f32 1.5, %v4011
  %v4013 = vmul.f32 %v4008, %v4012
  %vm4014 = vweird.f32 %v3855
  %vm4015 = vweird.f32 %v4008
  %vm4016 = vmor %vm4014, %vm4015
  %v4017 = vsel %vm4016, %v4008, %v4013
  %v4018 = vrsqrt.pop %v3856
  %v4019 = vmul.f32 %v4018, %v3856
  %v4020 = vmul.f32 %v4019, %v4018
  %v4021 = vmul.f32 0.5, %v4020
  %v4022 = vsub.f32 1.5, %v4021
  %v4023 = vmul.f32 %v4018, %v4022
  %vm4024 = vweird.f32 %v3856
  %vm4025 = vweird.f32 %v4018
  %vm4026 = vmor %vm4024, %vm4025
  %v4027 = vsel %vm4026, %v4018, %v4023
  %v4028 = vrsqrt.pop %v3857
  %v4029 = vmul.f32 %v4028, %v3857
  %v4030 = vmul.f32 %v4029, %v4028
  %v4031 = vmul.f32 0.5, %v4030
  %v4032 = vsub.f32 1.5, %v4031
  %v4033 = vmul.f32 %v4028, %v4032
  %vm4034 = vweird.f32 %v3857
  %vm4035 = vweird.f32 %v4028
  %vm4036 = vmor %vm4034, %vm4035
  %v4037 = vsel %vm4036, %v4028, %v4033
  %v4038 = vmul.f32 %v3822, %v3867
  %v4039 = vmul.f32 %v3823, %v3877
  %v4040 = vmul.f32 %v3824, %v3887
  %v4041 = vmul.f32 %v3825, %v3897
  %v4042 = vmul.f32 %v3826, %v3907
  %v4043 = vmul.f32 %v3827, %v3917
  %v4044 = vmul.f32 %v3828, %v3927
  %v4045 = vmul.f32 %v3829, %v3937
  %v4046 = vmul.f32 %v3830, %v3947
  %v4047 = vmul.f32 %v3831, %v3957
  %v4048 = vmul.f32 %v3832, %v3967
  %v4049 = vmul.f32 %v3833, %v3977
  %v4050 = vmul.f32 %v3834, %v3987
  %v4051 = vmul.f32 %v3835, %v3997
  %v4052 = vmul.f32 %v3836, %v4007
  %v4053 = vmul.f32 %v3837, %v4017
  %v4054 = vmul.f32 %v3838, %v4027
  %v4055 = vmul.f32 %v3839, %v4037
  %v4056 = vperm.slane %v237, 3
  %v4057 = vmul.f32 %v4038, %v4056
  %v4058 = vmul.f32 %v4039, %v4056
  %v4059 = vmul.f32 %v4040, %v4056
  %v4060 = vmul.f32 %v4041, %v4056
  %v4061 = vmul.f32 %v4042, %v4056
  %v4062 = vmul.f32 %v4043, %v4056
  %v4063 = vmul.f32 %v4044, %v4056
  %v4064 = vmul.f32 %v4045, %v4056
  %v4065 = vmul.f32 %v4046, %v4056
  %v4066 = vmul.f32 %v4047, %v4056
  %v4067 = vmul.f32 %v4048, %v4056
  %v4068 = vmul.f32 %v4049, %v4056
  %v4069 = vmul.f32 %v4050, %v4056
  %v4070 = vmul.f32 %v4051, %v4056
  %v4071 = vmul.f32 %v4052, %v4056
  %v4072 = vmul.f32 %v4053, %v4056
  %v4073 = vmul.f32 %v4054, %v4056
  %v4074 = vmul.f32 %v4055, %v4056
  %v4075 = vperm.slane %v3609, 4
  %v4076 = vadd.f32 %v4057, %v4075
  %v4077 = vadd.f32 %v4058, %v4075
  %v4078 = vadd.f32 %v4059, %v4075
  %v4079 = vadd.f32 %v4060, %v4075
  %v4080 = vadd.f32 %v4061, %v4075
  %v4081 = vadd.f32 %v4062, %v4075
  %v4082 = vadd.f32 %v4063, %v4075
  %v4083 = vadd.f32 %v4064, %v4075
  %v4084 = vadd.f32 %v4065, %v4075
  %v4085 = vadd.f32 %v4066, %v4075
  %v4086 = vadd.f32 %v4067, %v4075
  %v4087 = vadd.f32 %v4068, %v4075
  %v4088 = vadd.f32 %v4069, %v4075
  %v4089 = vadd.f32 %v4070, %v4075
  %v4090 = vadd.f32 %v4071, %v4075
  %v4091 = vadd.f32 %v4072, %v4075
  %v4092 = vadd.f32 %v4073, %v4075
  %v4093 = vadd.f32 %v4074, %v4075
  %v4094 = vpack.c.bf16 %v4077, %v4076
  %v4095 = vpack.c.bf16 %v4079, %v4078
  %v4096 = vpack.c.bf16 %v4081, %v4080
  %v4097 = vpack.c.bf16 %v4083, %v4082
  %v4098 = vpack.c.bf16 %v4085, %v4084
  %v4099 = vpack.c.bf16 %v4087, %v4086
  %v4100 = vpack.c.bf16 %v4089, %v4088
  %v4101 = vpack.c.bf16 %v4091, %v4090
  %v4102 = vpack.c.bf16 %v4093, %v4092
  %v4103 = vperm.slane %v3609, 5
  %v4108 = vunpack.c.l.b16 %v3610
  %v4109 = vunpack.c.l.b16 %v3611
  %v4110 = vunpack.c.l.b16 %v3612
  %v4111 = vunpack.c.l.b16 %v3613
  %v4112 = vpack.c.b16 %v4109, %v4108
  %v4113 = vpack.c.b16 %v4111, %v4110
  %v4117 = vsel %vm238, %v4094, 0
  %v4120 = vsel %vm238, %v4095, 0
  %v4123 = vsel %vm238, %v4096, 0
  %v4126 = vsel %vm238, %v4097, 0
  %v4129 = vsel %vm238, %v4098, 0
  %v4132 = vsel %vm238, %v4099, 0
  %v4135 = vsel %vm238, %v4100, 0
  %v4138 = vsel %vm238, %v4101, 0
  %v4141 = vsel %vm238, %v4102, 0
  %4143 = vmatpush.bf16.msra.mxu0 0
  %4144 = vmatpush.bf16.msra.mxu0 0
  %4145 = vmatpush.bf16.msra.mxu0 0
  %4146 = vmatpush.bf16.msra.mxu0 0
  %4147 = vmatpush.bf16.msra.mxu0 0
  %4148 = vmatpush.bf16.msra.mxu0 0
  %4149 = vmatpush.bf16.msra.mxu0 %v4113
  %4150 = vmatpush.bf16.msra.mxu0 %v4112
  %4151 = vmatmul.bf16.gmra.mxu0 %v4117
  %v4152 = vpop.f32.mrf.mxu0
  %v4153 = vadd.f32 %v4103, %v4152
  %v4154 = vpop.f32.mrf.mxu0
  %v4155 = vadd.f32 %v4103, %v4154
  %4156 = vmatmul.bf16.gmra.mxu0 %v4120
  %v4157 = vpop.f32.mrf.mxu0
  %v4158 = vadd.f32 %v4103, %v4157
  %v4159 = vpop.f32.mrf.mxu0
  %v4160 = vadd.f32 %v4103, %v4159
  %4161 = vmatmul.bf16.gmra.mxu0 %v4123
  %v4162 = vpop.f32.mrf.mxu0
  %v4163 = vadd.f32 %v4103, %v4162
  %v4164 = vpop.f32.mrf.mxu0
  %v4165 = vadd.f32 %v4103, %v4164
  %4166 = vmatmul.bf16.gmra.mxu0 %v4126
  %v4167 = vpop.f32.mrf.mxu0
  %v4168 = vadd.f32 %v4103, %v4167
  %v4169 = vpop.f32.mrf.mxu0
  %v4170 = vadd.f32 %v4103, %v4169
  %4171 = vmatmul.bf16.gmra.mxu0 %v4129
  %v4172 = vpop.f32.mrf.mxu0
  %v4173 = vadd.f32 %v4103, %v4172
  %v4174 = vpop.f32.mrf.mxu0
  %v4175 = vadd.f32 %v4103, %v4174
  %4176 = vmatmul.bf16.gmra.mxu0 %v4132
  %v4177 = vpop.f32.mrf.mxu0
  %v4178 = vadd.f32 %v4103, %v4177
  %v4179 = vpop.f32.mrf.mxu0
  %v4180 = vadd.f32 %v4103, %v4179
  %4181 = vmatmul.bf16.gmra.mxu0 %v4135
  %v4182 = vpop.f32.mrf.mxu0
  %v4183 = vadd.f32 %v4103, %v4182
  %v4184 = vpop.f32.mrf.mxu0
  %v4185 = vadd.f32 %v4103, %v4184
  %4186 = vmatmul.bf16.gmra.mxu0 %v4138
  %v4187 = vpop.f32.mrf.mxu0
  %v4188 = vadd.f32 %v4103, %v4187
  %v4189 = vpop.f32.mrf.mxu0
  %v4190 = vadd.f32 %v4103, %v4189
  %4191 = vmatmul.bf16.gmra.mxu0 %v4141
  %v4192 = vpop.f32.mrf.mxu0
  %v4193 = vadd.f32 %v4103, %v4192
  %v4194 = vpop.f32.mrf.mxu0
  %v4195 = vadd.f32 %v4103, %v4194
  %4196 = vdwg.mxu0
  %v4197 = vmul.f32 %v4153, 0.5
  %v4198 = vmul.f32 %v4155, 0.5
  %v4199 = vmul.f32 %v4158, 0.5
  %v4200 = vmul.f32 %v4160, 0.5
  %v4201 = vmul.f32 %v4163, 0.5
  %v4202 = vmul.f32 %v4165, 0.5
  %v4203 = vmul.f32 %v4168, 0.5
  %v4204 = vmul.f32 %v4170, 0.5
  %v4205 = vmul.f32 %v4173, 0.5
  %v4206 = vmul.f32 %v4175, 0.5
  %v4207 = vmul.f32 %v4178, 0.5
  %v4208 = vmul.f32 %v4180, 0.5
  %v4209 = vmul.f32 %v4183, 0.5
  %v4210 = vmul.f32 %v4185, 0.5
  %v4211 = vmul.f32 %v4188, 0.5
  %v4212 = vmul.f32 %v4190, 0.5
  %v4213 = vmul.f32 %v4193, 0.5
  %v4214 = vmul.f32 %v4195, 0.5
  %v4215 = vmul.f32 %v4153, 0.044715
  %v4216 = vmul.f32 %v4155, 0.044715
  %v4217 = vmul.f32 %v4158, 0.044715
  %v4218 = vmul.f32 %v4160, 0.044715
  %v4219 = vmul.f32 %v4163, 0.044715
  %v4220 = vmul.f32 %v4165, 0.044715
  %v4221 = vmul.f32 %v4168, 0.044715
  %v4222 = vmul.f32 %v4170, 0.044715
  %v4223 = vmul.f32 %v4173, 0.044715
  %v4224 = vmul.f32 %v4175, 0.044715
  %v4225 = vmul.f32 %v4178, 0.044715
  %v4226 = vmul.f32 %v4180, 0.044715
  %v4227 = vmul.f32 %v4183, 0.044715
  %v4228 = vmul.f32 %v4185, 0.044715
  %v4229 = vmul.f32 %v4188, 0.044715
  %v4230 = vmul.f32 %v4190, 0.044715
  %v4231 = vmul.f32 %v4193, 0.044715
  %v4232 = vmul.f32 %v4195, 0.044715
  %v4233 = vmul.f32 %v4215, %v4153
  %v4234 = vmul.f32 %v4216, %v4155
  %v4235 = vmul.f32 %v4217, %v4158
  %v4236 = vmul.f32 %v4218, %v4160
  %v4237 = vmul.f32 %v4219, %v4163
  %v4238 = vmul.f32 %v4220, %v4165
  %v4239 = vmul.f32 %v4221, %v4168
  %v4240 = vmul.f32 %v4222, %v4170
  %v4241 = vmul.f32 %v4223, %v4173
  %v4242 = vmul.f32 %v4224, %v4175
  %v4243 = vmul.f32 %v4225, %v4178
  %v4244 = vmul.f32 %v4226, %v4180
  %v4245 = vmul.f32 %v4227, %v4183
  %v4246 = vmul.f32 %v4228, %v4185
  %v4247 = vmul.f32 %v4229, %v4188
  %v4248 = vmul.f32 %v4230, %v4190
  %v4249 = vmul.f32 %v4231, %v4193
  %v4250 = vmul.f32 %v4232, %v4195
  %v4251 = vmul.f32 %v4233, %v4153
  %v4252 = vmul.f32 %v4234, %v4155
  %v4253 = vmul.f32 %v4235, %v4158
  %v4254 = vmul.f32 %v4236, %v4160
  %v4255 = vmul.f32 %v4237, %v4163
  %v4256 = vmul.f32 %v4238, %v4165
  %v4257 = vmul.f32 %v4239, %v4168
  %v4258 = vmul.f32 %v4240, %v4170
  %v4259 = vmul.f32 %v4241, %v4173
  %v4260 = vmul.f32 %v4242, %v4175
  %v4261 = vmul.f32 %v4243, %v4178
  %v4262 = vmul.f32 %v4244, %v4180
  %v4263 = vmul.f32 %v4245, %v4183
  %v4264 = vmul.f32 %v4246, %v4185
  %v4265 = vmul.f32 %v4247, %v4188
  %v4266 = vmul.f32 %v4248, %v4190
  %v4267 = vmul.f32 %v4249, %v4193
  %v4268 = vmul.f32 %v4250, %v4195
  %v4269 = vadd.f32 %v4153, %v4251
  %v4270 = vadd.f32 %v4155, %v4252
  %v4271 = vadd.f32 %v4158, %v4253
  %v4272 = vadd.f32 %v4160, %v4254
  %v4273 = vadd.f32 %v4163, %v4255
  %v4274 = vadd.f32 %v4165, %v4256
  %v4275 = vadd.f32 %v4168, %v4257
  %v4276 = vadd.f32 %v4170, %v4258
  %v4277 = vadd.f32 %v4173, %v4259
  %v4278 = vadd.f32 %v4175, %v4260
  %v4279 = vadd.f32 %v4178, %v4261
  %v4280 = vadd.f32 %v4180, %v4262
  %v4281 = vadd.f32 %v4183, %v4263
  %v4282 = vadd.f32 %v4185, %v4264
  %v4283 = vadd.f32 %v4188, %v4265
  %v4284 = vadd.f32 %v4190, %v4266
  %v4285 = vadd.f32 %v4193, %v4267
  %v4286 = vadd.f32 %v4195, %v4268
  %v4287 = vmul.f32 %v4269, 0.7978846
  %v4288 = vmul.f32 %v4270, 0.7978846
  %v4289 = vmul.f32 %v4271, 0.7978846
  %v4290 = vmul.f32 %v4272, 0.7978846
  %v4291 = vmul.f32 %v4273, 0.7978846
  %v4292 = vmul.f32 %v4274, 0.7978846
  %v4293 = vmul.f32 %v4275, 0.7978846
  %v4294 = vmul.f32 %v4276, 0.7978846
  %v4295 = vmul.f32 %v4277, 0.7978846
  %v4296 = vmul.f32 %v4278, 0.7978846
  %v4297 = vmul.f32 %v4279, 0.7978846
  %v4298 = vmul.f32 %v4280, 0.7978846
  %v4299 = vmul.f32 %v4281, 0.7978846
  %v4300 = vmul.f32 %v4282, 0.7978846
  %v4301 = vmul.f32 %v4283, 0.7978846
  %v4302 = vmul.f32 %v4284, 0.7978846
  %v4303 = vmul.f32 %v4285, 0.7978846
  %v4304 = vmul.f32 %v4286, 0.7978846
  %v4305 = vtanh.pop %v4287
  %v4306 = vtanh.pop %v4288
  %v4307 = vtanh.pop %v4289
  %v4308 = vtanh.pop %v4290
  %v4309 = vtanh.pop %v4291
  %v4310 = vtanh.pop %v4292
  %v4311 = vtanh.pop %v4293
  %v4312 = vtanh.pop %v4294
  %v4313 = vtanh.pop %v4295
  %v4314 = vtanh.pop %v4296
  %v4315 = vtanh.pop %v4297
  %v4316 = vtanh.pop %v4298
  %v4317 = vtanh.pop %v4299
  %v4318 = vtanh.pop %v4300
  %v4319 = vtanh.pop %v4301
  %v4320 = vtanh.pop %v4302
  %v4321 = vtanh.pop %v4303
  %v4322 = vtanh.pop %v4304
  %v4323 = vadd.f32 %v4305, 1.0
  %v4324 = vadd.f32 %v4306, 1.0
  %v4325 = vadd.f32 %v4307, 1.0
  %v4326 = vadd.f32 %v4308, 1.0
  %v4327 = vadd.f32 %v4309, 1.0
  %v4328 = vadd.f32 %v4310, 1.0
  %v4329 = vadd.f32 %v4311, 1.0
  %v4330 = vadd.f32 %v4312, 1.0
  %v4331 = vadd.f32 %v4313, 1.0
  %v4332 = vadd.f32 %v4314, 1.0
  %v4333 = vadd.f32 %v4315, 1.0
  %v4334 = vadd.f32 %v4316, 1.0
  %v4335 = vadd.f32 %v4317, 1.0
  %v4336 = vadd.f32 %v4318, 1.0
  %v4337 = vadd.f32 %v4319, 1.0
  %v4338 = vadd.f32 %v4320, 1.0
  %v4339 = vadd.f32 %v4321, 1.0
  %v4340 = vadd.f32 %v4322, 1.0
  %v4341 = vmul.f32 %v4197, %v4323
  %v4342 = vmul.f32 %v4198, %v4324
  %v4343 = vmul.f32 %v4199, %v4325
  %v4344 = vmul.f32 %v4200, %v4326
  %v4345 = vmul.f32 %v4201, %v4327
  %v4346 = vmul.f32 %v4202, %v4328
  %v4347 = vmul.f32 %v4203, %v4329
  %v4348 = vmul.f32 %v4204, %v4330
  %v4349 = vmul.f32 %v4205, %v4331
  %v4350 = vmul.f32 %v4206, %v4332
  %v4351 = vmul.f32 %v4207, %v4333
  %v4352 = vmul.f32 %v4208, %v4334
  %v4353 = vmul.f32 %v4209, %v4335
  %v4354 = vmul.f32 %v4210, %v4336
  %v4355 = vmul.f32 %v4211, %v4337
  %v4356 = vmul.f32 %v4212, %v4338
  %v4357 = vmul.f32 %v4213, %v4339
  %v4358 = vmul.f32 %v4214, %v4340
  %v4359 = vpack.c.bf16 %v4342, %v4341
  %v4360 = vpack.c.bf16 %v4344, %v4343
  %v4361 = vpack.c.bf16 %v4346, %v4345
  %v4362 = vpack.c.bf16 %v4348, %v4347
  %v4363 = vpack.c.bf16 %v4350, %v4349
  %v4364 = vpack.c.bf16 %v4352, %v4351
  %v4365 = vpack.c.bf16 %v4354, %v4353
  %v4366 = vpack.c.bf16 %v4356, %v4355
  %v4367 = vpack.c.bf16 %v4358, %v4357
  %v4368 = vperm.slane %v3623, 6
  %v4377 = vunpack.c.l.b16 %v3614
  %v4378 = vunpack.c.l.b16 %v3615
  %v4379 = vunpack.c.l.b16 %v3616
  %v4380 = vunpack.c.l.b16 %v3617
  %v4381 = vunpack.c.l.b16 %v3618
  %v4382 = vunpack.c.l.b16 %v3619
  %v4383 = vunpack.c.l.b16 %v3620
  %v4384 = vunpack.c.l.b16 %v3621
  %v4385 = vpack.c.b16 %v4378, %v4377
  %v4386 = vpack.c.b16 %v4380, %v4379
  %v4387 = vpack.c.b16 %v4382, %v4381
  %v4388 = vpack.c.b16 %v4384, %v4383
  %vm4393 = vcmask 523264
  %v4395 = vsel %vm4393, %v4359, 0
  %v4398 = vsel %vm4393, %v4360, 0
  %v4401 = vsel %vm4393, %v4361, 0
  %v4404 = vsel %vm4393, %v4362, 0
  %v4407 = vsel %vm4393, %v4363, 0
  %v4410 = vsel %vm4393, %v4364, 0
  %v4413 = vsel %vm4393, %v4365, 0
  %v4416 = vsel %vm4393, %v4366, 0
  %v4419 = vsel %vm4393, %v4367, 0
  %4421 = vmatpush.bf16.msra.mxu0 0
  %4422 = vmatpush.bf16.msra.mxu0 0
  %4423 = vmatpush.bf16.msra.mxu0 0
  %4424 = vmatpush.bf16.msra.mxu0 0
  %4425 = vmatpush.bf16.msra.mxu0 %v4388
  %4426 = vmatpush.bf16.msra.mxu0 %v4387
  %4427 = vmatpush.bf16.msra.mxu0 %v4386
  %4428 = vmatpush.bf16.msra.mxu0 %v4385
  %4429 = vmatmul.bf16.gmra.mxu0 %v4395
  %v4430 = vpop.f32.mrf.mxu0
  %v4431 = vadd.f32 %v4368, %v4430
  %v4432 = vpop.f32.mrf.mxu0
  %v4433 = vadd.f32 %v4368, %v4432
  %4434 = vmatmul.bf16.gmra.mxu0 %v4398
  %v4435 = vpop.f32.mrf.mxu0
  %v4436 = vadd.f32 %v4368, %v4435
  %v4437 = vpop.f32.mrf.mxu0
  %v4438 = vadd.f32 %v4368, %v4437
  %4439 = vmatmul.bf16.gmra.mxu0 %v4401
  %v4440 = vpop.f32.mrf.mxu0
  %v4441 = vadd.f32 %v4368, %v4440
  %v4442 = vpop.f32.mrf.mxu0
  %v4443 = vadd.f32 %v4368, %v4442
  %4444 = vmatmul.bf16.gmra.mxu0 %v4404
  %v4445 = vpop.f32.mrf.mxu0
  %v4446 = vadd.f32 %v4368, %v4445
  %v4447 = vpop.f32.mrf.mxu0
  %v4448 = vadd.f32 %v4368, %v4447
  %4449 = vmatmul.bf16.gmra.mxu0 %v4407
  %v4450 = vpop.f32.mrf.mxu0
  %v4451 = vadd.f32 %v4368, %v4450
  %v4452 = vpop.f32.mrf.mxu0
  %v4453 = vadd.f32 %v4368, %v4452
  %4454 = vmatmul.bf16.gmra.mxu0 %v4410
  %v4455 = vpop.f32.mrf.mxu0
  %v4456 = vadd.f32 %v4368, %v4455
  %v4457 = vpop.f32.mrf.mxu0
  %v4458 = vadd.f32 %v4368, %v4457
  %4459 = vmatmul.bf16.gmra.mxu0 %v4413
  %v4460 = vpop.f32.mrf.mxu0
  %v4461 = vadd.f32 %v4368, %v4460
  %v4462 = vpop.f32.mrf.mxu0
  %v4463 = vadd.f32 %v4368, %v4462
  %4464 = vmatmul.bf16.gmra.mxu0 %v4416
  %v4465 = vpop.f32.mrf.mxu0
  %v4466 = vadd.f32 %v4368, %v4465
  %v4467 = vpop.f32.mrf.mxu0
  %v4468 = vadd.f32 %v4368, %v4467
  %4469 = vmatmul.bf16.gmra.mxu0 %v4419
  %v4470 = vpop.f32.mrf.mxu0
  %v4471 = vadd.f32 %v4368, %v4470
  %v4472 = vpop.f32.mrf.mxu0
  %v4473 = vadd.f32 %v4368, %v4472
  %4474 = vdwg.mxu0
  %v4475 = vadd.f32 %v3590, %v4431
  %v4476 = vadd.f32 %v3591, %v4433
  %v4477 = vadd.f32 %v3592, %v4436
  %v4478 = vadd.f32 %v3593, %v4438
  %v4479 = vadd.f32 %v3594, %v4441
  %v4480 = vadd.f32 %v3595, %v4443
  %v4481 = vadd.f32 %v3596, %v4446
  %v4482 = vadd.f32 %v3597, %v4448
  %v4483 = vadd.f32 %v3598, %v4451
  %v4484 = vadd.f32 %v3599, %v4453
  %v4485 = vadd.f32 %v3600, %v4456
  %v4486 = vadd.f32 %v3601, %v4458
  %v4487 = vadd.f32 %v3602, %v4461
  %v4488 = vadd.f32 %v3603, %v4463
  %v4489 = vadd.f32 %v3604, %v4466
  %v4490 = vadd.f32 %v3605, %v4468
  %v4491 = vadd.f32 %v3606, %v4471
  %v4492 = vadd.f32 %v3607, %v4473
  %v4493 = vld [vmem:[%s3 + $0xa4] sm:$0x1]
  %v4494 = vunpack.c.l.bf16 %v4493
  %v4495 = vld [vmem:[%s3 + $0x54] sm:$0xf]
  %v4496 = vld [vmem:[%s3 + $0x58] sm:$0xf]
  %v4497 = vld [vmem:[%s3 + $0x5c] sm:$0xf]
  %v4498 = vld [vmem:[%s3 + $0x60] sm:$0xf]
  %v4499 = vld [vmem:[%s3 + $0x64] sm:$0xf]
  %v4500 = vld [vmem:[%s3 + $0x68] sm:$0xf]
  %v4501 = vld [vmem:[%s3 + $0x6c] sm:$0xf]
  %v4502 = vld [vmem:[%s3 + $0x70] sm:$0xf]
  %v4503 = vld [vmem:[%s3 + $0xa4] sm:$0x2]
  %v4504 = vunpack.c.l.bf16 %v4503
  %v4505 = vsel %vm238, %v4475, 0.0
  %4506 = vadd.xlane.f32.xlu0 %v4505
  %v4507 = vpop.xlane.xlu0 %4506
  %v4508 = vsel %vm238, %v4476, 0.0
  %4509 = vadd.xlane.f32.xlu0 %v4508
  %v4510 = vpop.xlane.xlu0 %4509
  %v4511 = vsel %vm238, %v4477, 0.0
  %4512 = vadd.xlane.f32.xlu0 %v4511
  %v4513 = vpop.xlane.xlu0 %4512
  %v4514 = vsel %vm238, %v4478, 0.0
  %4515 = vadd.xlane.f32.xlu0 %v4514
  %v4516 = vpop.xlane.xlu0 %4515
  %v4517 = vsel %vm238, %v4479, 0.0
  %4518 = vadd.xlane.f32.xlu0 %v4517
  %v4519 = vpop.xlane.xlu0 %4518
  %v4520 = vsel %vm238, %v4480, 0.0
  %4521 = vadd.xlane.f32.xlu0 %v4520
  %v4522 = vpop.xlane.xlu0 %4521
  %v4523 = vsel %vm238, %v4481, 0.0
  %4524 = vadd.xlane.f32.xlu0 %v4523
  %v4525 = vpop.xlane.xlu0 %4524
  %v4526 = vsel %vm238, %v4482, 0.0
  %4527 = vadd.xlane.f32.xlu0 %v4526
  %v4528 = vpop.xlane.xlu0 %4527
  %v4529 = vsel %vm238, %v4483, 0.0
  %4530 = vadd.xlane.f32.xlu0 %v4529
  %v4531 = vpop.xlane.xlu0 %4530
  %v4532 = vsel %vm238, %v4484, 0.0
  %4533 = vadd.xlane.f32.xlu0 %v4532
  %v4534 = vpop.xlane.xlu0 %4533
  %v4535 = vsel %vm238, %v4485, 0.0
  %4536 = vadd.xlane.f32.xlu0 %v4535
  %v4537 = vpop.xlane.xlu0 %4536
  %v4538 = vsel %vm238, %v4486, 0.0
  %4539 = vadd.xlane.f32.xlu0 %v4538
  %v4540 = vpop.xlane.xlu0 %4539
  %v4541 = vsel %vm238, %v4487, 0.0
  %4542 = vadd.xlane.f32.xlu0 %v4541
  %v4543 = vpop.xlane.xlu0 %4542
  %v4544 = vsel %vm238, %v4488, 0.0
  %4545 = vadd.xlane.f32.xlu0 %v4544
  %v4546 = vpop.xlane.xlu0 %4545
  %v4547 = vsel %vm238, %v4489, 0.0
  %4548 = vadd.xlane.f32.xlu0 %v4547
  %v4549 = vpop.xlane.xlu0 %4548
  %v4550 = vsel %vm238, %v4490, 0.0
  %4551 = vadd.xlane.f32.xlu0 %v4550
  %v4552 = vpop.xlane.xlu0 %4551
  %v4553 = vsel %vm238, %v4491, 0.0
  %4554 = vadd.xlane.f32.xlu0 %v4553
  %v4555 = vpop.xlane.xlu0 %4554
  %v4556 = vsel %vm238, %v4492, 0.0
  %4557 = vadd.xlane.f32.xlu0 %v4556
  %v4558 = vpop.xlane.xlu0 %4557
  %v4559 = vmul.f32 %v4507, %v299
  %v4560 = vmul.f32 %v4510, %v299
  %v4561 = vmul.f32 %v4513, %v299
  %v4562 = vmul.f32 %v4516, %v299
  %v4563 = vmul.f32 %v4519, %v299
  %v4564 = vmul.f32 %v4522, %v299
  %v4565 = vmul.f32 %v4525, %v299
  %v4566 = vmul.f32 %v4528, %v299
  %v4567 = vmul.f32 %v4531, %v299
  %v4568 = vmul.f32 %v4534, %v299
  %v4569 = vmul.f32 %v4537, %v299
  %v4570 = vmul.f32 %v4540, %v299
  %v4571 = vmul.f32 %v4543, %v299
  %v4572 = vmul.f32 %v4546, %v299
  %v4573 = vmul.f32 %v4549, %v299
  %v4574 = vmul.f32 %v4552, %v299
  %v4575 = vmul.f32 %v4555, %v299
  %v4576 = vmul.f32 %v4558, %v299
  %v4577 = vmul.f32 %v4475, %v4475
  %v4578 = vmul.f32 %v4476, %v4476
  %v4579 = vmul.f32 %v4477, %v4477
  %v4580 = vmul.f32 %v4478, %v4478
  %v4581 = vmul.f32 %v4479, %v4479
  %v4582 = vmul.f32 %v4480, %v4480
  %v4583 = vmul.f32 %v4481, %v4481
  %v4584 = vmul.f32 %v4482, %v4482
  %v4585 = vmul.f32 %v4483, %v4483
  %v4586 = vmul.f32 %v4484, %v4484
  %v4587 = vmul.f32 %v4485, %v4485
  %v4588 = vmul.f32 %v4486, %v4486
  %v4589 = vmul.f32 %v4487, %v4487
  %v4590 = vmul.f32 %v4488, %v4488
  %v4591 = vmul.f32 %v4489, %v4489
  %v4592 = vmul.f32 %v4490, %v4490
  %v4593 = vmul.f32 %v4491, %v4491
  %v4594 = vmul.f32 %v4492, %v4492
  %v4595 = vsel %vm238, %v4577, 0.0
  %4596 = vadd.xlane.f32.xlu0 %v4595
  %v4597 = vpop.xlane.xlu0 %4596
  %v4598 = vsel %vm238, %v4578, 0.0
  %4599 = vadd.xlane.f32.xlu0 %v4598
  %v4600 = vpop.xlane.xlu0 %4599
  %v4601 = vsel %vm238, %v4579, 0.0
  %4602 = vadd.xlane.f32.xlu0 %v4601
  %v4603 = vpop.xlane.xlu0 %4602
  %v4604 = vsel %vm238, %v4580, 0.0
  %4605 = vadd.xlane.f32.xlu0 %v4604
  %v4606 = vpop.xlane.xlu0 %4605
  %v4607 = vsel %vm238, %v4581, 0.0
  %4608 = vadd.xlane.f32.xlu0 %v4607
  %v4609 = vpop.xlane.xlu0 %4608
  %v4610 = vsel %vm238, %v4582, 0.0
  %4611 = vadd.xlane.f32.xlu0 %v4610
  %v4612 = vpop.xlane.xlu0 %4611
  %v4613 = vsel %vm238, %v4583, 0.0
  %4614 = vadd.xlane.f32.xlu0 %v4613
  %v4615 = vpop.xlane.xlu0 %4614
  %v4616 = vsel %vm238, %v4584, 0.0
  %4617 = vadd.xlane.f32.xlu0 %v4616
  %v4618 = vpop.xlane.xlu0 %4617
  %v4619 = vsel %vm238, %v4585, 0.0
  %4620 = vadd.xlane.f32.xlu0 %v4619
  %v4621 = vpop.xlane.xlu0 %4620
  %v4622 = vsel %vm238, %v4586, 0.0
  %4623 = vadd.xlane.f32.xlu0 %v4622
  %v4624 = vpop.xlane.xlu0 %4623
  %v4625 = vsel %vm238, %v4587, 0.0
  %4626 = vadd.xlane.f32.xlu0 %v4625
  %v4627 = vpop.xlane.xlu0 %4626
  %v4628 = vsel %vm238, %v4588, 0.0
  %4629 = vadd.xlane.f32.xlu0 %v4628
  %v4630 = vpop.xlane.xlu0 %4629
  %v4631 = vsel %vm238, %v4589, 0.0
  %4632 = vadd.xlane.f32.xlu0 %v4631
  %v4633 = vpop.xlane.xlu0 %4632
  %v4634 = vsel %vm238, %v4590, 0.0
  %4635 = vadd.xlane.f32.xlu0 %v4634
  %v4636 = vpop.xlane.xlu0 %4635
  %v4637 = vsel %vm238, %v4591, 0.0
  %4638 = vadd.xlane.f32.xlu0 %v4637
  %v4639 = vpop.xlane.xlu0 %4638
  %v4640 = vsel %vm238, %v4592, 0.0
  %4641 = vadd.xlane.f32.xlu0 %v4640
  %v4642 = vpop.xlane.xlu0 %4641
  %v4643 = vsel %vm238, %v4593, 0.0
  %4644 = vadd.xlane.f32.xlu0 %v4643
  %v4645 = vpop.xlane.xlu0 %4644
  %v4646 = vsel %vm238, %v4594, 0.0
  %4647 = vadd.xlane.f32.xlu0 %v4646
  %v4648 = vpop.xlane.xlu0 %4647
  %v4649 = vmul.f32 %v4597, %v299
  %v4650 = vmul.f32 %v4600, %v299
  %v4651 = vmul.f32 %v4603, %v299
  %v4652 = vmul.f32 %v4606, %v299
  %v4653 = vmul.f32 %v4609, %v299
  %v4654 = vmul.f32 %v4612, %v299
  %v4655 = vmul.f32 %v4615, %v299
  %v4656 = vmul.f32 %v4618, %v299
  %v4657 = vmul.f32 %v4621, %v299
  %v4658 = vmul.f32 %v4624, %v299
  %v4659 = vmul.f32 %v4627, %v299
  %v4660 = vmul.f32 %v4630, %v299
  %v4661 = vmul.f32 %v4633, %v299
  %v4662 = vmul.f32 %v4636, %v299
  %v4663 = vmul.f32 %v4639, %v299
  %v4664 = vmul.f32 %v4642, %v299
  %v4665 = vmul.f32 %v4645, %v299
  %v4666 = vmul.f32 %v4648, %v299
  %v4667 = vmul.f32 %v4559, %v4559
  %v4668 = vmul.f32 %v4560, %v4560
  %v4669 = vmul.f32 %v4561, %v4561
  %v4670 = vmul.f32 %v4562, %v4562
  %v4671 = vmul.f32 %v4563, %v4563
  %v4672 = vmul.f32 %v4564, %v4564
  %v4673 = vmul.f32 %v4565, %v4565
  %v4674 = vmul.f32 %v4566, %v4566
  %v4675 = vmul.f32 %v4567, %v4567
  %v4676 = vmul.f32 %v4568, %v4568
  %v4677 = vmul.f32 %v4569, %v4569
  %v4678 = vmul.f32 %v4570, %v4570
  %v4679 = vmul.f32 %v4571, %v4571
  %v4680 = vmul.f32 %v4572, %v4572
  %v4681 = vmul.f32 %v4573, %v4573
  %v4682 = vmul.f32 %v4574, %v4574
  %v4683 = vmul.f32 %v4575, %v4575
  %v4684 = vmul.f32 %v4576, %v4576
  %v4685 = vsub.f32 %v4649, %v4667
  %v4686 = vsub.f32 %v4650, %v4668
  %v4687 = vsub.f32 %v4651, %v4669
  %v4688 = vsub.f32 %v4652, %v4670
  %v4689 = vsub.f32 %v4653, %v4671
  %v4690 = vsub.f32 %v4654, %v4672
  %v4691 = vsub.f32 %v4655, %v4673
  %v4692 = vsub.f32 %v4656, %v4674
  %v4693 = vsub.f32 %v4657, %v4675
  %v4694 = vsub.f32 %v4658, %v4676
  %v4695 = vsub.f32 %v4659, %v4677
  %v4696 = vsub.f32 %v4660, %v4678
  %v4697 = vsub.f32 %v4661, %v4679
  %v4698 = vsub.f32 %v4662, %v4680
  %v4699 = vsub.f32 %v4663, %v4681
  %v4700 = vsub.f32 %v4664, %v4682
  %v4701 = vsub.f32 %v4665, %v4683
  %v4702 = vsub.f32 %v4666, %v4684
  %v4703 = vsub.f32 %v4475, %v4559
  %v4704 = vsub.f32 %v4476, %v4560
  %v4705 = vsub.f32 %v4477, %v4561
  %v4706 = vsub.f32 %v4478, %v4562
  %v4707 = vsub.f32 %v4479, %v4563
  %v4708 = vsub.f32 %v4480, %v4564
  %v4709 = vsub.f32 %v4481, %v4565
  %v4710 = vsub.f32 %v4482, %v4566
  %v4711 = vsub.f32 %v4483, %v4567
  %v4712 = vsub.f32 %v4484, %v4568
  %v4713 = vsub.f32 %v4485, %v4569
  %v4714 = vsub.f32 %v4486, %v4570
  %v4715 = vsub.f32 %v4487, %v4571
  %v4716 = vsub.f32 %v4488, %v4572
  %v4717 = vsub.f32 %v4489, %v4573
  %v4718 = vsub.f32 %v4490, %v4574
  %v4719 = vsub.f32 %v4491, %v4575
  %v4720 = vsub.f32 %v4492, %v4576
  %v4721 = vadd.f32 %v4685, 1e-05
  %v4722 = vadd.f32 %v4686, 1e-05
  %v4723 = vadd.f32 %v4687, 1e-05
  %v4724 = vadd.f32 %v4688, 1e-05
  %v4725 = vadd.f32 %v4689, 1e-05
  %v4726 = vadd.f32 %v4690, 1e-05
  %v4727 = vadd.f32 %v4691, 1e-05
  %v4728 = vadd.f32 %v4692, 1e-05
  %v4729 = vadd.f32 %v4693, 1e-05
  %v4730 = vadd.f32 %v4694, 1e-05
  %v4731 = vadd.f32 %v4695, 1e-05
  %v4732 = vadd.f32 %v4696, 1e-05
  %v4733 = vadd.f32 %v4697, 1e-05
  %v4734 = vadd.f32 %v4698, 1e-05
  %v4735 = vadd.f32 %v4699, 1e-05
  %v4736 = vadd.f32 %v4700, 1e-05
  %v4737 = vadd.f32 %v4701, 1e-05
  %v4738 = vadd.f32 %v4702, 1e-05
  %v4739 = vrsqrt.pop %v4721
  %v4740 = vmul.f32 %v4739, %v4721
  %v4741 = vmul.f32 %v4740, %v4739
  %v4742 = vmul.f32 0.5, %v4741
  %v4743 = vsub.f32 1.5, %v4742
  %v4744 = vmul.f32 %v4739, %v4743
  %vm4745 = vweird.f32 %v4721
  %vm4746 = vweird.f32 %v4739
  %vm4747 = vmor %vm4745, %vm4746
  %v4748 = vsel %vm4747, %v4739, %v4744
  %v4749 = vrsqrt.pop %v4722
  %v4750 = vmul.f32 %v4749, %v4722
  %v4751 = vmul.f32 %v4750, %v4749
  %v4752 = vmul.f32 0.5, %v4751
  %v4753 = vsub.f32 1.5, %v4752
  %v4754 = vmul.f32 %v4749, %v4753
  %vm4755 = vweird.f32 %v4722
  %vm4756 = vweird.f32 %v4749
  %vm4757 = vmor %vm4755, %vm4756
  %v4758 = vsel %vm4757, %v4749, %v4754
  %v4759 = vrsqrt.pop %v4723
  %v4760 = vmul.f32 %v4759, %v4723
  %v4761 = vmul.f32 %v4760, %v4759
  %v4762 = vmul.f32 0.5, %v4761
  %v4763 = vsub.f32 1.5, %v4762
  %v4764 = vmul.f32 %v4759, %v4763
  %vm4765 = vweird.f32 %v4723
  %vm4766 = vweird.f32 %v4759
  %vm4767 = vmor %vm4765, %vm4766
  %v4768 = vsel %vm4767, %v4759, %v4764
  %v4769 = vrsqrt.pop %v4724
  %v4770 = vmul.f32 %v4769, %v4724
  %v4771 = vmul.f32 %v4770, %v4769
  %v4772 = vmul.f32 0.5, %v4771
  %v4773 = vsub.f32 1.5, %v4772
  %v4774 = vmul.f32 %v4769, %v4773
  %vm4775 = vweird.f32 %v4724
  %vm4776 = vweird.f32 %v4769
  %vm4777 = vmor %vm4775, %vm4776
  %v4778 = vsel %vm4777, %v4769, %v4774
  %v4779 = vrsqrt.pop %v4725
  %v4780 = vmul.f32 %v4779, %v4725
  %v4781 = vmul.f32 %v4780, %v4779
  %v4782 = vmul.f32 0.5, %v4781
  %v4783 = vsub.f32 1.5, %v4782
  %v4784 = vmul.f32 %v4779, %v4783
  %vm4785 = vweird.f32 %v4725
  %vm4786 = vweird.f32 %v4779
  %vm4787 = vmor %vm4785, %vm4786
  %v4788 = vsel %vm4787, %v4779, %v4784
  %v4789 = vrsqrt.pop %v4726
  %v4790 = vmul.f32 %v4789, %v4726
  %v4791 = vmul.f32 %v4790, %v4789
  %v4792 = vmul.f32 0.5, %v4791
  %v4793 = vsub.f32 1.5, %v4792
  %v4794 = vmul.f32 %v4789, %v4793
  %vm4795 = vweird.f32 %v4726
  %vm4796 = vweird.f32 %v4789
  %vm4797 = vmor %vm4795, %vm4796
  %v4798 = vsel %vm4797, %v4789, %v4794
  %v4799 = vrsqrt.pop %v4727
  %v4800 = vmul.f32 %v4799, %v4727
  %v4801 = vmul.f32 %v4800, %v4799
  %v4802 = vmul.f32 0.5, %v4801
  %v4803 = vsub.f32 1.5, %v4802
  %v4804 = vmul.f32 %v4799, %v4803
  %vm4805 = vweird.f32 %v4727
  %vm4806 = vweird.f32 %v4799
  %vm4807 = vmor %vm4805, %vm4806
  %v4808 = vsel %vm4807, %v4799, %v4804
  %v4809 = vrsqrt.pop %v4728
  %v4810 = vmul.f32 %v4809, %v4728
  %v4811 = vmul.f32 %v4810, %v4809
  %v4812 = vmul.f32 0.5, %v4811
  %v4813 = vsub.f32 1.5, %v4812
  %v4814 = vmul.f32 %v4809, %v4813
  %vm4815 = vweird.f32 %v4728
  %vm4816 = vweird.f32 %v4809
  %vm4817 = vmor %vm4815, %vm4816
  %v4818 = vsel %vm4817, %v4809, %v4814
  %v4819 = vrsqrt.pop %v4729
  %v4820 = vmul.f32 %v4819, %v4729
  %v4821 = vmul.f32 %v4820, %v4819
  %v4822 = vmul.f32 0.5, %v4821
  %v4823 = vsub.f32 1.5, %v4822
  %v4824 = vmul.f32 %v4819, %v4823
  %vm4825 = vweird.f32 %v4729
  %vm4826 = vweird.f32 %v4819
  %vm4827 = vmor %vm4825, %vm4826
  %v4828 = vsel %vm4827, %v4819, %v4824
  %v4829 = vrsqrt.pop %v4730
  %v4830 = vmul.f32 %v4829, %v4730
  %v4831 = vmul.f32 %v4830, %v4829
  %v4832 = vmul.f32 0.5, %v4831
  %v4833 = vsub.f32 1.5, %v4832
  %v4834 = vmul.f32 %v4829, %v4833
  %vm4835 = vweird.f32 %v4730
  %vm4836 = vweird.f32 %v4829
  %vm4837 = vmor %vm4835, %vm4836
  %v4838 = vsel %vm4837, %v4829, %v4834
  %v4839 = vrsqrt.pop %v4731
  %v4840 = vmul.f32 %v4839, %v4731
  %v4841 = vmul.f32 %v4840, %v4839
  %v4842 = vmul.f32 0.5, %v4841
  %v4843 = vsub.f32 1.5, %v4842
  %v4844 = vmul.f32 %v4839, %v4843
  %vm4845 = vweird.f32 %v4731
  %vm4846 = vweird.f32 %v4839
  %vm4847 = vmor %vm4845, %vm4846
  %v4848 = vsel %vm4847, %v4839, %v4844
  %v4849 = vrsqrt.pop %v4732
  %v4850 = vmul.f32 %v4849, %v4732
  %v4851 = vmul.f32 %v4850, %v4849
  %v4852 = vmul.f32 0.5, %v4851
  %v4853 = vsub.f32 1.5, %v4852
  %v4854 = vmul.f32 %v4849, %v4853
  %vm4855 = vweird.f32 %v4732
  %vm4856 = vweird.f32 %v4849
  %vm4857 = vmor %vm4855, %vm4856
  %v4858 = vsel %vm4857, %v4849, %v4854
  %v4859 = vrsqrt.pop %v4733
  %v4860 = vmul.f32 %v4859, %v4733
  %v4861 = vmul.f32 %v4860, %v4859
  %v4862 = vmul.f32 0.5, %v4861
  %v4863 = vsub.f32 1.5, %v4862
  %v4864 = vmul.f32 %v4859, %v4863
  %vm4865 = vweird.f32 %v4733
  %vm4866 = vweird.f32 %v4859
  %vm4867 = vmor %vm4865, %vm4866
  %v4868 = vsel %vm4867, %v4859, %v4864
  %v4869 = vrsqrt.pop %v4734
  %v4870 = vmul.f32 %v4869, %v4734
  %v4871 = vmul.f32 %v4870, %v4869
  %v4872 = vmul.f32 0.5, %v4871
  %v4873 = vsub.f32 1.5, %v4872
  %v4874 = vmul.f32 %v4869, %v4873
  %vm4875 = vweird.f32 %v4734
  %vm4876 = vweird.f32 %v4869
  %vm4877 = vmor %vm4875, %vm4876
  %v4878 = vsel %vm4877, %v4869, %v4874
  %v4879 = vrsqrt.pop %v4735
  %v4880 = vmul.f32 %v4879, %v4735
  %v4881 = vmul.f32 %v4880, %v4879
  %v4882 = vmul.f32 0.5, %v4881
  %v4883 = vsub.f32 1.5, %v4882
  %v4884 = vmul.f32 %v4879, %v4883
  %vm4885 = vweird.f32 %v4735
  %vm4886 = vweird.f32 %v4879
  %vm4887 = vmor %vm4885, %vm4886
  %v4888 = vsel %vm4887, %v4879, %v4884
  %v4889 = vrsqrt.pop %v4736
  %v4890 = vmul.f32 %v4889, %v4736
  %v4891 = vmul.f32 %v4890, %v4889
  %v4892 = vmul.f32 0.5, %v4891
  %v4893 = vsub.f32 1.5, %v4892
  %v4894 = vmul.f32 %v4889, %v4893
  %vm4895 = vweird.f32 %v4736
  %vm4896 = vweird.f32 %v4889
  %vm4897 = vmor %vm4895, %vm4896
  %v4898 = vsel %vm4897, %v4889, %v4894
  %v4899 = vrsqrt.pop %v4737
  %v4900 = vmul.f32 %v4899, %v4737
  %v4901 = vmul.f32 %v4900, %v4899
  %v4902 = vmul.f32 0.5, %v4901
  %v4903 = vsub.f32 1.5, %v4902
  %v4904 = vmul.f32 %v4899, %v4903
  %vm4905 = vweird.f32 %v4737
  %vm4906 = vweird.f32 %v4899
  %vm4907 = vmor %vm4905, %vm4906
  %v4908 = vsel %vm4907, %v4899, %v4904
  %v4909 = vrsqrt.pop %v4738
  %v4910 = vmul.f32 %v4909, %v4738
  %v4911 = vmul.f32 %v4910, %v4909
  %v4912 = vmul.f32 0.5, %v4911
  %v4913 = vsub.f32 1.5, %v4912
  %v4914 = vmul.f32 %v4909, %v4913
  %vm4915 = vweird.f32 %v4738
  %vm4916 = vweird.f32 %v4909
  %vm4917 = vmor %vm4915, %vm4916
  %v4918 = vsel %vm4917, %v4909, %v4914
  %v4919 = vmul.f32 %v4703, %v4748
  %v4920 = vmul.f32 %v4704, %v4758
  %v4921 = vmul.f32 %v4705, %v4768
  %v4922 = vmul.f32 %v4706, %v4778
  %v4923 = vmul.f32 %v4707, %v4788
  %v4924 = vmul.f32 %v4708, %v4798
  %v4925 = vmul.f32 %v4709, %v4808
  %v4926 = vmul.f32 %v4710, %v4818
  %v4927 = vmul.f32 %v4711, %v4828
  %v4928 = vmul.f32 %v4712, %v4838
  %v4929 = vmul.f32 %v4713, %v4848
  %v4930 = vmul.f32 %v4714, %v4858
  %v4931 = vmul.f32 %v4715, %v4868
  %v4932 = vmul.f32 %v4716, %v4878
  %v4933 = vmul.f32 %v4717, %v4888
  %v4934 = vmul.f32 %v4718, %v4898
  %v4935 = vmul.f32 %v4719, %v4908
  %v4936 = vmul.f32 %v4720, %v4918
  %v4937 = vperm.slane %v4494, 0
  %v4938 = vmul.f32 %v4919, %v4937
  %v4939 = vmul.f32 %v4920, %v4937
  %v4940 = vmul.f32 %v4921, %v4937
  %v4941 = vmul.f32 %v4922, %v4937
  %v4942 = vmul.f32 %v4923, %v4937
  %v4943 = vmul.f32 %v4924, %v4937
  %v4944 = vmul.f32 %v4925, %v4937
  %v4945 = vmul.f32 %v4926, %v4937
  %v4946 = vmul.f32 %v4927, %v4937
  %v4947 = vmul.f32 %v4928, %v4937
  %v4948 = vmul.f32 %v4929, %v4937
  %v4949 = vmul.f32 %v4930, %v4937
  %v4950 = vmul.f32 %v4931, %v4937
  %v4951 = vmul.f32 %v4932, %v4937
  %v4952 = vmul.f32 %v4933, %v4937
  %v4953 = vmul.f32 %v4934, %v4937
  %v4954 = vmul.f32 %v4935, %v4937
  %v4955 = vmul.f32 %v4936, %v4937
  %v4956 = vperm.slane %v4494, 1
  %v4957 = vadd.f32 %v4938, %v4956
  %v4958 = vadd.f32 %v4939, %v4956
  %v4959 = vadd.f32 %v4940, %v4956
  %v4960 = vadd.f32 %v4941, %v4956
  %v4961 = vadd.f32 %v4942, %v4956
  %v4962 = vadd.f32 %v4943, %v4956
  %v4963 = vadd.f32 %v4944, %v4956
  %v4964 = vadd.f32 %v4945, %v4956
  %v4965 = vadd.f32 %v4946, %v4956
  %v4966 = vadd.f32 %v4947, %v4956
  %v4967 = vadd.f32 %v4948, %v4956
  %v4968 = vadd.f32 %v4949, %v4956
  %v4969 = vadd.f32 %v4950, %v4956
  %v4970 = vadd.f32 %v4951, %v4956
  %v4971 = vadd.f32 %v4952, %v4956
  %v4972 = vadd.f32 %v4953, %v4956
  %v4973 = vadd.f32 %v4954, %v4956
  %v4974 = vadd.f32 %v4955, %v4956
  %v4975 = vpack.c.bf16 %v4958, %v4957
  %v4976 = vpack.c.bf16 %v4960, %v4959
  %v4977 = vpack.c.bf16 %v4962, %v4961
  %v4978 = vpack.c.bf16 %v4964, %v4963
  %v4979 = vpack.c.bf16 %v4966, %v4965
  %v4980 = vpack.c.bf16 %v4968, %v4967
  %v4981 = vpack.c.bf16 %v4970, %v4969
  %v4982 = vpack.c.bf16 %v4972, %v4971
  %v4983 = vpack.c.bf16 %v4974, %v4973
  %v4988 = vunpack.c.l.b16 %v4495
  %v4989 = vunpack.c.l.b16 %v4496
  %v4990 = vunpack.c.l.b16 %v4497
  %v4991 = vunpack.c.l.b16 %v4498
  %v4992 = vpack.c.b16 %v4989, %v4988
  %v4993 = vpack.c.b16 %v4991, %v4990
  %v4997 = vsel %vm238, %v4975, 0
  %v5000 = vsel %vm238, %v4976, 0
  %v5003 = vsel %vm238, %v4977, 0
  %v5006 = vsel %vm238, %v4978, 0
  %v5009 = vsel %vm238, %v4979, 0
  %v5012 = vsel %vm238, %v4980, 0
  %v5015 = vsel %vm238, %v4981, 0
  %v5018 = vsel %vm238, %v4982, 0
  %v5021 = vsel %vm238, %v4983, 0
  %5023 = vmatpush.bf16.msra.mxu0 0
  %5024 = vmatpush.bf16.msra.mxu0 0
  %5025 = vmatpush.bf16.msra.mxu0 0
  %5026 = vmatpush.bf16.msra.mxu0 0
  %5027 = vmatpush.bf16.msra.mxu0 0
  %5028 = vmatpush.bf16.msra.mxu0 0
  %5029 = vmatpush.bf16.msra.mxu0 %v4993
  %5030 = vmatpush.bf16.msra.mxu0 %v4992
  %5031 = vmatmul.bf16.gmra.mxu0 %v4997
  %v5032 = vpop.f32.mrf.mxu0
  %v5033 = vadd.f32 0.0, %v5032
  %v5034 = vpop.f32.mrf.mxu0
  %v5035 = vadd.f32 0.0, %v5034
  %5036 = vmatmul.bf16.gmra.mxu0 %v5000
  %v5037 = vpop.f32.mrf.mxu0
  %v5038 = vadd.f32 0.0, %v5037
  %v5039 = vpop.f32.mrf.mxu0
  %v5040 = vadd.f32 0.0, %v5039
  %5041 = vmatmul.bf16.gmra.mxu0 %v5003
  %v5042 = vpop.f32.mrf.mxu0
  %v5043 = vadd.f32 0.0, %v5042
  %v5044 = vpop.f32.mrf.mxu0
  %v5045 = vadd.f32 0.0, %v5044
  %5046 = vmatmul.bf16.gmra.mxu0 %v5006
  %v5047 = vpop.f32.mrf.mxu0
  %v5048 = vadd.f32 0.0, %v5047
  %v5049 = vpop.f32.mrf.mxu0
  %v5050 = vadd.f32 0.0, %v5049
  %5051 = vmatmul.bf16.gmra.mxu0 %v5009
  %v5052 = vpop.f32.mrf.mxu0
  %v5053 = vadd.f32 0.0, %v5052
  %v5054 = vpop.f32.mrf.mxu0
  %v5055 = vadd.f32 0.0, %v5054
  %5056 = vmatmul.bf16.gmra.mxu0 %v5012
  %v5057 = vpop.f32.mrf.mxu0
  %v5058 = vadd.f32 0.0, %v5057
  %v5059 = vpop.f32.mrf.mxu0
  %v5060 = vadd.f32 0.0, %v5059
  %5061 = vmatmul.bf16.gmra.mxu0 %v5015
  %v5062 = vpop.f32.mrf.mxu0
  %v5063 = vadd.f32 0.0, %v5062
  %v5064 = vpop.f32.mrf.mxu0
  %v5065 = vadd.f32 0.0, %v5064
  %5066 = vmatmul.bf16.gmra.mxu0 %v5018
  %v5067 = vpop.f32.mrf.mxu0
  %v5068 = vadd.f32 0.0, %v5067
  %v5069 = vpop.f32.mrf.mxu0
  %v5070 = vadd.f32 0.0, %v5069
  %5071 = vmatmul.bf16.gmra.mxu0 %v5021
  %v5072 = vpop.f32.mrf.mxu0
  %v5073 = vadd.f32 0.0, %v5072
  %v5074 = vpop.f32.mrf.mxu0
  %v5075 = vadd.f32 0.0, %v5074
  %5076 = vdwg.mxu0
  %v5077 = vpack.c.bf16 %v5033, %v5033
  %v5078 = vpack.c.bf16 %v5035, %v5035
  %v5079 = vpack.c.bf16 %v5038, %v5038
  %v5080 = vpack.c.bf16 %v5040, %v5040
  %v5081 = vpack.c.bf16 %v5043, %v5043
  %v5082 = vpack.c.bf16 %v5045, %v5045
  %v5083 = vpack.c.bf16 %v5048, %v5048
  %v5084 = vpack.c.bf16 %v5050, %v5050
  %v5085 = vpack.c.bf16 %v5053, %v5053
  %v5086 = vpack.c.bf16 %v5055, %v5055
  %v5087 = vpack.c.bf16 %v5058, %v5058
  %v5088 = vpack.c.bf16 %v5060, %v5060
  %v5089 = vpack.c.bf16 %v5063, %v5063
  %v5090 = vpack.c.bf16 %v5065, %v5065
  %v5091 = vpack.c.bf16 %v5068, %v5068
  %v5092 = vpack.c.bf16 %v5070, %v5070
  %v5093 = vpack.c.bf16 %v5073, %v5073
  %v5094 = vpack.c.bf16 %v5075, %v5075
  %v5104 = vunpack.c.l.b16 %v5077
  %v5105 = vunpack.c.l.b16 %v5078
  %v5106 = vunpack.c.l.b16 %v5079
  %v5107 = vunpack.c.l.b16 %v5080
  %v5108 = vunpack.c.l.b16 %v5081
  %v5109 = vunpack.c.l.b16 %v5082
  %v5110 = vunpack.c.l.b16 %v5083
  %v5111 = vunpack.c.l.b16 %v5084
  %v5112 = vunpack.c.l.b16 %v5085
  %v5113 = vpack.c.b16 %v5105, %v5104
  %v5114 = vpack.c.b16 %v5107, %v5106
  %v5115 = vpack.c.b16 %v5109, %v5108
  %v5116 = vpack.c.b16 %v5111, %v5110
  %v5117 = vpack.c.b16 %v5112, %v5112
  %5118 = vrot.lane.b32.xlu0 %v5113, 96
  %v5119 = vpop.permute.xlu0 %5118
  %5120 = vrot.lane.b32.xlu0 %v5114, 96
  %v5121 = vpop.permute.xlu0 %5120
  %5122 = vrot.lane.b32.xlu0 %v5115, 96
  %v5123 = vpop.permute.xlu0 %5122
  %5124 = vrot.lane.b32.xlu0 %v5116, 96
  %v5125 = vpop.permute.xlu0 %5124
  %5126 = vrot.lane.b32.xlu0 %v5117, 96
  %v5127 = vpop.permute.xlu0 %5126
  %v5129 = vsel %vm870, %v5113, 0
  %v5132 = vsel %vm870, %v5114, 0
  %v5135 = vsel %vm870, %v5115, 0
  %v5138 = vsel %vm870, %v5116, 0
  %v5141 = vsel %vm870, %v5117, 0
  %v5144 = vsel %vm870, %v5119, 0
  %v5147 = vsel %vm870, %v5121, 0
  %v5150 = vsel %vm870, %v5123, 0
  %v5153 = vsel %vm870, %v5125, 0
  %v5156 = vsel %vm870, %v5127, 0
  %5158 = vmatpush.bf16.xpose.msra.mxu0 0
  %5159 = vmatpush.bf16.xpose.msra.mxu0 0
  %5160 = vmatpush.bf16.xpose.msra.mxu0 0
  %5161 = vmatpush.bf16.xpose.msra.mxu0 %v5156
  %5162 = vmatpush.bf16.xpose.msra.mxu0 %v5153
  %5163 = vmatpush.bf16.xpose.msra.mxu0 %v5150
  %5164 = vmatpush.bf16.xpose.msra.mxu0 %v5147
  %5165 = vmatpush.bf16.xpose.msra.mxu0 %v5144
  %5166 = vmatmul.bf16.gmra.mxu0 %v5129
  %v5167 = vpop.f32.mrf.mxu0
  %v5168 = vadd.f32 %v836, %v5167
  %v5169 = vpop.f32.mrf.mxu0
  %v5170 = vadd.f32 %v836, %v5169
  %5171 = vmatmul.bf16.gmra.mxu0 %v5132
  %v5172 = vpop.f32.mrf.mxu0
  %v5173 = vadd.f32 %v836, %v5172
  %v5174 = vpop.f32.mrf.mxu0
  %v5175 = vadd.f32 %v836, %v5174
  %5176 = vmatmul.bf16.gmra.mxu0 %v5135
  %v5177 = vpop.f32.mrf.mxu0
  %v5178 = vadd.f32 %v836, %v5177
  %v5179 = vpop.f32.mrf.mxu0
  %v5180 = vadd.f32 %v836, %v5179
  %5181 = vmatmul.bf16.gmra.mxu0 %v5138
  %v5182 = vpop.f32.mrf.mxu0
  %v5183 = vadd.f32 %v836, %v5182
  %v5184 = vpop.f32.mrf.mxu0
  %v5185 = vadd.f32 %v836, %v5184
  %5186 = vmatmul.bf16.gmra.mxu0 %v5141
  %v5187 = vpop.f32.mrf.mxu0
  %v5188 = vadd.f32 %v836, %v5187
  %v5189 = vpop.f32.mrf.mxu0
  %5190 = vdwg.mxu0
  %v5191 = vsel %vm934, %v5168, -inf
  %5192 = vmax.xlane.f32.xlu0 %v5191
  %v5193 = vpop.xlane.xlu0 %5192
  %v5194 = vsel %vm934, %v5170, -inf
  %5195 = vmax.xlane.f32.xlu0 %v5194
  %v5196 = vpop.xlane.xlu0 %5195
  %v5197 = vsel %vm934, %v5173, -inf
  %5198 = vmax.xlane.f32.xlu0 %v5197
  %v5199 = vpop.xlane.xlu0 %5198
  %v5200 = vsel %vm934, %v5175, -inf
  %5201 = vmax.xlane.f32.xlu0 %v5200
  %v5202 = vpop.xlane.xlu0 %5201
  %v5203 = vsel %vm934, %v5178, -inf
  %5204 = vmax.xlane.f32.xlu0 %v5203
  %v5205 = vpop.xlane.xlu0 %5204
  %v5206 = vsel %vm934, %v5180, -inf
  %5207 = vmax.xlane.f32.xlu0 %v5206
  %v5208 = vpop.xlane.xlu0 %5207
  %v5209 = vsel %vm934, %v5183, -inf
  %5210 = vmax.xlane.f32.xlu0 %v5209
  %v5211 = vpop.xlane.xlu0 %5210
  %v5212 = vsel %vm934, %v5185, -inf
  %5213 = vmax.xlane.f32.xlu0 %v5212
  %v5214 = vpop.xlane.xlu0 %5213
  %v5215 = vsel %vm934, %v5188, -inf
  %5216 = vmax.xlane.f32.xlu0 %v5215
  %v5217 = vpop.xlane.xlu0 %5216
  %v5218 = vsub.f32 %v5168, %v5193
  %v5219 = vsub.f32 %v5170, %v5196
  %v5220 = vsub.f32 %v5173, %v5199
  %v5221 = vsub.f32 %v5175, %v5202
  %v5222 = vsub.f32 %v5178, %v5205
  %v5223 = vsub.f32 %v5180, %v5208
  %v5224 = vsub.f32 %v5183, %v5211
  %v5225 = vsub.f32 %v5185, %v5214
  %v5226 = vsub.f32 %v5188, %v5217
  %v5227 = vmul.f32 %v5218, 1.442695
  %v5228 = vpow.pop %v5227
  %v5229 = vmul.f32 %v5219, 1.442695
  %v5230 = vpow.pop %v5229
  %v5231 = vmul.f32 %v5220, 1.442695
  %v5232 = vpow.pop %v5231
  %v5233 = vmul.f32 %v5221, 1.442695
  %v5234 = vpow.pop %v5233
  %v5235 = vmul.f32 %v5222, 1.442695
  %v5236 = vpow.pop %v5235
  %v5237 = vmul.f32 %v5223, 1.442695
  %v5238 = vpow.pop %v5237
  %v5239 = vmul.f32 %v5224, 1.442695
  %v5240 = vpow.pop %v5239
  %v5241 = vmul.f32 %v5225, 1.442695
  %v5242 = vpow.pop %v5241
  %v5243 = vmul.f32 %v5226, 1.442695
  %v5244 = vpow.pop %v5243
  %v5245 = vpack.c.bf16 %v5230, %v5228
  %v5246 = vpack.c.bf16 %v5234, %v5232
  %v5247 = vpack.c.bf16 %v5238, %v5236
  %v5248 = vpack.c.bf16 %v5242, %v5240
  %v5249 = vpack.c.bf16 %v5244, %v5244
  %5250 = vrot.lane.b32.xlu0 %v5113, 64
  %v5251 = vpop.permute.xlu0 %5250
  %5252 = vrot.lane.b32.xlu0 %v5114, 64
  %v5253 = vpop.permute.xlu0 %5252
  %5254 = vrot.lane.b32.xlu0 %v5115, 64
  %v5255 = vpop.permute.xlu0 %5254
  %5256 = vrot.lane.b32.xlu0 %v5116, 64
  %v5257 = vpop.permute.xlu0 %5256
  %5258 = vrot.lane.b32.xlu0 %v5117, 64
  %v5259 = vpop.permute.xlu0 %5258
  %v5261 = vsel %vm870, %v5251, 1065369472
  %v5264 = vsel %vm870, %v5253, 1065369472
  %v5267 = vsel %vm870, %v5255, 1065369472
  %v5270 = vsel %vm870, %v5257, 1065369472
  %v5273 = vsel %vm870, %v5259, 1065369472
  %v5275 = vsel %vm934, %v5245, 0
  %v5278 = vsel %vm934, %v5246, 0
  %v5281 = vsel %vm934, %v5247, 0
  %v5284 = vsel %vm934, %v5248, 0
  %v5287 = vsel %vm934, %v5249, 0
  %v5289 = vsel %vm1034, %v5273, 0
  %5291 = vmatpush.bf16.msra.mxu0 0
  %5292 = vmatpush.bf16.msra.mxu0 0
  %5293 = vmatpush.bf16.msra.mxu0 0
  %5294 = vmatpush.bf16.msra.mxu0 %v5289
  %5295 = vmatpush.bf16.msra.mxu0 %v5270
  %5296 = vmatpush.bf16.msra.mxu0 %v5267
  %5297 = vmatpush.bf16.msra.mxu0 %v5264
  %5298 = vmatpush.bf16.msra.mxu0 %v5261
  %5299 = vmatmul.bf16.gmra.mxu0 %v5275
  %v5300 = vpop.f32.mrf.mxu0
  %v5301 = vadd.f32 0.0, %v5300
  %v5302 = vpop.f32.mrf.mxu0
  %v5303 = vadd.f32 0.0, %v5302
  %5304 = vmatmul.bf16.gmra.mxu0 %v5278
  %v5305 = vpop.f32.mrf.mxu0
  %v5306 = vadd.f32 0.0, %v5305
  %v5307 = vpop.f32.mrf.mxu0
  %v5308 = vadd.f32 0.0, %v5307
  %5309 = vmatmul.bf16.gmra.mxu0 %v5281
  %v5310 = vpop.f32.mrf.mxu0
  %v5311 = vadd.f32 0.0, %v5310
  %v5312 = vpop.f32.mrf.mxu0
  %v5313 = vadd.f32 0.0, %v5312
  %5314 = vmatmul.bf16.gmra.mxu0 %v5284
  %v5315 = vpop.f32.mrf.mxu0
  %v5316 = vadd.f32 0.0, %v5315
  %v5317 = vpop.f32.mrf.mxu0
  %v5318 = vadd.f32 0.0, %v5317
  %5319 = vmatmul.bf16.gmra.mxu0 %v5287
  %v5320 = vpop.f32.mrf.mxu0
  %v5321 = vadd.f32 0.0, %v5320
  %v5322 = vpop.f32.mrf.mxu0
  %5323 = vdwg.mxu0
  %v5324 = vrcp.pop %v5301
  %v5325 = vrcp.pop %v5303
  %v5326 = vrcp.pop %v5306
  %v5327 = vrcp.pop %v5308
  %v5328 = vrcp.pop %v5311
  %v5329 = vrcp.pop %v5313
  %v5330 = vrcp.pop %v5316
  %v5331 = vrcp.pop %v5318
  %v5332 = vrcp.pop %v5321
  %5334 = vset.pattern.permute.xlu0 8
  %5335 = vperm.xlu0 %5334, %v5324
  %v5336 = vpop.permute.xlu0 %5335
  %5339 = vset.pattern.permute.xlu0 8
  %5340 = vperm.xlu0 %5339, %v5325
  %v5341 = vpop.permute.xlu0 %5340
  %5344 = vset.pattern.permute.xlu0 8
  %5345 = vperm.xlu0 %5344, %v5326
  %v5346 = vpop.permute.xlu0 %5345
  %5349 = vset.pattern.permute.xlu0 8
  %5350 = vperm.xlu0 %5349, %v5327
  %v5351 = vpop.permute.xlu0 %5350
  %5354 = vset.pattern.permute.xlu0 8
  %5355 = vperm.xlu0 %5354, %v5328
  %v5356 = vpop.permute.xlu0 %5355
  %5359 = vset.pattern.permute.xlu0 8
  %5360 = vperm.xlu0 %5359, %v5329
  %v5361 = vpop.permute.xlu0 %5360
  %5364 = vset.pattern.permute.xlu0 8
  %5365 = vperm.xlu0 %5364, %v5330
  %v5366 = vpop.permute.xlu0 %5365
  %5369 = vset.pattern.permute.xlu0 8
  %5370 = vperm.xlu0 %5369, %v5331
  %v5371 = vpop.permute.xlu0 %5370
  %5374 = vset.pattern.permute.xlu0 8
  %5375 = vperm.xlu0 %5374, %v5332
  %v5376 = vpop.permute.xlu0 %5375
  %v5378 = vmul.f32 %v5301, %v5336
  %v5379 = vmul.f32 %v5303, %v5341
  %v5380 = vmul.f32 %v5306, %v5346
  %v5381 = vmul.f32 %v5308, %v5351
  %v5382 = vmul.f32 %v5311, %v5356
  %v5383 = vmul.f32 %v5313, %v5361
  %v5384 = vmul.f32 %v5316, %v5366
  %v5385 = vmul.f32 %v5318, %v5371
  %v5386 = vmul.f32 %v5321, %v5376
  %v5387 = vpack.c.bf16 %v5379, %v5378
  %v5388 = vpack.c.bf16 %v5381, %v5380
  %v5389 = vpack.c.bf16 %v5383, %v5382
  %v5390 = vpack.c.bf16 %v5385, %v5384
  %v5391 = vpack.c.bf16 %v5386, %v5386
  %5392 = vrot.lane.b32.xlu0 %v5113, 120
  %v5393 = vpop.permute.xlu0 %5392
  %5394 = vrot.lane.b32.xlu0 %v5114, 120
  %v5395 = vpop.permute.xlu0 %5394
  %5396 = vrot.lane.b32.xlu0 %v5115, 120
  %v5397 = vpop.permute.xlu0 %5396
  %5398 = vrot.lane.b32.xlu0 %v5116, 120
  %v5399 = vpop.permute.xlu0 %5398
  %5400 = vrot.lane.b32.xlu0 %v5117, 120
  %v5401 = vpop.permute.xlu0 %5400
  %5402 = vrot.lane.b32.xlu0 %v5113, 88
  %v5403 = vpop.permute.xlu0 %5402
  %5404 = vrot.lane.b32.xlu0 %v5114, 88
  %v5405 = vpop.permute.xlu0 %5404
  %5406 = vrot.lane.b32.xlu0 %v5115, 88
  %v5407 = vpop.permute.xlu0 %5406
  %5408 = vrot.lane.b32.xlu0 %v5116, 88
  %v5409 = vpop.permute.xlu0 %5408
  %5410 = vrot.lane.b32.xlu0 %v5117, 88
  %v5411 = vpop.permute.xlu0 %5410
  %v5413 = vsel %vm870, %v5393, 0
  %v5416 = vsel %vm870, %v5395, 0
  %v5419 = vsel %vm870, %v5397, 0
  %v5422 = vsel %vm870, %v5399, 0
  %v5425 = vsel %vm870, %v5401, 0
  %v5428 = vsel %vm870, %v5403, 0
  %v5431 = vsel %vm870, %v5405, 0
  %v5434 = vsel %vm870, %v5407, 0
  %v5437 = vsel %vm870, %v5409, 0
  %v5440 = vsel %vm870, %v5411, 0
  %5442 = vmatpush.bf16.xpose.msra.mxu0 0
  %5443 = vmatpush.bf16.xpose.msra.mxu0 0
  %5444 = vmatpush.bf16.xpose.msra.mxu0 0
  %5445 = vmatpush.bf16.xpose.msra.mxu0 %v5440
  %5446 = vmatpush.bf16.xpose.msra.mxu0 %v5437
  %5447 = vmatpush.bf16.xpose.msra.mxu0 %v5434
  %5448 = vmatpush.bf16.xpose.msra.mxu0 %v5431
  %5449 = vmatpush.bf16.xpose.msra.mxu0 %v5428
  %5450 = vmatmul.bf16.gmra.mxu0 %v5413
  %v5451 = vpop.f32.mrf.mxu0
  %v5452 = vadd.f32 %v836, %v5451
  %v5453 = vpop.f32.mrf.mxu0
  %v5454 = vadd.f32 %v836, %v5453
  %5455 = vmatmul.bf16.gmra.mxu0 %v5416
  %v5456 = vpop.f32.mrf.mxu0
  %v5457 = vadd.f32 %v836, %v5456
  %v5458 = vpop.f32.mrf.mxu0
  %v5459 = vadd.f32 %v836, %v5458
  %5460 = vmatmul.bf16.gmra.mxu0 %v5419
  %v5461 = vpop.f32.mrf.mxu0
  %v5462 = vadd.f32 %v836, %v5461
  %v5463 = vpop.f32.mrf.mxu0
  %v5464 = vadd.f32 %v836, %v5463
  %5465 = vmatmul.bf16.gmra.mxu0 %v5422
  %v5466 = vpop.f32.mrf.mxu0
  %v5467 = vadd.f32 %v836, %v5466
  %v5468 = vpop.f32.mrf.mxu0
  %v5469 = vadd.f32 %v836, %v5468
  %5470 = vmatmul.bf16.gmra.mxu0 %v5425
  %v5471 = vpop.f32.mrf.mxu0
  %v5472 = vadd.f32 %v836, %v5471
  %v5473 = vpop.f32.mrf.mxu0
  %5474 = vdwg.mxu0
  %v5475 = vsel %vm934, %v5452, -inf
  %5476 = vmax.xlane.f32.xlu0 %v5475
  %v5477 = vpop.xlane.xlu0 %5476
  %v5478 = vsel %vm934, %v5454, -inf
  %5479 = vmax.xlane.f32.xlu0 %v5478
  %v5480 = vpop.xlane.xlu0 %5479
  %v5481 = vsel %vm934, %v5457, -inf
  %5482 = vmax.xlane.f32.xlu0 %v5481
  %v5483 = vpop.xlane.xlu0 %5482
  %v5484 = vsel %vm934, %v5459, -inf
  %5485 = vmax.xlane.f32.xlu0 %v5484
  %v5486 = vpop.xlane.xlu0 %5485
  %v5487 = vsel %vm934, %v5462, -inf
  %5488 = vmax.xlane.f32.xlu0 %v5487
  %v5489 = vpop.xlane.xlu0 %5488
  %v5490 = vsel %vm934, %v5464, -inf
  %5491 = vmax.xlane.f32.xlu0 %v5490
  %v5492 = vpop.xlane.xlu0 %5491
  %v5493 = vsel %vm934, %v5467, -inf
  %5494 = vmax.xlane.f32.xlu0 %v5493
  %v5495 = vpop.xlane.xlu0 %5494
  %v5496 = vsel %vm934, %v5469, -inf
  %5497 = vmax.xlane.f32.xlu0 %v5496
  %v5498 = vpop.xlane.xlu0 %5497
  %v5499 = vsel %vm934, %v5472, -inf
  %5500 = vmax.xlane.f32.xlu0 %v5499
  %v5501 = vpop.xlane.xlu0 %5500
  %v5502 = vsub.f32 %v5452, %v5477
  %v5503 = vsub.f32 %v5454, %v5480
  %v5504 = vsub.f32 %v5457, %v5483
  %v5505 = vsub.f32 %v5459, %v5486
  %v5506 = vsub.f32 %v5462, %v5489
  %v5507 = vsub.f32 %v5464, %v5492
  %v5508 = vsub.f32 %v5467, %v5495
  %v5509 = vsub.f32 %v5469, %v5498
  %v5510 = vsub.f32 %v5472, %v5501
  %v5511 = vmul.f32 %v5502, 1.442695
  %v5512 = vpow.pop %v5511
  %v5513 = vmul.f32 %v5503, 1.442695
  %v5514 = vpow.pop %v5513
  %v5515 = vmul.f32 %v5504, 1.442695
  %v5516 = vpow.pop %v5515
  %v5517 = vmul.f32 %v5505, 1.442695
  %v5518 = vpow.pop %v5517
  %v5519 = vmul.f32 %v5506, 1.442695
  %v5520 = vpow.pop %v5519
  %v5521 = vmul.f32 %v5507, 1.442695
  %v5522 = vpow.pop %v5521
  %v5523 = vmul.f32 %v5508, 1.442695
  %v5524 = vpow.pop %v5523
  %v5525 = vmul.f32 %v5509, 1.442695
  %v5526 = vpow.pop %v5525
  %v5527 = vmul.f32 %v5510, 1.442695
  %v5528 = vpow.pop %v5527
  %v5529 = vpack.c.bf16 %v5514, %v5512
  %v5530 = vpack.c.bf16 %v5518, %v5516
  %v5531 = vpack.c.bf16 %v5522, %v5520
  %v5532 = vpack.c.bf16 %v5526, %v5524
  %v5533 = vpack.c.bf16 %v5528, %v5528
  %5534 = vrot.lane.b32.xlu0 %v5113, 56
  %v5535 = vpop.permute.xlu0 %5534
  %5536 = vrot.lane.b32.xlu0 %v5114, 56
  %v5537 = vpop.permute.xlu0 %5536
  %5538 = vrot.lane.b32.xlu0 %v5115, 56
  %v5539 = vpop.permute.xlu0 %5538
  %5540 = vrot.lane.b32.xlu0 %v5116, 56
  %v5541 = vpop.permute.xlu0 %5540
  %5542 = vrot.lane.b32.xlu0 %v5117, 56
  %v5543 = vpop.permute.xlu0 %5542
  %v5545 = vsel %vm870, %v5535, 1065369472
  %v5548 = vsel %vm870, %v5537, 1065369472
  %v5551 = vsel %vm870, %v5539, 1065369472
  %v5554 = vsel %vm870, %v5541, 1065369472
  %v5557 = vsel %vm870, %v5543, 1065369472
  %v5559 = vsel %vm934, %v5529, 0
  %v5562 = vsel %vm934, %v5530, 0
  %v5565 = vsel %vm934, %v5531, 0
  %v5568 = vsel %vm934, %v5532, 0
  %v5571 = vsel %vm934, %v5533, 0
  %v5573 = vsel %vm1034, %v5557, 0
  %5575 = vmatpush.bf16.msra.mxu0 0
  %5576 = vmatpush.bf16.msra.mxu0 0
  %5577 = vmatpush.bf16.msra.mxu0 0
  %5578 = vmatpush.bf16.msra.mxu0 %v5573
  %5579 = vmatpush.bf16.msra.mxu0 %v5554
  %5580 = vmatpush.bf16.msra.mxu0 %v5551
  %5581 = vmatpush.bf16.msra.mxu0 %v5548
  %5582 = vmatpush.bf16.msra.mxu0 %v5545
  %5583 = vmatmul.bf16.gmra.mxu0 %v5559
  %v5584 = vpop.f32.mrf.mxu0
  %v5585 = vadd.f32 0.0, %v5584
  %v5586 = vpop.f32.mrf.mxu0
  %v5587 = vadd.f32 0.0, %v5586
  %5588 = vmatmul.bf16.gmra.mxu0 %v5562
  %v5589 = vpop.f32.mrf.mxu0
  %v5590 = vadd.f32 0.0, %v5589
  %v5591 = vpop.f32.mrf.mxu0
  %v5592 = vadd.f32 0.0, %v5591
  %5593 = vmatmul.bf16.gmra.mxu0 %v5565
  %v5594 = vpop.f32.mrf.mxu0
  %v5595 = vadd.f32 0.0, %v5594
  %v5596 = vpop.f32.mrf.mxu0
  %v5597 = vadd.f32 0.0, %v5596
  %5598 = vmatmul.bf16.gmra.mxu0 %v5568
  %v5599 = vpop.f32.mrf.mxu0
  %v5600 = vadd.f32 0.0, %v5599
  %v5601 = vpop.f32.mrf.mxu0
  %v5602 = vadd.f32 0.0, %v5601
  %5603 = vmatmul.bf16.gmra.mxu0 %v5571
  %v5604 = vpop.f32.mrf.mxu0
  %v5605 = vadd.f32 0.0, %v5604
  %v5606 = vpop.f32.mrf.mxu0
  %5607 = vdwg.mxu0
  %v5608 = vrcp.pop %v5585
  %v5609 = vrcp.pop %v5587
  %v5610 = vrcp.pop %v5590
  %v5611 = vrcp.pop %v5592
  %v5612 = vrcp.pop %v5595
  %v5613 = vrcp.pop %v5597
  %v5614 = vrcp.pop %v5600
  %v5615 = vrcp.pop %v5602
  %v5616 = vrcp.pop %v5605
  %5618 = vset.pattern.permute.xlu0 8
  %5619 = vperm.xlu0 %5618, %v5608
  %v5620 = vpop.permute.xlu0 %5619
  %5623 = vset.pattern.permute.xlu0 8
  %5624 = vperm.xlu0 %5623, %v5609
  %v5625 = vpop.permute.xlu0 %5624
  %5628 = vset.pattern.permute.xlu0 8
  %5629 = vperm.xlu0 %5628, %v5610
  %v5630 = vpop.permute.xlu0 %5629
  %5633 = vset.pattern.permute.xlu0 8
  %5634 = vperm.xlu0 %5633, %v5611
  %v5635 = vpop.permute.xlu0 %5634
  %5638 = vset.pattern.permute.xlu0 8
  %5639 = vperm.xlu0 %5638, %v5612
  %v5640 = vpop.permute.xlu0 %5639
  %5643 = vset.pattern.permute.xlu0 8
  %5644 = vperm.xlu0 %5643, %v5613
  %v5645 = vpop.permute.xlu0 %5644
  %5648 = vset.pattern.permute.xlu0 8
  %5649 = vperm.xlu0 %5648, %v5614
  %v5650 = vpop.permute.xlu0 %5649
  %5653 = vset.pattern.permute.xlu0 8
  %5654 = vperm.xlu0 %5653, %v5615
  %v5655 = vpop.permute.xlu0 %5654
  %5658 = vset.pattern.permute.xlu0 8
  %5659 = vperm.xlu0 %5658, %v5616
  %v5660 = vpop.permute.xlu0 %5659
  %v5662 = vmul.f32 %v5585, %v5620
  %v5663 = vmul.f32 %v5587, %v5625
  %v5664 = vmul.f32 %v5590, %v5630
  %v5665 = vmul.f32 %v5592, %v5635
  %v5666 = vmul.f32 %v5595, %v5640
  %v5667 = vmul.f32 %v5597, %v5645
  %v5668 = vmul.f32 %v5600, %v5650
  %v5669 = vmul.f32 %v5602, %v5655
  %v5670 = vmul.f32 %v5605, %v5660
  %v5671 = vpack.c.bf16 %v5663, %v5662
  %v5672 = vpack.c.bf16 %v5665, %v5664
  %v5673 = vpack.c.bf16 %v5667, %v5666
  %v5674 = vpack.c.bf16 %v5669, %v5668
  %v5675 = vpack.c.bf16 %v5670, %v5670
  %v5677 = vsel %vm870, %v5671, 0
  %v5680 = vsel %vm870, %v5672, 0
  %v5683 = vsel %vm870, %v5673, 0
  %v5686 = vsel %vm870, %v5674, 0
  %v5689 = vsel %vm870, %v5675, 0
  %v5692 = vsel %vm1034, %v4500, 0
  %5694 = vmatpush.bf16.msra.mxu0 0
  %5695 = vmatpush.bf16.msra.mxu0 0
  %5696 = vmatpush.bf16.msra.mxu0 0
  %5697 = vmatpush.bf16.msra.mxu0 0
  %5698 = vmatpush.bf16.msra.mxu0 0
  %5699 = vmatpush.bf16.msra.mxu0 0
  %5700 = vmatpush.bf16.msra.mxu0 0
  %5701 = vmatpush.bf16.msra.mxu0 %v5692
  %5702 = vmatmul.bf16.gmra.mxu0 %v5677
  %v5703 = vpop.f32.mrf.mxu0
  %v5704 = vadd.f32 0.0, %v5703
  %v5705 = vpop.f32.mrf.mxu0
  %v5706 = vadd.f32 0.0, %v5705
  %5707 = vmatmul.bf16.gmra.mxu0 %v5680
  %v5708 = vpop.f32.mrf.mxu0
  %v5709 = vadd.f32 0.0, %v5708
  %v5710 = vpop.f32.mrf.mxu0
  %v5711 = vadd.f32 0.0, %v5710
  %5712 = vmatmul.bf16.gmra.mxu0 %v5683
  %v5713 = vpop.f32.mrf.mxu0
  %v5714 = vadd.f32 0.0, %v5713
  %v5715 = vpop.f32.mrf.mxu0
  %v5716 = vadd.f32 0.0, %v5715
  %5717 = vmatmul.bf16.gmra.mxu0 %v5686
  %v5718 = vpop.f32.mrf.mxu0
  %v5719 = vadd.f32 0.0, %v5718
  %v5720 = vpop.f32.mrf.mxu0
  %v5721 = vadd.f32 0.0, %v5720
  %5722 = vmatmul.bf16.gmra.mxu0 %v5689
  %v5723 = vpop.f32.mrf.mxu0
  %v5724 = vadd.f32 0.0, %v5723
  %v5725 = vpop.f32.mrf.mxu0
  %5726 = vdwg.mxu0
  %v5728 = vsel %vm870, %v5387, 0
  %v5731 = vsel %vm870, %v5388, 0
  %v5734 = vsel %vm870, %v5389, 0
  %v5737 = vsel %vm870, %v5390, 0
  %v5740 = vsel %vm870, %v5391, 0
  %v5743 = vsel %vm1034, %v4499, 0
  %5745 = vmatpush.bf16.msra.mxu0 0
  %5746 = vmatpush.bf16.msra.mxu0 0
  %5747 = vmatpush.bf16.msra.mxu0 0
  %5748 = vmatpush.bf16.msra.mxu0 0
  %5749 = vmatpush.bf16.msra.mxu0 0
  %5750 = vmatpush.bf16.msra.mxu0 0
  %5751 = vmatpush.bf16.msra.mxu0 0
  %5752 = vmatpush.bf16.msra.mxu0 %v5743
  %5753 = vmatmul.bf16.gmra.mxu0 %v5728
  %v5754 = vpop.f32.mrf.mxu0
  %v5755 = vadd.f32 %v5704, %v5754
  %v5756 = vpop.f32.mrf.mxu0
  %v5757 = vadd.f32 %v5706, %v5756
  %5758 = vmatmul.bf16.gmra.mxu0 %v5731
  %v5759 = vpop.f32.mrf.mxu0
  %v5760 = vadd.f32 %v5709, %v5759
  %v5761 = vpop.f32.mrf.mxu0
  %v5762 = vadd.f32 %v5711, %v5761
  %5763 = vmatmul.bf16.gmra.mxu0 %v5734
  %v5764 = vpop.f32.mrf.mxu0
  %v5765 = vadd.f32 %v5714, %v5764
  %v5766 = vpop.f32.mrf.mxu0
  %v5767 = vadd.f32 %v5716, %v5766
  %5768 = vmatmul.bf16.gmra.mxu0 %v5737
  %v5769 = vpop.f32.mrf.mxu0
  %v5770 = vadd.f32 %v5719, %v5769
  %v5771 = vpop.f32.mrf.mxu0
  %v5772 = vadd.f32 %v5721, %v5771
  %5773 = vmatmul.bf16.gmra.mxu0 %v5740
  %v5774 = vpop.f32.mrf.mxu0
  %v5775 = vadd.f32 %v5724, %v5774
  %v5776 = vpop.f32.mrf.mxu0
  %5777 = vdwg.mxu0
  %5778 = vrot.lane.b32.xlu0 %v5113, 112
  %v5779 = vpop.permute.xlu0 %5778
  %5780 = vrot.lane.b32.xlu0 %v5114, 112
  %v5781 = vpop.permute.xlu0 %5780
  %5782 = vrot.lane.b32.xlu0 %v5115, 112
  %v5783 = vpop.permute.xlu0 %5782
  %5784 = vrot.lane.b32.xlu0 %v5116, 112
  %v5785 = vpop.permute.xlu0 %5784
  %5786 = vrot.lane.b32.xlu0 %v5117, 112
  %v5787 = vpop.permute.xlu0 %5786
  %5788 = vrot.lane.b32.xlu0 %v5113, 80
  %v5789 = vpop.permute.xlu0 %5788
  %5790 = vrot.lane.b32.xlu0 %v5114, 80
  %v5791 = vpop.permute.xlu0 %5790
  %5792 = vrot.lane.b32.xlu0 %v5115, 80
  %v5793 = vpop.permute.xlu0 %5792
  %5794 = vrot.lane.b32.xlu0 %v5116, 80
  %v5795 = vpop.permute.xlu0 %5794
  %5796 = vrot.lane.b32.xlu0 %v5117, 80
  %v5797 = vpop.permute.xlu0 %5796
  %v5799 = vsel %vm870, %v5779, 0
  %v5802 = vsel %vm870, %v5781, 0
  %v5805 = vsel %vm870, %v5783, 0
  %v5808 = vsel %vm870, %v5785, 0
  %v5811 = vsel %vm870, %v5787, 0
  %v5814 = vsel %vm870, %v5789, 0
  %v5817 = vsel %vm870, %v5791, 0
  %v5820 = vsel %vm870, %v5793, 0
  %v5823 = vsel %vm870, %v5795, 0
  %v5826 = vsel %vm870, %v5797, 0
  %5828 = vmatpush.bf16.xpose.msra.mxu0 0
  %5829 = vmatpush.bf16.xpose.msra.mxu0 0
  %5830 = vmatpush.bf16.xpose.msra.mxu0 0
  %5831 = vmatpush.bf16.xpose.msra.mxu0 %v5826
  %5832 = vmatpush.bf16.xpose.msra.mxu0 %v5823
  %5833 = vmatpush.bf16.xpose.msra.mxu0 %v5820
  %5834 = vmatpush.bf16.xpose.msra.mxu0 %v5817
  %5835 = vmatpush.bf16.xpose.msra.mxu0 %v5814
  %5836 = vmatmul.bf16.gmra.mxu0 %v5799
  %v5837 = vpop.f32.mrf.mxu0
  %v5838 = vadd.f32 %v836, %v5837
  %v5839 = vpop.f32.mrf.mxu0
  %v5840 = vadd.f32 %v836, %v5839
  %5841 = vmatmul.bf16.gmra.mxu0 %v5802
  %v5842 = vpop.f32.mrf.mxu0
  %v5843 = vadd.f32 %v836, %v5842
  %v5844 = vpop.f32.mrf.mxu0
  %v5845 = vadd.f32 %v836, %v5844
  %5846 = vmatmul.bf16.gmra.mxu0 %v5805
  %v5847 = vpop.f32.mrf.mxu0
  %v5848 = vadd.f32 %v836, %v5847
  %v5849 = vpop.f32.mrf.mxu0
  %v5850 = vadd.f32 %v836, %v5849
  %5851 = vmatmul.bf16.gmra.mxu0 %v5808
  %v5852 = vpop.f32.mrf.mxu0
  %v5853 = vadd.f32 %v836, %v5852
  %v5854 = vpop.f32.mrf.mxu0
  %v5855 = vadd.f32 %v836, %v5854
  %5856 = vmatmul.bf16.gmra.mxu0 %v5811
  %v5857 = vpop.f32.mrf.mxu0
  %v5858 = vadd.f32 %v836, %v5857
  %v5859 = vpop.f32.mrf.mxu0
  %5860 = vdwg.mxu0
  %v5861 = vsel %vm934, %v5838, -inf
  %5862 = vmax.xlane.f32.xlu0 %v5861
  %v5863 = vpop.xlane.xlu0 %5862
  %v5864 = vsel %vm934, %v5840, -inf
  %5865 = vmax.xlane.f32.xlu0 %v5864
  %v5866 = vpop.xlane.xlu0 %5865
  %v5867 = vsel %vm934, %v5843, -inf
  %5868 = vmax.xlane.f32.xlu0 %v5867
  %v5869 = vpop.xlane.xlu0 %5868
  %v5870 = vsel %vm934, %v5845, -inf
  %5871 = vmax.xlane.f32.xlu0 %v5870
  %v5872 = vpop.xlane.xlu0 %5871
  %v5873 = vsel %vm934, %v5848, -inf
  %5874 = vmax.xlane.f32.xlu0 %v5873
  %v5875 = vpop.xlane.xlu0 %5874
  %v5876 = vsel %vm934, %v5850, -inf
  %5877 = vmax.xlane.f32.xlu0 %v5876
  %v5878 = vpop.xlane.xlu0 %5877
  %v5879 = vsel %vm934, %v5853, -inf
  %5880 = vmax.xlane.f32.xlu0 %v5879
  %v5881 = vpop.xlane.xlu0 %5880
  %v5882 = vsel %vm934, %v5855, -inf
  %5883 = vmax.xlane.f32.xlu0 %v5882
  %v5884 = vpop.xlane.xlu0 %5883
  %v5885 = vsel %vm934, %v5858, -inf
  %5886 = vmax.xlane.f32.xlu0 %v5885
  %v5887 = vpop.xlane.xlu0 %5886
  %v5888 = vsub.f32 %v5838, %v5863
  %v5889 = vsub.f32 %v5840, %v5866
  %v5890 = vsub.f32 %v5843, %v5869
  %v5891 = vsub.f32 %v5845, %v5872
  %v5892 = vsub.f32 %v5848, %v5875
  %v5893 = vsub.f32 %v5850, %v5878
  %v5894 = vsub.f32 %v5853, %v5881
  %v5895 = vsub.f32 %v5855, %v5884
  %v5896 = vsub.f32 %v5858, %v5887
  %v5897 = vmul.f32 %v5888, 1.442695
  %v5898 = vpow.pop %v5897
  %v5899 = vmul.f32 %v5889, 1.442695
  %v5900 = vpow.pop %v5899
  %v5901 = vmul.f32 %v5890, 1.442695
  %v5902 = vpow.pop %v5901
  %v5903 = vmul.f32 %v5891, 1.442695
  %v5904 = vpow.pop %v5903
  %v5905 = vmul.f32 %v5892, 1.442695
  %v5906 = vpow.pop %v5905
  %v5907 = vmul.f32 %v5893, 1.442695
  %v5908 = vpow.pop %v5907
  %v5909 = vmul.f32 %v5894, 1.442695
  %v5910 = vpow.pop %v5909
  %v5911 = vmul.f32 %v5895, 1.442695
  %v5912 = vpow.pop %v5911
  %v5913 = vmul.f32 %v5896, 1.442695
  %v5914 = vpow.pop %v5913
  %v5915 = vpack.c.bf16 %v5900, %v5898
  %v5916 = vpack.c.bf16 %v5904, %v5902
  %v5917 = vpack.c.bf16 %v5908, %v5906
  %v5918 = vpack.c.bf16 %v5912, %v5910
  %v5919 = vpack.c.bf16 %v5914, %v5914
  %5920 = vrot.lane.b32.xlu0 %v5113, 48
  %v5921 = vpop.permute.xlu0 %5920
  %5922 = vrot.lane.b32.xlu0 %v5114, 48
  %v5923 = vpop.permute.xlu0 %5922
  %5924 = vrot.lane.b32.xlu0 %v5115, 48
  %v5925 = vpop.permute.xlu0 %5924
  %5926 = vrot.lane.b32.xlu0 %v5116, 48
  %v5927 = vpop.permute.xlu0 %5926
  %5928 = vrot.lane.b32.xlu0 %v5117, 48
  %v5929 = vpop.permute.xlu0 %5928
  %v5931 = vsel %vm870, %v5921, 1065369472
  %v5934 = vsel %vm870, %v5923, 1065369472
  %v5937 = vsel %vm870, %v5925, 1065369472
  %v5940 = vsel %vm870, %v5927, 1065369472
  %v5943 = vsel %vm870, %v5929, 1065369472
  %v5945 = vsel %vm934, %v5915, 0
  %v5948 = vsel %vm934, %v5916, 0
  %v5951 = vsel %vm934, %v5917, 0
  %v5954 = vsel %vm934, %v5918, 0
  %v5957 = vsel %vm934, %v5919, 0
  %v5959 = vsel %vm1034, %v5943, 0
  %5961 = vmatpush.bf16.msra.mxu0 0
  %5962 = vmatpush.bf16.msra.mxu0 0
  %5963 = vmatpush.bf16.msra.mxu0 0
  %5964 = vmatpush.bf16.msra.mxu0 %v5959
  %5965 = vmatpush.bf16.msra.mxu0 %v5940
  %5966 = vmatpush.bf16.msra.mxu0 %v5937
  %5967 = vmatpush.bf16.msra.mxu0 %v5934
  %5968 = vmatpush.bf16.msra.mxu0 %v5931
  %5969 = vmatmul.bf16.gmra.mxu0 %v5945
  %v5970 = vpop.f32.mrf.mxu0
  %v5971 = vadd.f32 0.0, %v5970
  %v5972 = vpop.f32.mrf.mxu0
  %v5973 = vadd.f32 0.0, %v5972
  %5974 = vmatmul.bf16.gmra.mxu0 %v5948
  %v5975 = vpop.f32.mrf.mxu0
  %v5976 = vadd.f32 0.0, %v5975
  %v5977 = vpop.f32.mrf.mxu0
  %v5978 = vadd.f32 0.0, %v5977
  %5979 = vmatmul.bf16.gmra.mxu0 %v5951
  %v5980 = vpop.f32.mrf.mxu0
  %v5981 = vadd.f32 0.0, %v5980
  %v5982 = vpop.f32.mrf.mxu0
  %v5983 = vadd.f32 0.0, %v5982
  %5984 = vmatmul.bf16.gmra.mxu0 %v5954
  %v5985 = vpop.f32.mrf.mxu0
  %v5986 = vadd.f32 0.0, %v5985
  %v5987 = vpop.f32.mrf.mxu0
  %v5988 = vadd.f32 0.0, %v5987
  %5989 = vmatmul.bf16.gmra.mxu0 %v5957
  %v5990 = vpop.f32.mrf.mxu0
  %v5991 = vadd.f32 0.0, %v5990
  %v5992 = vpop.f32.mrf.mxu0
  %5993 = vdwg.mxu0
  %v5994 = vrcp.pop %v5971
  %v5995 = vrcp.pop %v5973
  %v5996 = vrcp.pop %v5976
  %v5997 = vrcp.pop %v5978
  %v5998 = vrcp.pop %v5981
  %v5999 = vrcp.pop %v5983
  %v6000 = vrcp.pop %v5986
  %v6001 = vrcp.pop %v5988
  %v6002 = vrcp.pop %v5991
  %6004 = vset.pattern.permute.xlu0 8
  %6005 = vperm.xlu0 %6004, %v5994
  %v6006 = vpop.permute.xlu0 %6005
  %6009 = vset.pattern.permute.xlu0 8
  %6010 = vperm.xlu0 %6009, %v5995
  %v6011 = vpop.permute.xlu0 %6010
  %6014 = vset.pattern.permute.xlu0 8
  %6015 = vperm.xlu0 %6014, %v5996
  %v6016 = vpop.permute.xlu0 %6015
  %6019 = vset.pattern.permute.xlu0 8
  %6020 = vperm.xlu0 %6019, %v5997
  %v6021 = vpop.permute.xlu0 %6020
  %6024 = vset.pattern.permute.xlu0 8
  %6025 = vperm.xlu0 %6024, %v5998
  %v6026 = vpop.permute.xlu0 %6025
  %6029 = vset.pattern.permute.xlu0 8
  %6030 = vperm.xlu0 %6029, %v5999
  %v6031 = vpop.permute.xlu0 %6030
  %6034 = vset.pattern.permute.xlu0 8
  %6035 = vperm.xlu0 %6034, %v6000
  %v6036 = vpop.permute.xlu0 %6035
  %6039 = vset.pattern.permute.xlu0 8
  %6040 = vperm.xlu0 %6039, %v6001
  %v6041 = vpop.permute.xlu0 %6040
  %6044 = vset.pattern.permute.xlu0 8
  %6045 = vperm.xlu0 %6044, %v6002
  %v6046 = vpop.permute.xlu0 %6045
  %v6048 = vmul.f32 %v5971, %v6006
  %v6049 = vmul.f32 %v5973, %v6011
  %v6050 = vmul.f32 %v5976, %v6016
  %v6051 = vmul.f32 %v5978, %v6021
  %v6052 = vmul.f32 %v5981, %v6026
  %v6053 = vmul.f32 %v5983, %v6031
  %v6054 = vmul.f32 %v5986, %v6036
  %v6055 = vmul.f32 %v5988, %v6041
  %v6056 = vmul.f32 %v5991, %v6046
  %v6057 = vpack.c.bf16 %v6049, %v6048
  %v6058 = vpack.c.bf16 %v6051, %v6050
  %v6059 = vpack.c.bf16 %v6053, %v6052
  %v6060 = vpack.c.bf16 %v6055, %v6054
  %v6061 = vpack.c.bf16 %v6056, %v6056
  %v6063 = vsel %vm870, %v6057, 0
  %v6066 = vsel %vm870, %v6058, 0
  %v6069 = vsel %vm870, %v6059, 0
  %v6072 = vsel %vm870, %v6060, 0
  %v6075 = vsel %vm870, %v6061, 0
  %v6078 = vsel %vm1034, %v4501, 0
  %6080 = vmatpush.bf16.msra.mxu0 0
  %6081 = vmatpush.bf16.msra.mxu0 0
  %6082 = vmatpush.bf16.msra.mxu0 0
  %6083 = vmatpush.bf16.msra.mxu0 0
  %6084 = vmatpush.bf16.msra.mxu0 0
  %6085 = vmatpush.bf16.msra.mxu0 0
  %6086 = vmatpush.bf16.msra.mxu0 0
  %6087 = vmatpush.bf16.msra.mxu0 %v6078
  %6088 = vmatmul.bf16.gmra.mxu0 %v6063
  %v6089 = vpop.f32.mrf.mxu0
  %v6090 = vadd.f32 0.0, %v6089
  %v6091 = vpop.f32.mrf.mxu0
  %v6092 = vadd.f32 0.0, %v6091
  %6093 = vmatmul.bf16.gmra.mxu0 %v6066
  %v6094 = vpop.f32.mrf.mxu0
  %v6095 = vadd.f32 0.0, %v6094
  %v6096 = vpop.f32.mrf.mxu0
  %v6097 = vadd.f32 0.0, %v6096
  %6098 = vmatmul.bf16.gmra.mxu0 %v6069
  %v6099 = vpop.f32.mrf.mxu0
  %v6100 = vadd.f32 0.0, %v6099
  %v6101 = vpop.f32.mrf.mxu0
  %v6102 = vadd.f32 0.0, %v6101
  %6103 = vmatmul.bf16.gmra.mxu0 %v6072
  %v6104 = vpop.f32.mrf.mxu0
  %v6105 = vadd.f32 0.0, %v6104
  %v6106 = vpop.f32.mrf.mxu0
  %v6107 = vadd.f32 0.0, %v6106
  %6108 = vmatmul.bf16.gmra.mxu0 %v6075
  %v6109 = vpop.f32.mrf.mxu0
  %v6110 = vadd.f32 0.0, %v6109
  %v6111 = vpop.f32.mrf.mxu0
  %6112 = vdwg.mxu0
  %v6113 = vadd.f32 %v5755, %v6090
  %v6114 = vadd.f32 %v5757, %v6092
  %v6115 = vadd.f32 %v5760, %v6095
  %v6116 = vadd.f32 %v5762, %v6097
  %v6117 = vadd.f32 %v5765, %v6100
  %v6118 = vadd.f32 %v5767, %v6102
  %v6119 = vadd.f32 %v5770, %v6105
  %v6120 = vadd.f32 %v5772, %v6107
  %v6121 = vadd.f32 %v5775, %v6110
  %6122 = vrot.lane.b32.xlu0 %v5113, 104
  %v6123 = vpop.permute.xlu0 %6122
  %6124 = vrot.lane.b32.xlu0 %v5114, 104
  %v6125 = vpop.permute.xlu0 %6124
  %6126 = vrot.lane.b32.xlu0 %v5115, 104
  %v6127 = vpop.permute.xlu0 %6126
  %6128 = vrot.lane.b32.xlu0 %v5116, 104
  %v6129 = vpop.permute.xlu0 %6128
  %6130 = vrot.lane.b32.xlu0 %v5117, 104
  %v6131 = vpop.permute.xlu0 %6130
  %6132 = vrot.lane.b32.xlu0 %v5113, 72
  %v6133 = vpop.permute.xlu0 %6132
  %6134 = vrot.lane.b32.xlu0 %v5114, 72
  %v6135 = vpop.permute.xlu0 %6134
  %6136 = vrot.lane.b32.xlu0 %v5115, 72
  %v6137 = vpop.permute.xlu0 %6136
  %6138 = vrot.lane.b32.xlu0 %v5116, 72
  %v6139 = vpop.permute.xlu0 %6138
  %6140 = vrot.lane.b32.xlu0 %v5117, 72
  %v6141 = vpop.permute.xlu0 %6140
  %v6143 = vsel %vm870, %v6123, 0
  %v6146 = vsel %vm870, %v6125, 0
  %v6149 = vsel %vm870, %v6127, 0
  %v6152 = vsel %vm870, %v6129, 0
  %v6155 = vsel %vm870, %v6131, 0
  %v6158 = vsel %vm870, %v6133, 0
  %v6161 = vsel %vm870, %v6135, 0
  %v6164 = vsel %vm870, %v6137, 0
  %v6167 = vsel %vm870, %v6139, 0
  %v6170 = vsel %vm870, %v6141, 0
  %6172 = vmatpush.bf16.xpose.msra.mxu0 0
  %6173 = vmatpush.bf16.xpose.msra.mxu0 0
  %6174 = vmatpush.bf16.xpose.msra.mxu0 0
  %6175 = vmatpush.bf16.xpose.msra.mxu0 %v6170
  %6176 = vmatpush.bf16.xpose.msra.mxu0 %v6167
  %6177 = vmatpush.bf16.xpose.msra.mxu0 %v6164
  %6178 = vmatpush.bf16.xpose.msra.mxu0 %v6161
  %6179 = vmatpush.bf16.xpose.msra.mxu0 %v6158
  %6180 = vmatmul.bf16.gmra.mxu0 %v6143
  %v6181 = vpop.f32.mrf.mxu0
  %v6182 = vadd.f32 %v836, %v6181
  %v6183 = vpop.f32.mrf.mxu0
  %v6184 = vadd.f32 %v836, %v6183
  %6185 = vmatmul.bf16.gmra.mxu0 %v6146
  %v6186 = vpop.f32.mrf.mxu0
  %v6187 = vadd.f32 %v836, %v6186
  %v6188 = vpop.f32.mrf.mxu0
  %v6189 = vadd.f32 %v836, %v6188
  %6190 = vmatmul.bf16.gmra.mxu0 %v6149
  %v6191 = vpop.f32.mrf.mxu0
  %v6192 = vadd.f32 %v836, %v6191
  %v6193 = vpop.f32.mrf.mxu0
  %v6194 = vadd.f32 %v836, %v6193
  %6195 = vmatmul.bf16.gmra.mxu0 %v6152
  %v6196 = vpop.f32.mrf.mxu0
  %v6197 = vadd.f32 %v836, %v6196
  %v6198 = vpop.f32.mrf.mxu0
  %v6199 = vadd.f32 %v836, %v6198
  %6200 = vmatmul.bf16.gmra.mxu0 %v6155
  %v6201 = vpop.f32.mrf.mxu0
  %v6202 = vadd.f32 %v836, %v6201
  %v6203 = vpop.f32.mrf.mxu0
  %6204 = vdwg.mxu0
  %v6205 = vsel %vm934, %v6182, -inf
  %6206 = vmax.xlane.f32.xlu0 %v6205
  %v6207 = vpop.xlane.xlu0 %6206
  %v6208 = vsel %vm934, %v6184, -inf
  %6209 = vmax.xlane.f32.xlu0 %v6208
  %v6210 = vpop.xlane.xlu0 %6209
  %v6211 = vsel %vm934, %v6187, -inf
  %6212 = vmax.xlane.f32.xlu0 %v6211
  %v6213 = vpop.xlane.xlu0 %6212
  %v6214 = vsel %vm934, %v6189, -inf
  %6215 = vmax.xlane.f32.xlu0 %v6214
  %v6216 = vpop.xlane.xlu0 %6215
  %v6217 = vsel %vm934, %v6192, -inf
  %6218 = vmax.xlane.f32.xlu0 %v6217
  %v6219 = vpop.xlane.xlu0 %6218
  %v6220 = vsel %vm934, %v6194, -inf
  %6221 = vmax.xlane.f32.xlu0 %v6220
  %v6222 = vpop.xlane.xlu0 %6221
  %v6223 = vsel %vm934, %v6197, -inf
  %6224 = vmax.xlane.f32.xlu0 %v6223
  %v6225 = vpop.xlane.xlu0 %6224
  %v6226 = vsel %vm934, %v6199, -inf
  %6227 = vmax.xlane.f32.xlu0 %v6226
  %v6228 = vpop.xlane.xlu0 %6227
  %v6229 = vsel %vm934, %v6202, -inf
  %6230 = vmax.xlane.f32.xlu0 %v6229
  %v6231 = vpop.xlane.xlu0 %6230
  %v6232 = vsub.f32 %v6182, %v6207
  %v6233 = vsub.f32 %v6184, %v6210
  %v6234 = vsub.f32 %v6187, %v6213
  %v6235 = vsub.f32 %v6189, %v6216
  %v6236 = vsub.f32 %v6192, %v6219
  %v6237 = vsub.f32 %v6194, %v6222
  %v6238 = vsub.f32 %v6197, %v6225
  %v6239 = vsub.f32 %v6199, %v6228
  %v6240 = vsub.f32 %v6202, %v6231
  %v6241 = vmul.f32 %v6232, 1.442695
  %v6242 = vpow.pop %v6241
  %v6243 = vmul.f32 %v6233, 1.442695
  %v6244 = vpow.pop %v6243
  %v6245 = vmul.f32 %v6234, 1.442695
  %v6246 = vpow.pop %v6245
  %v6247 = vmul.f32 %v6235, 1.442695
  %v6248 = vpow.pop %v6247
  %v6249 = vmul.f32 %v6236, 1.442695
  %v6250 = vpow.pop %v6249
  %v6251 = vmul.f32 %v6237, 1.442695
  %v6252 = vpow.pop %v6251
  %v6253 = vmul.f32 %v6238, 1.442695
  %v6254 = vpow.pop %v6253
  %v6255 = vmul.f32 %v6239, 1.442695
  %v6256 = vpow.pop %v6255
  %v6257 = vmul.f32 %v6240, 1.442695
  %v6258 = vpow.pop %v6257
  %v6259 = vpack.c.bf16 %v6244, %v6242
  %v6260 = vpack.c.bf16 %v6248, %v6246
  %v6261 = vpack.c.bf16 %v6252, %v6250
  %v6262 = vpack.c.bf16 %v6256, %v6254
  %v6263 = vpack.c.bf16 %v6258, %v6258
  %6264 = vrot.lane.b32.xlu0 %v5113, 40
  %v6265 = vpop.permute.xlu0 %6264
  %6266 = vrot.lane.b32.xlu0 %v5114, 40
  %v6267 = vpop.permute.xlu0 %6266
  %6268 = vrot.lane.b32.xlu0 %v5115, 40
  %v6269 = vpop.permute.xlu0 %6268
  %6270 = vrot.lane.b32.xlu0 %v5116, 40
  %v6271 = vpop.permute.xlu0 %6270
  %6272 = vrot.lane.b32.xlu0 %v5117, 40
  %v6273 = vpop.permute.xlu0 %6272
  %v6275 = vsel %vm870, %v6265, 1065369472
  %v6278 = vsel %vm870, %v6267, 1065369472
  %v6281 = vsel %vm870, %v6269, 1065369472
  %v6284 = vsel %vm870, %v6271, 1065369472
  %v6287 = vsel %vm870, %v6273, 1065369472
  %v6289 = vsel %vm934, %v6259, 0
  %v6292 = vsel %vm934, %v6260, 0
  %v6295 = vsel %vm934, %v6261, 0
  %v6298 = vsel %vm934, %v6262, 0
  %v6301 = vsel %vm934, %v6263, 0
  %v6303 = vsel %vm1034, %v6287, 0
  %6305 = vmatpush.bf16.msra.mxu0 0
  %6306 = vmatpush.bf16.msra.mxu0 0
  %6307 = vmatpush.bf16.msra.mxu0 0
  %6308 = vmatpush.bf16.msra.mxu0 %v6303
  %6309 = vmatpush.bf16.msra.mxu0 %v6284
  %6310 = vmatpush.bf16.msra.mxu0 %v6281
  %6311 = vmatpush.bf16.msra.mxu0 %v6278
  %6312 = vmatpush.bf16.msra.mxu0 %v6275
  %6313 = vmatmul.bf16.gmra.mxu0 %v6289
  %v6314 = vpop.f32.mrf.mxu0
  %v6315 = vadd.f32 0.0, %v6314
  %v6316 = vpop.f32.mrf.mxu0
  %v6317 = vadd.f32 0.0, %v6316
  %6318 = vmatmul.bf16.gmra.mxu0 %v6292
  %v6319 = vpop.f32.mrf.mxu0
  %v6320 = vadd.f32 0.0, %v6319
  %v6321 = vpop.f32.mrf.mxu0
  %v6322 = vadd.f32 0.0, %v6321
  %6323 = vmatmul.bf16.gmra.mxu0 %v6295
  %v6324 = vpop.f32.mrf.mxu0
  %v6325 = vadd.f32 0.0, %v6324
  %v6326 = vpop.f32.mrf.mxu0
  %v6327 = vadd.f32 0.0, %v6326
  %6328 = vmatmul.bf16.gmra.mxu0 %v6298
  %v6329 = vpop.f32.mrf.mxu0
  %v6330 = vadd.f32 0.0, %v6329
  %v6331 = vpop.f32.mrf.mxu0
  %v6332 = vadd.f32 0.0, %v6331
  %6333 = vmatmul.bf16.gmra.mxu0 %v6301
  %v6334 = vpop.f32.mrf.mxu0
  %v6335 = vadd.f32 0.0, %v6334
  %v6336 = vpop.f32.mrf.mxu0
  %6337 = vdwg.mxu0
  %v6338 = vrcp.pop %v6315
  %v6339 = vrcp.pop %v6317
  %v6340 = vrcp.pop %v6320
  %v6341 = vrcp.pop %v6322
  %v6342 = vrcp.pop %v6325
  %v6343 = vrcp.pop %v6327
  %v6344 = vrcp.pop %v6330
  %v6345 = vrcp.pop %v6332
  %v6346 = vrcp.pop %v6335
  %6348 = vset.pattern.permute.xlu0 8
  %6349 = vperm.xlu0 %6348, %v6338
  %v6350 = vpop.permute.xlu0 %6349
  %6353 = vset.pattern.permute.xlu0 8
  %6354 = vperm.xlu0 %6353, %v6339
  %v6355 = vpop.permute.xlu0 %6354
  %6358 = vset.pattern.permute.xlu0 8
  %6359 = vperm.xlu0 %6358, %v6340
  %v6360 = vpop.permute.xlu0 %6359
  %6363 = vset.pattern.permute.xlu0 8
  %6364 = vperm.xlu0 %6363, %v6341
  %v6365 = vpop.permute.xlu0 %6364
  %6368 = vset.pattern.permute.xlu0 8
  %6369 = vperm.xlu0 %6368, %v6342
  %v6370 = vpop.permute.xlu0 %6369
  %6373 = vset.pattern.permute.xlu0 8
  %6374 = vperm.xlu0 %6373, %v6343
  %v6375 = vpop.permute.xlu0 %6374
  %6378 = vset.pattern.permute.xlu0 8
  %6379 = vperm.xlu0 %6378, %v6344
  %v6380 = vpop.permute.xlu0 %6379
  %6383 = vset.pattern.permute.xlu0 8
  %6384 = vperm.xlu0 %6383, %v6345
  %v6385 = vpop.permute.xlu0 %6384
  %6388 = vset.pattern.permute.xlu0 8
  %6389 = vperm.xlu0 %6388, %v6346
  %v6390 = vpop.permute.xlu0 %6389
  %v6392 = vmul.f32 %v6315, %v6350
  %v6393 = vmul.f32 %v6317, %v6355
  %v6394 = vmul.f32 %v6320, %v6360
  %v6395 = vmul.f32 %v6322, %v6365
  %v6396 = vmul.f32 %v6325, %v6370
  %v6397 = vmul.f32 %v6327, %v6375
  %v6398 = vmul.f32 %v6330, %v6380
  %v6399 = vmul.f32 %v6332, %v6385
  %v6400 = vmul.f32 %v6335, %v6390
  %v6401 = vpack.c.bf16 %v6393, %v6392
  %v6402 = vpack.c.bf16 %v6395, %v6394
  %v6403 = vpack.c.bf16 %v6397, %v6396
  %v6404 = vpack.c.bf16 %v6399, %v6398
  %v6405 = vpack.c.bf16 %v6400, %v6400
  %v6407 = vsel %vm870, %v6401, 0
  %v6410 = vsel %vm870, %v6402, 0
  %v6413 = vsel %vm870, %v6403, 0
  %v6416 = vsel %vm870, %v6404, 0
  %v6419 = vsel %vm870, %v6405, 0
  %v6422 = vsel %vm1034, %v4502, 0
  %6424 = vmatpush.bf16.msra.mxu0 0
  %6425 = vmatpush.bf16.msra.mxu0 0
  %6426 = vmatpush.bf16.msra.mxu0 0
  %6427 = vmatpush.bf16.msra.mxu0 0
  %6428 = vmatpush.bf16.msra.mxu0 0
  %6429 = vmatpush.bf16.msra.mxu0 0
  %6430 = vmatpush.bf16.msra.mxu0 0
  %6431 = vmatpush.bf16.msra.mxu0 %v6422
  %6432 = vmatmul.bf16.gmra.mxu0 %v6407
  %v6433 = vpop.f32.mrf.mxu0
  %v6434 = vadd.f32 0.0, %v6433
  %v6435 = vpop.f32.mrf.mxu0
  %v6436 = vadd.f32 0.0, %v6435
  %6437 = vmatmul.bf16.gmra.mxu0 %v6410
  %v6438 = vpop.f32.mrf.mxu0
  %v6439 = vadd.f32 0.0, %v6438
  %v6440 = vpop.f32.mrf.mxu0
  %v6441 = vadd.f32 0.0, %v6440
  %6442 = vmatmul.bf16.gmra.mxu0 %v6413
  %v6443 = vpop.f32.mrf.mxu0
  %v6444 = vadd.f32 0.0, %v6443
  %v6445 = vpop.f32.mrf.mxu0
  %v6446 = vadd.f32 0.0, %v6445
  %6447 = vmatmul.bf16.gmra.mxu0 %v6416
  %v6448 = vpop.f32.mrf.mxu0
  %v6449 = vadd.f32 0.0, %v6448
  %v6450 = vpop.f32.mrf.mxu0
  %v6451 = vadd.f32 0.0, %v6450
  %6452 = vmatmul.bf16.gmra.mxu0 %v6419
  %v6453 = vpop.f32.mrf.mxu0
  %v6454 = vadd.f32 0.0, %v6453
  %v6455 = vpop.f32.mrf.mxu0
  %6456 = vdwg.mxu0
  %v6457 = vadd.f32 %v6113, %v6434
  %v6458 = vadd.f32 %v6114, %v6436
  %v6459 = vadd.f32 %v6115, %v6439
  %v6460 = vadd.f32 %v6116, %v6441
  %v6461 = vadd.f32 %v6117, %v6444
  %v6462 = vadd.f32 %v6118, %v6446
  %v6463 = vadd.f32 %v6119, %v6449
  %v6464 = vadd.f32 %v6120, %v6451
  %v6465 = vadd.f32 %v6121, %v6454
  %v6475 = vunpack.c.l.b16 %v5086
  %v6476 = vunpack.c.l.b16 %v5087
  %v6477 = vunpack.c.l.b16 %v5088
  %v6478 = vunpack.c.l.b16 %v5089
  %v6479 = vunpack.c.l.b16 %v5090
  %v6480 = vunpack.c.l.b16 %v5091
  %v6481 = vunpack.c.l.b16 %v5092
  %v6482 = vunpack.c.l.b16 %v5093
  %v6483 = vunpack.c.l.b16 %v5094
  %v6484 = vpack.c.b16 %v6476, %v6475
  %v6485 = vpack.c.b16 %v6478, %v6477
  %v6486 = vpack.c.b16 %v6480, %v6479
  %v6487 = vpack.c.b16 %v6482, %v6481
  %v6488 = vpack.c.b16 %v6483, %v6483
  %6489 = vrot.lane.b32.xlu0 %v6484, 96
  %v6490 = vpop.permute.xlu0 %6489
  %6491 = vrot.lane.b32.xlu0 %v6485, 96
  %v6492 = vpop.permute.xlu0 %6491
  %6493 = vrot.lane.b32.xlu0 %v6486, 96
  %v6494 = vpop.permute.xlu0 %6493
  %6495 = vrot.lane.b32.xlu0 %v6487, 96
  %v6496 = vpop.permute.xlu0 %6495
  %6497 = vrot.lane.b32.xlu0 %v6488, 96
  %v6498 = vpop.permute.xlu0 %6497
  %v6500 = vsel %vm870, %v6484, 0
  %v6503 = vsel %vm870, %v6485, 0
  %v6506 = vsel %vm870, %v6486, 0
  %v6509 = vsel %vm870, %v6487, 0
  %v6512 = vsel %vm870, %v6488, 0
  %v6515 = vsel %vm870, %v6490, 0
  %v6518 = vsel %vm870, %v6492, 0
  %v6521 = vsel %vm870, %v6494, 0
  %v6524 = vsel %vm870, %v6496, 0
  %v6527 = vsel %vm870, %v6498, 0
  %6529 = vmatpush.bf16.xpose.msra.mxu0 0
  %6530 = vmatpush.bf16.xpose.msra.mxu0 0
  %6531 = vmatpush.bf16.xpose.msra.mxu0 0
  %6532 = vmatpush.bf16.xpose.msra.mxu0 %v6527
  %6533 = vmatpush.bf16.xpose.msra.mxu0 %v6524
  %6534 = vmatpush.bf16.xpose.msra.mxu0 %v6521
  %6535 = vmatpush.bf16.xpose.msra.mxu0 %v6518
  %6536 = vmatpush.bf16.xpose.msra.mxu0 %v6515
  %6537 = vmatmul.bf16.gmra.mxu0 %v6500
  %v6538 = vpop.f32.mrf.mxu0
  %v6539 = vadd.f32 %v836, %v6538
  %v6540 = vpop.f32.mrf.mxu0
  %v6541 = vadd.f32 %v836, %v6540
  %6542 = vmatmul.bf16.gmra.mxu0 %v6503
  %v6543 = vpop.f32.mrf.mxu0
  %v6544 = vadd.f32 %v836, %v6543
  %v6545 = vpop.f32.mrf.mxu0
  %v6546 = vadd.f32 %v836, %v6545
  %6547 = vmatmul.bf16.gmra.mxu0 %v6506
  %v6548 = vpop.f32.mrf.mxu0
  %v6549 = vadd.f32 %v836, %v6548
  %v6550 = vpop.f32.mrf.mxu0
  %v6551 = vadd.f32 %v836, %v6550
  %6552 = vmatmul.bf16.gmra.mxu0 %v6509
  %v6553 = vpop.f32.mrf.mxu0
  %v6554 = vadd.f32 %v836, %v6553
  %v6555 = vpop.f32.mrf.mxu0
  %v6556 = vadd.f32 %v836, %v6555
  %6557 = vmatmul.bf16.gmra.mxu0 %v6512
  %v6558 = vpop.f32.mrf.mxu0
  %v6559 = vadd.f32 %v836, %v6558
  %v6560 = vpop.f32.mrf.mxu0
  %6561 = vdwg.mxu0
  %v6562 = vsel %vm934, %v6539, -inf
  %6563 = vmax.xlane.f32.xlu0 %v6562
  %v6564 = vpop.xlane.xlu0 %6563
  %v6565 = vsel %vm934, %v6541, -inf
  %6566 = vmax.xlane.f32.xlu0 %v6565
  %v6567 = vpop.xlane.xlu0 %6566
  %v6568 = vsel %vm934, %v6544, -inf
  %6569 = vmax.xlane.f32.xlu0 %v6568
  %v6570 = vpop.xlane.xlu0 %6569
  %v6571 = vsel %vm934, %v6546, -inf
  %6572 = vmax.xlane.f32.xlu0 %v6571
  %v6573 = vpop.xlane.xlu0 %6572
  %v6574 = vsel %vm934, %v6549, -inf
  %6575 = vmax.xlane.f32.xlu0 %v6574
  %v6576 = vpop.xlane.xlu0 %6575
  %v6577 = vsel %vm934, %v6551, -inf
  %6578 = vmax.xlane.f32.xlu0 %v6577
  %v6579 = vpop.xlane.xlu0 %6578
  %v6580 = vsel %vm934, %v6554, -inf
  %6581 = vmax.xlane.f32.xlu0 %v6580
  %v6582 = vpop.xlane.xlu0 %6581
  %v6583 = vsel %vm934, %v6556, -inf
  %6584 = vmax.xlane.f32.xlu0 %v6583
  %v6585 = vpop.xlane.xlu0 %6584
  %v6586 = vsel %vm934, %v6559, -inf
  %6587 = vmax.xlane.f32.xlu0 %v6586
  %v6588 = vpop.xlane.xlu0 %6587
  %v6589 = vsub.f32 %v6539, %v6564
  %v6590 = vsub.f32 %v6541, %v6567
  %v6591 = vsub.f32 %v6544, %v6570
  %v6592 = vsub.f32 %v6546, %v6573
  %v6593 = vsub.f32 %v6549, %v6576
  %v6594 = vsub.f32 %v6551, %v6579
  %v6595 = vsub.f32 %v6554, %v6582
  %v6596 = vsub.f32 %v6556, %v6585
  %v6597 = vsub.f32 %v6559, %v6588
  %v6598 = vmul.f32 %v6589, 1.442695
  %v6599 = vpow.pop %v6598
  %v6600 = vmul.f32 %v6590, 1.442695
  %v6601 = vpow.pop %v6600
  %v6602 = vmul.f32 %v6591, 1.442695
  %v6603 = vpow.pop %v6602
  %v6604 = vmul.f32 %v6592, 1.442695
  %v6605 = vpow.pop %v6604
  %v6606 = vmul.f32 %v6593, 1.442695
  %v6607 = vpow.pop %v6606
  %v6608 = vmul.f32 %v6594, 1.442695
  %v6609 = vpow.pop %v6608
  %v6610 = vmul.f32 %v6595, 1.442695
  %v6611 = vpow.pop %v6610
  %v6612 = vmul.f32 %v6596, 1.442695
  %v6613 = vpow.pop %v6612
  %v6614 = vmul.f32 %v6597, 1.442695
  %v6615 = vpow.pop %v6614
  %v6616 = vpack.c.bf16 %v6601, %v6599
  %v6617 = vpack.c.bf16 %v6605, %v6603
  %v6618 = vpack.c.bf16 %v6609, %v6607
  %v6619 = vpack.c.bf16 %v6613, %v6611
  %v6620 = vpack.c.bf16 %v6615, %v6615
  %6621 = vrot.lane.b32.xlu0 %v6484, 64
  %v6622 = vpop.permute.xlu0 %6621
  %6623 = vrot.lane.b32.xlu0 %v6485, 64
  %v6624 = vpop.permute.xlu0 %6623
  %6625 = vrot.lane.b32.xlu0 %v6486, 64
  %v6626 = vpop.permute.xlu0 %6625
  %6627 = vrot.lane.b32.xlu0 %v6487, 64
  %v6628 = vpop.permute.xlu0 %6627
  %6629 = vrot.lane.b32.xlu0 %v6488, 64
  %v6630 = vpop.permute.xlu0 %6629
  %v6632 = vsel %vm870, %v6622, 1065369472
  %v6635 = vsel %vm870, %v6624, 1065369472
  %v6638 = vsel %vm870, %v6626, 1065369472
  %v6641 = vsel %vm870, %v6628, 1065369472
  %v6644 = vsel %vm870, %v6630, 1065369472
  %v6646 = vsel %vm934, %v6616, 0
  %v6649 = vsel %vm934, %v6617, 0
  %v6652 = vsel %vm934, %v6618, 0
  %v6655 = vsel %vm934, %v6619, 0
  %v6658 = vsel %vm934, %v6620, 0
  %v6660 = vsel %vm1034, %v6644, 0
  %6662 = vmatpush.bf16.msra.mxu0 0
  %6663 = vmatpush.bf16.msra.mxu0 0
  %6664 = vmatpush.bf16.msra.mxu0 0
  %6665 = vmatpush.bf16.msra.mxu0 %v6660
  %6666 = vmatpush.bf16.msra.mxu0 %v6641
  %6667 = vmatpush.bf16.msra.mxu0 %v6638
  %6668 = vmatpush.bf16.msra.mxu0 %v6635
  %6669 = vmatpush.bf16.msra.mxu0 %v6632
  %6670 = vmatmul.bf16.gmra.mxu0 %v6646
  %v6671 = vpop.f32.mrf.mxu0
  %v6672 = vadd.f32 0.0, %v6671
  %v6673 = vpop.f32.mrf.mxu0
  %v6674 = vadd.f32 0.0, %v6673
  %6675 = vmatmul.bf16.gmra.mxu0 %v6649
  %v6676 = vpop.f32.mrf.mxu0
  %v6677 = vadd.f32 0.0, %v6676
  %v6678 = vpop.f32.mrf.mxu0
  %v6679 = vadd.f32 0.0, %v6678
  %6680 = vmatmul.bf16.gmra.mxu0 %v6652
  %v6681 = vpop.f32.mrf.mxu0
  %v6682 = vadd.f32 0.0, %v6681
  %v6683 = vpop.f32.mrf.mxu0
  %v6684 = vadd.f32 0.0, %v6683
  %6685 = vmatmul.bf16.gmra.mxu0 %v6655
  %v6686 = vpop.f32.mrf.mxu0
  %v6687 = vadd.f32 0.0, %v6686
  %v6688 = vpop.f32.mrf.mxu0
  %v6689 = vadd.f32 0.0, %v6688
  %6690 = vmatmul.bf16.gmra.mxu0 %v6658
  %v6691 = vpop.f32.mrf.mxu0
  %v6692 = vadd.f32 0.0, %v6691
  %v6693 = vpop.f32.mrf.mxu0
  %6694 = vdwg.mxu0
  %v6695 = vrcp.pop %v6672
  %v6696 = vrcp.pop %v6674
  %v6697 = vrcp.pop %v6677
  %v6698 = vrcp.pop %v6679
  %v6699 = vrcp.pop %v6682
  %v6700 = vrcp.pop %v6684
  %v6701 = vrcp.pop %v6687
  %v6702 = vrcp.pop %v6689
  %v6703 = vrcp.pop %v6692
  %6705 = vset.pattern.permute.xlu0 8
  %6706 = vperm.xlu0 %6705, %v6695
  %v6707 = vpop.permute.xlu0 %6706
  %6710 = vset.pattern.permute.xlu0 8
  %6711 = vperm.xlu0 %6710, %v6696
  %v6712 = vpop.permute.xlu0 %6711
  %6715 = vset.pattern.permute.xlu0 8
  %6716 = vperm.xlu0 %6715, %v6697
  %v6717 = vpop.permute.xlu0 %6716
  %6720 = vset.pattern.permute.xlu0 8
  %6721 = vperm.xlu0 %6720, %v6698
  %v6722 = vpop.permute.xlu0 %6721
  %6725 = vset.pattern.permute.xlu0 8
  %6726 = vperm.xlu0 %6725, %v6699
  %v6727 = vpop.permute.xlu0 %6726
  %6730 = vset.pattern.permute.xlu0 8
  %6731 = vperm.xlu0 %6730, %v6700
  %v6732 = vpop.permute.xlu0 %6731
  %6735 = vset.pattern.permute.xlu0 8
  %6736 = vperm.xlu0 %6735, %v6701
  %v6737 = vpop.permute.xlu0 %6736
  %6740 = vset.pattern.permute.xlu0 8
  %6741 = vperm.xlu0 %6740, %v6702
  %v6742 = vpop.permute.xlu0 %6741
  %6745 = vset.pattern.permute.xlu0 8
  %6746 = vperm.xlu0 %6745, %v6703
  %v6747 = vpop.permute.xlu0 %6746
  %v6749 = vmul.f32 %v6672, %v6707
  %v6750 = vmul.f32 %v6674, %v6712
  %v6751 = vmul.f32 %v6677, %v6717
  %v6752 = vmul.f32 %v6679, %v6722
  %v6753 = vmul.f32 %v6682, %v6727
  %v6754 = vmul.f32 %v6684, %v6732
  %v6755 = vmul.f32 %v6687, %v6737
  %v6756 = vmul.f32 %v6689, %v6742
  %v6757 = vmul.f32 %v6692, %v6747
  %v6758 = vpack.c.bf16 %v6750, %v6749
  %v6759 = vpack.c.bf16 %v6752, %v6751
  %v6760 = vpack.c.bf16 %v6754, %v6753
  %v6761 = vpack.c.bf16 %v6756, %v6755
  %v6762 = vpack.c.bf16 %v6757, %v6757
  %6763 = vrot.lane.b32.xlu0 %v6484, 120
  %v6764 = vpop.permute.xlu0 %6763
  %6765 = vrot.lane.b32.xlu0 %v6485, 120
  %v6766 = vpop.permute.xlu0 %6765
  %6767 = vrot.lane.b32.xlu0 %v6486, 120
  %v6768 = vpop.permute.xlu0 %6767
  %6769 = vrot.lane.b32.xlu0 %v6487, 120
  %v6770 = vpop.permute.xlu0 %6769
  %6771 = vrot.lane.b32.xlu0 %v6488, 120
  %v6772 = vpop.permute.xlu0 %6771
  %6773 = vrot.lane.b32.xlu0 %v6484, 88
  %v6774 = vpop.permute.xlu0 %6773
  %6775 = vrot.lane.b32.xlu0 %v6485, 88
  %v6776 = vpop.permute.xlu0 %6775
  %6777 = vrot.lane.b32.xlu0 %v6486, 88
  %v6778 = vpop.permute.xlu0 %6777
  %6779 = vrot.lane.b32.xlu0 %v6487, 88
  %v6780 = vpop.permute.xlu0 %6779
  %6781 = vrot.lane.b32.xlu0 %v6488, 88
  %v6782 = vpop.permute.xlu0 %6781
  %v6784 = vsel %vm870, %v6764, 0
  %v6787 = vsel %vm870, %v6766, 0
  %v6790 = vsel %vm870, %v6768, 0
  %v6793 = vsel %vm870, %v6770, 0
  %v6796 = vsel %vm870, %v6772, 0
  %v6799 = vsel %vm870, %v6774, 0
  %v6802 = vsel %vm870, %v6776, 0
  %v6805 = vsel %vm870, %v6778, 0
  %v6808 = vsel %vm870, %v6780, 0
  %v6811 = vsel %vm870, %v6782, 0
  %6813 = vmatpush.bf16.xpose.msra.mxu0 0
  %6814 = vmatpush.bf16.xpose.msra.mxu0 0
  %6815 = vmatpush.bf16.xpose.msra.mxu0 0
  %6816 = vmatpush.bf16.xpose.msra.mxu0 %v6811
  %6817 = vmatpush.bf16.xpose.msra.mxu0 %v6808
  %6818 = vmatpush.bf16.xpose.msra.mxu0 %v6805
  %6819 = vmatpush.bf16.xpose.msra.mxu0 %v6802
  %6820 = vmatpush.bf16.xpose.msra.mxu0 %v6799
  %6821 = vmatmul.bf16.gmra.mxu0 %v6784
  %v6822 = vpop.f32.mrf.mxu0
  %v6823 = vadd.f32 %v836, %v6822
  %v6824 = vpop.f32.mrf.mxu0
  %v6825 = vadd.f32 %v836, %v6824
  %6826 = vmatmul.bf16.gmra.mxu0 %v6787
  %v6827 = vpop.f32.mrf.mxu0
  %v6828 = vadd.f32 %v836, %v6827
  %v6829 = vpop.f32.mrf.mxu0
  %v6830 = vadd.f32 %v836, %v6829
  %6831 = vmatmul.bf16.gmra.mxu0 %v6790
  %v6832 = vpop.f32.mrf.mxu0
  %v6833 = vadd.f32 %v836, %v6832
  %v6834 = vpop.f32.mrf.mxu0
  %v6835 = vadd.f32 %v836, %v6834
  %6836 = vmatmul.bf16.gmra.mxu0 %v6793
  %v6837 = vpop.f32.mrf.mxu0
  %v6838 = vadd.f32 %v836, %v6837
  %v6839 = vpop.f32.mrf.mxu0
  %v6840 = vadd.f32 %v836, %v6839
  %6841 = vmatmul.bf16.gmra.mxu0 %v6796
  %v6842 = vpop.f32.mrf.mxu0
  %v6843 = vadd.f32 %v836, %v6842
  %v6844 = vpop.f32.mrf.mxu0
  %6845 = vdwg.mxu0
  %v6846 = vsel %vm934, %v6823, -inf
  %6847 = vmax.xlane.f32.xlu0 %v6846
  %v6848 = vpop.xlane.xlu0 %6847
  %v6849 = vsel %vm934, %v6825, -inf
  %6850 = vmax.xlane.f32.xlu0 %v6849
  %v6851 = vpop.xlane.xlu0 %6850
  %v6852 = vsel %vm934, %v6828, -inf
  %6853 = vmax.xlane.f32.xlu0 %v6852
  %v6854 = vpop.xlane.xlu0 %6853
  %v6855 = vsel %vm934, %v6830, -inf
  %6856 = vmax.xlane.f32.xlu0 %v6855
  %v6857 = vpop.xlane.xlu0 %6856
  %v6858 = vsel %vm934, %v6833, -inf
  %6859 = vmax.xlane.f32.xlu0 %v6858
  %v6860 = vpop.xlane.xlu0 %6859
  %v6861 = vsel %vm934, %v6835, -inf
  %6862 = vmax.xlane.f32.xlu0 %v6861
  %v6863 = vpop.xlane.xlu0 %6862
  %v6864 = vsel %vm934, %v6838, -inf
  %6865 = vmax.xlane.f32.xlu0 %v6864
  %v6866 = vpop.xlane.xlu0 %6865
  %v6867 = vsel %vm934, %v6840, -inf
  %6868 = vmax.xlane.f32.xlu0 %v6867
  %v6869 = vpop.xlane.xlu0 %6868
  %v6870 = vsel %vm934, %v6843, -inf
  %6871 = vmax.xlane.f32.xlu0 %v6870
  %v6872 = vpop.xlane.xlu0 %6871
  %v6873 = vsub.f32 %v6823, %v6848
  %v6874 = vsub.f32 %v6825, %v6851
  %v6875 = vsub.f32 %v6828, %v6854
  %v6876 = vsub.f32 %v6830, %v6857
  %v6877 = vsub.f32 %v6833, %v6860
  %v6878 = vsub.f32 %v6835, %v6863
  %v6879 = vsub.f32 %v6838, %v6866
  %v6880 = vsub.f32 %v6840, %v6869
  %v6881 = vsub.f32 %v6843, %v6872
  %v6882 = vmul.f32 %v6873, 1.442695
  %v6883 = vpow.pop %v6882
  %v6884 = vmul.f32 %v6874, 1.442695
  %v6885 = vpow.pop %v6884
  %v6886 = vmul.f32 %v6875, 1.442695
  %v6887 = vpow.pop %v6886
  %v6888 = vmul.f32 %v6876, 1.442695
  %v6889 = vpow.pop %v6888
  %v6890 = vmul.f32 %v6877, 1.442695
  %v6891 = vpow.pop %v6890
  %v6892 = vmul.f32 %v6878, 1.442695
  %v6893 = vpow.pop %v6892
  %v6894 = vmul.f32 %v6879, 1.442695
  %v6895 = vpow.pop %v6894
  %v6896 = vmul.f32 %v6880, 1.442695
  %v6897 = vpow.pop %v6896
  %v6898 = vmul.f32 %v6881, 1.442695
  %v6899 = vpow.pop %v6898
  %v6900 = vpack.c.bf16 %v6885, %v6883
  %v6901 = vpack.c.bf16 %v6889, %v6887
  %v6902 = vpack.c.bf16 %v6893, %v6891
  %v6903 = vpack.c.bf16 %v6897, %v6895
  %v6904 = vpack.c.bf16 %v6899, %v6899
  %6905 = vrot.lane.b32.xlu0 %v6484, 56
  %v6906 = vpop.permute.xlu0 %6905
  %6907 = vrot.lane.b32.xlu0 %v6485, 56
  %v6908 = vpop.permute.xlu0 %6907
  %6909 = vrot.lane.b32.xlu0 %v6486, 56
  %v6910 = vpop.permute.xlu0 %6909
  %6911 = vrot.lane.b32.xlu0 %v6487, 56
  %v6912 = vpop.permute.xlu0 %6911
  %6913 = vrot.lane.b32.xlu0 %v6488, 56
  %v6914 = vpop.permute.xlu0 %6913
  %v6916 = vsel %vm870, %v6906, 1065369472
  %v6919 = vsel %vm870, %v6908, 1065369472
  %v6922 = vsel %vm870, %v6910, 1065369472
  %v6925 = vsel %vm870, %v6912, 1065369472
  %v6928 = vsel %vm870, %v6914, 1065369472
  %v6930 = vsel %vm934, %v6900, 0
  %v6933 = vsel %vm934, %v6901, 0
  %v6936 = vsel %vm934, %v6902, 0
  %v6939 = vsel %vm934, %v6903, 0
  %v6942 = vsel %vm934, %v6904, 0
  %v6944 = vsel %vm1034, %v6928, 0
  %6946 = vmatpush.bf16.msra.mxu0 0
  %6947 = vmatpush.bf16.msra.mxu0 0
  %6948 = vmatpush.bf16.msra.mxu0 0
  %6949 = vmatpush.bf16.msra.mxu0 %v6944
  %6950 = vmatpush.bf16.msra.mxu0 %v6925
  %6951 = vmatpush.bf16.msra.mxu0 %v6922
  %6952 = vmatpush.bf16.msra.mxu0 %v6919
  %6953 = vmatpush.bf16.msra.mxu0 %v6916
  %6954 = vmatmul.bf16.gmra.mxu0 %v6930
  %v6955 = vpop.f32.mrf.mxu0
  %v6956 = vadd.f32 0.0, %v6955
  %v6957 = vpop.f32.mrf.mxu0
  %v6958 = vadd.f32 0.0, %v6957
  %6959 = vmatmul.bf16.gmra.mxu0 %v6933
  %v6960 = vpop.f32.mrf.mxu0
  %v6961 = vadd.f32 0.0, %v6960
  %v6962 = vpop.f32.mrf.mxu0
  %v6963 = vadd.f32 0.0, %v6962
  %6964 = vmatmul.bf16.gmra.mxu0 %v6936
  %v6965 = vpop.f32.mrf.mxu0
  %v6966 = vadd.f32 0.0, %v6965
  %v6967 = vpop.f32.mrf.mxu0
  %v6968 = vadd.f32 0.0, %v6967
  %6969 = vmatmul.bf16.gmra.mxu0 %v6939
  %v6970 = vpop.f32.mrf.mxu0
  %v6971 = vadd.f32 0.0, %v6970
  %v6972 = vpop.f32.mrf.mxu0
  %v6973 = vadd.f32 0.0, %v6972
  %6974 = vmatmul.bf16.gmra.mxu0 %v6942
  %v6975 = vpop.f32.mrf.mxu0
  %v6976 = vadd.f32 0.0, %v6975
  %v6977 = vpop.f32.mrf.mxu0
  %6978 = vdwg.mxu0
  %v6979 = vrcp.pop %v6956
  %v6980 = vrcp.pop %v6958
  %v6981 = vrcp.pop %v6961
  %v6982 = vrcp.pop %v6963
  %v6983 = vrcp.pop %v6966
  %v6984 = vrcp.pop %v6968
  %v6985 = vrcp.pop %v6971
  %v6986 = vrcp.pop %v6973
  %v6987 = vrcp.pop %v6976
  %6989 = vset.pattern.permute.xlu0 8
  %6990 = vperm.xlu0 %6989, %v6979
  %v6991 = vpop.permute.xlu0 %6990
  %6994 = vset.pattern.permute.xlu0 8
  %6995 = vperm.xlu0 %6994, %v6980
  %v6996 = vpop.permute.xlu0 %6995
  %6999 = vset.pattern.permute.xlu0 8
  %7000 = vperm.xlu0 %6999, %v6981
  %v7001 = vpop.permute.xlu0 %7000
  %7004 = vset.pattern.permute.xlu0 8
  %7005 = vperm.xlu0 %7004, %v6982
  %v7006 = vpop.permute.xlu0 %7005
  %7009 = vset.pattern.permute.xlu0 8
  %7010 = vperm.xlu0 %7009, %v6983
  %v7011 = vpop.permute.xlu0 %7010
  %7014 = vset.pattern.permute.xlu0 8
  %7015 = vperm.xlu0 %7014, %v6984
  %v7016 = vpop.permute.xlu0 %7015
  %7019 = vset.pattern.permute.xlu0 8
  %7020 = vperm.xlu0 %7019, %v6985
  %v7021 = vpop.permute.xlu0 %7020
  %7024 = vset.pattern.permute.xlu0 8
  %7025 = vperm.xlu0 %7024, %v6986
  %v7026 = vpop.permute.xlu0 %7025
  %7029 = vset.pattern.permute.xlu0 8
  %7030 = vperm.xlu0 %7029, %v6987
  %v7031 = vpop.permute.xlu0 %7030
  %v7033 = vmul.f32 %v6956, %v6991
  %v7034 = vmul.f32 %v6958, %v6996
  %v7035 = vmul.f32 %v6961, %v7001
  %v7036 = vmul.f32 %v6963, %v7006
  %v7037 = vmul.f32 %v6966, %v7011
  %v7038 = vmul.f32 %v6968, %v7016
  %v7039 = vmul.f32 %v6971, %v7021
  %v7040 = vmul.f32 %v6973, %v7026
  %v7041 = vmul.f32 %v6976, %v7031
  %v7042 = vpack.c.bf16 %v7034, %v7033
  %v7043 = vpack.c.bf16 %v7036, %v7035
  %v7044 = vpack.c.bf16 %v7038, %v7037
  %v7045 = vpack.c.bf16 %v7040, %v7039
  %v7046 = vpack.c.bf16 %v7041, %v7041
  %v7048 = vsel %vm870, %v7042, 0
  %v7051 = vsel %vm870, %v7043, 0
  %v7054 = vsel %vm870, %v7044, 0
  %v7057 = vsel %vm870, %v7045, 0
  %v7060 = vsel %vm870, %v7046, 0
  %7062 = vmatpush.bf16.msra.mxu0 0
  %7063 = vmatpush.bf16.msra.mxu0 0
  %7064 = vmatpush.bf16.msra.mxu0 0
  %7065 = vmatpush.bf16.msra.mxu0 0
  %7066 = vmatpush.bf16.msra.mxu0 0
  %7067 = vmatpush.bf16.msra.mxu0 0
  %7068 = vmatpush.bf16.msra.mxu0 0
  %7069 = vmatpush.bf16.msra.mxu0 %v5692
  %7070 = vmatmul.bf16.gmra.mxu0 %v7048
  %v7071 = vpop.f32.mrf.mxu0
  %v7072 = vadd.f32 0.0, %v7071
  %v7073 = vpop.f32.mrf.mxu0
  %v7074 = vadd.f32 0.0, %v7073
  %7075 = vmatmul.bf16.gmra.mxu0 %v7051
  %v7076 = vpop.f32.mrf.mxu0
  %v7077 = vadd.f32 0.0, %v7076
  %v7078 = vpop.f32.mrf.mxu0
  %v7079 = vadd.f32 0.0, %v7078
  %7080 = vmatmul.bf16.gmra.mxu0 %v7054
  %v7081 = vpop.f32.mrf.mxu0
  %v7082 = vadd.f32 0.0, %v7081
  %v7083 = vpop.f32.mrf.mxu0
  %v7084 = vadd.f32 0.0, %v7083
  %7085 = vmatmul.bf16.gmra.mxu0 %v7057
  %v7086 = vpop.f32.mrf.mxu0
  %v7087 = vadd.f32 0.0, %v7086
  %v7088 = vpop.f32.mrf.mxu0
  %v7089 = vadd.f32 0.0, %v7088
  %7090 = vmatmul.bf16.gmra.mxu0 %v7060
  %v7091 = vpop.f32.mrf.mxu0
  %v7092 = vadd.f32 0.0, %v7091
  %v7093 = vpop.f32.mrf.mxu0
  %7094 = vdwg.mxu0
  %v7096 = vsel %vm870, %v6758, 0
  %v7099 = vsel %vm870, %v6759, 0
  %v7102 = vsel %vm870, %v6760, 0
  %v7105 = vsel %vm870, %v6761, 0
  %v7108 = vsel %vm870, %v6762, 0
  %7110 = vmatpush.bf16.msra.mxu0 0
  %7111 = vmatpush.bf16.msra.mxu0 0
  %7112 = vmatpush.bf16.msra.mxu0 0
  %7113 = vmatpush.bf16.msra.mxu0 0
  %7114 = vmatpush.bf16.msra.mxu0 0
  %7115 = vmatpush.bf16.msra.mxu0 0
  %7116 = vmatpush.bf16.msra.mxu0 0
  %7117 = vmatpush.bf16.msra.mxu0 %v5743
  %7118 = vmatmul.bf16.gmra.mxu0 %v7096
  %v7119 = vpop.f32.mrf.mxu0
  %v7120 = vadd.f32 %v7072, %v7119
  %v7121 = vpop.f32.mrf.mxu0
  %v7122 = vadd.f32 %v7074, %v7121
  %7123 = vmatmul.bf16.gmra.mxu0 %v7099
  %v7124 = vpop.f32.mrf.mxu0
  %v7125 = vadd.f32 %v7077, %v7124
  %v7126 = vpop.f32.mrf.mxu0
  %v7127 = vadd.f32 %v7079, %v7126
  %7128 = vmatmul.bf16.gmra.mxu0 %v7102
  %v7129 = vpop.f32.mrf.mxu0
  %v7130 = vadd.f32 %v7082, %v7129
  %v7131 = vpop.f32.mrf.mxu0
  %v7132 = vadd.f32 %v7084, %v7131
  %7133 = vmatmul.bf16.gmra.mxu0 %v7105
  %v7134 = vpop.f32.mrf.mxu0
  %v7135 = vadd.f32 %v7087, %v7134
  %v7136 = vpop.f32.mrf.mxu0
  %v7137 = vadd.f32 %v7089, %v7136
  %7138 = vmatmul.bf16.gmra.mxu0 %v7108
  %v7139 = vpop.f32.mrf.mxu0
  %v7140 = vadd.f32 %v7092, %v7139
  %v7141 = vpop.f32.mrf.mxu0
  %7142 = vdwg.mxu0
  %7143 = vrot.lane.b32.xlu0 %v6484, 112
  %v7144 = vpop.permute.xlu0 %7143
  %7145 = vrot.lane.b32.xlu0 %v6485, 112
  %v7146 = vpop.permute.xlu0 %7145
  %7147 = vrot.lane.b32.xlu0 %v6486, 112
  %v7148 = vpop.permute.xlu0 %7147
  %7149 = vrot.lane.b32.xlu0 %v6487, 112
  %v7150 = vpop.permute.xlu0 %7149
  %7151 = vrot.lane.b32.xlu0 %v6488, 112
  %v7152 = vpop.permute.xlu0 %7151
  %7153 = vrot.lane.b32.xlu0 %v6484, 80
  %v7154 = vpop.permute.xlu0 %7153
  %7155 = vrot.lane.b32.xlu0 %v6485, 80
  %v7156 = vpop.permute.xlu0 %7155
  %7157 = vrot.lane.b32.xlu0 %v6486, 80
  %v7158 = vpop.permute.xlu0 %7157
  %7159 = vrot.lane.b32.xlu0 %v6487, 80
  %v7160 = vpop.permute.xlu0 %7159
  %7161 = vrot.lane.b32.xlu0 %v6488, 80
  %v7162 = vpop.permute.xlu0 %7161
  %v7164 = vsel %vm870, %v7144, 0
  %v7167 = vsel %vm870, %v7146, 0
  %v7170 = vsel %vm870, %v7148, 0
  %v7173 = vsel %vm870, %v7150, 0
  %v7176 = vsel %vm870, %v7152, 0
  %v7179 = vsel %vm870, %v7154, 0
  %v7182 = vsel %vm870, %v7156, 0
  %v7185 = vsel %vm870, %v7158, 0
  %v7188 = vsel %vm870, %v7160, 0
  %v7191 = vsel %vm870, %v7162, 0
  %7193 = vmatpush.bf16.xpose.msra.mxu0 0
  %7194 = vmatpush.bf16.xpose.msra.mxu0 0
  %7195 = vmatpush.bf16.xpose.msra.mxu0 0
  %7196 = vmatpush.bf16.xpose.msra.mxu0 %v7191
  %7197 = vmatpush.bf16.xpose.msra.mxu0 %v7188
  %7198 = vmatpush.bf16.xpose.msra.mxu0 %v7185
  %7199 = vmatpush.bf16.xpose.msra.mxu0 %v7182
  %7200 = vmatpush.bf16.xpose.msra.mxu0 %v7179
  %7201 = vmatmul.bf16.gmra.mxu0 %v7164
  %v7202 = vpop.f32.mrf.mxu0
  %v7203 = vadd.f32 %v836, %v7202
  %v7204 = vpop.f32.mrf.mxu0
  %v7205 = vadd.f32 %v836, %v7204
  %7206 = vmatmul.bf16.gmra.mxu0 %v7167
  %v7207 = vpop.f32.mrf.mxu0
  %v7208 = vadd.f32 %v836, %v7207
  %v7209 = vpop.f32.mrf.mxu0
  %v7210 = vadd.f32 %v836, %v7209
  %7211 = vmatmul.bf16.gmra.mxu0 %v7170
  %v7212 = vpop.f32.mrf.mxu0
  %v7213 = vadd.f32 %v836, %v7212
  %v7214 = vpop.f32.mrf.mxu0
  %v7215 = vadd.f32 %v836, %v7214
  %7216 = vmatmul.bf16.gmra.mxu0 %v7173
  %v7217 = vpop.f32.mrf.mxu0
  %v7218 = vadd.f32 %v836, %v7217
  %v7219 = vpop.f32.mrf.mxu0
  %v7220 = vadd.f32 %v836, %v7219
  %7221 = vmatmul.bf16.gmra.mxu0 %v7176
  %v7222 = vpop.f32.mrf.mxu0
  %v7223 = vadd.f32 %v836, %v7222
  %v7224 = vpop.f32.mrf.mxu0
  %7225 = vdwg.mxu0
  %v7226 = vsel %vm934, %v7203, -inf
  %7227 = vmax.xlane.f32.xlu0 %v7226
  %v7228 = vpop.xlane.xlu0 %7227
  %v7229 = vsel %vm934, %v7205, -inf
  %7230 = vmax.xlane.f32.xlu0 %v7229
  %v7231 = vpop.xlane.xlu0 %7230
  %v7232 = vsel %vm934, %v7208, -inf
  %7233 = vmax.xlane.f32.xlu0 %v7232
  %v7234 = vpop.xlane.xlu0 %7233
  %v7235 = vsel %vm934, %v7210, -inf
  %7236 = vmax.xlane.f32.xlu0 %v7235
  %v7237 = vpop.xlane.xlu0 %7236
  %v7238 = vsel %vm934, %v7213, -inf
  %7239 = vmax.xlane.f32.xlu0 %v7238
  %v7240 = vpop.xlane.xlu0 %7239
  %v7241 = vsel %vm934, %v7215, -inf
  %7242 = vmax.xlane.f32.xlu0 %v7241
  %v7243 = vpop.xlane.xlu0 %7242
  %v7244 = vsel %vm934, %v7218, -inf
  %7245 = vmax.xlane.f32.xlu0 %v7244
  %v7246 = vpop.xlane.xlu0 %7245
  %v7247 = vsel %vm934, %v7220, -inf
  %7248 = vmax.xlane.f32.xlu0 %v7247
  %v7249 = vpop.xlane.xlu0 %7248
  %v7250 = vsel %vm934, %v7223, -inf
  %7251 = vmax.xlane.f32.xlu0 %v7250
  %v7252 = vpop.xlane.xlu0 %7251
  %v7253 = vsub.f32 %v7203, %v7228
  %v7254 = vsub.f32 %v7205, %v7231
  %v7255 = vsub.f32 %v7208, %v7234
  %v7256 = vsub.f32 %v7210, %v7237
  %v7257 = vsub.f32 %v7213, %v7240
  %v7258 = vsub.f32 %v7215, %v7243
  %v7259 = vsub.f32 %v7218, %v7246
  %v7260 = vsub.f32 %v7220, %v7249
  %v7261 = vsub.f32 %v7223, %v7252
  %v7262 = vmul.f32 %v7253, 1.442695
  %v7263 = vpow.pop %v7262
  %v7264 = vmul.f32 %v7254, 1.442695
  %v7265 = vpow.pop %v7264
  %v7266 = vmul.f32 %v7255, 1.442695
  %v7267 = vpow.pop %v7266
  %v7268 = vmul.f32 %v7256, 1.442695
  %v7269 = vpow.pop %v7268
  %v7270 = vmul.f32 %v7257, 1.442695
  %v7271 = vpow.pop %v7270
  %v7272 = vmul.f32 %v7258, 1.442695
  %v7273 = vpow.pop %v7272
  %v7274 = vmul.f32 %v7259, 1.442695
  %v7275 = vpow.pop %v7274
  %v7276 = vmul.f32 %v7260, 1.442695
  %v7277 = vpow.pop %v7276
  %v7278 = vmul.f32 %v7261, 1.442695
  %v7279 = vpow.pop %v7278
  %v7280 = vpack.c.bf16 %v7265, %v7263
  %v7281 = vpack.c.bf16 %v7269, %v7267
  %v7282 = vpack.c.bf16 %v7273, %v7271
  %v7283 = vpack.c.bf16 %v7277, %v7275
  %v7284 = vpack.c.bf16 %v7279, %v7279
  %7285 = vrot.lane.b32.xlu0 %v6484, 48
  %v7286 = vpop.permute.xlu0 %7285
  %7287 = vrot.lane.b32.xlu0 %v6485, 48
  %v7288 = vpop.permute.xlu0 %7287
  %7289 = vrot.lane.b32.xlu0 %v6486, 48
  %v7290 = vpop.permute.xlu0 %7289
  %7291 = vrot.lane.b32.xlu0 %v6487, 48
  %v7292 = vpop.permute.xlu0 %7291
  %7293 = vrot.lane.b32.xlu0 %v6488, 48
  %v7294 = vpop.permute.xlu0 %7293
  %v7296 = vsel %vm870, %v7286, 1065369472
  %v7299 = vsel %vm870, %v7288, 1065369472
  %v7302 = vsel %vm870, %v7290, 1065369472
  %v7305 = vsel %vm870, %v7292, 1065369472
  %v7308 = vsel %vm870, %v7294, 1065369472
  %v7310 = vsel %vm934, %v7280, 0
  %v7313 = vsel %vm934, %v7281, 0
  %v7316 = vsel %vm934, %v7282, 0
  %v7319 = vsel %vm934, %v7283, 0
  %v7322 = vsel %vm934, %v7284, 0
  %v7324 = vsel %vm1034, %v7308, 0
  %7326 = vmatpush.bf16.msra.mxu0 0
  %7327 = vmatpush.bf16.msra.mxu0 0
  %7328 = vmatpush.bf16.msra.mxu0 0
  %7329 = vmatpush.bf16.msra.mxu0 %v7324
  %7330 = vmatpush.bf16.msra.mxu0 %v7305
  %7331 = vmatpush.bf16.msra.mxu0 %v7302
  %7332 = vmatpush.bf16.msra.mxu0 %v7299
  %7333 = vmatpush.bf16.msra.mxu0 %v7296
  %7334 = vmatmul.bf16.gmra.mxu0 %v7310
  %v7335 = vpop.f32.mrf.mxu0
  %v7336 = vadd.f32 0.0, %v7335
  %v7337 = vpop.f32.mrf.mxu0
  %v7338 = vadd.f32 0.0, %v7337
  %7339 = vmatmul.bf16.gmra.mxu0 %v7313
  %v7340 = vpop.f32.mrf.mxu0
  %v7341 = vadd.f32 0.0, %v7340
  %v7342 = vpop.f32.mrf.mxu0
  %v7343 = vadd.f32 0.0, %v7342
  %7344 = vmatmul.bf16.gmra.mxu0 %v7316
  %v7345 = vpop.f32.mrf.mxu0
  %v7346 = vadd.f32 0.0, %v7345
  %v7347 = vpop.f32.mrf.mxu0
  %v7348 = vadd.f32 0.0, %v7347
  %7349 = vmatmul.bf16.gmra.mxu0 %v7319
  %v7350 = vpop.f32.mrf.mxu0
  %v7351 = vadd.f32 0.0, %v7350
  %v7352 = vpop.f32.mrf.mxu0
  %v7353 = vadd.f32 0.0, %v7352
  %7354 = vmatmul.bf16.gmra.mxu0 %v7322
  %v7355 = vpop.f32.mrf.mxu0
  %v7356 = vadd.f32 0.0, %v7355
  %v7357 = vpop.f32.mrf.mxu0
  %7358 = vdwg.mxu0
  %v7359 = vrcp.pop %v7336
  %v7360 = vrcp.pop %v7338
  %v7361 = vrcp.pop %v7341
  %v7362 = vrcp.pop %v7343
  %v7363 = vrcp.pop %v7346
  %v7364 = vrcp.pop %v7348
  %v7365 = vrcp.pop %v7351
  %v7366 = vrcp.pop %v7353
  %v7367 = vrcp.pop %v7356
  %7369 = vset.pattern.permute.xlu0 8
  %7370 = vperm.xlu0 %7369, %v7359
  %v7371 = vpop.permute.xlu0 %7370
  %7374 = vset.pattern.permute.xlu0 8
  %7375 = vperm.xlu0 %7374, %v7360
  %v7376 = vpop.permute.xlu0 %7375
  %7379 = vset.pattern.permute.xlu0 8
  %7380 = vperm.xlu0 %7379, %v7361
  %v7381 = vpop.permute.xlu0 %7380
  %7384 = vset.pattern.permute.xlu0 8
  %7385 = vperm.xlu0 %7384, %v7362
  %v7386 = vpop.permute.xlu0 %7385
  %7389 = vset.pattern.permute.xlu0 8
  %7390 = vperm.xlu0 %7389, %v7363
  %v7391 = vpop.permute.xlu0 %7390
  %7394 = vset.pattern.permute.xlu0 8
  %7395 = vperm.xlu0 %7394, %v7364
  %v7396 = vpop.permute.xlu0 %7395
  %7399 = vset.pattern.permute.xlu0 8
  %7400 = vperm.xlu0 %7399, %v7365
  %v7401 = vpop.permute.xlu0 %7400
  %7404 = vset.pattern.permute.xlu0 8
  %7405 = vperm.xlu0 %7404, %v7366
  %v7406 = vpop.permute.xlu0 %7405
  %7409 = vset.pattern.permute.xlu0 8
  %7410 = vperm.xlu0 %7409, %v7367
  %v7411 = vpop.permute.xlu0 %7410
  %v7413 = vmul.f32 %v7336, %v7371
  %v7414 = vmul.f32 %v7338, %v7376
  %v7415 = vmul.f32 %v7341, %v7381
  %v7416 = vmul.f32 %v7343, %v7386
  %v7417 = vmul.f32 %v7346, %v7391
  %v7418 = vmul.f32 %v7348, %v7396
  %v7419 = vmul.f32 %v7351, %v7401
  %v7420 = vmul.f32 %v7353, %v7406
  %v7421 = vmul.f32 %v7356, %v7411
  %v7422 = vpack.c.bf16 %v7414, %v7413
  %v7423 = vpack.c.bf16 %v7416, %v7415
  %v7424 = vpack.c.bf16 %v7418, %v7417
  %v7425 = vpack.c.bf16 %v7420, %v7419
  %v7426 = vpack.c.bf16 %v7421, %v7421
  %v7428 = vsel %vm870, %v7422, 0
  %v7431 = vsel %vm870, %v7423, 0
  %v7434 = vsel %vm870, %v7424, 0
  %v7437 = vsel %vm870, %v7425, 0
  %v7440 = vsel %vm870, %v7426, 0
  %7442 = vmatpush.bf16.msra.mxu0 0
  %7443 = vmatpush.bf16.msra.mxu0 0
  %7444 = vmatpush.bf16.msra.mxu0 0
  %7445 = vmatpush.bf16.msra.mxu0 0
  %7446 = vmatpush.bf16.msra.mxu0 0
  %7447 = vmatpush.bf16.msra.mxu0 0
  %7448 = vmatpush.bf16.msra.mxu0 0
  %7449 = vmatpush.bf16.msra.mxu0 %v6078
  %7450 = vmatmul.bf16.gmra.mxu0 %v7428
  %v7451 = vpop.f32.mrf.mxu0
  %v7452 = vadd.f32 0.0, %v7451
  %v7453 = vpop.f32.mrf.mxu0
  %v7454 = vadd.f32 0.0, %v7453
  %7455 = vmatmul.bf16.gmra.mxu0 %v7431
  %v7456 = vpop.f32.mrf.mxu0
  %v7457 = vadd.f32 0.0, %v7456
  %v7458 = vpop.f32.mrf.mxu0
  %v7459 = vadd.f32 0.0, %v7458
  %7460 = vmatmul.bf16.gmra.mxu0 %v7434
  %v7461 = vpop.f32.mrf.mxu0
  %v7462 = vadd.f32 0.0, %v7461
  %v7463 = vpop.f32.mrf.mxu0
  %v7464 = vadd.f32 0.0, %v7463
  %7465 = vmatmul.bf16.gmra.mxu0 %v7437
  %v7466 = vpop.f32.mrf.mxu0
  %v7467 = vadd.f32 0.0, %v7466
  %v7468 = vpop.f32.mrf.mxu0
  %v7469 = vadd.f32 0.0, %v7468
  %7470 = vmatmul.bf16.gmra.mxu0 %v7440
  %v7471 = vpop.f32.mrf.mxu0
  %v7472 = vadd.f32 0.0, %v7471
  %v7473 = vpop.f32.mrf.mxu0
  %7474 = vdwg.mxu0
  %v7475 = vadd.f32 %v7120, %v7452
  %v7476 = vadd.f32 %v7122, %v7454
  %v7477 = vadd.f32 %v7125, %v7457
  %v7478 = vadd.f32 %v7127, %v7459
  %v7479 = vadd.f32 %v7130, %v7462
  %v7480 = vadd.f32 %v7132, %v7464
  %v7481 = vadd.f32 %v7135, %v7467
  %v7482 = vadd.f32 %v7137, %v7469
  %v7483 = vadd.f32 %v7140, %v7472
  %7484 = vrot.lane.b32.xlu0 %v6484, 104
  %v7485 = vpop.permute.xlu0 %7484
  %7486 = vrot.lane.b32.xlu0 %v6485, 104
  %v7487 = vpop.permute.xlu0 %7486
  %7488 = vrot.lane.b32.xlu0 %v6486, 104
  %v7489 = vpop.permute.xlu0 %7488
  %7490 = vrot.lane.b32.xlu0 %v6487, 104
  %v7491 = vpop.permute.xlu0 %7490
  %7492 = vrot.lane.b32.xlu0 %v6488, 104
  %v7493 = vpop.permute.xlu0 %7492
  %7494 = vrot.lane.b32.xlu0 %v6484, 72
  %v7495 = vpop.permute.xlu0 %7494
  %7496 = vrot.lane.b32.xlu0 %v6485, 72
  %v7497 = vpop.permute.xlu0 %7496
  %7498 = vrot.lane.b32.xlu0 %v6486, 72
  %v7499 = vpop.permute.xlu0 %7498
  %7500 = vrot.lane.b32.xlu0 %v6487, 72
  %v7501 = vpop.permute.xlu0 %7500
  %7502 = vrot.lane.b32.xlu0 %v6488, 72
  %v7503 = vpop.permute.xlu0 %7502
  %v7505 = vsel %vm870, %v7485, 0
  %v7508 = vsel %vm870, %v7487, 0
  %v7511 = vsel %vm870, %v7489, 0
  %v7514 = vsel %vm870, %v7491, 0
  %v7517 = vsel %vm870, %v7493, 0
  %v7520 = vsel %vm870, %v7495, 0
  %v7523 = vsel %vm870, %v7497, 0
  %v7526 = vsel %vm870, %v7499, 0
  %v7529 = vsel %vm870, %v7501, 0
  %v7532 = vsel %vm870, %v7503, 0
  %7534 = vmatpush.bf16.xpose.msra.mxu0 0
  %7535 = vmatpush.bf16.xpose.msra.mxu0 0
  %7536 = vmatpush.bf16.xpose.msra.mxu0 0
  %7537 = vmatpush.bf16.xpose.msra.mxu0 %v7532
  %7538 = vmatpush.bf16.xpose.msra.mxu0 %v7529
  %7539 = vmatpush.bf16.xpose.msra.mxu0 %v7526
  %7540 = vmatpush.bf16.xpose.msra.mxu0 %v7523
  %7541 = vmatpush.bf16.xpose.msra.mxu0 %v7520
  %7542 = vmatmul.bf16.gmra.mxu0 %v7505
  %v7543 = vpop.f32.mrf.mxu0
  %v7544 = vadd.f32 %v836, %v7543
  %v7545 = vpop.f32.mrf.mxu0
  %v7546 = vadd.f32 %v836, %v7545
  %7547 = vmatmul.bf16.gmra.mxu0 %v7508
  %v7548 = vpop.f32.mrf.mxu0
  %v7549 = vadd.f32 %v836, %v7548
  %v7550 = vpop.f32.mrf.mxu0
  %v7551 = vadd.f32 %v836, %v7550
  %7552 = vmatmul.bf16.gmra.mxu0 %v7511
  %v7553 = vpop.f32.mrf.mxu0
  %v7554 = vadd.f32 %v836, %v7553
  %v7555 = vpop.f32.mrf.mxu0
  %v7556 = vadd.f32 %v836, %v7555
  %7557 = vmatmul.bf16.gmra.mxu0 %v7514
  %v7558 = vpop.f32.mrf.mxu0
  %v7559 = vadd.f32 %v836, %v7558
  %v7560 = vpop.f32.mrf.mxu0
  %v7561 = vadd.f32 %v836, %v7560
  %7562 = vmatmul.bf16.gmra.mxu0 %v7517
  %v7563 = vpop.f32.mrf.mxu0
  %v7564 = vadd.f32 %v836, %v7563
  %v7565 = vpop.f32.mrf.mxu0
  %7566 = vdwg.mxu0
  %v7567 = vsel %vm934, %v7544, -inf
  %7568 = vmax.xlane.f32.xlu0 %v7567
  %v7569 = vpop.xlane.xlu0 %7568
  %v7570 = vsel %vm934, %v7546, -inf
  %7571 = vmax.xlane.f32.xlu0 %v7570
  %v7572 = vpop.xlane.xlu0 %7571
  %v7573 = vsel %vm934, %v7549, -inf
  %7574 = vmax.xlane.f32.xlu0 %v7573
  %v7575 = vpop.xlane.xlu0 %7574
  %v7576 = vsel %vm934, %v7551, -inf
  %7577 = vmax.xlane.f32.xlu0 %v7576
  %v7578 = vpop.xlane.xlu0 %7577
  %v7579 = vsel %vm934, %v7554, -inf
  %7580 = vmax.xlane.f32.xlu0 %v7579
  %v7581 = vpop.xlane.xlu0 %7580
  %v7582 = vsel %vm934, %v7556, -inf
  %7583 = vmax.xlane.f32.xlu0 %v7582
  %v7584 = vpop.xlane.xlu0 %7583
  %v7585 = vsel %vm934, %v7559, -inf
  %7586 = vmax.xlane.f32.xlu0 %v7585
  %v7587 = vpop.xlane.xlu0 %7586
  %v7588 = vsel %vm934, %v7561, -inf
  %7589 = vmax.xlane.f32.xlu0 %v7588
  %v7590 = vpop.xlane.xlu0 %7589
  %v7591 = vsel %vm934, %v7564, -inf
  %7592 = vmax.xlane.f32.xlu0 %v7591
  %v7593 = vpop.xlane.xlu0 %7592
  %v7594 = vsub.f32 %v7544, %v7569
  %v7595 = vsub.f32 %v7546, %v7572
  %v7596 = vsub.f32 %v7549, %v7575
  %v7597 = vsub.f32 %v7551, %v7578
  %v7598 = vsub.f32 %v7554, %v7581
  %v7599 = vsub.f32 %v7556, %v7584
  %v7600 = vsub.f32 %v7559, %v7587
  %v7601 = vsub.f32 %v7561, %v7590
  %v7602 = vsub.f32 %v7564, %v7593
  %v7603 = vmul.f32 %v7594, 1.442695
  %v7604 = vpow.pop %v7603
  %v7605 = vmul.f32 %v7595, 1.442695
  %v7606 = vpow.pop %v7605
  %v7607 = vmul.f32 %v7596, 1.442695
  %v7608 = vpow.pop %v7607
  %v7609 = vmul.f32 %v7597, 1.442695
  %v7610 = vpow.pop %v7609
  %v7611 = vmul.f32 %v7598, 1.442695
  %v7612 = vpow.pop %v7611
  %v7613 = vmul.f32 %v7599, 1.442695
  %v7614 = vpow.pop %v7613
  %v7615 = vmul.f32 %v7600, 1.442695
  %v7616 = vpow.pop %v7615
  %v7617 = vmul.f32 %v7601, 1.442695
  %v7618 = vpow.pop %v7617
  %v7619 = vmul.f32 %v7602, 1.442695
  %v7620 = vpow.pop %v7619
  %v7621 = vpack.c.bf16 %v7606, %v7604
  %v7622 = vpack.c.bf16 %v7610, %v7608
  %v7623 = vpack.c.bf16 %v7614, %v7612
  %v7624 = vpack.c.bf16 %v7618, %v7616
  %v7625 = vpack.c.bf16 %v7620, %v7620
  %7626 = vrot.lane.b32.xlu0 %v6484, 40
  %v7627 = vpop.permute.xlu0 %7626
  %7628 = vrot.lane.b32.xlu0 %v6485, 40
  %v7629 = vpop.permute.xlu0 %7628
  %7630 = vrot.lane.b32.xlu0 %v6486, 40
  %v7631 = vpop.permute.xlu0 %7630
  %7632 = vrot.lane.b32.xlu0 %v6487, 40
  %v7633 = vpop.permute.xlu0 %7632
  %7634 = vrot.lane.b32.xlu0 %v6488, 40
  %v7635 = vpop.permute.xlu0 %7634
  %v7637 = vsel %vm870, %v7627, 1065369472
  %v7640 = vsel %vm870, %v7629, 1065369472
  %v7643 = vsel %vm870, %v7631, 1065369472
  %v7646 = vsel %vm870, %v7633, 1065369472
  %v7649 = vsel %vm870, %v7635, 1065369472
  %v7651 = vsel %vm934, %v7621, 0
  %v7654 = vsel %vm934, %v7622, 0
  %v7657 = vsel %vm934, %v7623, 0
  %v7660 = vsel %vm934, %v7624, 0
  %v7663 = vsel %vm934, %v7625, 0
  %v7665 = vsel %vm1034, %v7649, 0
  %7667 = vmatpush.bf16.msra.mxu0 0
  %7668 = vmatpush.bf16.msra.mxu0 0
  %7669 = vmatpush.bf16.msra.mxu0 0
  %7670 = vmatpush.bf16.msra.mxu0 %v7665
  %7671 = vmatpush.bf16.msra.mxu0 %v7646
  %7672 = vmatpush.bf16.msra.mxu0 %v7643
  %7673 = vmatpush.bf16.msra.mxu0 %v7640
  %7674 = vmatpush.bf16.msra.mxu0 %v7637
  %7675 = vmatmul.bf16.gmra.mxu0 %v7651
  %v7676 = vpop.f32.mrf.mxu0
  %v7677 = vadd.f32 0.0, %v7676
  %v7678 = vpop.f32.mrf.mxu0
  %v7679 = vadd.f32 0.0, %v7678
  %7680 = vmatmul.bf16.gmra.mxu0 %v7654
  %v7681 = vpop.f32.mrf.mxu0
  %v7682 = vadd.f32 0.0, %v7681
  %v7683 = vpop.f32.mrf.mxu0
  %v7684 = vadd.f32 0.0, %v7683
  %7685 = vmatmul.bf16.gmra.mxu0 %v7657
  %v7686 = vpop.f32.mrf.mxu0
  %v7687 = vadd.f32 0.0, %v7686
  %v7688 = vpop.f32.mrf.mxu0
  %v7689 = vadd.f32 0.0, %v7688
  %7690 = vmatmul.bf16.gmra.mxu0 %v7660
  %v7691 = vpop.f32.mrf.mxu0
  %v7692 = vadd.f32 0.0, %v7691
  %v7693 = vpop.f32.mrf.mxu0
  %v7694 = vadd.f32 0.0, %v7693
  %7695 = vmatmul.bf16.gmra.mxu0 %v7663
  %v7696 = vpop.f32.mrf.mxu0
  %v7697 = vadd.f32 0.0, %v7696
  %v7698 = vpop.f32.mrf.mxu0
  %7699 = vdwg.mxu0
  %v7700 = vrcp.pop %v7677
  %v7701 = vrcp.pop %v7679
  %v7702 = vrcp.pop %v7682
  %v7703 = vrcp.pop %v7684
  %v7704 = vrcp.pop %v7687
  %v7705 = vrcp.pop %v7689
  %v7706 = vrcp.pop %v7692
  %v7707 = vrcp.pop %v7694
  %v7708 = vrcp.pop %v7697
  %7710 = vset.pattern.permute.xlu0 8
  %7711 = vperm.xlu0 %7710, %v7700
  %v7712 = vpop.permute.xlu0 %7711
  %7715 = vset.pattern.permute.xlu0 8
  %7716 = vperm.xlu0 %7715, %v7701
  %v7717 = vpop.permute.xlu0 %7716
  %7720 = vset.pattern.permute.xlu0 8
  %7721 = vperm.xlu0 %7720, %v7702
  %v7722 = vpop.permute.xlu0 %7721
  %7725 = vset.pattern.permute.xlu0 8
  %7726 = vperm.xlu0 %7725, %v7703
  %v7727 = vpop.permute.xlu0 %7726
  %7730 = vset.pattern.permute.xlu0 8
  %7731 = vperm.xlu0 %7730, %v7704
  %v7732 = vpop.permute.xlu0 %7731
  %7735 = vset.pattern.permute.xlu0 8
  %7736 = vperm.xlu0 %7735, %v7705
  %v7737 = vpop.permute.xlu0 %7736
  %7740 = vset.pattern.permute.xlu0 8
  %7741 = vperm.xlu0 %7740, %v7706
  %v7742 = vpop.permute.xlu0 %7741
  %7745 = vset.pattern.permute.xlu0 8
  %7746 = vperm.xlu0 %7745, %v7707
  %v7747 = vpop.permute.xlu0 %7746
  %7750 = vset.pattern.permute.xlu0 8
  %7751 = vperm.xlu0 %7750, %v7708
  %v7752 = vpop.permute.xlu0 %7751
  %v7754 = vmul.f32 %v7677, %v7712
  %v7755 = vmul.f32 %v7679, %v7717
  %v7756 = vmul.f32 %v7682, %v7722
  %v7757 = vmul.f32 %v7684, %v7727
  %v7758 = vmul.f32 %v7687, %v7732
  %v7759 = vmul.f32 %v7689, %v7737
  %v7760 = vmul.f32 %v7692, %v7742
  %v7761 = vmul.f32 %v7694, %v7747
  %v7762 = vmul.f32 %v7697, %v7752
  %v7763 = vpack.c.bf16 %v7755, %v7754
  %v7764 = vpack.c.bf16 %v7757, %v7756
  %v7765 = vpack.c.bf16 %v7759, %v7758
  %v7766 = vpack.c.bf16 %v7761, %v7760
  %v7767 = vpack.c.bf16 %v7762, %v7762
  %v7769 = vsel %vm870, %v7763, 0
  %v7772 = vsel %vm870, %v7764, 0
  %v7775 = vsel %vm870, %v7765, 0
  %v7778 = vsel %vm870, %v7766, 0
  %v7781 = vsel %vm870, %v7767, 0
  %7783 = vmatpush.bf16.msra.mxu0 0
  %7784 = vmatpush.bf16.msra.mxu0 0
  %7785 = vmatpush.bf16.msra.mxu0 0
  %7786 = vmatpush.bf16.msra.mxu0 0
  %7787 = vmatpush.bf16.msra.mxu0 0
  %7788 = vmatpush.bf16.msra.mxu0 0
  %7789 = vmatpush.bf16.msra.mxu0 0
  %7790 = vmatpush.bf16.msra.mxu0 %v6422
  %7791 = vmatmul.bf16.gmra.mxu0 %v7769
  %v7792 = vpop.f32.mrf.mxu0
  %v7793 = vadd.f32 0.0, %v7792
  %v7794 = vpop.f32.mrf.mxu0
  %v7795 = vadd.f32 0.0, %v7794
  %7796 = vmatmul.bf16.gmra.mxu0 %v7772
  %v7797 = vpop.f32.mrf.mxu0
  %v7798 = vadd.f32 0.0, %v7797
  %v7799 = vpop.f32.mrf.mxu0
  %v7800 = vadd.f32 0.0, %v7799
  %7801 = vmatmul.bf16.gmra.mxu0 %v7775
  %v7802 = vpop.f32.mrf.mxu0
  %v7803 = vadd.f32 0.0, %v7802
  %v7804 = vpop.f32.mrf.mxu0
  %v7805 = vadd.f32 0.0, %v7804
  %7806 = vmatmul.bf16.gmra.mxu0 %v7778
  %v7807 = vpop.f32.mrf.mxu0
  %v7808 = vadd.f32 0.0, %v7807
  %v7809 = vpop.f32.mrf.mxu0
  %v7810 = vadd.f32 0.0, %v7809
  %7811 = vmatmul.bf16.gmra.mxu0 %v7781
  %v7812 = vpop.f32.mrf.mxu0
  %v7813 = vadd.f32 0.0, %v7812
  %v7814 = vpop.f32.mrf.mxu0
  %7815 = vdwg.mxu0
  %v7816 = vadd.f32 %v7475, %v7793
  %v7817 = vadd.f32 %v7476, %v7795
  %v7818 = vadd.f32 %v7477, %v7798
  %v7819 = vadd.f32 %v7478, %v7800
  %v7820 = vadd.f32 %v7479, %v7803
  %v7821 = vadd.f32 %v7480, %v7805
  %v7822 = vadd.f32 %v7481, %v7808
  %v7823 = vadd.f32 %v7482, %v7810
  %v7824 = vadd.f32 %v7483, %v7813
  %v7825 = vadd.f32 %v4475, %v6457
  %v7826 = vadd.f32 %v4476, %v6458
  %v7827 = vadd.f32 %v4477, %v6459
  %v7828 = vadd.f32 %v4478, %v6460
  %v7829 = vadd.f32 %v4479, %v6461
  %v7830 = vadd.f32 %v4480, %v6462
  %v7831 = vadd.f32 %v4481, %v6463
  %v7832 = vadd.f32 %v4482, %v6464
  %v7833 = vadd.f32 %v4483, %v6465
  %v7834 = vadd.f32 %v4484, %v7816
  %v7835 = vadd.f32 %v4485, %v7817
  %v7836 = vadd.f32 %v4486, %v7818
  %v7837 = vadd.f32 %v4487, %v7819
  %v7838 = vadd.f32 %v4488, %v7820
  %v7839 = vadd.f32 %v4489, %v7821
  %v7840 = vadd.f32 %v4490, %v7822
  %v7841 = vadd.f32 %v4491, %v7823
  %v7842 = vadd.f32 %v4492, %v7824
  %v7843 = vperm.slane %v4504, 2
  %v7844 = vadd.f32 %v7825, %v7843
  %v7845 = vadd.f32 %v7826, %v7843
  %v7846 = vadd.f32 %v7827, %v7843
  %v7847 = vadd.f32 %v7828, %v7843
  %v7848 = vadd.f32 %v7829, %v7843
  %v7849 = vadd.f32 %v7830, %v7843
  %v7850 = vadd.f32 %v7831, %v7843
  %v7851 = vadd.f32 %v7832, %v7843
  %v7852 = vadd.f32 %v7833, %v7843
  %v7853 = vadd.f32 %v7834, %v7843
  %v7854 = vadd.f32 %v7835, %v7843
  %v7855 = vadd.f32 %v7836, %v7843
  %v7856 = vadd.f32 %v7837, %v7843
  %v7857 = vadd.f32 %v7838, %v7843
  %v7858 = vadd.f32 %v7839, %v7843
  %v7859 = vadd.f32 %v7840, %v7843
  %v7860 = vadd.f32 %v7841, %v7843
  %v7861 = vadd.f32 %v7842, %v7843
  %v7862 = vld [vmem:[%s3 + $0xa4] sm:$0x4]
  %v7863 = vunpack.c.l.bf16 %v7862
  %v7864 = vld [vmem:[%s3 + $0x74] sm:$0xf]
  %v7865 = vld [vmem:[%s3 + $0x78] sm:$0xf]
  %v7866 = vld [vmem:[%s3 + $0x7c] sm:$0xf]
  %v7867 = vld [vmem:[%s3 + $0x80] sm:$0xf]
  %v7868 = vld [vmem:[%s3 + $0x84] sm:$0xf]
  %v7869 = vld [vmem:[%s3 + $0x88] sm:$0xf]
  %v7870 = vld [vmem:[%s3 + $0x8c] sm:$0xf]
  %v7871 = vld [vmem:[%s3 + $0x90] sm:$0xf]
  %v7872 = vld [vmem:[%s3 + $0x94] sm:$0xf]
  %v7873 = vld [vmem:[%s3 + $0x98] sm:$0xf]
  %v7874 = vld [vmem:[%s3 + $0x9c] sm:$0xf]
  %v7875 = vld [vmem:[%s3 + $0xa0] sm:$0xf]
  %v7876 = vld [vmem:[%s3 + $0xa4] sm:$0x8]
  %v7877 = vunpack.c.l.bf16 %v7876
  %v7878 = vsel %vm238, %v7844, 0.0
  %7879 = vadd.xlane.f32.xlu0 %v7878
  %v7880 = vpop.xlane.xlu0 %7879
  %v7881 = vsel %vm238, %v7845, 0.0
  %7882 = vadd.xlane.f32.xlu0 %v7881
  %v7883 = vpop.xlane.xlu0 %7882
  %v7884 = vsel %vm238, %v7846, 0.0
  %7885 = vadd.xlane.f32.xlu0 %v7884
  %v7886 = vpop.xlane.xlu0 %7885
  %v7887 = vsel %vm238, %v7847, 0.0
  %7888 = vadd.xlane.f32.xlu0 %v7887
  %v7889 = vpop.xlane.xlu0 %7888
  %v7890 = vsel %vm238, %v7848, 0.0
  %7891 = vadd.xlane.f32.xlu0 %v7890
  %v7892 = vpop.xlane.xlu0 %7891
  %v7893 = vsel %vm238, %v7849, 0.0
  %7894 = vadd.xlane.f32.xlu0 %v7893
  %v7895 = vpop.xlane.xlu0 %7894
  %v7896 = vsel %vm238, %v7850, 0.0
  %7897 = vadd.xlane.f32.xlu0 %v7896
  %v7898 = vpop.xlane.xlu0 %7897
  %v7899 = vsel %vm238, %v7851, 0.0
  %7900 = vadd.xlane.f32.xlu0 %v7899
  %v7901 = vpop.xlane.xlu0 %7900
  %v7902 = vsel %vm238, %v7852, 0.0
  %7903 = vadd.xlane.f32.xlu0 %v7902
  %v7904 = vpop.xlane.xlu0 %7903
  %v7905 = vsel %vm238, %v7853, 0.0
  %7906 = vadd.xlane.f32.xlu0 %v7905
  %v7907 = vpop.xlane.xlu0 %7906
  %v7908 = vsel %vm238, %v7854, 0.0
  %7909 = vadd.xlane.f32.xlu0 %v7908
  %v7910 = vpop.xlane.xlu0 %7909
  %v7911 = vsel %vm238, %v7855, 0.0
  %7912 = vadd.xlane.f32.xlu0 %v7911
  %v7913 = vpop.xlane.xlu0 %7912
  %v7914 = vsel %vm238, %v7856, 0.0
  %7915 = vadd.xlane.f32.xlu0 %v7914
  %v7916 = vpop.xlane.xlu0 %7915
  %v7917 = vsel %vm238, %v7857, 0.0
  %7918 = vadd.xlane.f32.xlu0 %v7917
  %v7919 = vpop.xlane.xlu0 %7918
  %v7920 = vsel %vm238, %v7858, 0.0
  %7921 = vadd.xlane.f32.xlu0 %v7920
  %v7922 = vpop.xlane.xlu0 %7921
  %v7923 = vsel %vm238, %v7859, 0.0
  %7924 = vadd.xlane.f32.xlu0 %v7923
  %v7925 = vpop.xlane.xlu0 %7924
  %v7926 = vsel %vm238, %v7860, 0.0
  %7927 = vadd.xlane.f32.xlu0 %v7926
  %v7928 = vpop.xlane.xlu0 %7927
  %v7929 = vsel %vm238, %v7861, 0.0
  %7930 = vadd.xlane.f32.xlu0 %v7929
  %v7931 = vpop.xlane.xlu0 %7930
  %v7932 = vmul.f32 %v7880, %v299
  %v7933 = vmul.f32 %v7883, %v299
  %v7934 = vmul.f32 %v7886, %v299
  %v7935 = vmul.f32 %v7889, %v299
  %v7936 = vmul.f32 %v7892, %v299
  %v7937 = vmul.f32 %v7895, %v299
  %v7938 = vmul.f32 %v7898, %v299
  %v7939 = vmul.f32 %v7901, %v299
  %v7940 = vmul.f32 %v7904, %v299
  %v7941 = vmul.f32 %v7907, %v299
  %v7942 = vmul.f32 %v7910, %v299
  %v7943 = vmul.f32 %v7913, %v299
  %v7944 = vmul.f32 %v7916, %v299
  %v7945 = vmul.f32 %v7919, %v299
  %v7946 = vmul.f32 %v7922, %v299
  %v7947 = vmul.f32 %v7925, %v299
  %v7948 = vmul.f32 %v7928, %v299
  %v7949 = vmul.f32 %v7931, %v299
  %v7950 = vmul.f32 %v7844, %v7844
  %v7951 = vmul.f32 %v7845, %v7845
  %v7952 = vmul.f32 %v7846, %v7846
  %v7953 = vmul.f32 %v7847, %v7847
  %v7954 = vmul.f32 %v7848, %v7848
  %v7955 = vmul.f32 %v7849, %v7849
  %v7956 = vmul.f32 %v7850, %v7850
  %v7957 = vmul.f32 %v7851, %v7851
  %v7958 = vmul.f32 %v7852, %v7852
  %v7959 = vmul.f32 %v7853, %v7853
  %v7960 = vmul.f32 %v7854, %v7854
  %v7961 = vmul.f32 %v7855, %v7855
  %v7962 = vmul.f32 %v7856, %v7856
  %v7963 = vmul.f32 %v7857, %v7857
  %v7964 = vmul.f32 %v7858, %v7858
  %v7965 = vmul.f32 %v7859, %v7859
  %v7966 = vmul.f32 %v7860, %v7860
  %v7967 = vmul.f32 %v7861, %v7861
  %v7968 = vsel %vm238, %v7950, 0.0
  %7969 = vadd.xlane.f32.xlu0 %v7968
  %v7970 = vpop.xlane.xlu0 %7969
  %v7971 = vsel %vm238, %v7951, 0.0
  %7972 = vadd.xlane.f32.xlu0 %v7971
  %v7973 = vpop.xlane.xlu0 %7972
  %v7974 = vsel %vm238, %v7952, 0.0
  %7975 = vadd.xlane.f32.xlu0 %v7974
  %v7976 = vpop.xlane.xlu0 %7975
  %v7977 = vsel %vm238, %v7953, 0.0
  %7978 = vadd.xlane.f32.xlu0 %v7977
  %v7979 = vpop.xlane.xlu0 %7978
  %v7980 = vsel %vm238, %v7954, 0.0
  %7981 = vadd.xlane.f32.xlu0 %v7980
  %v7982 = vpop.xlane.xlu0 %7981
  %v7983 = vsel %vm238, %v7955, 0.0
  %7984 = vadd.xlane.f32.xlu0 %v7983
  %v7985 = vpop.xlane.xlu0 %7984
  %v7986 = vsel %vm238, %v7956, 0.0
  %7987 = vadd.xlane.f32.xlu0 %v7986
  %v7988 = vpop.xlane.xlu0 %7987
  %v7989 = vsel %vm238, %v7957, 0.0
  %7990 = vadd.xlane.f32.xlu0 %v7989
  %v7991 = vpop.xlane.xlu0 %7990
  %v7992 = vsel %vm238, %v7958, 0.0
  %7993 = vadd.xlane.f32.xlu0 %v7992
  %v7994 = vpop.xlane.xlu0 %7993
  %v7995 = vsel %vm238, %v7959, 0.0
  %7996 = vadd.xlane.f32.xlu0 %v7995
  %v7997 = vpop.xlane.xlu0 %7996
  %v7998 = vsel %vm238, %v7960, 0.0
  %7999 = vadd.xlane.f32.xlu0 %v7998
  %v8000 = vpop.xlane.xlu0 %7999
  %v8001 = vsel %vm238, %v7961, 0.0
  %8002 = vadd.xlane.f32.xlu0 %v8001
  %v8003 = vpop.xlane.xlu0 %8002
  %v8004 = vsel %vm238, %v7962, 0.0
  %8005 = vadd.xlane.f32.xlu0 %v8004
  %v8006 = vpop.xlane.xlu0 %8005
  %v8007 = vsel %vm238, %v7963, 0.0
  %8008 = vadd.xlane.f32.xlu0 %v8007
  %v8009 = vpop.xlane.xlu0 %8008
  %v8010 = vsel %vm238, %v7964, 0.0
  %8011 = vadd.xlane.f32.xlu0 %v8010
  %v8012 = vpop.xlane.xlu0 %8011
  %v8013 = vsel %vm238, %v7965, 0.0
  %8014 = vadd.xlane.f32.xlu0 %v8013
  %v8015 = vpop.xlane.xlu0 %8014
  %v8016 = vsel %vm238, %v7966, 0.0
  %8017 = vadd.xlane.f32.xlu0 %v8016
  %v8018 = vpop.xlane.xlu0 %8017
  %v8019 = vsel %vm238, %v7967, 0.0
  %8020 = vadd.xlane.f32.xlu0 %v8019
  %v8021 = vpop.xlane.xlu0 %8020
  %v8022 = vmul.f32 %v7970, %v299
  %v8023 = vmul.f32 %v7973, %v299
  %v8024 = vmul.f32 %v7976, %v299
  %v8025 = vmul.f32 %v7979, %v299
  %v8026 = vmul.f32 %v7982, %v299
  %v8027 = vmul.f32 %v7985, %v299
  %v8028 = vmul.f32 %v7988, %v299
  %v8029 = vmul.f32 %v7991, %v299
  %v8030 = vmul.f32 %v7994, %v299
  %v8031 = vmul.f32 %v7997, %v299
  %v8032 = vmul.f32 %v8000, %v299
  %v8033 = vmul.f32 %v8003, %v299
  %v8034 = vmul.f32 %v8006, %v299
  %v8035 = vmul.f32 %v8009, %v299
  %v8036 = vmul.f32 %v8012, %v299
  %v8037 = vmul.f32 %v8015, %v299
  %v8038 = vmul.f32 %v8018, %v299
  %v8039 = vmul.f32 %v8021, %v299
  %v8040 = vmul.f32 %v7932, %v7932
  %v8041 = vmul.f32 %v7933, %v7933
  %v8042 = vmul.f32 %v7934, %v7934
  %v8043 = vmul.f32 %v7935, %v7935
  %v8044 = vmul.f32 %v7936, %v7936
  %v8045 = vmul.f32 %v7937, %v7937
  %v8046 = vmul.f32 %v7938, %v7938
  %v8047 = vmul.f32 %v7939, %v7939
  %v8048 = vmul.f32 %v7940, %v7940
  %v8049 = vmul.f32 %v7941, %v7941
  %v8050 = vmul.f32 %v7942, %v7942
  %v8051 = vmul.f32 %v7943, %v7943
  %v8052 = vmul.f32 %v7944, %v7944
  %v8053 = vmul.f32 %v7945, %v7945
  %v8054 = vmul.f32 %v7946, %v7946
  %v8055 = vmul.f32 %v7947, %v7947
  %v8056 = vmul.f32 %v7948, %v7948
  %v8057 = vmul.f32 %v7949, %v7949
  %v8058 = vsub.f32 %v8022, %v8040
  %v8059 = vsub.f32 %v8023, %v8041
  %v8060 = vsub.f32 %v8024, %v8042
  %v8061 = vsub.f32 %v8025, %v8043
  %v8062 = vsub.f32 %v8026, %v8044
  %v8063 = vsub.f32 %v8027, %v8045
  %v8064 = vsub.f32 %v8028, %v8046
  %v8065 = vsub.f32 %v8029, %v8047
  %v8066 = vsub.f32 %v8030, %v8048
  %v8067 = vsub.f32 %v8031, %v8049
  %v8068 = vsub.f32 %v8032, %v8050
  %v8069 = vsub.f32 %v8033, %v8051
  %v8070 = vsub.f32 %v8034, %v8052
  %v8071 = vsub.f32 %v8035, %v8053
  %v8072 = vsub.f32 %v8036, %v8054
  %v8073 = vsub.f32 %v8037, %v8055
  %v8074 = vsub.f32 %v8038, %v8056
  %v8075 = vsub.f32 %v8039, %v8057
  %v8076 = vsub.f32 %v7844, %v7932
  %v8077 = vsub.f32 %v7845, %v7933
  %v8078 = vsub.f32 %v7846, %v7934
  %v8079 = vsub.f32 %v7847, %v7935
  %v8080 = vsub.f32 %v7848, %v7936
  %v8081 = vsub.f32 %v7849, %v7937
  %v8082 = vsub.f32 %v7850, %v7938
  %v8083 = vsub.f32 %v7851, %v7939
  %v8084 = vsub.f32 %v7852, %v7940
  %v8085 = vsub.f32 %v7853, %v7941
  %v8086 = vsub.f32 %v7854, %v7942
  %v8087 = vsub.f32 %v7855, %v7943
  %v8088 = vsub.f32 %v7856, %v7944
  %v8089 = vsub.f32 %v7857, %v7945
  %v8090 = vsub.f32 %v7858, %v7946
  %v8091 = vsub.f32 %v7859, %v7947
  %v8092 = vsub.f32 %v7860, %v7948
  %v8093 = vsub.f32 %v7861, %v7949
  %v8094 = vadd.f32 %v8058, 1e-05
  %v8095 = vadd.f32 %v8059, 1e-05
  %v8096 = vadd.f32 %v8060, 1e-05
  %v8097 = vadd.f32 %v8061, 1e-05
  %v8098 = vadd.f32 %v8062, 1e-05
  %v8099 = vadd.f32 %v8063, 1e-05
  %v8100 = vadd.f32 %v8064, 1e-05
  %v8101 = vadd.f32 %v8065, 1e-05
  %v8102 = vadd.f32 %v8066, 1e-05
  %v8103 = vadd.f32 %v8067, 1e-05
  %v8104 = vadd.f32 %v8068, 1e-05
  %v8105 = vadd.f32 %v8069, 1e-05
  %v8106 = vadd.f32 %v8070, 1e-05
  %v8107 = vadd.f32 %v8071, 1e-05
  %v8108 = vadd.f32 %v8072, 1e-05
  %v8109 = vadd.f32 %v8073, 1e-05
  %v8110 = vadd.f32 %v8074, 1e-05
  %v8111 = vadd.f32 %v8075, 1e-05
  %v8112 = vrsqrt.pop %v8094
  %v8113 = vmul.f32 %v8112, %v8094
  %v8114 = vmul.f32 %v8113, %v8112
  %v8115 = vmul.f32 0.5, %v8114
  %v8116 = vsub.f32 1.5, %v8115
  %v8117 = vmul.f32 %v8112, %v8116
  %vm8118 = vweird.f32 %v8094
  %vm8119 = vweird.f32 %v8112
  %vm8120 = vmor %vm8118, %vm8119
  %v8121 = vsel %vm8120, %v8112, %v8117
  %v8122 = vrsqrt.pop %v8095
  %v8123 = vmul.f32 %v8122, %v8095
  %v8124 = vmul.f32 %v8123, %v8122
  %v8125 = vmul.f32 0.5, %v8124
  %v8126 = vsub.f32 1.5, %v8125
  %v8127 = vmul.f32 %v8122, %v8126
  %vm8128 = vweird.f32 %v8095
  %vm8129 = vweird.f32 %v8122
  %vm8130 = vmor %vm8128, %vm8129
  %v8131 = vsel %vm8130, %v8122, %v8127
  %v8132 = vrsqrt.pop %v8096
  %v8133 = vmul.f32 %v8132, %v8096
  %v8134 = vmul.f32 %v8133, %v8132
  %v8135 = vmul.f32 0.5, %v8134
  %v8136 = vsub.f32 1.5, %v8135
  %v8137 = vmul.f32 %v8132, %v8136
  %vm8138 = vweird.f32 %v8096
  %vm8139 = vweird.f32 %v8132
  %vm8140 = vmor %vm8138, %vm8139
  %v8141 = vsel %vm8140, %v8132, %v8137
  %v8142 = vrsqrt.pop %v8097
  %v8143 = vmul.f32 %v8142, %v8097
  %v8144 = vmul.f32 %v8143, %v8142
  %v8145 = vmul.f32 0.5, %v8144
  %v8146 = vsub.f32 1.5, %v8145
  %v8147 = vmul.f32 %v8142, %v8146
  %vm8148 = vweird.f32 %v8097
  %vm8149 = vweird.f32 %v8142
  %vm8150 = vmor %vm8148, %vm8149
  %v8151 = vsel %vm8150, %v8142, %v8147
  %v8152 = vrsqrt.pop %v8098
  %v8153 = vmul.f32 %v8152, %v8098
  %v8154 = vmul.f32 %v8153, %v8152
  %v8155 = vmul.f32 0.5, %v8154
  %v8156 = vsub.f32 1.5, %v8155
  %v8157 = vmul.f32 %v8152, %v8156
  %vm8158 = vweird.f32 %v8098
  %vm8159 = vweird.f32 %v8152
  %vm8160 = vmor %vm8158, %vm8159
  %v8161 = vsel %vm8160, %v8152, %v8157
  %v8162 = vrsqrt.pop %v8099
  %v8163 = vmul.f32 %v8162, %v8099
  %v8164 = vmul.f32 %v8163, %v8162
  %v8165 = vmul.f32 0.5, %v8164
  %v8166 = vsub.f32 1.5, %v8165
  %v8167 = vmul.f32 %v8162, %v8166
  %vm8168 = vweird.f32 %v8099
  %vm8169 = vweird.f32 %v8162
  %vm8170 = vmor %vm8168, %vm8169
  %v8171 = vsel %vm8170, %v8162, %v8167
  %v8172 = vrsqrt.pop %v8100
  %v8173 = vmul.f32 %v8172, %v8100
  %v8174 = vmul.f32 %v8173, %v8172
  %v8175 = vmul.f32 0.5, %v8174
  %v8176 = vsub.f32 1.5, %v8175
  %v8177 = vmul.f32 %v8172, %v8176
  %vm8178 = vweird.f32 %v8100
  %vm8179 = vweird.f32 %v8172
  %vm8180 = vmor %vm8178, %vm8179
  %v8181 = vsel %vm8180, %v8172, %v8177
  %v8182 = vrsqrt.pop %v8101
  %v8183 = vmul.f32 %v8182, %v8101
  %v8184 = vmul.f32 %v8183, %v8182
  %v8185 = vmul.f32 0.5, %v8184
  %v8186 = vsub.f32 1.5, %v8185
  %v8187 = vmul.f32 %v8182, %v8186
  %vm8188 = vweird.f32 %v8101
  %vm8189 = vweird.f32 %v8182
  %vm8190 = vmor %vm8188, %vm8189
  %v8191 = vsel %vm8190, %v8182, %v8187
  %v8192 = vrsqrt.pop %v8102
  %v8193 = vmul.f32 %v8192, %v8102
  %v8194 = vmul.f32 %v8193, %v8192
  %v8195 = vmul.f32 0.5, %v8194
  %v8196 = vsub.f32 1.5, %v8195
  %v8197 = vmul.f32 %v8192, %v8196
  %vm8198 = vweird.f32 %v8102
  %vm8199 = vweird.f32 %v8192
  %vm8200 = vmor %vm8198, %vm8199
  %v8201 = vsel %vm8200, %v8192, %v8197
  %v8202 = vrsqrt.pop %v8103
  %v8203 = vmul.f32 %v8202, %v8103
  %v8204 = vmul.f32 %v8203, %v8202
  %v8205 = vmul.f32 0.5, %v8204
  %v8206 = vsub.f32 1.5, %v8205
  %v8207 = vmul.f32 %v8202, %v8206
  %vm8208 = vweird.f32 %v8103
  %vm8209 = vweird.f32 %v8202
  %vm8210 = vmor %vm8208, %vm8209
  %v8211 = vsel %vm8210, %v8202, %v8207
  %v8212 = vrsqrt.pop %v8104
  %v8213 = vmul.f32 %v8212, %v8104
  %v8214 = vmul.f32 %v8213, %v8212
  %v8215 = vmul.f32 0.5, %v8214
  %v8216 = vsub.f32 1.5, %v8215
  %v8217 = vmul.f32 %v8212, %v8216
  %vm8218 = vweird.f32 %v8104
  %vm8219 = vweird.f32 %v8212
  %vm8220 = vmor %vm8218, %vm8219
  %v8221 = vsel %vm8220, %v8212, %v8217
  %v8222 = vrsqrt.pop %v8105
  %v8223 = vmul.f32 %v8222, %v8105
  %v8224 = vmul.f32 %v8223, %v8222
  %v8225 = vmul.f32 0.5, %v8224
  %v8226 = vsub.f32 1.5, %v8225
  %v8227 = vmul.f32 %v8222, %v8226
  %vm8228 = vweird.f32 %v8105
  %vm8229 = vweird.f32 %v8222
  %vm8230 = vmor %vm8228, %vm8229
  %v8231 = vsel %vm8230, %v8222, %v8227
  %v8232 = vrsqrt.pop %v8106
  %v8233 = vmul.f32 %v8232, %v8106
  %v8234 = vmul.f32 %v8233, %v8232
  %v8235 = vmul.f32 0.5, %v8234
  %v8236 = vsub.f32 1.5, %v8235
  %v8237 = vmul.f32 %v8232, %v8236
  %vm8238 = vweird.f32 %v8106
  %vm8239 = vweird.f32 %v8232
  %vm8240 = vmor %vm8238, %vm8239
  %v8241 = vsel %vm8240, %v8232, %v8237
  %v8242 = vrsqrt.pop %v8107
  %v8243 = vmul.f32 %v8242, %v8107
  %v8244 = vmul.f32 %v8243, %v8242
  %v8245 = vmul.f32 0.5, %v8244
  %v8246 = vsub.f32 1.5, %v8245
  %v8247 = vmul.f32 %v8242, %v8246
  %vm8248 = vweird.f32 %v8107
  %vm8249 = vweird.f32 %v8242
  %vm8250 = vmor %vm8248, %vm8249
  %v8251 = vsel %vm8250, %v8242, %v8247
  %v8252 = vrsqrt.pop %v8108
  %v8253 = vmul.f32 %v8252, %v8108
  %v8254 = vmul.f32 %v8253, %v8252
  %v8255 = vmul.f32 0.5, %v8254
  %v8256 = vsub.f32 1.5, %v8255
  %v8257 = vmul.f32 %v8252, %v8256
  %vm8258 = vweird.f32 %v8108
  %vm8259 = vweird.f32 %v8252
  %vm8260 = vmor %vm8258, %vm8259
  %v8261 = vsel %vm8260, %v8252, %v8257
  %v8262 = vrsqrt.pop %v8109
  %v8263 = vmul.f32 %v8262, %v8109
  %v8264 = vmul.f32 %v8263, %v8262
  %v8265 = vmul.f32 0.5, %v8264
  %v8266 = vsub.f32 1.5, %v8265
  %v8267 = vmul.f32 %v8262, %v8266
  %vm8268 = vweird.f32 %v8109
  %vm8269 = vweird.f32 %v8262
  %vm8270 = vmor %vm8268, %vm8269
  %v8271 = vsel %vm8270, %v8262, %v8267
  %v8272 = vrsqrt.pop %v8110
  %v8273 = vmul.f32 %v8272, %v8110
  %v8274 = vmul.f32 %v8273, %v8272
  %v8275 = vmul.f32 0.5, %v8274
  %v8276 = vsub.f32 1.5, %v8275
  %v8277 = vmul.f32 %v8272, %v8276
  %vm8278 = vweird.f32 %v8110
  %vm8279 = vweird.f32 %v8272
  %vm8280 = vmor %vm8278, %vm8279
  %v8281 = vsel %vm8280, %v8272, %v8277
  %v8282 = vrsqrt.pop %v8111
  %v8283 = vmul.f32 %v8282, %v8111
  %v8284 = vmul.f32 %v8283, %v8282
  %v8285 = vmul.f32 0.5, %v8284
  %v8286 = vsub.f32 1.5, %v8285
  %v8287 = vmul.f32 %v8282, %v8286
  %vm8288 = vweird.f32 %v8111
  %vm8289 = vweird.f32 %v8282
  %vm8290 = vmor %vm8288, %vm8289
  %v8291 = vsel %vm8290, %v8282, %v8287
  %v8292 = vmul.f32 %v8076, %v8121
  %v8293 = vmul.f32 %v8077, %v8131
  %v8294 = vmul.f32 %v8078, %v8141
  %v8295 = vmul.f32 %v8079, %v8151
  %v8296 = vmul.f32 %v8080, %v8161
  %v8297 = vmul.f32 %v8081, %v8171
  %v8298 = vmul.f32 %v8082, %v8181
  %v8299 = vmul.f32 %v8083, %v8191
  %v8300 = vmul.f32 %v8084, %v8201
  %v8301 = vmul.f32 %v8085, %v8211
  %v8302 = vmul.f32 %v8086, %v8221
  %v8303 = vmul.f32 %v8087, %v8231
  %v8304 = vmul.f32 %v8088, %v8241
  %v8305 = vmul.f32 %v8089, %v8251
  %v8306 = vmul.f32 %v8090, %v8261
  %v8307 = vmul.f32 %v8091, %v8271
  %v8308 = vmul.f32 %v8092, %v8281
  %v8309 = vmul.f32 %v8093, %v8291
  %v8310 = vperm.slane %v4504, 3
  %v8311 = vmul.f32 %v8292, %v8310
  %v8312 = vmul.f32 %v8293, %v8310
  %v8313 = vmul.f32 %v8294, %v8310
  %v8314 = vmul.f32 %v8295, %v8310
  %v8315 = vmul.f32 %v8296, %v8310
  %v8316 = vmul.f32 %v8297, %v8310
  %v8317 = vmul.f32 %v8298, %v8310
  %v8318 = vmul.f32 %v8299, %v8310
  %v8319 = vmul.f32 %v8300, %v8310
  %v8320 = vmul.f32 %v8301, %v8310
  %v8321 = vmul.f32 %v8302, %v8310
  %v8322 = vmul.f32 %v8303, %v8310
  %v8323 = vmul.f32 %v8304, %v8310
  %v8324 = vmul.f32 %v8305, %v8310
  %v8325 = vmul.f32 %v8306, %v8310
  %v8326 = vmul.f32 %v8307, %v8310
  %v8327 = vmul.f32 %v8308, %v8310
  %v8328 = vmul.f32 %v8309, %v8310
  %v8329 = vperm.slane %v7863, 4
  %v8330 = vadd.f32 %v8311, %v8329
  %v8331 = vadd.f32 %v8312, %v8329
  %v8332 = vadd.f32 %v8313, %v8329
  %v8333 = vadd.f32 %v8314, %v8329
  %v8334 = vadd.f32 %v8315, %v8329
  %v8335 = vadd.f32 %v8316, %v8329
  %v8336 = vadd.f32 %v8317, %v8329
  %v8337 = vadd.f32 %v8318, %v8329
  %v8338 = vadd.f32 %v8319, %v8329
  %v8339 = vadd.f32 %v8320, %v8329
  %v8340 = vadd.f32 %v8321, %v8329
  %v8341 = vadd.f32 %v8322, %v8329
  %v8342 = vadd.f32 %v8323, %v8329
  %v8343 = vadd.f32 %v8324, %v8329
  %v8344 = vadd.f32 %v8325, %v8329
  %v8345 = vadd.f32 %v8326, %v8329
  %v8346 = vadd.f32 %v8327, %v8329
  %v8347 = vadd.f32 %v8328, %v8329
  %v8348 = vpack.c.bf16 %v8331, %v8330
  %v8349 = vpack.c.bf16 %v8333, %v8332
  %v8350 = vpack.c.bf16 %v8335, %v8334
  %v8351 = vpack.c.bf16 %v8337, %v8336
  %v8352 = vpack.c.bf16 %v8339, %v8338
  %v8353 = vpack.c.bf16 %v8341, %v8340
  %v8354 = vpack.c.bf16 %v8343, %v8342
  %v8355 = vpack.c.bf16 %v8345, %v8344
  %v8356 = vpack.c.bf16 %v8347, %v8346
  %v8357 = vperm.slane %v7863, 5
  %v8362 = vunpack.c.l.b16 %v7864
  %v8363 = vunpack.c.l.b16 %v7865
  %v8364 = vunpack.c.l.b16 %v7866
  %v8365 = vunpack.c.l.b16 %v7867
  %v8366 = vpack.c.b16 %v8363, %v8362
  %v8367 = vpack.c.b16 %v8365, %v8364
  %v8371 = vsel %vm238, %v8348, 0
  %v8374 = vsel %vm238, %v8349, 0
  %v8377 = vsel %vm238, %v8350, 0
  %v8380 = vsel %vm238, %v8351, 0
  %v8383 = vsel %vm238, %v8352, 0
  %v8386 = vsel %vm238, %v8353, 0
  %v8389 = vsel %vm238, %v8354, 0
  %v8392 = vsel %vm238, %v8355, 0
  %v8395 = vsel %vm238, %v8356, 0
  %8397 = vmatpush.bf16.msra.mxu0 0
  %8398 = vmatpush.bf16.msra.mxu0 0
  %8399 = vmatpush.bf16.msra.mxu0 0
  %8400 = vmatpush.bf16.msra.mxu0 0
  %8401 = vmatpush.bf16.msra.mxu0 0
  %8402 = vmatpush.bf16.msra.mxu0 0
  %8403 = vmatpush.bf16.msra.mxu0 %v8367
  %8404 = vmatpush.bf16.msra.mxu0 %v8366
  %8405 = vmatmul.bf16.gmra.mxu0 %v8371
  %v8406 = vpop.f32.mrf.mxu0
  %v8407 = vadd.f32 %v8357, %v8406
  %v8408 = vpop.f32.mrf.mxu0
  %v8409 = vadd.f32 %v8357, %v8408
  %8410 = vmatmul.bf16.gmra.mxu0 %v8374
  %v8411 = vpop.f32.mrf.mxu0
  %v8412 = vadd.f32 %v8357, %v8411
  %v8413 = vpop.f32.mrf.mxu0
  %v8414 = vadd.f32 %v8357, %v8413
  %8415 = vmatmul.bf16.gmra.mxu0 %v8377
  %v8416 = vpop.f32.mrf.mxu0
  %v8417 = vadd.f32 %v8357, %v8416
  %v8418 = vpop.f32.mrf.mxu0
  %v8419 = vadd.f32 %v8357, %v8418
  %8420 = vmatmul.bf16.gmra.mxu0 %v8380
  %v8421 = vpop.f32.mrf.mxu0
  %v8422 = vadd.f32 %v8357, %v8421
  %v8423 = vpop.f32.mrf.mxu0
  %v8424 = vadd.f32 %v8357, %v8423
  %8425 = vmatmul.bf16.gmra.mxu0 %v8383
  %v8426 = vpop.f32.mrf.mxu0
  %v8427 = vadd.f32 %v8357, %v8426
  %v8428 = vpop.f32.mrf.mxu0
  %v8429 = vadd.f32 %v8357, %v8428
  %8430 = vmatmul.bf16.gmra.mxu0 %v8386
  %v8431 = vpop.f32.mrf.mxu0
  %v8432 = vadd.f32 %v8357, %v8431
  %v8433 = vpop.f32.mrf.mxu0
  %v8434 = vadd.f32 %v8357, %v8433
  %8435 = vmatmul.bf16.gmra.mxu0 %v8389
  %v8436 = vpop.f32.mrf.mxu0
  %v8437 = vadd.f32 %v8357, %v8436
  %v8438 = vpop.f32.mrf.mxu0
  %v8439 = vadd.f32 %v8357, %v8438
  %8440 = vmatmul.bf16.gmra.mxu0 %v8392
  %v8441 = vpop.f32.mrf.mxu0
  %v8442 = vadd.f32 %v8357, %v8441
  %v8443 = vpop.f32.mrf.mxu0
  %v8444 = vadd.f32 %v8357, %v8443
  %8445 = vmatmul.bf16.gmra.mxu0 %v8395
  %v8446 = vpop.f32.mrf.mxu0
  %v8447 = vadd.f32 %v8357, %v8446
  %v8448 = vpop.f32.mrf.mxu0
  %v8449 = vadd.f32 %v8357, %v8448
  %8450 = vdwg.mxu0
  %v8451 = vmul.f32 %v8407, 0.5
  %v8452 = vmul.f32 %v8409, 0.5
  %v8453 = vmul.f32 %v8412, 0.5
  %v8454 = vmul.f32 %v8414, 0.5
  %v8455 = vmul.f32 %v8417, 0.5
  %v8456 = vmul.f32 %v8419, 0.5
  %v8457 = vmul.f32 %v8422, 0.5
  %v8458 = vmul.f32 %v8424, 0.5
  %v8459 = vmul.f32 %v8427, 0.5
  %v8460 = vmul.f32 %v8429, 0.5
  %v8461 = vmul.f32 %v8432, 0.5
  %v8462 = vmul.f32 %v8434, 0.5
  %v8463 = vmul.f32 %v8437, 0.5
  %v8464 = vmul.f32 %v8439, 0.5
  %v8465 = vmul.f32 %v8442, 0.5
  %v8466 = vmul.f32 %v8444, 0.5
  %v8467 = vmul.f32 %v8447, 0.5
  %v8468 = vmul.f32 %v8449, 0.5
  %v8469 = vmul.f32 %v8407, 0.044715
  %v8470 = vmul.f32 %v8409, 0.044715
  %v8471 = vmul.f32 %v8412, 0.044715
  %v8472 = vmul.f32 %v8414, 0.044715
  %v8473 = vmul.f32 %v8417, 0.044715
  %v8474 = vmul.f32 %v8419, 0.044715
  %v8475 = vmul.f32 %v8422, 0.044715
  %v8476 = vmul.f32 %v8424, 0.044715
  %v8477 = vmul.f32 %v8427, 0.044715
  %v8478 = vmul.f32 %v8429, 0.044715
  %v8479 = vmul.f32 %v8432, 0.044715
  %v8480 = vmul.f32 %v8434, 0.044715
  %v8481 = vmul.f32 %v8437, 0.044715
  %v8482 = vmul.f32 %v8439, 0.044715
  %v8483 = vmul.f32 %v8442, 0.044715
  %v8484 = vmul.f32 %v8444, 0.044715
  %v8485 = vmul.f32 %v8447, 0.044715
  %v8486 = vmul.f32 %v8449, 0.044715
  %v8487 = vmul.f32 %v8469, %v8407
  %v8488 = vmul.f32 %v8470, %v8409
  %v8489 = vmul.f32 %v8471, %v8412
  %v8490 = vmul.f32 %v8472, %v8414
  %v8491 = vmul.f32 %v8473, %v8417
  %v8492 = vmul.f32 %v8474, %v8419
  %v8493 = vmul.f32 %v8475, %v8422
  %v8494 = vmul.f32 %v8476, %v8424
  %v8495 = vmul.f32 %v8477, %v8427
  %v8496 = vmul.f32 %v8478, %v8429
  %v8497 = vmul.f32 %v8479, %v8432
  %v8498 = vmul.f32 %v8480, %v8434
  %v8499 = vmul.f32 %v8481, %v8437
  %v8500 = vmul.f32 %v8482, %v8439
  %v8501 = vmul.f32 %v8483, %v8442
  %v8502 = vmul.f32 %v8484, %v8444
  %v8503 = vmul.f32 %v8485, %v8447
  %v8504 = vmul.f32 %v8486, %v8449
  %v8505 = vmul.f32 %v8487, %v8407
  %v8506 = vmul.f32 %v8488, %v8409
  %v8507 = vmul.f32 %v8489, %v8412
  %v8508 = vmul.f32 %v8490, %v8414
  %v8509 = vmul.f32 %v8491, %v8417
  %v8510 = vmul.f32 %v8492, %v8419
  %v8511 = vmul.f32 %v8493, %v8422
  %v8512 = vmul.f32 %v8494, %v8424
  %v8513 = vmul.f32 %v8495, %v8427
  %v8514 = vmul.f32 %v8496, %v8429
  %v8515 = vmul.f32 %v8497, %v8432
  %v8516 = vmul.f32 %v8498, %v8434
  %v8517 = vmul.f32 %v8499, %v8437
  %v8518 = vmul.f32 %v8500, %v8439
  %v8519 = vmul.f32 %v8501, %v8442
  %v8520 = vmul.f32 %v8502, %v8444
  %v8521 = vmul.f32 %v8503, %v8447
  %v8522 = vmul.f32 %v8504, %v8449
  %v8523 = vadd.f32 %v8407, %v8505
  %v8524 = vadd.f32 %v8409, %v8506
  %v8525 = vadd.f32 %v8412, %v8507
  %v8526 = vadd.f32 %v8414, %v8508
  %v8527 = vadd.f32 %v8417, %v8509
  %v8528 = vadd.f32 %v8419, %v8510
  %v8529 = vadd.f32 %v8422, %v8511
  %v8530 = vadd.f32 %v8424, %v8512
  %v8531 = vadd.f32 %v8427, %v8513
  %v8532 = vadd.f32 %v8429, %v8514
  %v8533 = vadd.f32 %v8432, %v8515
  %v8534 = vadd.f32 %v8434, %v8516
  %v8535 = vadd.f32 %v8437, %v8517
  %v8536 = vadd.f32 %v8439, %v8518
  %v8537 = vadd.f32 %v8442, %v8519
  %v8538 = vadd.f32 %v8444, %v8520
  %v8539 = vadd.f32 %v8447, %v8521
  %v8540 = vadd.f32 %v8449, %v8522
  %v8541 = vmul.f32 %v8523, 0.7978846
  %v8542 = vmul.f32 %v8524, 0.7978846
  %v8543 = vmul.f32 %v8525, 0.7978846
  %v8544 = vmul.f32 %v8526, 0.7978846
  %v8545 = vmul.f32 %v8527, 0.7978846
  %v8546 = vmul.f32 %v8528, 0.7978846
  %v8547 = vmul.f32 %v8529, 0.7978846
  %v8548 = vmul.f32 %v8530, 0.7978846
  %v8549 = vmul.f32 %v8531, 0.7978846
  %v8550 = vmul.f32 %v8532, 0.7978846
  %v8551 = vmul.f32 %v8533, 0.7978846
  %v8552 = vmul.f32 %v8534, 0.7978846
  %v8553 = vmul.f32 %v8535, 0.7978846
  %v8554 = vmul.f32 %v8536, 0.7978846
  %v8555 = vmul.f32 %v8537, 0.7978846
  %v8556 = vmul.f32 %v8538, 0.7978846
  %v8557 = vmul.f32 %v8539, 0.7978846
  %v8558 = vmul.f32 %v8540, 0.7978846
  %v8559 = vtanh.pop %v8541
  %v8560 = vtanh.pop %v8542
  %v8561 = vtanh.pop %v8543
  %v8562 = vtanh.pop %v8544
  %v8563 = vtanh.pop %v8545
  %v8564 = vtanh.pop %v8546
  %v8565 = vtanh.pop %v8547
  %v8566 = vtanh.pop %v8548
  %v8567 = vtanh.pop %v8549
  %v8568 = vtanh.pop %v8550
  %v8569 = vtanh.pop %v8551
  %v8570 = vtanh.pop %v8552
  %v8571 = vtanh.pop %v8553
  %v8572 = vtanh.pop %v8554
  %v8573 = vtanh.pop %v8555
  %v8574 = vtanh.pop %v8556
  %v8575 = vtanh.pop %v8557
  %v8576 = vtanh.pop %v8558
  %v8577 = vadd.f32 %v8559, 1.0
  %v8578 = vadd.f32 %v8560, 1.0
  %v8579 = vadd.f32 %v8561, 1.0
  %v8580 = vadd.f32 %v8562, 1.0
  %v8581 = vadd.f32 %v8563, 1.0
  %v8582 = vadd.f32 %v8564, 1.0
  %v8583 = vadd.f32 %v8565, 1.0
  %v8584 = vadd.f32 %v8566, 1.0
  %v8585 = vadd.f32 %v8567, 1.0
  %v8586 = vadd.f32 %v8568, 1.0
  %v8587 = vadd.f32 %v8569, 1.0
  %v8588 = vadd.f32 %v8570, 1.0
  %v8589 = vadd.f32 %v8571, 1.0
  %v8590 = vadd.f32 %v8572, 1.0
  %v8591 = vadd.f32 %v8573, 1.0
  %v8592 = vadd.f32 %v8574, 1.0
  %v8593 = vadd.f32 %v8575, 1.0
  %v8594 = vadd.f32 %v8576, 1.0
  %v8595 = vmul.f32 %v8451, %v8577
  %v8596 = vmul.f32 %v8452, %v8578
  %v8597 = vmul.f32 %v8453, %v8579
  %v8598 = vmul.f32 %v8454, %v8580
  %v8599 = vmul.f32 %v8455, %v8581
  %v8600 = vmul.f32 %v8456, %v8582
  %v8601 = vmul.f32 %v8457, %v8583
  %v8602 = vmul.f32 %v8458, %v8584
  %v8603 = vmul.f32 %v8459, %v8585
  %v8604 = vmul.f32 %v8460, %v8586
  %v8605 = vmul.f32 %v8461, %v8587
  %v8606 = vmul.f32 %v8462, %v8588
  %v8607 = vmul.f32 %v8463, %v8589
  %v8608 = vmul.f32 %v8464, %v8590
  %v8609 = vmul.f32 %v8465, %v8591
  %v8610 = vmul.f32 %v8466, %v8592
  %v8611 = vmul.f32 %v8467, %v8593
  %v8612 = vmul.f32 %v8468, %v8594
  %v8613 = vpack.c.bf16 %v8596, %v8595
  %v8614 = vpack.c.bf16 %v8598, %v8597
  %v8615 = vpack.c.bf16 %v8600, %v8599
  %v8616 = vpack.c.bf16 %v8602, %v8601
  %v8617 = vpack.c.bf16 %v8604, %v8603
  %v8618 = vpack.c.bf16 %v8606, %v8605
  %v8619 = vpack.c.bf16 %v8608, %v8607
  %v8620 = vpack.c.bf16 %v8610, %v8609
  %v8621 = vpack.c.bf16 %v8612, %v8611
  %v8622 = vperm.slane %v7877, 6
  %v8631 = vunpack.c.l.b16 %v7868
  %v8632 = vunpack.c.l.b16 %v7869
  %v8633 = vunpack.c.l.b16 %v7870
  %v8634 = vunpack.c.l.b16 %v7871
  %v8635 = vunpack.c.l.b16 %v7872
  %v8636 = vunpack.c.l.b16 %v7873
  %v8637 = vunpack.c.l.b16 %v7874
  %v8638 = vunpack.c.l.b16 %v7875
  %v8639 = vpack.c.b16 %v8632, %v8631
  %v8640 = vpack.c.b16 %v8634, %v8633
  %v8641 = vpack.c.b16 %v8636, %v8635
  %v8642 = vpack.c.b16 %v8638, %v8637
  %v8648 = vsel %vm4393, %v8613, 0
  %v8651 = vsel %vm4393, %v8614, 0
  %v8654 = vsel %vm4393, %v8615, 0
  %v8657 = vsel %vm4393, %v8616, 0
  %v8660 = vsel %vm4393, %v8617, 0
  %v8663 = vsel %vm4393, %v8618, 0
  %v8666 = vsel %vm4393, %v8619, 0
  %v8669 = vsel %vm4393, %v8620, 0
  %v8672 = vsel %vm4393, %v8621, 0
  %8674 = vmatpush.bf16.msra.mxu0 0
  %8675 = vmatpush.bf16.msra.mxu0 0
  %8676 = vmatpush.bf16.msra.mxu0 0
  %8677 = vmatpush.bf16.msra.mxu0 0
  %8678 = vmatpush.bf16.msra.mxu0 %v8642
  %8679 = vmatpush.bf16.msra.mxu0 %v8641
  %8680 = vmatpush.bf16.msra.mxu0 %v8640
  %8681 = vmatpush.bf16.msra.mxu0 %v8639
  %8682 = vmatmul.bf16.gmra.mxu0 %v8648
  %v8683 = vpop.f32.mrf.mxu0
  %v8684 = vadd.f32 %v8622, %v8683
  %v8685 = vpop.f32.mrf.mxu0
  %v8686 = vadd.f32 %v8622, %v8685
  %8687 = vmatmul.bf16.gmra.mxu0 %v8651
  %v8688 = vpop.f32.mrf.mxu0
  %v8689 = vadd.f32 %v8622, %v8688
  %v8690 = vpop.f32.mrf.mxu0
  %v8691 = vadd.f32 %v8622, %v8690
  %8692 = vmatmul.bf16.gmra.mxu0 %v8654
  %v8693 = vpop.f32.mrf.mxu0
  %v8694 = vadd.f32 %v8622, %v8693
  %v8695 = vpop.f32.mrf.mxu0
  %v8696 = vadd.f32 %v8622, %v8695
  %8697 = vmatmul.bf16.gmra.mxu0 %v8657
  %v8698 = vpop.f32.mrf.mxu0
  %v8699 = vadd.f32 %v8622, %v8698
  %v8700 = vpop.f32.mrf.mxu0
  %v8701 = vadd.f32 %v8622, %v8700
  %8702 = vmatmul.bf16.gmra.mxu0 %v8660
  %v8703 = vpop.f32.mrf.mxu0
  %v8704 = vadd.f32 %v8622, %v8703
  %v8705 = vpop.f32.mrf.mxu0
  %v8706 = vadd.f32 %v8622, %v8705
  %8707 = vmatmul.bf16.gmra.mxu0 %v8663
  %v8708 = vpop.f32.mrf.mxu0
  %v8709 = vadd.f32 %v8622, %v8708
  %v8710 = vpop.f32.mrf.mxu0
  %v8711 = vadd.f32 %v8622, %v8710
  %8712 = vmatmul.bf16.gmra.mxu0 %v8666
  %v8713 = vpop.f32.mrf.mxu0
  %v8714 = vadd.f32 %v8622, %v8713
  %v8715 = vpop.f32.mrf.mxu0
  %v8716 = vadd.f32 %v8622, %v8715
  %8717 = vmatmul.bf16.gmra.mxu0 %v8669
  %v8718 = vpop.f32.mrf.mxu0
  %v8719 = vadd.f32 %v8622, %v8718
  %v8720 = vpop.f32.mrf.mxu0
  %v8721 = vadd.f32 %v8622, %v8720
  %8722 = vmatmul.bf16.gmra.mxu0 %v8672
  %v8723 = vpop.f32.mrf.mxu0
  %v8724 = vadd.f32 %v8622, %v8723
  %v8725 = vpop.f32.mrf.mxu0
  %v8726 = vadd.f32 %v8622, %v8725
  %8727 = vdwg.mxu0
  %v8728 = vadd.f32 %v7844, %v8684
  %v8729 = vadd.f32 %v7845, %v8686
  %v8730 = vadd.f32 %v7846, %v8689
  %v8731 = vadd.f32 %v7847, %v8691
  %v8732 = vadd.f32 %v7848, %v8694
  %v8733 = vadd.f32 %v7849, %v8696
  %v8734 = vadd.f32 %v7850, %v8699
  %v8735 = vadd.f32 %v7851, %v8701
  %v8736 = vadd.f32 %v7852, %v8704
  %v8737 = vadd.f32 %v7853, %v8706
  %v8738 = vadd.f32 %v7854, %v8709
  %v8739 = vadd.f32 %v7855, %v8711
  %v8740 = vadd.f32 %v7856, %v8714
  %v8741 = vadd.f32 %v7857, %v8716
  %v8742 = vadd.f32 %v7858, %v8719
  %v8743 = vadd.f32 %v7859, %v8721
  %v8744 = vadd.f32 %v7860, %v8724
  %v8745 = vadd.f32 %v7861, %v8726
  %v8746 = vld [vmem:[%s2 + $0x18] sm:$0xf]
  %v8747 = vld [vmem:[%s2 + $0x1c] sm:$0xf]
  %v8748 = vld [vmem:[%s2 + $0x20] sm:$0xf]
  %v8749 = vld [vmem:[%s2 + $0x24] sm:$0xf]
  %v8750 = vpack.c.bf16 %v8729, %v8728
  %v8751 = vpack.c.bf16 %v8731, %v8730
  %v8752 = vpack.c.bf16 %v8733, %v8732
  %v8753 = vpack.c.bf16 %v8735, %v8734
  %v8754 = vpack.c.bf16 %v8737, %v8736
  %v8755 = vpack.c.bf16 %v8739, %v8738
  %v8756 = vpack.c.bf16 %v8741, %v8740
  %v8757 = vpack.c.bf16 %v8743, %v8742
  %v8758 = vpack.c.bf16 %v8745, %v8744
  %v8759 = vperm.slane %v225, 0
  %v8764 = vunpack.c.l.b16 %v8746
  %v8765 = vunpack.c.l.b16 %v8747
  %v8766 = vunpack.c.l.b16 %v8748
  %v8767 = vunpack.c.l.b16 %v8749
  %v8768 = vpack.c.b16 %v8765, %v8764
  %v8769 = vpack.c.b16 %v8767, %v8766
  %v8773 = vsel %vm238, %v8750, 0
  %v8776 = vsel %vm238, %v8751, 0
  %v8779 = vsel %vm238, %v8752, 0
  %v8782 = vsel %vm238, %v8753, 0
  %v8785 = vsel %vm238, %v8754, 0
  %v8788 = vsel %vm238, %v8755, 0
  %v8791 = vsel %vm238, %v8756, 0
  %v8794 = vsel %vm238, %v8757, 0
  %v8797 = vsel %vm238, %v8758, 0
  %8799 = vmatpush.bf16.msra.mxu0 0
  %8800 = vmatpush.bf16.msra.mxu0 0
  %8801 = vmatpush.bf16.msra.mxu0 0
  %8802 = vmatpush.bf16.msra.mxu0 0
  %8803 = vmatpush.bf16.msra.mxu0 0
  %8804 = vmatpush.bf16.msra.mxu0 0
  %8805 = vmatpush.bf16.msra.mxu0 %v8769
  %8806 = vmatpush.bf16.msra.mxu0 %v8768
  %8807 = vmatmul.bf16.gmra.mxu0 %v8773
  %v8808 = vpop.f32.mrf.mxu0
  %v8809 = vadd.f32 %v8759, %v8808
  %v8810 = vpop.f32.mrf.mxu0
  %v8811 = vadd.f32 %v8759, %v8810
  %8812 = vmatmul.bf16.gmra.mxu0 %v8776
  %v8813 = vpop.f32.mrf.mxu0
  %v8814 = vadd.f32 %v8759, %v8813
  %v8815 = vpop.f32.mrf.mxu0
  %v8816 = vadd.f32 %v8759, %v8815
  %8817 = vmatmul.bf16.gmra.mxu0 %v8779
  %v8818 = vpop.f32.mrf.mxu0
  %v8819 = vadd.f32 %v8759, %v8818
  %v8820 = vpop.f32.mrf.mxu0
  %v8821 = vadd.f32 %v8759, %v8820
  %8822 = vmatmul.bf16.gmra.mxu0 %v8782
  %v8823 = vpop.f32.mrf.mxu0
  %v8824 = vadd.f32 %v8759, %v8823
  %v8825 = vpop.f32.mrf.mxu0
  %v8826 = vadd.f32 %v8759, %v8825
  %8827 = vmatmul.bf16.gmra.mxu0 %v8785
  %v8828 = vpop.f32.mrf.mxu0
  %v8829 = vadd.f32 %v8759, %v8828
  %v8830 = vpop.f32.mrf.mxu0
  %v8831 = vadd.f32 %v8759, %v8830
  %8832 = vmatmul.bf16.gmra.mxu0 %v8788
  %v8833 = vpop.f32.mrf.mxu0
  %v8834 = vadd.f32 %v8759, %v8833
  %v8835 = vpop.f32.mrf.mxu0
  %v8836 = vadd.f32 %v8759, %v8835
  %8837 = vmatmul.bf16.gmra.mxu0 %v8791
  %v8838 = vpop.f32.mrf.mxu0
  %v8839 = vadd.f32 %v8759, %v8838
  %v8840 = vpop.f32.mrf.mxu0
  %v8841 = vadd.f32 %v8759, %v8840
  %8842 = vmatmul.bf16.gmra.mxu0 %v8794
  %v8843 = vpop.f32.mrf.mxu0
  %v8844 = vadd.f32 %v8759, %v8843
  %v8845 = vpop.f32.mrf.mxu0
  %v8846 = vadd.f32 %v8759, %v8845
  %8847 = vmatmul.bf16.gmra.mxu0 %v8797
  %v8848 = vpop.f32.mrf.mxu0
  %v8849 = vadd.f32 %v8759, %v8848
  %v8850 = vpop.f32.mrf.mxu0
  %v8851 = vadd.f32 %v8759, %v8850
  %8852 = vdwg.mxu0
  %8853 = vst [vmem:[%s4] sm:$0xff] %v8809
  %8854 = vst [vmem:[%s4 + $0x8] sm:$0xff] %v8811
  %8855 = vst [vmem:[%s4 + $0x10] sm:$0xff] %v8814
  %8856 = vst [vmem:[%s4 + $0x18] sm:$0xff] %v8816
  %8857 = vst [vmem:[%s4 + $0x20] sm:$0xff] %v8819
  %8858 = vst [vmem:[%s4 + $0x28] sm:$0xff] %v8821
  %8859 = vst [vmem:[%s4 + $0x30] sm:$0xff] %v8824
  %8860 = vst [vmem:[%s4 + $0x38] sm:$0xff] %v8826
  %8861 = vst [vmem:[%s4 + $0x40] sm:$0xff] %v8829
  %8862 = vst [vmem:[%s4 + $0x48] sm:$0xff] %v8831
  %8863 = vst [vmem:[%s4 + $0x50] sm:$0xff] %v8834
  %8864 = vst [vmem:[%s4 + $0x58] sm:$0xff] %v8836
  %8865 = vst [vmem:[%s4 + $0x60] sm:$0xff] %v8839
  %8866 = vst [vmem:[%s4 + $0x68] sm:$0xff] %v8841
  %8867 = vst [vmem:[%s4 + $0x70] sm:$0xff] %v8844
  %8868 = vst [vmem:[%s4 + $0x78] sm:$0xff] %v8846
  %8869 = vst [vmem:[%s4 + $0x80] sm:$0xff] %v8849
  %8870 = vst [vmem:[%s4 + $0x88] sm:$0xff] %v8851
  // Predicated region
  $region18: #{exemplar_transformer_forward.1} parent=0 // pred_check
    _
  $region19: #{exemplar_transformer_forward.1} parent=0 // pred_check_branch
    %8872 = sbr.rel (0) target = $region21
  $region20: #{exemplar_transformer_forward.1} parent=0 // pred_region
    _
  $region21: #{exemplar_transformer_forward.1} parent=0 // pred_fallthru
    _
  // Predicated region
  $region22: #{exemplar_transformer_forward.1} parent=0 // pred_check
    _
  $region23: #{exemplar_transformer_forward.1} parent=0 // pred_check_branch
    %8874 = sbr.rel (0) target = $region25
  $region24: #{exemplar_transformer_forward.1} parent=0 // pred_region
    _
  $region25: #{exemplar_transformer_forward.1} parent=0 // pred_fallthru
    _

</llo_original>
